<compile_context>
chip_gen: v7x
topology: tpu7x:2x2x1
jax: 0.10.0
libtpu: 0.0.40
codegen_flags: <defaults>
</compile_context>

<pallas_src>
import jax
import jax.numpy as jnp
from jax import lax
from jax.experimental import pallas as pl
from jax.experimental.pallas import tpu as pltpu


def _make_kernel(H, W, Hs, Wp, Cp, SHs, S, compute_dtype):
    """Kernel for one (image, H-strip) grid step.

    Slab layout: SHs = Hs + 4 rows (2-row halo per side because two stacked
    3x3 convs need it), flattened to S = SHs * Wp rows of Cp lanes.
    Only slab rows [2, Hs+2) are stored to the output.
    """

    def kernel(x_hbm, col_ref, srow_ref, w1_ref, s1_ref, b1_ref,
               w2_ref, s2_ref, b2_ref, out_ref, xs_ref, xcol_ref, sem):
        n = pl.program_id(0)
        s = pl.program_id(1)

        # Fetch this strip's input rows (+2-row halo each side) from HBM.
        cp = pltpu.make_async_copy(x_hbm.at[n, pl.ds(s * Hs, SHs)], xs_ref, sem)
        cp.start()

        # Index helpers (host-precomputed iotas; no vector div/mod in-kernel).
        col = col_ref[...]                       # (S, 1) lane index within a row
        m_w0 = col == 0                          # left image edge  (dw = -1 taps)
        m_wl = col == W - 1                      # right image edge (dw = +1 taps)
        grow = s * Hs + srow_ref[...] - 2        # global image row of each slab row
        valid = (grow >= 0) & (grow < H) & (col < W)

        cp.wait()
        xf = xs_ref[...].reshape(S, Cp)          # (S, Cp) f32, lane-dense

        def im2col(act):
            # Slab-write the 9 taps of a 3x3 SAME conv into the shared xcol
            # scratch.  dw (+-1) shifts are masked at the true image edges;
            # dh (+-W) shifts need no mask: the 2-row halo keeps every used
            # slab row's neighbours in-slab, and wrap-around only touches the
            # unused slab-edge rows.  Rolls run on the (otherwise idle) XLU.
            zero = jnp.zeros_like(act)
            dw_variants = (
                jnp.where(m_w0, zero, pltpu.roll(act, shift=1, axis=0)),      # dw=-1
                act,                                                          # dw= 0
                jnp.where(m_wl, zero, pltpu.roll(act, shift=S - 1, axis=0)),  # dw=+1
            )
            for dh_i, hshift in enumerate((Wp, 0, S - Wp)):                   # dh=-1,0,+1
                for dw_i, v in enumerate(dw_variants):
                    tap = dh_i * 3 + dw_i
                    vv = v if hshift == 0 else pltpu.roll(v, shift=hshift, axis=0)
                    xcol_ref[:, tap * Cp:(tap + 1) * Cp] = vv.astype(compute_dtype)

        # conv1 -> bn1 -> relu1.  Zero all rows/cols outside the real image so
        # the second conv sees correct SAME zero padding at image borders.
        im2col(xf)
        a1 = jnp.dot(xcol_ref[...], w1_ref[...], preferred_element_type=jnp.float32)
        a1 = jnp.where(valid, jnp.maximum(a1 * s1_ref[...] + b1_ref[...], 0.0), 0.0)

        # conv2 -> bn2 (same xcol scratch, rebuilt from a1).
        im2col(a1)
        a2 = jnp.dot(xcol_ref[...], w2_ref[...], preferred_element_type=jnp.float32)
        a2 = a2 * s2_ref[...] + b2_ref[...]

        # identity residual + relu2 on the Hs output rows of this strip.
        res = xs_ref[2:2 + Hs]                                    # (Hs, Wp, Cp) f32
        mid = a2[2 * Wp:(2 + Hs) * Wp].reshape(Hs, Wp, Cp)
        out_ref[...] = jnp.maximum(mid + res, 0.0).reshape(1, Hs, Wp, Cp)

    return kernel


def residual_block(x_nchw, params, compute_dtype=jnp.float32, strip_rows=None):
    """x_nchw: (N, C, H, W) f32 -> (N, C, H, W) f32.

    compute_dtype: dtype of the MXU matmul operands (f32 or bf16; bf16 is
    valid and faster on v5e/v6e/v7x since only the MXU sees it — accumulation
    and the BN/ReLU/residual path stay f32).
    strip_rows: output rows per grid step (None -> pick so the shared im2col
    scratch stays around ~8 MiB, bounding VMEM independent of H).
    """
    (w1, s1, b1, w2, s2, b2) = params
    N, Cin, H, W = x_nchw.shape
    Cout = w1.shape[-1]
    assert Cin == Cout, "no downsample: in_channels must equal out_channels"
    C = Cin
    Cp = max(128, -(-C // 128) * 128)      # lane-dense channel count
    Wp = -(-W // 8) * 8                    # sublane-aligned row width

    itemsize = jnp.dtype(compute_dtype).itemsize
    if strip_rows is None:
        per_row = Wp * 9 * Cp * itemsize
        strip_rows = max(8, (8 * 1024 * 1024) // per_row - 4)
    Hs = int(min(strip_rows, H))
    n_strips = -(-H // Hs)
    H_pad = n_strips * Hs
    SHs = Hs + 4                           # strip rows + 2-row halo each side
    S = SHs * Wp                           # flattened slab rows

    # NCHW -> NHWC; zero-pad channels to Cp, width to Wp, and height with a
    # 2-row halo (+ bottom padding up to H_pad) so every strip's halo read is
    # in bounds and the conv's zero padding comes for free from padded rows.
    x_nhwc = jnp.transpose(x_nchw, (0, 2, 3, 1))
    x_p = jnp.pad(x_nhwc, ((0, 0), (2, H_pad - H + 2), (0, Wp - W), (0, Cp - C)))

    def pad_weight(w):  # (3,3,C,C) HWIO -> (9*Cp, Cp), tap-major rows
        wp = jnp.pad(w, ((0, 0), (0, 0), (0, Cp - C), (0, Cp - C)))
        return wp.reshape(9 * Cp, Cp).astype(compute_dtype)

    def pad_vec(v):     # (C,) -> (1, Cp) f32 (elementwise path stays f32)
        return jnp.pad(v, (0, Cp - C)).reshape(1, Cp).astype(jnp.float32)

    w1p, w2p = pad_weight(w1), pad_weight(w2)
    s1p, b1p = pad_vec(s1), pad_vec(b1)
    s2p, b2p = pad_vec(s2), pad_vec(b2)

    # Host-precomputed per-slab-position indices (avoids in-kernel int div/mod).
    flat = jnp.arange(S, dtype=jnp.int32)
    col_idx = (flat % Wp).reshape(S, 1)
    srow_idx = (flat // Wp).reshape(S, 1)

    kernel = _make_kernel(H, W, Hs, Wp, Cp, SHs, S, compute_dtype)

    out_p = pl.pallas_call(
        kernel,
        out_shape=jax.ShapeDtypeStruct((N, H_pad, Wp, Cp), jnp.float32),
        grid_spec=pltpu.PrefetchScalarGridSpec(
            num_scalar_prefetch=0,
            grid=(N, n_strips),
            in_specs=[
                pl.BlockSpec(memory_space=pl.ANY),            # x_p (manual halo DMA)
                pl.BlockSpec((S, 1), lambda n, s: (0, 0)),    # col index
                pl.BlockSpec((S, 1), lambda n, s: (0, 0)),    # slab-row index
                pl.BlockSpec((9 * Cp, Cp), lambda n, s: (0, 0)),   # w1 (im2col)
                pl.BlockSpec((1, Cp), lambda n, s: (0, 0)),        # bn1 scale
                pl.BlockSpec((1, Cp), lambda n, s: (0, 0)),        # bn1 bias
                pl.BlockSpec((9 * Cp, Cp), lambda n, s: (0, 0)),   # w2 (im2col)
                pl.BlockSpec((1, Cp), lambda n, s: (0, 0)),        # bn2 scale
                pl.BlockSpec((1, Cp), lambda n, s: (0, 0)),        # bn2 bias
            ],
            out_specs=pl.BlockSpec((1, Hs, Wp, Cp), lambda n, s: (n, s, 0, 0)),
            scratch_shapes=[
                pltpu.VMEM((SHs, Wp, Cp), jnp.float32),   # input strip (+halo)
                pltpu.VMEM((S, 9 * Cp), compute_dtype),   # shared im2col scratch
                pltpu.SemaphoreType.DMA,                  # strip DMA semaphore
            ],
        ),
        compiler_params=pltpu.CompilerParams(
            dimension_semantics=("parallel", "parallel"),
            vmem_limit_bytes=64 * 1024 * 1024,
        ),
    )(x_p, col_idx, srow_idx, w1p, s1p, b1p, w2p, s2p, b2p)

    return jnp.transpose(out_p[:, :H, :W, :C], (0, 3, 1, 2))


def make_params(key, in_channels, out_channels):
    """Deterministic synthetic params; conv bias + eval-mode BN folded to
    per-channel (scale, bias)."""
    ks = jax.random.split(key, 12)
    eps = 1e-5

    def layer(kw, kb, kg, kbeta, kmean, kvar, cin, cout):
        w = jax.random.normal(kw, (3, 3, cin, cout), jnp.float32) * 0.1  # HWIO
        conv_b = jax.random.normal(kb, (cout,), jnp.float32) * 0.1
        gamma = 1.0 + 0.1 * jax.random.normal(kg, (cout,), jnp.float32)
        beta = 0.1 * jax.random.normal(kbeta, (cout,), jnp.float32)
        mean = 0.1 * jax.random.normal(kmean, (cout,), jnp.float32)
        var = 0.5 + jnp.abs(jax.random.normal(kvar, (cout,), jnp.float32))
        scale = gamma / jnp.sqrt(var + eps)
        bias = scale * (conv_b - mean) + beta
        return w, scale, bias

    w1, s1, b1 = layer(*ks[0:6], in_channels, out_channels)
    w2, s2, b2 = layer(*ks[6:12], out_channels, out_channels)
    return (w1, s1, b1, w2, s2, b2)


def reference_forward(x_nchw, params):
    """Pure-JAX reference (same math, NHWC conv via lax)."""
    (w1, s1, b1, w2, s2, b2) = params
    x = jnp.transpose(x_nchw, (0, 2, 3, 1))

    def conv(x, w):
        return lax.conv_general_dilated(
            x, w, window_strides=(1, 1), padding="SAME",
            dimension_numbers=("NHWC", "HWIO", "NHWC"))

    out = jnp.maximum(conv(x, w1) * s1 + b1, 0.0)
    out = conv(out, w2) * s2 + b2
    out = jnp.maximum(out + x, 0.0)
    return jnp.transpose(out, (0, 3, 1, 2))


if __name__ == "__main__":
    key = jax.random.PRNGKey(0)
    k_x, k_p, k_x2 = jax.random.split(key, 3)

    # Small config consistent with the module (single-strip path).
    N, C, H, W = 2, 4, 16, 16
    x = jax.random.normal(k_x, (N, C, H, W), jnp.float32)
    params = make_params(k_p, C, C)
    ref = reference_forward(x, params)

    # f32 matmul operands (strict check).
    out = jax.block_until_ready(residual_block(x, params))
    assert out.shape == (N, C, H, W)
    assert jnp.allclose(out, ref, atol=1e-4, rtol=1e-4), "f32 mismatch vs reference"

    # bf16 matmul operands / f32 accumulation (MXU-native on v5e/v6e/v7x).
    out_bf16 = jax.block_until_ready(
        residual_block(x, params, compute_dtype=jnp.bfloat16))
    assert jnp.allclose(out_bf16, ref, atol=5e-2, rtol=5e-2), "bf16 mismatch vs reference"

    # Odd spatial shape + forced multi-strip path (exercises the 2-row halo,
    # width padding/masks and the bottom H padding).
    N2, C2, H2, W2 = 1, 4, 19, 13
    x2 = jax.random.normal(k_x2, (N2, C2, H2, W2), jnp.float32)
    ref2 = reference_forward(x2, params)
    out2 = jax.block_until_ready(residual_block(x2, params, strip_rows=8))
    assert out2.shape == (N2, C2, H2, W2)
    assert jnp.allclose(out2, ref2, atol=1e-4, rtol=1e-4), "strip mismatch vs reference"

    print("KERNEL_OK")
</pallas_src>

<mosaic_0001>
module attributes {stable_mosaic.version = 11 : i64} {
  func.func @kernel(%arg0: i32, %arg1: i32, %arg2: memref<2x20x16x128xf32, #tpu.memory_space<any>>, %arg3: memref<320x1xi32, #tpu.memory_space<vmem>>, %arg4: memref<320x1xi32, #tpu.memory_space<vmem>>, %arg5: memref<1152x128xf32, #tpu.memory_space<vmem>>, %arg6: memref<1x128xf32, #tpu.memory_space<vmem>>, %arg7: memref<1x128xf32, #tpu.memory_space<vmem>>, %arg8: memref<1152x128xf32, #tpu.memory_space<vmem>>, %arg9: memref<1x128xf32, #tpu.memory_space<vmem>>, %arg10: memref<1x128xf32, #tpu.memory_space<vmem>>, %arg11: memref<1x16x16x128xf32, #tpu.memory_space<vmem>>, %arg12: memref<20x16x128xf32, #tpu.memory_space<vmem>>, %arg13: memref<320x1152xf32, #tpu.memory_space<vmem>>, %arg14: memref<!tpu.dma_semaphore, #tpu.memory_space<semaphore_mem>>) attributes {dimension_semantics = [#tpu.dimension_semantics<parallel>, #tpu.dimension_semantics<parallel>], iteration_bounds = array<i64: 2, 1>, scalar_prefetch = 0 : i64, scratch_operands = 3 : i64, tpu.core_type = #tpu.core_type<tc>, window_params = [{}, {pipeline_mode = #tpu.pipeline_mode<synchronous>, transform_indices = @transform_1, window_bounds = array<i64: 320, 1>}, {pipeline_mode = #tpu.pipeline_mode<synchronous>, transform_indices = @transform_2, window_bounds = array<i64: 320, 1>}, {pipeline_mode = #tpu.pipeline_mode<synchronous>, transform_indices = @transform_3, window_bounds = array<i64: 1152, 128>}, {pipeline_mode = #tpu.pipeline_mode<synchronous>, transform_indices = @transform_4, window_bounds = array<i64: 1, 128>}, {pipeline_mode = #tpu.pipeline_mode<synchronous>, transform_indices = @transform_5, window_bounds = array<i64: 1, 128>}, {pipeline_mode = #tpu.pipeline_mode<synchronous>, transform_indices = @transform_6, window_bounds = array<i64: 1152, 128>}, {pipeline_mode = #tpu.pipeline_mode<synchronous>, transform_indices = @transform_7, window_bounds = array<i64: 1, 128>}, {pipeline_mode = #tpu.pipeline_mode<synchronous>, transform_indices = @transform_8, window_bounds = array<i64: 1, 128>}, {transform_indices = @transform_9, window_bounds = array<i64: 1, 16, 16, 128>}]} {
    %c16_i32 = arith.constant 16 : i32
    %0 = arith.muli %arg1, %c16_i32 : i32
    %c0_i32 = arith.constant 0 : i32
    %c0_i32_0 = arith.constant 0 : i32
    %1 = tpu.memref_slice %arg2[%arg0, %0, %c0_i32, %c0_i32_0] : memref<2x20x16x128xf32, #tpu.memory_space<any>> -> memref<1x20x16x128xf32, #tpu.memory_space<any>>
    %2 = tpu.memref_squeeze %1 : memref<1x20x16x128xf32, #tpu.memory_space<any>> -> memref<20x16x128xf32, #tpu.memory_space<any>>
    tpu.enqueue_dma source(%2 : memref<20x16x128xf32, #tpu.memory_space<any>>) target(%arg12 : memref<20x16x128xf32, #tpu.memory_space<vmem>>) target_semaphore(%arg14 : memref<!tpu.dma_semaphore, #tpu.memory_space<semaphore_mem>>)
    %c0 = arith.constant 0 : index
    %c0_1 = arith.constant 0 : index
    %3 = vector.load %arg3[%c0, %c0_1] : memref<320x1xi32, #tpu.memory_space<vmem>>, vector<320x1xi32>
    %c0_i32_2 = arith.constant 0 : i32
    %4 = vector.broadcast %c0_i32_2 : i32 to vector<320x1xi32>
    %5 = arith.cmpi eq, %3, %4 : vector<320x1xi32>
    %c15_i32 = arith.constant 15 : i32
    %6 = vector.broadcast %c15_i32 : i32 to vector<320x1xi32>
    %7 = arith.cmpi eq, %3, %6 : vector<320x1xi32>
    %c16_i32_3 = arith.constant 16 : i32
    %8 = arith.muli %arg1, %c16_i32_3 : i32
    %c0_4 = arith.constant 0 : index
    %c0_5 = arith.constant 0 : index
    %9 = vector.load %arg4[%c0_4, %c0_5] : memref<320x1xi32, #tpu.memory_space<vmem>>, vector<320x1xi32>
    %10 = vector.broadcast %8 : i32 to vector<320x1xi32>
    %11 = arith.addi %10, %9 : vector<320x1xi32>
    %c2_i32 = arith.constant 2 : i32
    %12 = vector.broadcast %c2_i32 : i32 to vector<320x1xi32>
    %13 = arith.subi %11, %12 : vector<320x1xi32>
    %c0_i32_6 = arith.constant 0 : i32
    %14 = vector.broadcast %c0_i32_6 : i32 to vector<320x1xi32>
    %15 = arith.cmpi sge, %13, %14 : vector<320x1xi32>
    %c16_i32_7 = arith.constant 16 : i32
    %16 = vector.broadcast %c16_i32_7 : i32 to vector<320x1xi32>
    %17 = arith.cmpi slt, %13, %16 : vector<320x1xi32>
    %18 = arith.andi %15, %17 : vector<320x1xi1>
    %c16_i32_8 = arith.constant 16 : i32
    %19 = vector.broadcast %c16_i32_8 : i32 to vector<320x1xi32>
    %20 = arith.cmpi slt, %3, %19 : vector<320x1xi32>
    %21 = arith.andi %18, %20 : vector<320x1xi1>
    %c0_i32_9 = arith.constant 0 : i32
    %c0_i32_10 = arith.constant 0 : i32
    %22 = tpu.memref_slice %arg2[%arg0, %0, %c0_i32_9, %c0_i32_10] : memref<2x20x16x128xf32, #tpu.memory_space<any>> -> memref<1x20x16x128xf32, #tpu.memory_space<any>>
    %23 = tpu.memref_squeeze %22 : memref<1x20x16x128xf32, #tpu.memory_space<any>> -> memref<20x16x128xf32, #tpu.memory_space<any>>
    tpu.wait_dma2 semaphore(%arg14 : memref<!tpu.dma_semaphore, #tpu.memory_space<semaphore_mem>>) src(%23 : memref<20x16x128xf32, #tpu.memory_space<any>>) dst(%arg12 : memref<20x16x128xf32, #tpu.memory_space<vmem>>)
    %c0_11 = arith.constant 0 : index
    %c0_12 = arith.constant 0 : index
    %c0_13 = arith.constant 0 : index
    %24 = vector.load %arg12[%c0_11, %c0_12, %c0_13] : memref<20x16x128xf32, #tpu.memory_space<vmem>>, vector<20x16x128xf32>
    %25 = vector.shape_cast %24 : vector<20x16x128xf32> to vector<320x128xf32>
    %cst = arith.constant 0.000000e+00 : f32
    %26 = vector.broadcast %cst : f32 to vector<320x128xf32>
    %c1_i32 = arith.constant 1 : i32
    %27 = tpu.dynamic_rotate %25 by %c1_i32 dim 0 : vector<320x128xf32>, i32 -> vector<320x128xf32>
    %28 = vector.shape_cast %5 : vector<320x1xi1> to vector<320x1xi1>
    %29 = vector.broadcast %28 : vector<320x1xi1> to vector<320x128xi1>
    %30 = arith.select %29, %26, %27 : vector<320x128xi1>, vector<320x128xf32>
    %c319_i32 = arith.constant 319 : i32
    %31 = tpu.dynamic_rotate %25 by %c319_i32 dim 0 : vector<320x128xf32>, i32 -> vector<320x128xf32>
    %32 = vector.shape_cast %7 : vector<320x1xi1> to vector<320x1xi1>
    %33 = vector.broadcast %32 : vector<320x1xi1> to vector<320x128xi1>
    %34 = arith.select %33, %26, %31 : vector<320x128xi1>, vector<320x128xf32>
    %c16_i32_14 = arith.constant 16 : i32
    %35 = tpu.dynamic_rotate %30 by %c16_i32_14 dim 0 : vector<320x128xf32>, i32 -> vector<320x128xf32>
    %c0_15 = arith.constant 0 : index
    %c0_16 = arith.constant 0 : index
    %36 = vector.load %arg13[%c0_15, %c0_16] : memref<320x1152xf32, #tpu.memory_space<vmem>>, vector<320x128xf32>
    tpu.vector_store %arg13[%c0_15, %c0_16], %35 {strides = array<i32>} : memref<320x1152xf32, #tpu.memory_space<vmem>>, vector<320x128xf32>,
    %c16_i32_17 = arith.constant 16 : i32
    %37 = tpu.dynamic_rotate %25 by %c16_i32_17 dim 0 : vector<320x128xf32>, i32 -> vector<320x128xf32>
    %c0_18 = arith.constant 0 : index
    %c128 = arith.constant 128 : index
    %38 = vector.load %arg13[%c0_18, %c128] : memref<320x1152xf32, #tpu.memory_space<vmem>>, vector<320x128xf32>
    tpu.vector_store %arg13[%c0_18, %c128], %37 {strides = array<i32>} : memref<320x1152xf32, #tpu.memory_space<vmem>>, vector<320x128xf32>,
    %c16_i32_19 = arith.constant 16 : i32
    %39 = tpu.dynamic_rotate %34 by %c16_i32_19 dim 0 : vector<320x128xf32>, i32 -> vector<320x128xf32>
    %c0_20 = arith.constant 0 : index
    %c256 = arith.constant 256 : index
    %40 = vector.load %arg13[%c0_20, %c256] : memref<320x1152xf32, #tpu.memory_space<vmem>>, vector<320x128xf32>
    tpu.vector_store %arg13[%c0_20, %c256], %39 {strides = array<i32>} : memref<320x1152xf32, #tpu.memory_space<vmem>>, vector<320x128xf32>,
    %c0_21 = arith.constant 0 : index
    %c384 = arith.constant 384 : index
    %41 = vector.load %arg13[%c0_21, %c384] : memref<320x1152xf32, #tpu.memory_space<vmem>>, vector<320x128xf32>
    tpu.vector_store %arg13[%c0_21, %c384], %30 {strides = array<i32>} : memref<320x1152xf32, #tpu.memory_space<vmem>>, vector<320x128xf32>,
    %c0_22 = arith.constant 0 : index
    %c512 = arith.constant 512 : index
    %42 = vector.load %arg13[%c0_22, %c512] : memref<320x1152xf32, #tpu.memory_space<vmem>>, vector<320x128xf32>
    tpu.vector_store %arg13[%c0_22, %c512], %25 {strides = array<i32>} : memref<320x1152xf32, #tpu.memory_space<vmem>>, vector<320x128xf32>,
    %c0_23 = arith.constant 0 : index
    %c640 = arith.constant 640 : index
    %43 = vector.load %arg13[%c0_23, %c640] : memref<320x1152xf32, #tpu.memory_space<vmem>>, vector<320x128xf32>
    tpu.vector_store %arg13[%c0_23, %c640], %34 {strides = array<i32>} : memref<320x1152xf32, #tpu.memory_space<vmem>>, vector<320x128xf32>,
    %c304_i32 = arith.constant 304 : i32
    %44 = tpu.dynamic_rotate %30 by %c304_i32 dim 0 : vector<320x128xf32>, i32 -> vector<320x128xf32>
    %c0_24 = arith.constant 0 : index
    %c768 = arith.constant 768 : index
    %45 = vector.load %arg13[%c0_24, %c768] : memref<320x1152xf32, #tpu.memory_space<vmem>>, vector<320x128xf32>
    tpu.vector_store %arg13[%c0_24, %c768], %44 {strides = array<i32>} : memref<320x1152xf32, #tpu.memory_space<vmem>>, vector<320x128xf32>,
    %c304_i32_25 = arith.constant 304 : i32
    %46 = tpu.dynamic_rotate %25 by %c304_i32_25 dim 0 : vector<320x128xf32>, i32 -> vector<320x128xf32>
    %c0_26 = arith.constant 0 : index
    %c896 = arith.constant 896 : index
    %47 = vector.load %arg13[%c0_26, %c896] : memref<320x1152xf32, #tpu.memory_space<vmem>>, vector<320x128xf32>
    tpu.vector_store %arg13[%c0_26, %c896], %46 {strides = array<i32>} : memref<320x1152xf32, #tpu.memory_space<vmem>>, vector<320x128xf32>,
    %c304_i32_27 = arith.constant 304 : i32
    %48 = tpu.dynamic_rotate %34 by %c304_i32_27 dim 0 : vector<320x128xf32>, i32 -> vector<320x128xf32>
    %c0_28 = arith.constant 0 : index
    %c1024 = arith.constant 1024 : index
    %49 = vector.load %arg13[%c0_28, %c1024] : memref<320x1152xf32, #tpu.memory_space<vmem>>, vector<320x128xf32>
    tpu.vector_store %arg13[%c0_28, %c1024], %48 {strides = array<i32>} : memref<320x1152xf32, #tpu.memory_space<vmem>>, vector<320x128xf32>,
    %c0_29 = arith.constant 0 : index
    %c0_30 = arith.constant 0 : index
    %50 = vector.load %arg13[%c0_29, %c0_30] : memref<320x1152xf32, #tpu.memory_space<vmem>>, vector<320x1152xf32>
    %c0_31 = arith.constant 0 : index
    %c0_32 = arith.constant 0 : index
    %51 = vector.load %arg5[%c0_31, %c0_32] : memref<1152x128xf32, #tpu.memory_space<vmem>>, vector<1152x128xf32>
    %cst_33 = arith.constant dense<0.000000e+00> : vector<320x128xf32>
    %52 = tpu.matmul %50, %51, %cst_33 {dimension_numbers = #tpu.dot_dimension_numbers<[1], [0], [0], [1], [0, 0, 1, 1], [], []>} : vector<320x1152xf32>, vector<1152x128xf32>, vector<320x128xf32> -> vector<320x128xf32>
    %c0_34 = arith.constant 0 : index
    %c0_35 = arith.constant 0 : index
    %53 = vector.load %arg6[%c0_34, %c0_35] : memref<1x128xf32, #tpu.memory_space<vmem>>, vector<1x128xf32>
    %54 = vector.broadcast %53 : vector<1x128xf32> to vector<320x128xf32>
    %55 = arith.mulf %52, %54 : vector<320x128xf32>
    %c0_36 = arith.constant 0 : index
    %c0_37 = arith.constant 0 : index
    %56 = vector.load %arg7[%c0_36, %c0_37] : memref<1x128xf32, #tpu.memory_space<vmem>>, vector<1x128xf32>
    %57 = vector.broadcast %56 : vector<1x128xf32> to vector<320x128xf32>
    %58 = arith.addf %55, %57 : vector<320x128xf32>
    %cst_38 = arith.constant 0.000000e+00 : f32
    %59 = vector.broadcast %cst_38 : f32 to vector<320x128xf32>
    %60 = arith.maximumf %58, %59 : vector<320x128xf32>
    %cst_39 = arith.constant 0.000000e+00 : f32
    %61 = vector.shape_cast %21 : vector<320x1xi1> to vector<320x1xi1>
    %62 = vector.broadcast %61 : vector<320x1xi1> to vector<320x128xi1>
    %63 = vector.broadcast %cst_39 : f32 to vector<320x128xf32>
    %64 = arith.select %62, %60, %63 : vector<320x128xi1>, vector<320x128xf32>
    %cst_40 = arith.constant 0.000000e+00 : f32
    %65 = vector.broadcast %cst_40 : f32 to vector<320x128xf32>
    %c1_i32_41 = arith.constant 1 : i32
    %66 = tpu.dynamic_rotate %64 by %c1_i32_41 dim 0 : vector<320x128xf32>, i32 -> vector<320x128xf32>
    %67 = vector.shape_cast %5 : vector<320x1xi1> to vector<320x1xi1>
    %68 = vector.broadcast %67 : vector<320x1xi1> to vector<320x128xi1>
    %69 = arith.select %68, %65, %66 : vector<320x128xi1>, vector<320x128xf32>
    %c319_i32_42 = arith.constant 319 : i32
    %70 = tpu.dynamic_rotate %64 by %c319_i32_42 dim 0 : vector<320x128xf32>, i32 -> vector<320x128xf32>
    %71 = vector.shape_cast %7 : vector<320x1xi1> to vector<320x1xi1>
    %72 = vector.broadcast %71 : vector<320x1xi1> to vector<320x128xi1>
    %73 = arith.select %72, %65, %70 : vector<320x128xi1>, vector<320x128xf32>
    %c16_i32_43 = arith.constant 16 : i32
    %74 = tpu.dynamic_rotate %69 by %c16_i32_43 dim 0 : vector<320x128xf32>, i32 -> vector<320x128xf32>
    %c0_44 = arith.constant 0 : index
    %c0_45 = arith.constant 0 : index
    %75 = vector.load %arg13[%c0_44, %c0_45] : memref<320x1152xf32, #tpu.memory_space<vmem>>, vector<320x128xf32>
    tpu.vector_store %arg13[%c0_44, %c0_45], %74 {strides = array<i32>} : memref<320x1152xf32, #tpu.memory_space<vmem>>, vector<320x128xf32>,
    %c16_i32_46 = arith.constant 16 : i32
    %76 = tpu.dynamic_rotate %64 by %c16_i32_46 dim 0 : vector<320x128xf32>, i32 -> vector<320x128xf32>
    %c0_47 = arith.constant 0 : index
    %c128_48 = arith.constant 128 : index
    %77 = vector.load %arg13[%c0_47, %c128_48] : memref<320x1152xf32, #tpu.memory_space<vmem>>, vector<320x128xf32>
    tpu.vector_store %arg13[%c0_47, %c128_48], %76 {strides = array<i32>} : memref<320x1152xf32, #tpu.memory_space<vmem>>, vector<320x128xf32>,
    %c16_i32_49 = arith.constant 16 : i32
    %78 = tpu.dynamic_rotate %73 by %c16_i32_49 dim 0 : vector<320x128xf32>, i32 -> vector<320x128xf32>
    %c0_50 = arith.constant 0 : index
    %c256_51 = arith.constant 256 : index
    %79 = vector.load %arg13[%c0_50, %c256_51] : memref<320x1152xf32, #tpu.memory_space<vmem>>, vector<320x128xf32>
    tpu.vector_store %arg13[%c0_50, %c256_51], %78 {strides = array<i32>} : memref<320x1152xf32, #tpu.memory_space<vmem>>, vector<320x128xf32>,
    %c0_52 = arith.constant 0 : index
    %c384_53 = arith.constant 384 : index
    %80 = vector.load %arg13[%c0_52, %c384_53] : memref<320x1152xf32, #tpu.memory_space<vmem>>, vector<320x128xf32>
    tpu.vector_store %arg13[%c0_52, %c384_53], %69 {strides = array<i32>} : memref<320x1152xf32, #tpu.memory_space<vmem>>, vector<320x128xf32>,
    %c0_54 = arith.constant 0 : index
    %c512_55 = arith.constant 512 : index
    %81 = vector.load %arg13[%c0_54, %c512_55] : memref<320x1152xf32, #tpu.memory_space<vmem>>, vector<320x128xf32>
    tpu.vector_store %arg13[%c0_54, %c512_55], %64 {strides = array<i32>} : memref<320x1152xf32, #tpu.memory_space<vmem>>, vector<320x128xf32>,
    %c0_56 = arith.constant 0 : index
    %c640_57 = arith.constant 640 : index
    %82 = vector.load %arg13[%c0_56, %c640_57] : memref<320x1152xf32, #tpu.memory_space<vmem>>, vector<320x128xf32>
    tpu.vector_store %arg13[%c0_56, %c640_57], %73 {strides = array<i32>} : memref<320x1152xf32, #tpu.memory_space<vmem>>, vector<320x128xf32>,
    %c304_i32_58 = arith.constant 304 : i32
    %83 = tpu.dynamic_rotate %69 by %c304_i32_58 dim 0 : vector<320x128xf32>, i32 -> vector<320x128xf32>
    %c0_59 = arith.constant 0 : index
    %c768_60 = arith.constant 768 : index
    %84 = vector.load %arg13[%c0_59, %c768_60] : memref<320x1152xf32, #tpu.memory_space<vmem>>, vector<320x128xf32>
    tpu.vector_store %arg13[%c0_59, %c768_60], %83 {strides = array<i32>} : memref<320x1152xf32, #tpu.memory_space<vmem>>, vector<320x128xf32>,
    %c304_i32_61 = arith.constant 304 : i32
    %85 = tpu.dynamic_rotate %64 by %c304_i32_61 dim 0 : vector<320x128xf32>, i32 -> vector<320x128xf32>
    %c0_62 = arith.constant 0 : index
    %c896_63 = arith.constant 896 : index
    %86 = vector.load %arg13[%c0_62, %c896_63] : memref<320x1152xf32, #tpu.memory_space<vmem>>, vector<320x128xf32>
    tpu.vector_store %arg13[%c0_62, %c896_63], %85 {strides = array<i32>} : memref<320x1152xf32, #tpu.memory_space<vmem>>, vector<320x128xf32>,
    %c304_i32_64 = arith.constant 304 : i32
    %87 = tpu.dynamic_rotate %73 by %c304_i32_64 dim 0 : vector<320x128xf32>, i32 -> vector<320x128xf32>
    %c0_65 = arith.constant 0 : index
    %c1024_66 = arith.constant 1024 : index
    %88 = vector.load %arg13[%c0_65, %c1024_66] : memref<320x1152xf32, #tpu.memory_space<vmem>>, vector<320x128xf32>
    tpu.vector_store %arg13[%c0_65, %c1024_66], %87 {strides = array<i32>} : memref<320x1152xf32, #tpu.memory_space<vmem>>, vector<320x128xf32>,
    %c0_67 = arith.constant 0 : index
    %c0_68 = arith.constant 0 : index
    %89 = vector.load %arg13[%c0_67, %c0_68] : memref<320x1152xf32, #tpu.memory_space<vmem>>, vector<320x1152xf32>
    %c0_69 = arith.constant 0 : index
    %c0_70 = arith.constant 0 : index
    %90 = vector.load %arg8[%c0_69, %c0_70] : memref<1152x128xf32, #tpu.memory_space<vmem>>, vector<1152x128xf32>
    %cst_71 = arith.constant dense<0.000000e+00> : vector<320x128xf32>
    %91 = tpu.matmul %89, %90, %cst_71 {dimension_numbers = #tpu.dot_dimension_numbers<[1], [0], [0], [1], [0, 0, 1, 1], [], []>} : vector<320x1152xf32>, vector<1152x128xf32>, vector<320x128xf32> -> vector<320x128xf32>
    %c0_72 = arith.constant 0 : index
    %c0_73 = arith.constant 0 : index
    %92 = vector.load %arg9[%c0_72, %c0_73] : memref<1x128xf32, #tpu.memory_space<vmem>>, vector<1x128xf32>
    %93 = vector.broadcast %92 : vector<1x128xf32> to vector<320x128xf32>
    %94 = arith.mulf %91, %93 : vector<320x128xf32>
    %c0_74 = arith.constant 0 : index
    %c0_75 = arith.constant 0 : index
    %95 = vector.load %arg10[%c0_74, %c0_75] : memref<1x128xf32, #tpu.memory_space<vmem>>, vector<1x128xf32>
    %96 = vector.broadcast %95 : vector<1x128xf32> to vector<320x128xf32>
    %97 = arith.addf %94, %96 : vector<320x128xf32>
    %c2 = arith.constant 2 : index
    %c0_76 = arith.constant 0 : index
    %c0_77 = arith.constant 0 : index
    %98 = vector.load %arg12[%c2, %c0_76, %c0_77] : memref<20x16x128xf32, #tpu.memory_space<vmem>>, vector<16x16x128xf32>
    %99 = vector.extract_strided_slice %97 {offsets = [32, 0], sizes = [256, 128], strides = [1, 1]} : vector<320x128xf32> to vector<256x128xf32>
    %100 = vector.shape_cast %99 : vector<256x128xf32> to vector<16x16x128xf32>
    %101 = arith.addf %100, %98 : vector<16x16x128xf32>
    %cst_78 = arith.constant 0.000000e+00 : f32
    %102 = vector.broadcast %cst_78 : f32 to vector<16x16x128xf32>
    %103 = arith.maximumf %101, %102 : vector<16x16x128xf32>
    %104 = vector.shape_cast %103 : vector<16x16x128xf32> to vector<1x16x16x128xf32>
    %c0_79 = arith.constant 0 : index
    %c0_80 = arith.constant 0 : index
    %c0_81 = arith.constant 0 : index
    %c0_82 = arith.constant 0 : index
    %105 = vector.load %arg11[%c0_79, %c0_80, %c0_81, %c0_82] : memref<1x16x16x128xf32, #tpu.memory_space<vmem>>, vector<1x16x16x128xf32>
    tpu.vector_store %arg11[%c0_79, %c0_80, %c0_81, %c0_82], %104 {strides = array<i32>} : memref<1x16x16x128xf32, #tpu.memory_space<vmem>>, vector<1x16x16x128xf32>,
    return
  }
  func.func @transform_1(%arg0: i32, %arg1: i32) -> (i32, i32) {
    %c0_i32 = arith.constant 0 : i32
    %c0_i32_0 = arith.constant 0 : i32
    %c0_i32_1 = arith.constant 0 : i32
    return %c0_i32, %c0_i32_0 : i32, i32
  }
  func.func @transform_2(%arg0: i32, %arg1: i32) -> (i32, i32) {
    %c0_i32 = arith.constant 0 : i32
    %c0_i32_0 = arith.constant 0 : i32
    %c0_i32_1 = arith.constant 0 : i32
    return %c0_i32, %c0_i32_0 : i32, i32
  }
  func.func @transform_3(%arg0: i32, %arg1: i32) -> (i32, i32) {
    %c0_i32 = arith.constant 0 : i32
    %c0_i32_0 = arith.constant 0 : i32
    %c0_i32_1 = arith.constant 0 : i32
    return %c0_i32, %c0_i32_0 : i32, i32
  }
  func.func @transform_4(%arg0: i32, %arg1: i32) -> (i32, i32) {
    %c0_i32 = arith.constant 0 : i32
    %c0_i32_0 = arith.constant 0 : i32
    %c0_i32_1 = arith.constant 0 : i32
    return %c0_i32, %c0_i32_0 : i32, i32
  }
  func.func @transform_5(%arg0: i32, %arg1: i32) -> (i32, i32) {
    %c0_i32 = arith.constant 0 : i32
    %c0_i32_0 = arith.constant 0 : i32
    %c0_i32_1 = arith.constant 0 : i32
    return %c0_i32, %c0_i32_0 : i32, i32
  }
  func.func @transform_6(%arg0: i32, %arg1: i32) -> (i32, i32) {
    %c0_i32 = arith.constant 0 : i32
    %c0_i32_0 = arith.constant 0 : i32
    %c0_i32_1 = arith.constant 0 : i32
    return %c0_i32, %c0_i32_0 : i32, i32
  }
  func.func @transform_7(%arg0: i32, %arg1: i32) -> (i32, i32) {
    %c0_i32 = arith.constant 0 : i32
    %c0_i32_0 = arith.constant 0 : i32
    %c0_i32_1 = arith.constant 0 : i32
    return %c0_i32, %c0_i32_0 : i32, i32
  }
  func.func @transform_8(%arg0: i32, %arg1: i32) -> (i32, i32) {
    %c0_i32 = arith.constant 0 : i32
    %c0_i32_0 = arith.constant 0 : i32
    %c0_i32_1 = arith.constant 0 : i32
    return %c0_i32, %c0_i32_0 : i32, i32
  }
  func.func @transform_9(%arg0: i32, %arg1: i32) -> (i32, i32, i32, i32) {
    %c0_i32 = arith.constant 0 : i32
    %c0_i32_0 = arith.constant 0 : i32
    %c0_i32_1 = arith.constant 0 : i32
    return %arg0, %arg1, %c0_i32, %c0_i32_0 : i32, i32, i32, i32
  }
}

</mosaic_0001>

<llo_original>
// kernel: tpu_custom_call.1
$region0: #{tpu_custom_call.1}
  #allocation0 [shape = 'u32[]', space=smem, size = 0x4, offset = 0x4, fixed_abs, tag = 'smem constant byte address 0x4 - core index']
  #allocation1 [shape = 'u32[144,128]{1,0:T(1,128)}', space=vmem, size = 0x12000, scoped, tag = 'internal scratch']
  #allocation2 [shape = 'f32[20,16,128]{2,1,0:T(8,128)}', space=vmem, size = 0x28000, scoped, tag = 'scratch operand']
  #allocation3 [shape = 'f32[320,1152]{1,0:T(8,128)}', space=vmem, size = 0x168000, scoped, tag = 'scratch operand']
  #allocation4 [shape = 's32[1]{0}', space=sflag, size = 0x4, scoped, tag = 'scratch operand']
  #allocation20 [shape = 's32[]', space=sflag, size = 0x4, offset = 0, fixed_abs, tag = 'sflag constant byte address 0x0 - dummy sync flag']
  #allocation21 [shape = 's32[]', space=sflag, size = 0x4, offset = 0, fixed_abs, tag = 'sflag constant byte address 0x0 - dummy sync flag']
  #allocation22 [shape = 'u32[]', space=smem, size = 0x4, offset = 0x44, fixed_abs, tag = 'smem constant byte address 0x44 - assertion arg 0']
  #allocation23 [shape = 'u32[]', space=smem, size = 0x4, offset = 0x48, fixed_abs, tag = 'smem constant byte address 0x48 - assertion arg 1']
  %s0 = inlined_call_operand.hbm [shape: f32[2,20,16,128], index: 0, kind: input, shape index: {}]
  %s1 = inlined_call_operand.hbm [shape: s32[320,1], index: 1, kind: input, shape index: {}]
  %s2 = inlined_call_operand.hbm [shape: s32[320,1], index: 2, kind: input, shape index: {}]
  %s3 = inlined_call_operand.hbm [shape: f32[1152,128], index: 3, kind: input, shape index: {}]
  %s4 = inlined_call_operand.hbm [shape: f32[1,128], index: 4, kind: input, shape index: {}]
  %s5 = inlined_call_operand.hbm [shape: f32[1,128], index: 5, kind: input, shape index: {}]
  %s6 = inlined_call_operand.hbm [shape: f32[1152,128], index: 6, kind: input, shape index: {}]
  %s7 = inlined_call_operand.hbm [shape: f32[1,128], index: 7, kind: input, shape index: {}]
  %s8 = inlined_call_operand.hbm [shape: f32[1,128], index: 8, kind: input, shape index: {}]
  %s9 = inlined_call_operand.hbm [shape: f32[2,16,16,128], index: 9, kind: output, shape index: {}]
  %s10 = sld [smem:[#allocation0]]
  $region101: #{tpu_custom_call.1} parent=0
    _
  %s12 = ssub.s32 1, %s10
  %s13 = scalar_select 0, %s12, %s10
  $region1: #{tpu_custom_call.1} parent=0
    #allocation5 [shape = 'u8[163840]{0}', space=vmem, size = 0x28000, scoped, tag = 'input window, operand 1, single buffered']
    #allocation6 [shape = 's32[2]{0}', space=sflag, size = 0x8, scoped, tag = 'scoped memory for tpu_custom_call.1']
    #allocation7 [shape = 's32[2]{0}', space=sflag, size = 0x8, scoped, tag = 'scoped memory for tpu_custom_call.1']
    #allocation8 [shape = 'u8[163840]{0}', space=vmem, size = 0x28000, scoped, tag = 'input window, operand 2, single buffered']
    #allocation9 [shape = 's32[1]{0}', space=sflag, size = 0x4, scoped, tag = 'scoped memory for tpu_custom_call.1']
    #allocation10 [shape = 'u8[589824]{0}', space=vmem, size = 0x90000, scoped, tag = 'input window, operand 3, single buffered']
    #allocation11 [shape = 'u8[512]{0}', space=vmem, size = 0x400, scoped, tag = 'input window, operand 4, single buffered']
    #allocation12 [shape = 's32[1]{0}', space=sflag, size = 0x4, scoped, tag = 'scoped memory for tpu_custom_call.1']
    #allocation13 [shape = 'u8[512]{0}', space=vmem, size = 0x400, scoped, tag = 'input window, operand 5, single buffered']
    #allocation14 [shape = 'u8[589824]{0}', space=vmem, size = 0x90000, scoped, tag = 'input window, operand 6, single buffered']
    #allocation15 [shape = 's32[1]{0}', space=sflag, size = 0x4, scoped, tag = 'scoped memory for tpu_custom_call.1']
    #allocation16 [shape = 'u8[512]{0}', space=vmem, size = 0x400, scoped, tag = 'input window, operand 7, single buffered']
    #allocation17 [shape = 'u8[512]{0}', space=vmem, size = 0x400, scoped, tag = 'input window, operand 8, single buffered']
    #allocation18 [shape = 's32[1]{0}', space=sflag, size = 0x4, scoped, tag = 'scoped memory for tpu_custom_call.1']
    #allocation19 [shape = 'u8[262144]{0}', space=vmem, size = 0x40000, scoped, tag = 'output window, operand 0']
    %14 = vsyncpa [#allocation6], 0
    %15 = vsyncpa [#allocation9], 0
    %16 = vsyncpa [#allocation12], 0
    %17 = vsyncpa [#allocation15], 0
    %18 = vsyncpa [#allocation18], 0
    %19 = vsyncpa [#allocation7], 0
    %s20 = scalar_lea.sflag [#allocation7], 1
    %21 = vsyncpa %s20, 0
    loop: start=0, step=1, limit=4
    $region2: #{tpu_custom_call.1} parent=1 // loop_pre_header
      _
    $region3: #{tpu_custom_call.1} parent=1 // loop_header
      %s23 = sphi 0, %s27
      %p24 = scmp.ge.s32.totalorder %s23, 4
      %s30 = sphi 0, %s42
      %s31 = sphi 0, %s38
      %s32 = sphi 0, %s30
      %s33 = sphi 0, %s31
      %s34 = sphi 0, %s32
      %s35 = sphi 0, %s33
      %s43 = sphi 0, %s43
      %s45 = sphi 0, %s43
      %s46 = sphi 0, %s45
      %s60 = sphi 0, %s46
      %s64 = sphi 0, %s64
      %s66 = sphi 0, %s64
      %s67 = sphi 0, %s66
      %s81 = sphi 0, %s67
      %s85 = sphi 0, %s85
      %s87 = sphi 0, %s85
      %s88 = sphi 0, %s87
      %s102 = sphi 0, %s88
      %s106 = sphi 0, %s106
      %s108 = sphi 0, %s106
      %s109 = sphi 0, %s108
      %s123 = sphi 0, %s109
      %s127 = sphi 0, %s127
      %s129 = sphi 0, %s127
      %s130 = sphi 0, %s129
      %s144 = sphi 0, %s130
      %s148 = sphi 0, %s148
      %s150 = sphi 0, %s148
      %s151 = sphi 0, %s150
      %s165 = sphi 0, %s151
      %s169 = sphi 0, %s169
      %s171 = sphi 0, %s169
      %s172 = sphi 0, %s171
      %s186 = sphi 0, %s172
      %s190 = sphi 0, %s190
      %s192 = sphi 0, %s190
      %s193 = sphi 0, %s192
      %s207 = sphi 0, %s193
      %s215 = sphi 0, %s217
      %s218 = sphi 0, %s215
      %s219 = sphi 0, %s218
      %s235 = sphi 0, %s219
    $region4: #{tpu_custom_call.1} parent=1 // loop_header_branch
      %26 = sbr.rel (%p24) target = $region8
    $region5: #{tpu_custom_call.1} parent=1 // loop_body
      %s28 = ssub.s32 %s23, 1
      %s29 = ssub.s32 %s23, 2
      %s36 = sadd.s32 1, %s31
      %p37 = scmp.ge.s32.totalorder %s36, 1
      %s38 = scalar_select %p37, 0, %s36
      %s39 = sadd.s32 1, %s30
      %s40 = scalar_select %p37, %s39, %s30
      %p41 = scmp.ge.s32.totalorder %s40, 2
      %s42 = scalar_select %p41, 0, %s40
      %s44 = sadd.s32 %s43, 1
      %p47 = scmp.eq.s32.totalorder %s23, 1
      %p48 = scmp.ne.s32.totalorder %s43, %s45
      %p49 = scmp.eq.s32.totalorder %s23, 0
      %p50 = por %p48, %p49
      %p51 = scmp.ne.s32.totalorder %s43, %s45
      %p52 = scmp.eq.s32.totalorder %s28, 1
      %p53 = por %p51, %p52
      %p54 = scmp.ne.s32.totalorder %s45, %s46
      %p55 = scmp.eq.s32.totalorder %s28, 0
      %p56 = por %p54, %p55
      %p57 = scmp.ne.s32.totalorder %s45, %s46
      %p58 = scmp.eq.s32.totalorder %s29, 1
      %p59 = por %p57, %p58
      %p61 = scmp.ne.s32.totalorder %s46, %s60
      %p62 = scmp.eq.s32.totalorder %s29, 0
      %p63 = por %p61, %p62
      %s65 = sadd.s32 %s64, 1
      %p68 = scmp.eq.s32.totalorder %s23, 1
      %p69 = scmp.ne.s32.totalorder %s64, %s66
      %p70 = scmp.eq.s32.totalorder %s23, 0
      %p71 = por %p69, %p70
      %p72 = scmp.ne.s32.totalorder %s64, %s66
      %p73 = scmp.eq.s32.totalorder %s28, 1
      %p74 = por %p72, %p73
      %p75 = scmp.ne.s32.totalorder %s66, %s67
      %p76 = scmp.eq.s32.totalorder %s28, 0
      %p77 = por %p75, %p76
      %p78 = scmp.ne.s32.totalorder %s66, %s67
      %p79 = scmp.eq.s32.totalorder %s29, 1
      %p80 = por %p78, %p79
      %p82 = scmp.ne.s32.totalorder %s67, %s81
      %p83 = scmp.eq.s32.totalorder %s29, 0
      %p84 = por %p82, %p83
      %s86 = sadd.s32 %s85, 1
      %p89 = scmp.eq.s32.totalorder %s23, 1
      %p90 = scmp.ne.s32.totalorder %s85, %s87
      %p91 = scmp.eq.s32.totalorder %s23, 0
      %p92 = por %p90, %p91
      %p93 = scmp.ne.s32.totalorder %s85, %s87
      %p94 = scmp.eq.s32.totalorder %s28, 1
      %p95 = por %p93, %p94
      %p96 = scmp.ne.s32.totalorder %s87, %s88
      %p97 = scmp.eq.s32.totalorder %s28, 0
      %p98 = por %p96, %p97
      %p99 = scmp.ne.s32.totalorder %s87, %s88
      %p100 = scmp.eq.s32.totalorder %s29, 1
      %p101 = por %p99, %p100
      %p103 = scmp.ne.s32.totalorder %s88, %s102
      %p104 = scmp.eq.s32.totalorder %s29, 0
      %p105 = por %p103, %p104
      %s107 = sadd.s32 %s106, 1
      %p110 = scmp.eq.s32.totalorder %s23, 1
      %p111 = scmp.ne.s32.totalorder %s106, %s108
      %p112 = scmp.eq.s32.totalorder %s23, 0
      %p113 = por %p111, %p112
      %p114 = scmp.ne.s32.totalorder %s106, %s108
      %p115 = scmp.eq.s32.totalorder %s28, 1
      %p116 = por %p114, %p115
      %p117 = scmp.ne.s32.totalorder %s108, %s109
      %p118 = scmp.eq.s32.totalorder %s28, 0
      %p119 = por %p117, %p118
      %p120 = scmp.ne.s32.totalorder %s108, %s109
      %p121 = scmp.eq.s32.totalorder %s29, 1
      %p122 = por %p120, %p121
      %p124 = scmp.ne.s32.totalorder %s109, %s123
      %p125 = scmp.eq.s32.totalorder %s29, 0
      %p126 = por %p124, %p125
      %s128 = sadd.s32 %s127, 1
      %p131 = scmp.eq.s32.totalorder %s23, 1
      %p132 = scmp.ne.s32.totalorder %s127, %s129
      %p133 = scmp.eq.s32.totalorder %s23, 0
      %p134 = por %p132, %p133
      %p135 = scmp.ne.s32.totalorder %s127, %s129
      %p136 = scmp.eq.s32.totalorder %s28, 1
      %p137 = por %p135, %p136
      %p138 = scmp.ne.s32.totalorder %s129, %s130
      %p139 = scmp.eq.s32.totalorder %s28, 0
      %p140 = por %p138, %p139
      %p141 = scmp.ne.s32.totalorder %s129, %s130
      %p142 = scmp.eq.s32.totalorder %s29, 1
      %p143 = por %p141, %p142
      %p145 = scmp.ne.s32.totalorder %s130, %s144
      %p146 = scmp.eq.s32.totalorder %s29, 0
      %p147 = por %p145, %p146
      %s149 = sadd.s32 %s148, 1
      %p152 = scmp.eq.s32.totalorder %s23, 1
      %p153 = scmp.ne.s32.totalorder %s148, %s150
      %p154 = scmp.eq.s32.totalorder %s23, 0
      %p155 = por %p153, %p154
      %p156 = scmp.ne.s32.totalorder %s148, %s150
      %p157 = scmp.eq.s32.totalorder %s28, 1
      %p158 = por %p156, %p157
      %p159 = scmp.ne.s32.totalorder %s150, %s151
      %p160 = scmp.eq.s32.totalorder %s28, 0
      %p161 = por %p159, %p160
      %p162 = scmp.ne.s32.totalorder %s150, %s151
      %p163 = scmp.eq.s32.totalorder %s29, 1
      %p164 = por %p162, %p163
      %p166 = scmp.ne.s32.totalorder %s151, %s165
      %p167 = scmp.eq.s32.totalorder %s29, 0
      %p168 = por %p166, %p167
      %s170 = sadd.s32 %s169, 1
      %p173 = scmp.eq.s32.totalorder %s23, 1
      %p174 = scmp.ne.s32.totalorder %s169, %s171
      %p175 = scmp.eq.s32.totalorder %s23, 0
      %p176 = por %p174, %p175
      %p177 = scmp.ne.s32.totalorder %s169, %s171
      %p178 = scmp.eq.s32.totalorder %s28, 1
      %p179 = por %p177, %p178
      %p180 = scmp.ne.s32.totalorder %s171, %s172
      %p181 = scmp.eq.s32.totalorder %s28, 0
      %p182 = por %p180, %p181
      %p183 = scmp.ne.s32.totalorder %s171, %s172
      %p184 = scmp.eq.s32.totalorder %s29, 1
      %p185 = por %p183, %p184
      %p187 = scmp.ne.s32.totalorder %s172, %s186
      %p188 = scmp.eq.s32.totalorder %s29, 0
      %p189 = por %p187, %p188
      %s191 = sadd.s32 %s190, 1
      %p194 = scmp.eq.s32.totalorder %s23, 1
      %p195 = scmp.ne.s32.totalorder %s190, %s192
      %p196 = scmp.eq.s32.totalorder %s23, 0
      %p197 = por %p195, %p196
      %p198 = scmp.ne.s32.totalorder %s190, %s192
      %p199 = scmp.eq.s32.totalorder %s28, 1
      %p200 = por %p198, %p199
      %p201 = scmp.ne.s32.totalorder %s192, %s193
      %p202 = scmp.eq.s32.totalorder %s28, 0
      %p203 = por %p201, %p202
      %p204 = scmp.ne.s32.totalorder %s192, %s193
      %p205 = scmp.eq.s32.totalorder %s29, 1
      %p206 = por %p204, %p205
      %p208 = scmp.ne.s32.totalorder %s193, %s207
      %p209 = scmp.eq.s32.totalorder %s29, 0
      %p210 = por %p208, %p209
      %s211 = ssub.s32 %s30, %s42
      %s212 = ssub.s32 %s31, %s38
      %s213 = sor.u32 %s211, %s212
      %p214 = scmp.eq.s32.totalorder %s213, 0
      %s216 = sadd.s32 %s215, 1
      %s217 = scalar_select %p214, %s215, %s216
      %p220 = pneg %p214
      %p221 = scmp.eq.s32.totalorder %s23, 1
      %p222 = por %p220, %p221
      %p223 = scmp.ne.s32.totalorder %s215, %s218
      %p224 = scmp.eq.s32.totalorder %s23, 0
      %p225 = por %p223, %p224
      %p226 = scmp.ne.s32.totalorder %s215, %s218
      %p227 = scmp.eq.s32.totalorder %s28, 1
      %p228 = por %p226, %p227
      %p229 = scmp.ne.s32.totalorder %s218, %s219
      %p230 = scmp.eq.s32.totalorder %s28, 0
      %p231 = por %p229, %p230
      %p232 = scmp.ne.s32.totalorder %s218, %s219
      %p233 = scmp.eq.s32.totalorder %s29, 1
      %p234 = por %p232, %p233
      %p236 = scmp.ne.s32.totalorder %s219, %s235
      %p237 = scmp.eq.s32.totalorder %s29, 0
      %p238 = por %p236, %p237
      %p239 = scmp.le.s32.totalorder 1, %s23
      %p240 = scmp.lt.s32.totalorder %s23, 3
      %p241 = pnand %p239, %p240
      %p242 = pneg %p241
      // Predicated region
      $region9: #{tpu_custom_call.1} parent=5 // pred_check
        _
      $region10: #{tpu_custom_call.1} parent=5 // pred_check_branch
        %244 = sbr.rel (%p241) target = $region12
      $region11: #{tpu_custom_call.1} parent=5 // pred_region
        %s245 = ssub.s32 %s23, 1
        // Predicated region
        $region13: #{tpu_custom_call.1} parent=11 // pred_check
          %p246 = pneg %p56
        $region14: #{tpu_custom_call.1} parent=11 // pred_check_branch
          %248 = sbr.rel (%p246) target = $region16
        $region15: #{tpu_custom_call.1} parent=11 // pred_region
          %s250 = ssub.s32 5120, 5120
          %251 = vsyncadd [#allocation6], %s250
          %s252 = sshll.u32 [#allocation5], 4
          %s253 = int_to_ptr.vmem [resolvable:$true] %s252
          %258 = dma.hbm_to_vmem [thread:$0]  %s1, 5120, %s253, [#allocation6], 128, 128, 8
        $region16: #{tpu_custom_call.1} parent=11 // pred_fallthru
          _
        // Predicated region
        $region17: #{tpu_custom_call.1} parent=11 // pred_check
          %p259 = pneg %p77
        $region18: #{tpu_custom_call.1} parent=11 // pred_check_branch
          %261 = sbr.rel (%p259) target = $region20
        $region19: #{tpu_custom_call.1} parent=11 // pred_region
          %s263 = ssub.s32 5120, 5120
          %264 = vsyncadd [#allocation9], %s263
          %s265 = sshll.u32 [#allocation8], 4
          %s266 = int_to_ptr.vmem [resolvable:$true] %s265
          %271 = dma.hbm_to_vmem [thread:$0]  %s2, 5120, %s266, [#allocation9], 128, 128, 8
        $region20: #{tpu_custom_call.1} parent=11 // pred_fallthru
          _
        // Predicated region
        $region21: #{tpu_custom_call.1} parent=11 // pred_check
          %p272 = pneg %p98
        $region22: #{tpu_custom_call.1} parent=11 // pred_check_branch
          %274 = sbr.rel (%p272) target = $region24
        $region23: #{tpu_custom_call.1} parent=11 // pred_region
          %s276 = ssub.s32 18432, 18432
          %277 = vsyncadd [#allocation9], %s276
          %s278 = sshll.u32 [#allocation10], 4
          %s279 = int_to_ptr.vmem [resolvable:$true] %s278
          %284 = dma.hbm_to_vmem [thread:$0]  %s3, 18432, %s279, [#allocation9], 128, 128, 8
        $region24: #{tpu_custom_call.1} parent=11 // pred_fallthru
          _
        // Predicated region
        $region25: #{tpu_custom_call.1} parent=11 // pred_check
          %p285 = pneg %p119
        $region26: #{tpu_custom_call.1} parent=11 // pred_check_branch
          %287 = sbr.rel (%p285) target = $region28
        $region27: #{tpu_custom_call.1} parent=11 // pred_region
          %s289 = ssub.s32 16, 16
          %290 = vsyncadd [#allocation12], %s289
          %s292 = sshll.u32 [#allocation11], 4
          %s293 = int_to_ptr.vmem [resolvable:$true] %s292
          %295 = dma.hbm_to_vmem [thread:$0]  %s4, 16, %s293, [#allocation12]
        $region28: #{tpu_custom_call.1} parent=11 // pred_fallthru
          _
        // Predicated region
        $region29: #{tpu_custom_call.1} parent=11 // pred_check
          %p296 = pneg %p140
        $region30: #{tpu_custom_call.1} parent=11 // pred_check_branch
          %298 = sbr.rel (%p296) target = $region32
        $region31: #{tpu_custom_call.1} parent=11 // pred_region
          %s300 = ssub.s32 16, 16
          %301 = vsyncadd [#allocation12], %s300
          %s303 = sshll.u32 [#allocation13], 4
          %s304 = int_to_ptr.vmem [resolvable:$true] %s303
          %306 = dma.hbm_to_vmem [thread:$0]  %s5, 16, %s304, [#allocation12]
        $region32: #{tpu_custom_call.1} parent=11 // pred_fallthru
          _
        // Predicated region
        $region33: #{tpu_custom_call.1} parent=11 // pred_check
          %p307 = pneg %p161
        $region34: #{tpu_custom_call.1} parent=11 // pred_check_branch
          %309 = sbr.rel (%p307) target = $region36
        $region35: #{tpu_custom_call.1} parent=11 // pred_region
          %s311 = ssub.s32 18432, 18432
          %312 = vsyncadd [#allocation15], %s311
          %s313 = sshll.u32 [#allocation14], 4
          %s314 = int_to_ptr.vmem [resolvable:$true] %s313
          %319 = dma.hbm_to_vmem [thread:$0]  %s6, 18432, %s314, [#allocation15], 128, 128, 8
        $region36: #{tpu_custom_call.1} parent=11 // pred_fallthru
          _
        // Predicated region
        $region37: #{tpu_custom_call.1} parent=11 // pred_check
          %p320 = pneg %p182
        $region38: #{tpu_custom_call.1} parent=11 // pred_check_branch
          %322 = sbr.rel (%p320) target = $region40
        $region39: #{tpu_custom_call.1} parent=11 // pred_region
          %s324 = ssub.s32 16, 16
          %325 = vsyncadd [#allocation15], %s324
          %s327 = sshll.u32 [#allocation16], 4
          %s328 = int_to_ptr.vmem [resolvable:$true] %s327
          %330 = dma.hbm_to_vmem [thread:$0]  %s7, 16, %s328, [#allocation15]
        $region40: #{tpu_custom_call.1} parent=11 // pred_fallthru
          _
        // Predicated region
        $region41: #{tpu_custom_call.1} parent=11 // pred_check
          %p331 = pneg %p203
        $region42: #{tpu_custom_call.1} parent=11 // pred_check_branch
          %333 = sbr.rel (%p331) target = $region44
        $region43: #{tpu_custom_call.1} parent=11 // pred_region
          %s335 = ssub.s32 16, 16
          %336 = vsyncadd [#allocation18], %s335
          %s338 = sshll.u32 [#allocation17], 4
          %s339 = int_to_ptr.vmem [resolvable:$true] %s338
          %341 = dma.hbm_to_vmem [thread:$0]  %s8, 16, %s339, [#allocation18]
        $region44: #{tpu_custom_call.1} parent=11 // pred_fallthru
          _
      $region12: #{tpu_custom_call.1} parent=5 // pred_fallthru
        _
      %p342 = scmp.lt.s32.totalorder %s23, 2
      // Predicated region
      $region45: #{tpu_custom_call.1} parent=5 // pred_check
        %p343 = pneg %p342
      $region46: #{tpu_custom_call.1} parent=5 // pred_check_branch
        %345 = sbr.rel (%p343) target = $region48
      $region47: #{tpu_custom_call.1} parent=5 // pred_region
        _
      $region48: #{tpu_custom_call.1} parent=5 // pred_fallthru
        _
      %p346 = scmp.le.s32.totalorder 1, %s23
      %p347 = scmp.lt.s32.totalorder %s23, 3
      %p348 = pnand %p346, %p347
      %p349 = pneg %p348
      // Predicated region
      $region49: #{tpu_custom_call.1} parent=5 // pred_check
        _
      $region50: #{tpu_custom_call.1} parent=5 // pred_check_branch
        %351 = sbr.rel (%p348) target = $region52
      $region51: #{tpu_custom_call.1} parent=5 // pred_region
        %s352 = ssub.s32 %s23, 1
        // Predicated region
        $region53: #{tpu_custom_call.1} parent=51 // pred_check
          %p353 = pneg %p56
        $region54: #{tpu_custom_call.1} parent=51 // pred_check_branch
          %355 = sbr.rel (%p353) target = $region56
        $region55: #{tpu_custom_call.1} parent=51 // pred_region
          %356 = dma.done [#allocation6], 5120
        $region56: #{tpu_custom_call.1} parent=51 // pred_fallthru
          _
        // Predicated region
        $region57: #{tpu_custom_call.1} parent=51 // pred_check
          %p357 = pneg %p77
        $region58: #{tpu_custom_call.1} parent=51 // pred_check_branch
          %359 = sbr.rel (%p357) target = $region60
        $region59: #{tpu_custom_call.1} parent=51 // pred_region
          %360 = dma.done [#allocation9], 5120
        $region60: #{tpu_custom_call.1} parent=51 // pred_fallthru
          _
        // Predicated region
        $region61: #{tpu_custom_call.1} parent=51 // pred_check
          %p361 = pneg %p98
        $region62: #{tpu_custom_call.1} parent=51 // pred_check_branch
          %363 = sbr.rel (%p361) target = $region64
        $region63: #{tpu_custom_call.1} parent=51 // pred_region
          %364 = dma.done [#allocation9], 18432
        $region64: #{tpu_custom_call.1} parent=51 // pred_fallthru
          _
        // Predicated region
        $region65: #{tpu_custom_call.1} parent=51 // pred_check
          %p365 = pneg %p119
        $region66: #{tpu_custom_call.1} parent=51 // pred_check_branch
          %367 = sbr.rel (%p365) target = $region68
        $region67: #{tpu_custom_call.1} parent=51 // pred_region
          %368 = dma.done [#allocation12], 16
        $region68: #{tpu_custom_call.1} parent=51 // pred_fallthru
          _
        // Predicated region
        $region69: #{tpu_custom_call.1} parent=51 // pred_check
          %p369 = pneg %p140
        $region70: #{tpu_custom_call.1} parent=51 // pred_check_branch
          %371 = sbr.rel (%p369) target = $region72
        $region71: #{tpu_custom_call.1} parent=51 // pred_region
          %372 = dma.done [#allocation12], 16
        $region72: #{tpu_custom_call.1} parent=51 // pred_fallthru
          _
        // Predicated region
        $region73: #{tpu_custom_call.1} parent=51 // pred_check
          %p373 = pneg %p161
        $region74: #{tpu_custom_call.1} parent=51 // pred_check_branch
          %375 = sbr.rel (%p373) target = $region76
        $region75: #{tpu_custom_call.1} parent=51 // pred_region
          %376 = dma.done [#allocation15], 18432
        $region76: #{tpu_custom_call.1} parent=51 // pred_fallthru
          _
        // Predicated region
        $region77: #{tpu_custom_call.1} parent=51 // pred_check
          %p377 = pneg %p182
        $region78: #{tpu_custom_call.1} parent=51 // pred_check_branch
          %379 = sbr.rel (%p377) target = $region80
        $region79: #{tpu_custom_call.1} parent=51 // pred_region
          %380 = dma.done [#allocation15], 16
        $region80: #{tpu_custom_call.1} parent=51 // pred_fallthru
          _
        // Predicated region
        $region81: #{tpu_custom_call.1} parent=51 // pred_check
          %p381 = pneg %p203
        $region82: #{tpu_custom_call.1} parent=51 // pred_check_branch
          %383 = sbr.rel (%p381) target = $region84
        $region83: #{tpu_custom_call.1} parent=51 // pred_region
          %384 = dma.done [#allocation18], 16
        $region84: #{tpu_custom_call.1} parent=51 // pred_fallthru
          _
        %p385 = pneg %p56
        %p386 = pneg %p53
        %p387 = pneg %p77
        %p388 = pneg %p74
        %p389 = pneg %p98
        %p390 = pneg %p95
        %p391 = pneg %p119
        %p392 = pneg %p116
        %p393 = pneg %p140
        %p394 = pneg %p137
        %p395 = pneg %p161
        %p396 = pneg %p158
        %p397 = pneg %p182
        %p398 = pneg %p179
        %p399 = pneg %p203
        %p400 = pneg %p200
        %p401 = pneg %p231
        %p402 = pneg %p228
        %s403 = sand.u32 %s218, 1
        %s404 = scalar_lea.sflag [#allocation7], %s403
        %s405 = sand.u32 %s218, 1
        %s406 = smul.addr %s405, 256
        %s407 = scalar_lea.vmem [#allocation19], %s406
        %s408 = smul.u32 16, %s33
        %s409 = smul.u32 %s33, 16
        %s410 = smul.u32 %s409, 16
        %s411 = smul.u32 %s32, 320
        %s412 = sadd.s32 %s410, %s411
        %s413 = smul.addr %s412, 16
        %s414 = scalar_lea.hbm %s0, %s413
        // Predicated region
        $region85: #{tpu_custom_call.1} parent=51 // pred_check
          _
        $region86: #{tpu_custom_call.1} parent=51 // pred_check_branch
          %416 = sbr.rel target = $region88
        $region87: #{tpu_custom_call.1} parent=51 // pred_region
          %417 = sst [smem:[#allocation22]] [#allocation21]
          %418 = sst [smem:[#allocation23]] [#allocation20]
        $region88: #{tpu_custom_call.1} parent=51 // pred_fallthru
          _
        %420 = shalt.err (0)
        %s422 = sshll.u32 [#allocation2], 4
        %s423 = int_to_ptr.vmem [resolvable:$true] %s422
        %425 = dma.hbm_to_vmem [thread:$0]  %s414, 5120, %s423, [#allocation4]
        %v426 = vld [vmem:[#allocation5] sm:$0xff]
        %v427 = vld [vmem:[#allocation5 + $0x8] sm:$0xff]
        %v428 = vld [vmem:[#allocation5 + $0x10] sm:$0xff]
        %v429 = vld [vmem:[#allocation5 + $0x18] sm:$0xff]
        %v430 = vld [vmem:[#allocation5 + $0x20] sm:$0xff]
        %v431 = vld [vmem:[#allocation5 + $0x28] sm:$0xff]
        %v432 = vld [vmem:[#allocation5 + $0x30] sm:$0xff]
        %v433 = vld [vmem:[#allocation5 + $0x38] sm:$0xff]
        %v434 = vld [vmem:[#allocation5 + $0x40] sm:$0xff]
        %v435 = vld [vmem:[#allocation5 + $0x48] sm:$0xff]
        %v436 = vld [vmem:[#allocation5 + $0x50] sm:$0xff]
        %v437 = vld [vmem:[#allocation5 + $0x58] sm:$0xff]
        %v438 = vld [vmem:[#allocation5 + $0x60] sm:$0xff]
        %v439 = vld [vmem:[#allocation5 + $0x68] sm:$0xff]
        %v440 = vld [vmem:[#allocation5 + $0x70] sm:$0xff]
        %v441 = vld [vmem:[#allocation5 + $0x78] sm:$0xff]
        %v442 = vld [vmem:[#allocation5 + $0x80] sm:$0xff]
        %v443 = vld [vmem:[#allocation5 + $0x88] sm:$0xff]
        %v444 = vld [vmem:[#allocation5 + $0x90] sm:$0xff]
        %v445 = vld [vmem:[#allocation5 + $0x98] sm:$0xff]
        %v446 = vld [vmem:[#allocation5 + $0xa0] sm:$0xff]
        %v447 = vld [vmem:[#allocation5 + $0xa8] sm:$0xff]
        %v448 = vld [vmem:[#allocation5 + $0xb0] sm:$0xff]
        %v449 = vld [vmem:[#allocation5 + $0xb8] sm:$0xff]
        %v450 = vld [vmem:[#allocation5 + $0xc0] sm:$0xff]
        %v451 = vld [vmem:[#allocation5 + $0xc8] sm:$0xff]
        %v452 = vld [vmem:[#allocation5 + $0xd0] sm:$0xff]
        %v453 = vld [vmem:[#allocation5 + $0xd8] sm:$0xff]
        %v454 = vld [vmem:[#allocation5 + $0xe0] sm:$0xff]
        %v455 = vld [vmem:[#allocation5 + $0xe8] sm:$0xff]
        %v456 = vld [vmem:[#allocation5 + $0xf0] sm:$0xff]
        %v457 = vld [vmem:[#allocation5 + $0xf8] sm:$0xff]
        %v458 = vld [vmem:[#allocation5 + $0x100] sm:$0xff]
        %v459 = vld [vmem:[#allocation5 + $0x108] sm:$0xff]
        %v460 = vld [vmem:[#allocation5 + $0x110] sm:$0xff]
        %v461 = vld [vmem:[#allocation5 + $0x118] sm:$0xff]
        %v462 = vld [vmem:[#allocation5 + $0x120] sm:$0xff]
        %v463 = vld [vmem:[#allocation5 + $0x128] sm:$0xff]
        %v464 = vld [vmem:[#allocation5 + $0x130] sm:$0xff]
        %v465 = vld [vmem:[#allocation5 + $0x138] sm:$0xff]
        %vm466 = vcmp.eq.s32.totalorder %v426, 0
        %vm467 = vcmp.eq.s32.totalorder %v427, 0
        %vm468 = vcmp.eq.s32.totalorder %v428, 0
        %vm469 = vcmp.eq.s32.totalorder %v429, 0
        %vm470 = vcmp.eq.s32.totalorder %v430, 0
        %vm471 = vcmp.eq.s32.totalorder %v431, 0
        %vm472 = vcmp.eq.s32.totalorder %v432, 0
        %vm473 = vcmp.eq.s32.totalorder %v433, 0
        %vm474 = vcmp.eq.s32.totalorder %v434, 0
        %vm475 = vcmp.eq.s32.totalorder %v435, 0
        %vm476 = vcmp.eq.s32.totalorder %v436, 0
        %vm477 = vcmp.eq.s32.totalorder %v437, 0
        %vm478 = vcmp.eq.s32.totalorder %v438, 0
        %vm479 = vcmp.eq.s32.totalorder %v439, 0
        %vm480 = vcmp.eq.s32.totalorder %v440, 0
        %vm481 = vcmp.eq.s32.totalorder %v441, 0
        %vm482 = vcmp.eq.s32.totalorder %v442, 0
        %vm483 = vcmp.eq.s32.totalorder %v443, 0
        %vm484 = vcmp.eq.s32.totalorder %v444, 0
        %vm485 = vcmp.eq.s32.totalorder %v445, 0
        %vm486 = vcmp.eq.s32.totalorder %v446, 0
        %vm487 = vcmp.eq.s32.totalorder %v447, 0
        %vm488 = vcmp.eq.s32.totalorder %v448, 0
        %vm489 = vcmp.eq.s32.totalorder %v449, 0
        %vm490 = vcmp.eq.s32.totalorder %v450, 0
        %vm491 = vcmp.eq.s32.totalorder %v451, 0
        %vm492 = vcmp.eq.s32.totalorder %v452, 0
        %vm493 = vcmp.eq.s32.totalorder %v453, 0
        %vm494 = vcmp.eq.s32.totalorder %v454, 0
        %vm495 = vcmp.eq.s32.totalorder %v455, 0
        %vm496 = vcmp.eq.s32.totalorder %v456, 0
        %vm497 = vcmp.eq.s32.totalorder %v457, 0
        %vm498 = vcmp.eq.s32.totalorder %v458, 0
        %vm499 = vcmp.eq.s32.totalorder %v459, 0
        %vm500 = vcmp.eq.s32.totalorder %v460, 0
        %vm501 = vcmp.eq.s32.totalorder %v461, 0
        %vm502 = vcmp.eq.s32.totalorder %v462, 0
        %vm503 = vcmp.eq.s32.totalorder %v463, 0
        %vm504 = vcmp.eq.s32.totalorder %v464, 0
        %vm505 = vcmp.eq.s32.totalorder %v465, 0
        %vm506 = vcmp.eq.s32.totalorder %v426, 15
        %vm507 = vcmp.eq.s32.totalorder %v427, 15
        %vm508 = vcmp.eq.s32.totalorder %v428, 15
        %vm509 = vcmp.eq.s32.totalorder %v429, 15
        %vm510 = vcmp.eq.s32.totalorder %v430, 15
        %vm511 = vcmp.eq.s32.totalorder %v431, 15
        %vm512 = vcmp.eq.s32.totalorder %v432, 15
        %vm513 = vcmp.eq.s32.totalorder %v433, 15
        %vm514 = vcmp.eq.s32.totalorder %v434, 15
        %vm515 = vcmp.eq.s32.totalorder %v435, 15
        %vm516 = vcmp.eq.s32.totalorder %v436, 15
        %vm517 = vcmp.eq.s32.totalorder %v437, 15
        %vm518 = vcmp.eq.s32.totalorder %v438, 15
        %vm519 = vcmp.eq.s32.totalorder %v439, 15
        %vm520 = vcmp.eq.s32.totalorder %v440, 15
        %vm521 = vcmp.eq.s32.totalorder %v441, 15
        %vm522 = vcmp.eq.s32.totalorder %v442, 15
        %vm523 = vcmp.eq.s32.totalorder %v443, 15
        %vm524 = vcmp.eq.s32.totalorder %v444, 15
        %vm525 = vcmp.eq.s32.totalorder %v445, 15
        %vm526 = vcmp.eq.s32.totalorder %v446, 15
        %vm527 = vcmp.eq.s32.totalorder %v447, 15
        %vm528 = vcmp.eq.s32.totalorder %v448, 15
        %vm529 = vcmp.eq.s32.totalorder %v449, 15
        %vm530 = vcmp.eq.s32.totalorder %v450, 15
        %vm531 = vcmp.eq.s32.totalorder %v451, 15
        %vm532 = vcmp.eq.s32.totalorder %v452, 15
        %vm533 = vcmp.eq.s32.totalorder %v453, 15
        %vm534 = vcmp.eq.s32.totalorder %v454, 15
        %vm535 = vcmp.eq.s32.totalorder %v455, 15
        %vm536 = vcmp.eq.s32.totalorder %v456, 15
        %vm537 = vcmp.eq.s32.totalorder %v457, 15
        %vm538 = vcmp.eq.s32.totalorder %v458, 15
        %vm539 = vcmp.eq.s32.totalorder %v459, 15
        %vm540 = vcmp.eq.s32.totalorder %v460, 15
        %vm541 = vcmp.eq.s32.totalorder %v461, 15
        %vm542 = vcmp.eq.s32.totalorder %v462, 15
        %vm543 = vcmp.eq.s32.totalorder %v463, 15
        %vm544 = vcmp.eq.s32.totalorder %v464, 15
        %vm545 = vcmp.eq.s32.totalorder %v465, 15
        %v546 = vld [vmem:[#allocation8] sm:$0xff]
        %v547 = vld [vmem:[#allocation8 + $0x8] sm:$0xff]
        %v548 = vld [vmem:[#allocation8 + $0x10] sm:$0xff]
        %v549 = vld [vmem:[#allocation8 + $0x18] sm:$0xff]
        %v550 = vld [vmem:[#allocation8 + $0x20] sm:$0xff]
        %v551 = vld [vmem:[#allocation8 + $0x28] sm:$0xff]
        %v552 = vld [vmem:[#allocation8 + $0x30] sm:$0xff]
        %v553 = vld [vmem:[#allocation8 + $0x38] sm:$0xff]
        %v554 = vld [vmem:[#allocation8 + $0x40] sm:$0xff]
        %v555 = vld [vmem:[#allocation8 + $0x48] sm:$0xff]
        %v556 = vld [vmem:[#allocation8 + $0x50] sm:$0xff]
        %v557 = vld [vmem:[#allocation8 + $0x58] sm:$0xff]
        %v558 = vld [vmem:[#allocation8 + $0x60] sm:$0xff]
        %v559 = vld [vmem:[#allocation8 + $0x68] sm:$0xff]
        %v560 = vld [vmem:[#allocation8 + $0x70] sm:$0xff]
        %v561 = vld [vmem:[#allocation8 + $0x78] sm:$0xff]
        %v562 = vld [vmem:[#allocation8 + $0x80] sm:$0xff]
        %v563 = vld [vmem:[#allocation8 + $0x88] sm:$0xff]
        %v564 = vld [vmem:[#allocation8 + $0x90] sm:$0xff]
        %v565 = vld [vmem:[#allocation8 + $0x98] sm:$0xff]
        %v566 = vld [vmem:[#allocation8 + $0xa0] sm:$0xff]
        %v567 = vld [vmem:[#allocation8 + $0xa8] sm:$0xff]
        %v568 = vld [vmem:[#allocation8 + $0xb0] sm:$0xff]
        %v569 = vld [vmem:[#allocation8 + $0xb8] sm:$0xff]
        %v570 = vld [vmem:[#allocation8 + $0xc0] sm:$0xff]
        %v571 = vld [vmem:[#allocation8 + $0xc8] sm:$0xff]
        %v572 = vld [vmem:[#allocation8 + $0xd0] sm:$0xff]
        %v573 = vld [vmem:[#allocation8 + $0xd8] sm:$0xff]
        %v574 = vld [vmem:[#allocation8 + $0xe0] sm:$0xff]
        %v575 = vld [vmem:[#allocation8 + $0xe8] sm:$0xff]
        %v576 = vld [vmem:[#allocation8 + $0xf0] sm:$0xff]
        %v577 = vld [vmem:[#allocation8 + $0xf8] sm:$0xff]
        %v578 = vld [vmem:[#allocation8 + $0x100] sm:$0xff]
        %v579 = vld [vmem:[#allocation8 + $0x108] sm:$0xff]
        %v580 = vld [vmem:[#allocation8 + $0x110] sm:$0xff]
        %v581 = vld [vmem:[#allocation8 + $0x118] sm:$0xff]
        %v582 = vld [vmem:[#allocation8 + $0x120] sm:$0xff]
        %v583 = vld [vmem:[#allocation8 + $0x128] sm:$0xff]
        %v584 = vld [vmem:[#allocation8 + $0x130] sm:$0xff]
        %v585 = vld [vmem:[#allocation8 + $0x138] sm:$0xff]
        %v586 = vstv %s409
        %v587 = vadd.s32 %v586, %v546
        %v588 = vadd.s32 %v586, %v547
        %v589 = vadd.s32 %v586, %v548
        %v590 = vadd.s32 %v586, %v549
        %v591 = vadd.s32 %v586, %v550
        %v592 = vadd.s32 %v586, %v551
        %v593 = vadd.s32 %v586, %v552
        %v594 = vadd.s32 %v586, %v553
        %v595 = vadd.s32 %v586, %v554
        %v596 = vadd.s32 %v586, %v555
        %v597 = vadd.s32 %v586, %v556
        %v598 = vadd.s32 %v586, %v557
        %v599 = vadd.s32 %v586, %v558
        %v600 = vadd.s32 %v586, %v559
        %v601 = vadd.s32 %v586, %v560
        %v602 = vadd.s32 %v586, %v561
        %v603 = vadd.s32 %v586, %v562
        %v604 = vadd.s32 %v586, %v563
        %v605 = vadd.s32 %v586, %v564
        %v606 = vadd.s32 %v586, %v565
        %v607 = vadd.s32 %v586, %v566
        %v608 = vadd.s32 %v586, %v567
        %v609 = vadd.s32 %v586, %v568
        %v610 = vadd.s32 %v586, %v569
        %v611 = vadd.s32 %v586, %v570
        %v612 = vadd.s32 %v586, %v571
        %v613 = vadd.s32 %v586, %v572
        %v614 = vadd.s32 %v586, %v573
        %v615 = vadd.s32 %v586, %v574
        %v616 = vadd.s32 %v586, %v575
        %v617 = vadd.s32 %v586, %v576
        %v618 = vadd.s32 %v586, %v577
        %v619 = vadd.s32 %v586, %v578
        %v620 = vadd.s32 %v586, %v579
        %v621 = vadd.s32 %v586, %v580
        %v622 = vadd.s32 %v586, %v581
        %v623 = vadd.s32 %v586, %v582
        %v624 = vadd.s32 %v586, %v583
        %v625 = vadd.s32 %v586, %v584
        %v626 = vadd.s32 %v586, %v585
        %v627 = vsub.s32 %v587, 2
        %v628 = vsub.s32 %v588, 2
        %v629 = vsub.s32 %v589, 2
        %v630 = vsub.s32 %v590, 2
        %v631 = vsub.s32 %v591, 2
        %v632 = vsub.s32 %v592, 2
        %v633 = vsub.s32 %v593, 2
        %v634 = vsub.s32 %v594, 2
        %v635 = vsub.s32 %v595, 2
        %v636 = vsub.s32 %v596, 2
        %v637 = vsub.s32 %v597, 2
        %v638 = vsub.s32 %v598, 2
        %v639 = vsub.s32 %v599, 2
        %v640 = vsub.s32 %v600, 2
        %v641 = vsub.s32 %v601, 2
        %v642 = vsub.s32 %v602, 2
        %v643 = vsub.s32 %v603, 2
        %v644 = vsub.s32 %v604, 2
        %v645 = vsub.s32 %v605, 2
        %v646 = vsub.s32 %v606, 2
        %v647 = vsub.s32 %v607, 2
        %v648 = vsub.s32 %v608, 2
        %v649 = vsub.s32 %v609, 2
        %v650 = vsub.s32 %v610, 2
        %v651 = vsub.s32 %v611, 2
        %v652 = vsub.s32 %v612, 2
        %v653 = vsub.s32 %v613, 2
        %v654 = vsub.s32 %v614, 2
        %v655 = vsub.s32 %v615, 2
        %v656 = vsub.s32 %v616, 2
        %v657 = vsub.s32 %v617, 2
        %v658 = vsub.s32 %v618, 2
        %v659 = vsub.s32 %v619, 2
        %v660 = vsub.s32 %v620, 2
        %v661 = vsub.s32 %v621, 2
        %v662 = vsub.s32 %v622, 2
        %v663 = vsub.s32 %v623, 2
        %v664 = vsub.s32 %v624, 2
        %v665 = vsub.s32 %v625, 2
        %v666 = vsub.s32 %v626, 2
        %vm667 = vcmp.ge.s32.totalorder %v627, 0
        %vm668 = vcmp.ge.s32.totalorder %v628, 0
        %vm669 = vcmp.ge.s32.totalorder %v629, 0
        %vm670 = vcmp.ge.s32.totalorder %v630, 0
        %vm671 = vcmp.ge.s32.totalorder %v631, 0
        %vm672 = vcmp.ge.s32.totalorder %v632, 0
        %vm673 = vcmp.ge.s32.totalorder %v633, 0
        %vm674 = vcmp.ge.s32.totalorder %v634, 0
        %vm675 = vcmp.ge.s32.totalorder %v635, 0
        %vm676 = vcmp.ge.s32.totalorder %v636, 0
        %vm677 = vcmp.ge.s32.totalorder %v637, 0
        %vm678 = vcmp.ge.s32.totalorder %v638, 0
        %vm679 = vcmp.ge.s32.totalorder %v639, 0
        %vm680 = vcmp.ge.s32.totalorder %v640, 0
        %vm681 = vcmp.ge.s32.totalorder %v641, 0
        %vm682 = vcmp.ge.s32.totalorder %v642, 0
        %vm683 = vcmp.ge.s32.totalorder %v643, 0
        %vm684 = vcmp.ge.s32.totalorder %v644, 0
        %vm685 = vcmp.ge.s32.totalorder %v645, 0
        %vm686 = vcmp.ge.s32.totalorder %v646, 0
        %vm687 = vcmp.ge.s32.totalorder %v647, 0
        %vm688 = vcmp.ge.s32.totalorder %v648, 0
        %vm689 = vcmp.ge.s32.totalorder %v649, 0
        %vm690 = vcmp.ge.s32.totalorder %v650, 0
        %vm691 = vcmp.ge.s32.totalorder %v651, 0
        %vm692 = vcmp.ge.s32.totalorder %v652, 0
        %vm693 = vcmp.ge.s32.totalorder %v653, 0
        %vm694 = vcmp.ge.s32.totalorder %v654, 0
        %vm695 = vcmp.ge.s32.totalorder %v655, 0
        %vm696 = vcmp.ge.s32.totalorder %v656, 0
        %vm697 = vcmp.ge.s32.totalorder %v657, 0
        %vm698 = vcmp.ge.s32.totalorder %v658, 0
        %vm699 = vcmp.ge.s32.totalorder %v659, 0
        %vm700 = vcmp.ge.s32.totalorder %v660, 0
        %vm701 = vcmp.ge.s32.totalorder %v661, 0
        %vm702 = vcmp.ge.s32.totalorder %v662, 0
        %vm703 = vcmp.ge.s32.totalorder %v663, 0
        %vm704 = vcmp.ge.s32.totalorder %v664, 0
        %vm705 = vcmp.ge.s32.totalorder %v665, 0
        %vm706 = vcmp.ge.s32.totalorder %v666, 0
        %vm707 = vcmp.lt.s32.totalorder %v627, 16
        %vm708 = vcmp.lt.s32.totalorder %v628, 16
        %vm709 = vcmp.lt.s32.totalorder %v629, 16
        %vm710 = vcmp.lt.s32.totalorder %v630, 16
        %vm711 = vcmp.lt.s32.totalorder %v631, 16
        %vm712 = vcmp.lt.s32.totalorder %v632, 16
        %vm713 = vcmp.lt.s32.totalorder %v633, 16
        %vm714 = vcmp.lt.s32.totalorder %v634, 16
        %vm715 = vcmp.lt.s32.totalorder %v635, 16
        %vm716 = vcmp.lt.s32.totalorder %v636, 16
        %vm717 = vcmp.lt.s32.totalorder %v637, 16
        %vm718 = vcmp.lt.s32.totalorder %v638, 16
        %vm719 = vcmp.lt.s32.totalorder %v639, 16
        %vm720 = vcmp.lt.s32.totalorder %v640, 16
        %vm721 = vcmp.lt.s32.totalorder %v641, 16
        %vm722 = vcmp.lt.s32.totalorder %v642, 16
        %vm723 = vcmp.lt.s32.totalorder %v643, 16
        %vm724 = vcmp.lt.s32.totalorder %v644, 16
        %vm725 = vcmp.lt.s32.totalorder %v645, 16
        %vm726 = vcmp.lt.s32.totalorder %v646, 16
        %vm727 = vcmp.lt.s32.totalorder %v647, 16
        %vm728 = vcmp.lt.s32.totalorder %v648, 16
        %vm729 = vcmp.lt.s32.totalorder %v649, 16
        %vm730 = vcmp.lt.s32.totalorder %v650, 16
        %vm731 = vcmp.lt.s32.totalorder %v651, 16
        %vm732 = vcmp.lt.s32.totalorder %v652, 16
        %vm733 = vcmp.lt.s32.totalorder %v653, 16
        %vm734 = vcmp.lt.s32.totalorder %v654, 16
        %vm735 = vcmp.lt.s32.totalorder %v655, 16
        %vm736 = vcmp.lt.s32.totalorder %v656, 16
        %vm737 = vcmp.lt.s32.totalorder %v657, 16
        %vm738 = vcmp.lt.s32.totalorder %v658, 16
        %vm739 = vcmp.lt.s32.totalorder %v659, 16
        %vm740 = vcmp.lt.s32.totalorder %v660, 16
        %vm741 = vcmp.lt.s32.totalorder %v661, 16
        %vm742 = vcmp.lt.s32.totalorder %v662, 16
        %vm743 = vcmp.lt.s32.totalorder %v663, 16
        %vm744 = vcmp.lt.s32.totalorder %v664, 16
        %vm745 = vcmp.lt.s32.totalorder %v665, 16
        %vm746 = vcmp.lt.s32.totalorder %v666, 16
        %vm747 = vmand %vm667, %vm707
        %vm748 = vmand %vm668, %vm708
        %vm749 = vmand %vm669, %vm709
        %vm750 = vmand %vm670, %vm710
        %vm751 = vmand %vm671, %vm711
        %vm752 = vmand %vm672, %vm712
        %vm753 = vmand %vm673, %vm713
        %vm754 = vmand %vm674, %vm714
        %vm755 = vmand %vm675, %vm715
        %vm756 = vmand %vm676, %vm716
        %vm757 = vmand %vm677, %vm717
        %vm758 = vmand %vm678, %vm718
        %vm759 = vmand %vm679, %vm719
        %vm760 = vmand %vm680, %vm720
        %vm761 = vmand %vm681, %vm721
        %vm762 = vmand %vm682, %vm722
        %vm763 = vmand %vm683, %vm723
        %vm764 = vmand %vm684, %vm724
        %vm765 = vmand %vm685, %vm725
        %vm766 = vmand %vm686, %vm726
        %vm767 = vmand %vm687, %vm727
        %vm768 = vmand %vm688, %vm728
        %vm769 = vmand %vm689, %vm729
        %vm770 = vmand %vm690, %vm730
        %vm771 = vmand %vm691, %vm731
        %vm772 = vmand %vm692, %vm732
        %vm773 = vmand %vm693, %vm733
        %vm774 = vmand %vm694, %vm734
        %vm775 = vmand %vm695, %vm735
        %vm776 = vmand %vm696, %vm736
        %vm777 = vmand %vm697, %vm737
        %vm778 = vmand %vm698, %vm738
        %vm779 = vmand %vm699, %vm739
        %vm780 = vmand %vm700, %vm740
        %vm781 = vmand %vm701, %vm741
        %vm782 = vmand %vm702, %vm742
        %vm783 = vmand %vm703, %vm743
        %vm784 = vmand %vm704, %vm744
        %vm785 = vmand %vm705, %vm745
        %vm786 = vmand %vm706, %vm746
        %vm787 = vcmp.lt.s32.totalorder %v426, 16
        %vm788 = vcmp.lt.s32.totalorder %v427, 16
        %vm789 = vcmp.lt.s32.totalorder %v428, 16
        %vm790 = vcmp.lt.s32.totalorder %v429, 16
        %vm791 = vcmp.lt.s32.totalorder %v430, 16
        %vm792 = vcmp.lt.s32.totalorder %v431, 16
        %vm793 = vcmp.lt.s32.totalorder %v432, 16
        %vm794 = vcmp.lt.s32.totalorder %v433, 16
        %vm795 = vcmp.lt.s32.totalorder %v434, 16
        %vm796 = vcmp.lt.s32.totalorder %v435, 16
        %vm797 = vcmp.lt.s32.totalorder %v436, 16
        %vm798 = vcmp.lt.s32.totalorder %v437, 16
        %vm799 = vcmp.lt.s32.totalorder %v438, 16
        %vm800 = vcmp.lt.s32.totalorder %v439, 16
        %vm801 = vcmp.lt.s32.totalorder %v440, 16
        %vm802 = vcmp.lt.s32.totalorder %v441, 16
        %vm803 = vcmp.lt.s32.totalorder %v442, 16
        %vm804 = vcmp.lt.s32.totalorder %v443, 16
        %vm805 = vcmp.lt.s32.totalorder %v444, 16
        %vm806 = vcmp.lt.s32.totalorder %v445, 16
        %vm807 = vcmp.lt.s32.totalorder %v446, 16
        %vm808 = vcmp.lt.s32.totalorder %v447, 16
        %vm809 = vcmp.lt.s32.totalorder %v448, 16
        %vm810 = vcmp.lt.s32.totalorder %v449, 16
        %vm811 = vcmp.lt.s32.totalorder %v450, 16
        %vm812 = vcmp.lt.s32.totalorder %v451, 16
        %vm813 = vcmp.lt.s32.totalorder %v452, 16
        %vm814 = vcmp.lt.s32.totalorder %v453, 16
        %vm815 = vcmp.lt.s32.totalorder %v454, 16
        %vm816 = vcmp.lt.s32.totalorder %v455, 16
        %vm817 = vcmp.lt.s32.totalorder %v456, 16
        %vm818 = vcmp.lt.s32.totalorder %v457, 16
        %vm819 = vcmp.lt.s32.totalorder %v458, 16
        %vm820 = vcmp.lt.s32.totalorder %v459, 16
        %vm821 = vcmp.lt.s32.totalorder %v460, 16
        %vm822 = vcmp.lt.s32.totalorder %v461, 16
        %vm823 = vcmp.lt.s32.totalorder %v462, 16
        %vm824 = vcmp.lt.s32.totalorder %v463, 16
        %vm825 = vcmp.lt.s32.totalorder %v464, 16
        %vm826 = vcmp.lt.s32.totalorder %v465, 16
        %vm827 = vmand %vm747, %vm787
        %vm828 = vmand %vm748, %vm788
        %vm829 = vmand %vm749, %vm789
        %vm830 = vmand %vm750, %vm790
        %vm831 = vmand %vm751, %vm791
        %vm832 = vmand %vm752, %vm792
        %vm833 = vmand %vm753, %vm793
        %vm834 = vmand %vm754, %vm794
        %vm835 = vmand %vm755, %vm795
        %vm836 = vmand %vm756, %vm796
        %vm837 = vmand %vm757, %vm797
        %vm838 = vmand %vm758, %vm798
        %vm839 = vmand %vm759, %vm799
        %vm840 = vmand %vm760, %vm800
        %vm841 = vmand %vm761, %vm801
        %vm842 = vmand %vm762, %vm802
        %vm843 = vmand %vm763, %vm803
        %vm844 = vmand %vm764, %vm804
        %vm845 = vmand %vm765, %vm805
        %vm846 = vmand %vm766, %vm806
        %vm847 = vmand %vm767, %vm807
        %vm848 = vmand %vm768, %vm808
        %vm849 = vmand %vm769, %vm809
        %vm850 = vmand %vm770, %vm810
        %vm851 = vmand %vm771, %vm811
        %vm852 = vmand %vm772, %vm812
        %vm853 = vmand %vm773, %vm813
        %vm854 = vmand %vm774, %vm814
        %vm855 = vmand %vm775, %vm815
        %vm856 = vmand %vm776, %vm816
        %vm857 = vmand %vm777, %vm817
        %vm858 = vmand %vm778, %vm818
        %vm859 = vmand %vm779, %vm819
        %vm860 = vmand %vm780, %vm820
        %vm861 = vmand %vm781, %vm821
        %vm862 = vmand %vm782, %vm822
        %vm863 = vmand %vm783, %vm823
        %vm864 = vmand %vm784, %vm824
        %vm865 = vmand %vm785, %vm825
        %vm866 = vmand %vm786, %vm826
        %s867 = smul.u32 20, 16
        %s868 = smul.u32 %s867, 1
        %s869 = sshll.u32 %s868, 4
        %870 = dma.done [#allocation4], %s869
        %v871 = vld [vmem:[#allocation2] sm:$0xff]
        %v872 = vld [vmem:[#allocation2 + $0x8] sm:$0xff]
        %v873 = vld [vmem:[#allocation2 + $0x10] sm:$0xff]
        %v874 = vld [vmem:[#allocation2 + $0x18] sm:$0xff]
        %v875 = vld [vmem:[#allocation2 + $0x20] sm:$0xff]
        %v876 = vld [vmem:[#allocation2 + $0x28] sm:$0xff]
        %v877 = vld [vmem:[#allocation2 + $0x30] sm:$0xff]
        %v878 = vld [vmem:[#allocation2 + $0x38] sm:$0xff]
        %v879 = vld [vmem:[#allocation2 + $0x40] sm:$0xff]
        %v880 = vld [vmem:[#allocation2 + $0x48] sm:$0xff]
        %v881 = vld [vmem:[#allocation2 + $0x50] sm:$0xff]
        %v882 = vld [vmem:[#allocation2 + $0x58] sm:$0xff]
        %v883 = vld [vmem:[#allocation2 + $0x60] sm:$0xff]
        %v884 = vld [vmem:[#allocation2 + $0x68] sm:$0xff]
        %v885 = vld [vmem:[#allocation2 + $0x70] sm:$0xff]
        %v886 = vld [vmem:[#allocation2 + $0x78] sm:$0xff]
        %v887 = vld [vmem:[#allocation2 + $0x80] sm:$0xff]
        %v888 = vld [vmem:[#allocation2 + $0x88] sm:$0xff]
        %v889 = vld [vmem:[#allocation2 + $0x90] sm:$0xff]
        %v890 = vld [vmem:[#allocation2 + $0x98] sm:$0xff]
        %v891 = vld [vmem:[#allocation2 + $0xa0] sm:$0xff]
        %v892 = vld [vmem:[#allocation2 + $0xa8] sm:$0xff]
        %v893 = vld [vmem:[#allocation2 + $0xb0] sm:$0xff]
        %v894 = vld [vmem:[#allocation2 + $0xb8] sm:$0xff]
        %v895 = vld [vmem:[#allocation2 + $0xc0] sm:$0xff]
        %v896 = vld [vmem:[#allocation2 + $0xc8] sm:$0xff]
        %v897 = vld [vmem:[#allocation2 + $0xd0] sm:$0xff]
        %v898 = vld [vmem:[#allocation2 + $0xd8] sm:$0xff]
        %v899 = vld [vmem:[#allocation2 + $0xe0] sm:$0xff]
        %v900 = vld [vmem:[#allocation2 + $0xe8] sm:$0xff]
        %v901 = vld [vmem:[#allocation2 + $0xf0] sm:$0xff]
        %v902 = vld [vmem:[#allocation2 + $0xf8] sm:$0xff]
        %v903 = vld [vmem:[#allocation2 + $0x100] sm:$0xff]
        %v904 = vld [vmem:[#allocation2 + $0x108] sm:$0xff]
        %v905 = vld [vmem:[#allocation2 + $0x110] sm:$0xff]
        %v906 = vld [vmem:[#allocation2 + $0x118] sm:$0xff]
        %v907 = vld [vmem:[#allocation2 + $0x120] sm:$0xff]
        %v908 = vld [vmem:[#allocation2 + $0x128] sm:$0xff]
        %v909 = vld [vmem:[#allocation2 + $0x130] sm:$0xff]
        %v910 = vld [vmem:[#allocation2 + $0x138] sm:$0xff]
        %v911 = vrot.slane %v871, 7
        %v912 = vrot.slane %v872, 7
        %v913 = vrot.slane %v873, 7
        %v914 = vrot.slane %v874, 7
        %v915 = vrot.slane %v875, 7
        %v916 = vrot.slane %v876, 7
        %v917 = vrot.slane %v877, 7
        %v918 = vrot.slane %v878, 7
        %v919 = vrot.slane %v879, 7
        %v920 = vrot.slane %v880, 7
        %v921 = vrot.slane %v881, 7
        %v922 = vrot.slane %v882, 7
        %v923 = vrot.slane %v883, 7
        %v924 = vrot.slane %v884, 7
        %v925 = vrot.slane %v885, 7
        %v926 = vrot.slane %v886, 7
        %v927 = vrot.slane %v887, 7
        %v928 = vrot.slane %v888, 7
        %v929 = vrot.slane %v889, 7
        %v930 = vrot.slane %v890, 7
        %v931 = vrot.slane %v891, 7
        %v932 = vrot.slane %v892, 7
        %v933 = vrot.slane %v893, 7
        %v934 = vrot.slane %v894, 7
        %v935 = vrot.slane %v895, 7
        %v936 = vrot.slane %v896, 7
        %v937 = vrot.slane %v897, 7
        %v938 = vrot.slane %v898, 7
        %v939 = vrot.slane %v899, 7
        %v940 = vrot.slane %v900, 7
        %v941 = vrot.slane %v901, 7
        %v942 = vrot.slane %v902, 7
        %v943 = vrot.slane %v903, 7
        %v944 = vrot.slane %v904, 7
        %v945 = vrot.slane %v905, 7
        %v946 = vrot.slane %v906, 7
        %v947 = vrot.slane %v907, 7
        %v948 = vrot.slane %v908, 7
        %v949 = vrot.slane %v909, 7
        %v950 = vrot.slane %v910, 7
        %v951 = vlaneseq
        %v952 = vshrl.u32 %v951, 7
        %vm953 = vcmp.lt.s32.totalorder %v952, 1
        %v954 = vsel %vm953, %v949, %v950
        %v955 = vsel %vm953, %v948, %v949
        %v956 = vsel %vm953, %v947, %v948
        %v957 = vsel %vm953, %v946, %v947
        %v958 = vsel %vm953, %v945, %v946
        %v959 = vsel %vm953, %v944, %v945
        %v960 = vsel %vm953, %v943, %v944
        %v961 = vsel %vm953, %v942, %v943
        %v962 = vsel %vm953, %v941, %v942
        %v963 = vsel %vm953, %v940, %v941
        %v964 = vsel %vm953, %v939, %v940
        %v965 = vsel %vm953, %v938, %v939
        %v966 = vsel %vm953, %v937, %v938
        %v967 = vsel %vm953, %v936, %v937
        %v968 = vsel %vm953, %v935, %v936
        %v969 = vsel %vm953, %v934, %v935
        %v970 = vsel %vm953, %v933, %v934
        %v971 = vsel %vm953, %v932, %v933
        %v972 = vsel %vm953, %v931, %v932
        %v973 = vsel %vm953, %v930, %v931
        %v974 = vsel %vm953, %v929, %v930
        %v975 = vsel %vm953, %v928, %v929
        %v976 = vsel %vm953, %v927, %v928
        %v977 = vsel %vm953, %v926, %v927
        %v978 = vsel %vm953, %v925, %v926
        %v979 = vsel %vm953, %v924, %v925
        %v980 = vsel %vm953, %v923, %v924
        %v981 = vsel %vm953, %v922, %v923
        %v982 = vsel %vm953, %v921, %v922
        %v983 = vsel %vm953, %v920, %v921
        %v984 = vsel %vm953, %v919, %v920
        %v985 = vsel %vm953, %v918, %v919
        %v986 = vsel %vm953, %v917, %v918
        %v987 = vsel %vm953, %v916, %v917
        %v988 = vsel %vm953, %v915, %v916
        %v989 = vsel %vm953, %v914, %v915
        %v990 = vsel %vm953, %v913, %v914
        %v991 = vsel %vm953, %v912, %v913
        %v992 = vsel %vm953, %v911, %v912
        %v993 = vsel %vm953, %v950, %v911
        %v994 = vsel %vm466, 1, 0
        %v995 = vsel %vm467, 1, 0
        %v996 = vsel %vm468, 1, 0
        %v997 = vsel %vm469, 1, 0
        %v998 = vsel %vm470, 1, 0
        %v999 = vsel %vm471, 1, 0
        %v1000 = vsel %vm472, 1, 0
        %v1001 = vsel %vm473, 1, 0
        %v1002 = vsel %vm474, 1, 0
        %v1003 = vsel %vm475, 1, 0
        %v1004 = vsel %vm476, 1, 0
        %v1005 = vsel %vm477, 1, 0
        %v1006 = vsel %vm478, 1, 0
        %v1007 = vsel %vm479, 1, 0
        %v1008 = vsel %vm480, 1, 0
        %v1009 = vsel %vm481, 1, 0
        %v1010 = vsel %vm482, 1, 0
        %v1011 = vsel %vm483, 1, 0
        %v1012 = vsel %vm484, 1, 0
        %v1013 = vsel %vm485, 1, 0
        %v1014 = vsel %vm486, 1, 0
        %v1015 = vsel %vm487, 1, 0
        %v1016 = vsel %vm488, 1, 0
        %v1017 = vsel %vm489, 1, 0
        %v1018 = vsel %vm490, 1, 0
        %v1019 = vsel %vm491, 1, 0
        %v1020 = vsel %vm492, 1, 0
        %v1021 = vsel %vm493, 1, 0
        %v1022 = vsel %vm494, 1, 0
        %v1023 = vsel %vm495, 1, 0
        %v1024 = vsel %vm496, 1, 0
        %v1025 = vsel %vm497, 1, 0
        %v1026 = vsel %vm498, 1, 0
        %v1027 = vsel %vm499, 1, 0
        %v1028 = vsel %vm500, 1, 0
        %v1029 = vsel %vm501, 1, 0
        %v1030 = vsel %vm502, 1, 0
        %v1031 = vsel %vm503, 1, 0
        %v1032 = vsel %vm504, 1, 0
        %v1033 = vsel %vm505, 1, 0
        %1034 = vset.pattern.permute.xlu0 0
        %1035 = vperm.xlu0 %1034, %v994
        %v1036 = vpop.permute.xlu0 %1035
        %1037 = vset.pattern.permute.xlu0 0
        %1038 = vperm.xlu0 %1037, %v995
        %v1039 = vpop.permute.xlu0 %1038
        %1040 = vset.pattern.permute.xlu0 0
        %1041 = vperm.xlu0 %1040, %v996
        %v1042 = vpop.permute.xlu0 %1041
        %1043 = vset.pattern.permute.xlu0 0
        %1044 = vperm.xlu0 %1043, %v997
        %v1045 = vpop.permute.xlu0 %1044
        %1046 = vset.pattern.permute.xlu0 0
        %1047 = vperm.xlu0 %1046, %v998
        %v1048 = vpop.permute.xlu0 %1047
        %1049 = vset.pattern.permute.xlu0 0
        %1050 = vperm.xlu0 %1049, %v999
        %v1051 = vpop.permute.xlu0 %1050
        %1052 = vset.pattern.permute.xlu0 0
        %1053 = vperm.xlu0 %1052, %v1000
        %v1054 = vpop.permute.xlu0 %1053
        %1055 = vset.pattern.permute.xlu0 0
        %1056 = vperm.xlu0 %1055, %v1001
        %v1057 = vpop.permute.xlu0 %1056
        %1058 = vset.pattern.permute.xlu0 0
        %1059 = vperm.xlu0 %1058, %v1002
        %v1060 = vpop.permute.xlu0 %1059
        %1061 = vset.pattern.permute.xlu0 0
        %1062 = vperm.xlu0 %1061, %v1003
        %v1063 = vpop.permute.xlu0 %1062
        %1064 = vset.pattern.permute.xlu0 0
        %1065 = vperm.xlu0 %1064, %v1004
        %v1066 = vpop.permute.xlu0 %1065
        %1067 = vset.pattern.permute.xlu0 0
        %1068 = vperm.xlu0 %1067, %v1005
        %v1069 = vpop.permute.xlu0 %1068
        %1070 = vset.pattern.permute.xlu0 0
        %1071 = vperm.xlu0 %1070, %v1006
        %v1072 = vpop.permute.xlu0 %1071
        %1073 = vset.pattern.permute.xlu0 0
        %1074 = vperm.xlu0 %1073, %v1007
        %v1075 = vpop.permute.xlu0 %1074
        %1076 = vset.pattern.permute.xlu0 0
        %1077 = vperm.xlu0 %1076, %v1008
        %v1078 = vpop.permute.xlu0 %1077
        %1079 = vset.pattern.permute.xlu0 0
        %1080 = vperm.xlu0 %1079, %v1009
        %v1081 = vpop.permute.xlu0 %1080
        %1082 = vset.pattern.permute.xlu0 0
        %1083 = vperm.xlu0 %1082, %v1010
        %v1084 = vpop.permute.xlu0 %1083
        %1085 = vset.pattern.permute.xlu0 0
        %1086 = vperm.xlu0 %1085, %v1011
        %v1087 = vpop.permute.xlu0 %1086
        %1088 = vset.pattern.permute.xlu0 0
        %1089 = vperm.xlu0 %1088, %v1012
        %v1090 = vpop.permute.xlu0 %1089
        %1091 = vset.pattern.permute.xlu0 0
        %1092 = vperm.xlu0 %1091, %v1013
        %v1093 = vpop.permute.xlu0 %1092
        %1094 = vset.pattern.permute.xlu0 0
        %1095 = vperm.xlu0 %1094, %v1014
        %v1096 = vpop.permute.xlu0 %1095
        %1097 = vset.pattern.permute.xlu0 0
        %1098 = vperm.xlu0 %1097, %v1015
        %v1099 = vpop.permute.xlu0 %1098
        %1100 = vset.pattern.permute.xlu0 0
        %1101 = vperm.xlu0 %1100, %v1016
        %v1102 = vpop.permute.xlu0 %1101
        %1103 = vset.pattern.permute.xlu0 0
        %1104 = vperm.xlu0 %1103, %v1017
        %v1105 = vpop.permute.xlu0 %1104
        %1106 = vset.pattern.permute.xlu0 0
        %1107 = vperm.xlu0 %1106, %v1018
        %v1108 = vpop.permute.xlu0 %1107
        %1109 = vset.pattern.permute.xlu0 0
        %1110 = vperm.xlu0 %1109, %v1019
        %v1111 = vpop.permute.xlu0 %1110
        %1112 = vset.pattern.permute.xlu0 0
        %1113 = vperm.xlu0 %1112, %v1020
        %v1114 = vpop.permute.xlu0 %1113
        %1115 = vset.pattern.permute.xlu0 0
        %1116 = vperm.xlu0 %1115, %v1021
        %v1117 = vpop.permute.xlu0 %1116
        %1118 = vset.pattern.permute.xlu0 0
        %1119 = vperm.xlu0 %1118, %v1022
        %v1120 = vpop.permute.xlu0 %1119
        %1121 = vset.pattern.permute.xlu0 0
        %1122 = vperm.xlu0 %1121, %v1023
        %v1123 = vpop.permute.xlu0 %1122
        %1124 = vset.pattern.permute.xlu0 0
        %1125 = vperm.xlu0 %1124, %v1024
        %v1126 = vpop.permute.xlu0 %1125
        %1127 = vset.pattern.permute.xlu0 0
        %1128 = vperm.xlu0 %1127, %v1025
        %v1129 = vpop.permute.xlu0 %1128
        %1130 = vset.pattern.permute.xlu0 0
        %1131 = vperm.xlu0 %1130, %v1026
        %v1132 = vpop.permute.xlu0 %1131
        %1133 = vset.pattern.permute.xlu0 0
        %1134 = vperm.xlu0 %1133, %v1027
        %v1135 = vpop.permute.xlu0 %1134
        %1136 = vset.pattern.permute.xlu0 0
        %1137 = vperm.xlu0 %1136, %v1028
        %v1138 = vpop.permute.xlu0 %1137
        %1139 = vset.pattern.permute.xlu0 0
        %1140 = vperm.xlu0 %1139, %v1029
        %v1141 = vpop.permute.xlu0 %1140
        %1142 = vset.pattern.permute.xlu0 0
        %1143 = vperm.xlu0 %1142, %v1030
        %v1144 = vpop.permute.xlu0 %1143
        %1145 = vset.pattern.permute.xlu0 0
        %1146 = vperm.xlu0 %1145, %v1031
        %v1147 = vpop.permute.xlu0 %1146
        %1148 = vset.pattern.permute.xlu0 0
        %1149 = vperm.xlu0 %1148, %v1032
        %v1150 = vpop.permute.xlu0 %1149
        %1151 = vset.pattern.permute.xlu0 0
        %1152 = vperm.xlu0 %1151, %v1033
        %v1153 = vpop.permute.xlu0 %1152
        %vm1154 = vcmp.eq.s32.totalorder %v1036, 1
        %vm1155 = vcmp.eq.s32.totalorder %v1039, 1
        %vm1156 = vcmp.eq.s32.totalorder %v1042, 1
        %vm1157 = vcmp.eq.s32.totalorder %v1045, 1
        %vm1158 = vcmp.eq.s32.totalorder %v1048, 1
        %vm1159 = vcmp.eq.s32.totalorder %v1051, 1
        %vm1160 = vcmp.eq.s32.totalorder %v1054, 1
        %vm1161 = vcmp.eq.s32.totalorder %v1057, 1
        %vm1162 = vcmp.eq.s32.totalorder %v1060, 1
        %vm1163 = vcmp.eq.s32.totalorder %v1063, 1
        %vm1164 = vcmp.eq.s32.totalorder %v1066, 1
        %vm1165 = vcmp.eq.s32.totalorder %v1069, 1
        %vm1166 = vcmp.eq.s32.totalorder %v1072, 1
        %vm1167 = vcmp.eq.s32.totalorder %v1075, 1
        %vm1168 = vcmp.eq.s32.totalorder %v1078, 1
        %vm1169 = vcmp.eq.s32.totalorder %v1081, 1
        %vm1170 = vcmp.eq.s32.totalorder %v1084, 1
        %vm1171 = vcmp.eq.s32.totalorder %v1087, 1
        %vm1172 = vcmp.eq.s32.totalorder %v1090, 1
        %vm1173 = vcmp.eq.s32.totalorder %v1093, 1
        %vm1174 = vcmp.eq.s32.totalorder %v1096, 1
        %vm1175 = vcmp.eq.s32.totalorder %v1099, 1
        %vm1176 = vcmp.eq.s32.totalorder %v1102, 1
        %vm1177 = vcmp.eq.s32.totalorder %v1105, 1
        %vm1178 = vcmp.eq.s32.totalorder %v1108, 1
        %vm1179 = vcmp.eq.s32.totalorder %v1111, 1
        %vm1180 = vcmp.eq.s32.totalorder %v1114, 1
        %vm1181 = vcmp.eq.s32.totalorder %v1117, 1
        %vm1182 = vcmp.eq.s32.totalorder %v1120, 1
        %vm1183 = vcmp.eq.s32.totalorder %v1123, 1
        %vm1184 = vcmp.eq.s32.totalorder %v1126, 1
        %vm1185 = vcmp.eq.s32.totalorder %v1129, 1
        %vm1186 = vcmp.eq.s32.totalorder %v1132, 1
        %vm1187 = vcmp.eq.s32.totalorder %v1135, 1
        %vm1188 = vcmp.eq.s32.totalorder %v1138, 1
        %vm1189 = vcmp.eq.s32.totalorder %v1141, 1
        %vm1190 = vcmp.eq.s32.totalorder %v1144, 1
        %vm1191 = vcmp.eq.s32.totalorder %v1147, 1
        %vm1192 = vcmp.eq.s32.totalorder %v1150, 1
        %vm1193 = vcmp.eq.s32.totalorder %v1153, 1
        %v1194 = vsel %vm1154, 0.0, %v993
        %v1195 = vsel %vm1155, 0.0, %v992
        %v1196 = vsel %vm1156, 0.0, %v991
        %v1197 = vsel %vm1157, 0.0, %v990
        %v1198 = vsel %vm1158, 0.0, %v989
        %v1199 = vsel %vm1159, 0.0, %v988
        %v1200 = vsel %vm1160, 0.0, %v987
        %v1201 = vsel %vm1161, 0.0, %v986
        %v1202 = vsel %vm1162, 0.0, %v985
        %v1203 = vsel %vm1163, 0.0, %v984
        %v1204 = vsel %vm1164, 0.0, %v983
        %v1205 = vsel %vm1165, 0.0, %v982
        %v1206 = vsel %vm1166, 0.0, %v981
        %v1207 = vsel %vm1167, 0.0, %v980
        %v1208 = vsel %vm1168, 0.0, %v979
        %v1209 = vsel %vm1169, 0.0, %v978
        %v1210 = vsel %vm1170, 0.0, %v977
        %v1211 = vsel %vm1171, 0.0, %v976
        %v1212 = vsel %vm1172, 0.0, %v975
        %v1213 = vsel %vm1173, 0.0, %v974
        %v1214 = vsel %vm1174, 0.0, %v973
        %v1215 = vsel %vm1175, 0.0, %v972
        %v1216 = vsel %vm1176, 0.0, %v971
        %v1217 = vsel %vm1177, 0.0, %v970
        %v1218 = vsel %vm1178, 0.0, %v969
        %v1219 = vsel %vm1179, 0.0, %v968
        %v1220 = vsel %vm1180, 0.0, %v967
        %v1221 = vsel %vm1181, 0.0, %v966
        %v1222 = vsel %vm1182, 0.0, %v965
        %v1223 = vsel %vm1183, 0.0, %v964
        %v1224 = vsel %vm1184, 0.0, %v963
        %v1225 = vsel %vm1185, 0.0, %v962
        %v1226 = vsel %vm1186, 0.0, %v961
        %v1227 = vsel %vm1187, 0.0, %v960
        %v1228 = vsel %vm1188, 0.0, %v959
        %v1229 = vsel %vm1189, 0.0, %v958
        %v1230 = vsel %vm1190, 0.0, %v957
        %v1231 = vsel %vm1191, 0.0, %v956
        %v1232 = vsel %vm1192, 0.0, %v955
        %v1233 = vsel %vm1193, 0.0, %v954
        %v1234 = vrot.slane %v871, 1
        %v1235 = vrot.slane %v872, 1
        %v1236 = vrot.slane %v873, 1
        %v1237 = vrot.slane %v874, 1
        %v1238 = vrot.slane %v875, 1
        %v1239 = vrot.slane %v876, 1
        %v1240 = vrot.slane %v877, 1
        %v1241 = vrot.slane %v878, 1
        %v1242 = vrot.slane %v879, 1
        %v1243 = vrot.slane %v880, 1
        %v1244 = vrot.slane %v881, 1
        %v1245 = vrot.slane %v882, 1
        %v1246 = vrot.slane %v883, 1
        %v1247 = vrot.slane %v884, 1
        %v1248 = vrot.slane %v885, 1
        %v1249 = vrot.slane %v886, 1
        %v1250 = vrot.slane %v887, 1
        %v1251 = vrot.slane %v888, 1
        %v1252 = vrot.slane %v889, 1
        %v1253 = vrot.slane %v890, 1
        %v1254 = vrot.slane %v891, 1
        %v1255 = vrot.slane %v892, 1
        %v1256 = vrot.slane %v893, 1
        %v1257 = vrot.slane %v894, 1
        %v1258 = vrot.slane %v895, 1
        %v1259 = vrot.slane %v896, 1
        %v1260 = vrot.slane %v897, 1
        %v1261 = vrot.slane %v898, 1
        %v1262 = vrot.slane %v899, 1
        %v1263 = vrot.slane %v900, 1
        %v1264 = vrot.slane %v901, 1
        %v1265 = vrot.slane %v902, 1
        %v1266 = vrot.slane %v903, 1
        %v1267 = vrot.slane %v904, 1
        %v1268 = vrot.slane %v905, 1
        %v1269 = vrot.slane %v906, 1
        %v1270 = vrot.slane %v907, 1
        %v1271 = vrot.slane %v908, 1
        %v1272 = vrot.slane %v909, 1
        %v1273 = vrot.slane %v910, 1
        %vm1274 = vcmp.lt.s32.totalorder %v952, 7
        %v1275 = vsel %vm1274, %v1272, %v1273
        %v1276 = vsel %vm1274, %v1271, %v1272
        %v1277 = vsel %vm1274, %v1270, %v1271
        %v1278 = vsel %vm1274, %v1269, %v1270
        %v1279 = vsel %vm1274, %v1268, %v1269
        %v1280 = vsel %vm1274, %v1267, %v1268
        %v1281 = vsel %vm1274, %v1266, %v1267
        %v1282 = vsel %vm1274, %v1265, %v1266
        %v1283 = vsel %vm1274, %v1264, %v1265
        %v1284 = vsel %vm1274, %v1263, %v1264
        %v1285 = vsel %vm1274, %v1262, %v1263
        %v1286 = vsel %vm1274, %v1261, %v1262
        %v1287 = vsel %vm1274, %v1260, %v1261
        %v1288 = vsel %vm1274, %v1259, %v1260
        %v1289 = vsel %vm1274, %v1258, %v1259
        %v1290 = vsel %vm1274, %v1257, %v1258
        %v1291 = vsel %vm1274, %v1256, %v1257
        %v1292 = vsel %vm1274, %v1255, %v1256
        %v1293 = vsel %vm1274, %v1254, %v1255
        %v1294 = vsel %vm1274, %v1253, %v1254
        %v1295 = vsel %vm1274, %v1252, %v1253
        %v1296 = vsel %vm1274, %v1251, %v1252
        %v1297 = vsel %vm1274, %v1250, %v1251
        %v1298 = vsel %vm1274, %v1249, %v1250
        %v1299 = vsel %vm1274, %v1248, %v1249
        %v1300 = vsel %vm1274, %v1247, %v1248
        %v1301 = vsel %vm1274, %v1246, %v1247
        %v1302 = vsel %vm1274, %v1245, %v1246
        %v1303 = vsel %vm1274, %v1244, %v1245
        %v1304 = vsel %vm1274, %v1243, %v1244
        %v1305 = vsel %vm1274, %v1242, %v1243
        %v1306 = vsel %vm1274, %v1241, %v1242
        %v1307 = vsel %vm1274, %v1240, %v1241
        %v1308 = vsel %vm1274, %v1239, %v1240
        %v1309 = vsel %vm1274, %v1238, %v1239
        %v1310 = vsel %vm1274, %v1237, %v1238
        %v1311 = vsel %vm1274, %v1236, %v1237
        %v1312 = vsel %vm1274, %v1235, %v1236
        %v1313 = vsel %vm1274, %v1234, %v1235
        %v1314 = vsel %vm1274, %v1273, %v1234
        %v1315 = vsel %vm506, 1, 0
        %v1316 = vsel %vm507, 1, 0
        %v1317 = vsel %vm508, 1, 0
        %v1318 = vsel %vm509, 1, 0
        %v1319 = vsel %vm510, 1, 0
        %v1320 = vsel %vm511, 1, 0
        %v1321 = vsel %vm512, 1, 0
        %v1322 = vsel %vm513, 1, 0
        %v1323 = vsel %vm514, 1, 0
        %v1324 = vsel %vm515, 1, 0
        %v1325 = vsel %vm516, 1, 0
        %v1326 = vsel %vm517, 1, 0
        %v1327 = vsel %vm518, 1, 0
        %v1328 = vsel %vm519, 1, 0
        %v1329 = vsel %vm520, 1, 0
        %v1330 = vsel %vm521, 1, 0
        %v1331 = vsel %vm522, 1, 0
        %v1332 = vsel %vm523, 1, 0
        %v1333 = vsel %vm524, 1, 0
        %v1334 = vsel %vm525, 1, 0
        %v1335 = vsel %vm526, 1, 0
        %v1336 = vsel %vm527, 1, 0
        %v1337 = vsel %vm528, 1, 0
        %v1338 = vsel %vm529, 1, 0
        %v1339 = vsel %vm530, 1, 0
        %v1340 = vsel %vm531, 1, 0
        %v1341 = vsel %vm532, 1, 0
        %v1342 = vsel %vm533, 1, 0
        %v1343 = vsel %vm534, 1, 0
        %v1344 = vsel %vm535, 1, 0
        %v1345 = vsel %vm536, 1, 0
        %v1346 = vsel %vm537, 1, 0
        %v1347 = vsel %vm538, 1, 0
        %v1348 = vsel %vm539, 1, 0
        %v1349 = vsel %vm540, 1, 0
        %v1350 = vsel %vm541, 1, 0
        %v1351 = vsel %vm542, 1, 0
        %v1352 = vsel %vm543, 1, 0
        %v1353 = vsel %vm544, 1, 0
        %v1354 = vsel %vm545, 1, 0
        %1355 = vset.pattern.permute.xlu0 0
        %1356 = vperm.xlu0 %1355, %v1315
        %v1357 = vpop.permute.xlu0 %1356
        %1358 = vset.pattern.permute.xlu0 0
        %1359 = vperm.xlu0 %1358, %v1316
        %v1360 = vpop.permute.xlu0 %1359
        %1361 = vset.pattern.permute.xlu0 0
        %1362 = vperm.xlu0 %1361, %v1317
        %v1363 = vpop.permute.xlu0 %1362
        %1364 = vset.pattern.permute.xlu0 0
        %1365 = vperm.xlu0 %1364, %v1318
        %v1366 = vpop.permute.xlu0 %1365
        %1367 = vset.pattern.permute.xlu0 0
        %1368 = vperm.xlu0 %1367, %v1319
        %v1369 = vpop.permute.xlu0 %1368
        %1370 = vset.pattern.permute.xlu0 0
        %1371 = vperm.xlu0 %1370, %v1320
        %v1372 = vpop.permute.xlu0 %1371
        %1373 = vset.pattern.permute.xlu0 0
        %1374 = vperm.xlu0 %1373, %v1321
        %v1375 = vpop.permute.xlu0 %1374
        %1376 = vset.pattern.permute.xlu0 0
        %1377 = vperm.xlu0 %1376, %v1322
        %v1378 = vpop.permute.xlu0 %1377
        %1379 = vset.pattern.permute.xlu0 0
        %1380 = vperm.xlu0 %1379, %v1323
        %v1381 = vpop.permute.xlu0 %1380
        %1382 = vset.pattern.permute.xlu0 0
        %1383 = vperm.xlu0 %1382, %v1324
        %v1384 = vpop.permute.xlu0 %1383
        %1385 = vset.pattern.permute.xlu0 0
        %1386 = vperm.xlu0 %1385, %v1325
        %v1387 = vpop.permute.xlu0 %1386
        %1388 = vset.pattern.permute.xlu0 0
        %1389 = vperm.xlu0 %1388, %v1326
        %v1390 = vpop.permute.xlu0 %1389
        %1391 = vset.pattern.permute.xlu0 0
        %1392 = vperm.xlu0 %1391, %v1327
        %v1393 = vpop.permute.xlu0 %1392
        %1394 = vset.pattern.permute.xlu0 0
        %1395 = vperm.xlu0 %1394, %v1328
        %v1396 = vpop.permute.xlu0 %1395
        %1397 = vset.pattern.permute.xlu0 0
        %1398 = vperm.xlu0 %1397, %v1329
        %v1399 = vpop.permute.xlu0 %1398
        %1400 = vset.pattern.permute.xlu0 0
        %1401 = vperm.xlu0 %1400, %v1330
        %v1402 = vpop.permute.xlu0 %1401
        %1403 = vset.pattern.permute.xlu0 0
        %1404 = vperm.xlu0 %1403, %v1331
        %v1405 = vpop.permute.xlu0 %1404
        %1406 = vset.pattern.permute.xlu0 0
        %1407 = vperm.xlu0 %1406, %v1332
        %v1408 = vpop.permute.xlu0 %1407
        %1409 = vset.pattern.permute.xlu0 0
        %1410 = vperm.xlu0 %1409, %v1333
        %v1411 = vpop.permute.xlu0 %1410
        %1412 = vset.pattern.permute.xlu0 0
        %1413 = vperm.xlu0 %1412, %v1334
        %v1414 = vpop.permute.xlu0 %1413
        %1415 = vset.pattern.permute.xlu0 0
        %1416 = vperm.xlu0 %1415, %v1335
        %v1417 = vpop.permute.xlu0 %1416
        %1418 = vset.pattern.permute.xlu0 0
        %1419 = vperm.xlu0 %1418, %v1336
        %v1420 = vpop.permute.xlu0 %1419
        %1421 = vset.pattern.permute.xlu0 0
        %1422 = vperm.xlu0 %1421, %v1337
        %v1423 = vpop.permute.xlu0 %1422
        %1424 = vset.pattern.permute.xlu0 0
        %1425 = vperm.xlu0 %1424, %v1338
        %v1426 = vpop.permute.xlu0 %1425
        %1427 = vset.pattern.permute.xlu0 0
        %1428 = vperm.xlu0 %1427, %v1339
        %v1429 = vpop.permute.xlu0 %1428
        %1430 = vset.pattern.permute.xlu0 0
        %1431 = vperm.xlu0 %1430, %v1340
        %v1432 = vpop.permute.xlu0 %1431
        %1433 = vset.pattern.permute.xlu0 0
        %1434 = vperm.xlu0 %1433, %v1341
        %v1435 = vpop.permute.xlu0 %1434
        %1436 = vset.pattern.permute.xlu0 0
        %1437 = vperm.xlu0 %1436, %v1342
        %v1438 = vpop.permute.xlu0 %1437
        %1439 = vset.pattern.permute.xlu0 0
        %1440 = vperm.xlu0 %1439, %v1343
        %v1441 = vpop.permute.xlu0 %1440
        %1442 = vset.pattern.permute.xlu0 0
        %1443 = vperm.xlu0 %1442, %v1344
        %v1444 = vpop.permute.xlu0 %1443
        %1445 = vset.pattern.permute.xlu0 0
        %1446 = vperm.xlu0 %1445, %v1345
        %v1447 = vpop.permute.xlu0 %1446
        %1448 = vset.pattern.permute.xlu0 0
        %1449 = vperm.xlu0 %1448, %v1346
        %v1450 = vpop.permute.xlu0 %1449
        %1451 = vset.pattern.permute.xlu0 0
        %1452 = vperm.xlu0 %1451, %v1347
        %v1453 = vpop.permute.xlu0 %1452
        %1454 = vset.pattern.permute.xlu0 0
        %1455 = vperm.xlu0 %1454, %v1348
        %v1456 = vpop.permute.xlu0 %1455
        %1457 = vset.pattern.permute.xlu0 0
        %1458 = vperm.xlu0 %1457, %v1349
        %v1459 = vpop.permute.xlu0 %1458
        %1460 = vset.pattern.permute.xlu0 0
        %1461 = vperm.xlu0 %1460, %v1350
        %v1462 = vpop.permute.xlu0 %1461
        %1463 = vset.pattern.permute.xlu0 0
        %1464 = vperm.xlu0 %1463, %v1351
        %v1465 = vpop.permute.xlu0 %1464
        %1466 = vset.pattern.permute.xlu0 0
        %1467 = vperm.xlu0 %1466, %v1352
        %v1468 = vpop.permute.xlu0 %1467
        %1469 = vset.pattern.permute.xlu0 0
        %1470 = vperm.xlu0 %1469, %v1353
        %v1471 = vpop.permute.xlu0 %1470
        %1472 = vset.pattern.permute.xlu0 0
        %1473 = vperm.xlu0 %1472, %v1354
        %v1474 = vpop.permute.xlu0 %1473
        %vm1475 = vcmp.eq.s32.totalorder %v1357, 1
        %vm1476 = vcmp.eq.s32.totalorder %v1360, 1
        %vm1477 = vcmp.eq.s32.totalorder %v1363, 1
        %vm1478 = vcmp.eq.s32.totalorder %v1366, 1
        %vm1479 = vcmp.eq.s32.totalorder %v1369, 1
        %vm1480 = vcmp.eq.s32.totalorder %v1372, 1
        %vm1481 = vcmp.eq.s32.totalorder %v1375, 1
        %vm1482 = vcmp.eq.s32.totalorder %v1378, 1
        %vm1483 = vcmp.eq.s32.totalorder %v1381, 1
        %vm1484 = vcmp.eq.s32.totalorder %v1384, 1
        %vm1485 = vcmp.eq.s32.totalorder %v1387, 1
        %vm1486 = vcmp.eq.s32.totalorder %v1390, 1
        %vm1487 = vcmp.eq.s32.totalorder %v1393, 1
        %vm1488 = vcmp.eq.s32.totalorder %v1396, 1
        %vm1489 = vcmp.eq.s32.totalorder %v1399, 1
        %vm1490 = vcmp.eq.s32.totalorder %v1402, 1
        %vm1491 = vcmp.eq.s32.totalorder %v1405, 1
        %vm1492 = vcmp.eq.s32.totalorder %v1408, 1
        %vm1493 = vcmp.eq.s32.totalorder %v1411, 1
        %vm1494 = vcmp.eq.s32.totalorder %v1414, 1
        %vm1495 = vcmp.eq.s32.totalorder %v1417, 1
        %vm1496 = vcmp.eq.s32.totalorder %v1420, 1
        %vm1497 = vcmp.eq.s32.totalorder %v1423, 1
        %vm1498 = vcmp.eq.s32.totalorder %v1426, 1
        %vm1499 = vcmp.eq.s32.totalorder %v1429, 1
        %vm1500 = vcmp.eq.s32.totalorder %v1432, 1
        %vm1501 = vcmp.eq.s32.totalorder %v1435, 1
        %vm1502 = vcmp.eq.s32.totalorder %v1438, 1
        %vm1503 = vcmp.eq.s32.totalorder %v1441, 1
        %vm1504 = vcmp.eq.s32.totalorder %v1444, 1
        %vm1505 = vcmp.eq.s32.totalorder %v1447, 1
        %vm1506 = vcmp.eq.s32.totalorder %v1450, 1
        %vm1507 = vcmp.eq.s32.totalorder %v1453, 1
        %vm1508 = vcmp.eq.s32.totalorder %v1456, 1
        %vm1509 = vcmp.eq.s32.totalorder %v1459, 1
        %vm1510 = vcmp.eq.s32.totalorder %v1462, 1
        %vm1511 = vcmp.eq.s32.totalorder %v1465, 1
        %vm1512 = vcmp.eq.s32.totalorder %v1468, 1
        %vm1513 = vcmp.eq.s32.totalorder %v1471, 1
        %vm1514 = vcmp.eq.s32.totalorder %v1474, 1
        %v1515 = vsel %vm1475, 0.0, %v1313
        %v1516 = vsel %vm1476, 0.0, %v1312
        %v1517 = vsel %vm1477, 0.0, %v1311
        %v1518 = vsel %vm1478, 0.0, %v1310
        %v1519 = vsel %vm1479, 0.0, %v1309
        %v1520 = vsel %vm1480, 0.0, %v1308
        %v1521 = vsel %vm1481, 0.0, %v1307
        %v1522 = vsel %vm1482, 0.0, %v1306
        %v1523 = vsel %vm1483, 0.0, %v1305
        %v1524 = vsel %vm1484, 0.0, %v1304
        %v1525 = vsel %vm1485, 0.0, %v1303
        %v1526 = vsel %vm1486, 0.0, %v1302
        %v1527 = vsel %vm1487, 0.0, %v1301
        %v1528 = vsel %vm1488, 0.0, %v1300
        %v1529 = vsel %vm1489, 0.0, %v1299
        %v1530 = vsel %vm1490, 0.0, %v1298
        %v1531 = vsel %vm1491, 0.0, %v1297
        %v1532 = vsel %vm1492, 0.0, %v1296
        %v1533 = vsel %vm1493, 0.0, %v1295
        %v1534 = vsel %vm1494, 0.0, %v1294
        %v1535 = vsel %vm1495, 0.0, %v1293
        %v1536 = vsel %vm1496, 0.0, %v1292
        %v1537 = vsel %vm1497, 0.0, %v1291
        %v1538 = vsel %vm1498, 0.0, %v1290
        %v1539 = vsel %vm1499, 0.0, %v1289
        %v1540 = vsel %vm1500, 0.0, %v1288
        %v1541 = vsel %vm1501, 0.0, %v1287
        %v1542 = vsel %vm1502, 0.0, %v1286
        %v1543 = vsel %vm1503, 0.0, %v1285
        %v1544 = vsel %vm1504, 0.0, %v1284
        %v1545 = vsel %vm1505, 0.0, %v1283
        %v1546 = vsel %vm1506, 0.0, %v1282
        %v1547 = vsel %vm1507, 0.0, %v1281
        %v1548 = vsel %vm1508, 0.0, %v1280
        %v1549 = vsel %vm1509, 0.0, %v1279
        %v1550 = vsel %vm1510, 0.0, %v1278
        %v1551 = vsel %vm1511, 0.0, %v1277
        %v1552 = vsel %vm1512, 0.0, %v1276
        %v1553 = vsel %vm1513, 0.0, %v1275
        %v1554 = vsel %vm1514, 0.0, %v1314
        %1555 = vst [vmem:[#allocation3] sm:$0xff] %v1232
        %1556 = vst [vmem:[#allocation3 + $0x48] sm:$0xff] %v1233
        %1557 = vst [vmem:[#allocation3 + $0x90] sm:$0xff] %v1194
        %1558 = vst [vmem:[#allocation3 + $0xd8] sm:$0xff] %v1195
        %1559 = vst [vmem:[#allocation3 + $0x120] sm:$0xff] %v1196
        %1560 = vst [vmem:[#allocation3 + $0x168] sm:$0xff] %v1197
        %1561 = vst [vmem:[#allocation3 + $0x1b0] sm:$0xff] %v1198
        %1562 = vst [vmem:[#allocation3 + $0x1f8] sm:$0xff] %v1199
        %1563 = vst [vmem:[#allocation3 + $0x240] sm:$0xff] %v1200
        %1564 = vst [vmem:[#allocation3 + $0x288] sm:$0xff] %v1201
        %1565 = vst [vmem:[#allocation3 + $0x2d0] sm:$0xff] %v1202
        %1566 = vst [vmem:[#allocation3 + $0x318] sm:$0xff] %v1203
        %1567 = vst [vmem:[#allocation3 + $0x360] sm:$0xff] %v1204
        %1568 = vst [vmem:[#allocation3 + $0x3a8] sm:$0xff] %v1205
        %1569 = vst [vmem:[#allocation3 + $0x3f0] sm:$0xff] %v1206
        %1570 = vst [vmem:[#allocation3 + $0x438] sm:$0xff] %v1207
        %1571 = vst [vmem:[#allocation3 + $0x480] sm:$0xff] %v1208
        %1572 = vst [vmem:[#allocation3 + $0x4c8] sm:$0xff] %v1209
        %1573 = vst [vmem:[#allocation3 + $0x510] sm:$0xff] %v1210
        %1574 = vst [vmem:[#allocation3 + $0x558] sm:$0xff] %v1211
        %1575 = vst [vmem:[#allocation3 + $0x5a0] sm:$0xff] %v1212
        %1576 = vst [vmem:[#allocation3 + $0x5e8] sm:$0xff] %v1213
        %1577 = vst [vmem:[#allocation3 + $0x630] sm:$0xff] %v1214
        %1578 = vst [vmem:[#allocation3 + $0x678] sm:$0xff] %v1215
        %1579 = vst [vmem:[#allocation3 + $0x6c0] sm:$0xff] %v1216
        %1580 = vst [vmem:[#allocation3 + $0x708] sm:$0xff] %v1217
        %1581 = vst [vmem:[#allocation3 + $0x750] sm:$0xff] %v1218
        %1582 = vst [vmem:[#allocation3 + $0x798] sm:$0xff] %v1219
        %1583 = vst [vmem:[#allocation3 + $0x7e0] sm:$0xff] %v1220
        %1584 = vst [vmem:[#allocation3 + $0x828] sm:$0xff] %v1221
        %1585 = vst [vmem:[#allocation3 + $0x870] sm:$0xff] %v1222
        %1586 = vst [vmem:[#allocation3 + $0x8b8] sm:$0xff] %v1223
        %1587 = vst [vmem:[#allocation3 + $0x900] sm:$0xff] %v1224
        %1588 = vst [vmem:[#allocation3 + $0x948] sm:$0xff] %v1225
        %1589 = vst [vmem:[#allocation3 + $0x990] sm:$0xff] %v1226
        %1590 = vst [vmem:[#allocation3 + $0x9d8] sm:$0xff] %v1227
        %1591 = vst [vmem:[#allocation3 + $0xa20] sm:$0xff] %v1228
        %1592 = vst [vmem:[#allocation3 + $0xa68] sm:$0xff] %v1229
        %1593 = vst [vmem:[#allocation3 + $0xab0] sm:$0xff] %v1230
        %1594 = vst [vmem:[#allocation3 + $0xaf8] sm:$0xff] %v1231
        %1595 = vst [vmem:[#allocation3 + $0x8] sm:$0xff] %v909
        %1596 = vst [vmem:[#allocation3 + $0x50] sm:$0xff] %v910
        %1597 = vst [vmem:[#allocation3 + $0x98] sm:$0xff] %v871
        %1598 = vst [vmem:[#allocation3 + $0xe0] sm:$0xff] %v872
        %1599 = vst [vmem:[#allocation3 + $0x128] sm:$0xff] %v873
        %1600 = vst [vmem:[#allocation3 + $0x170] sm:$0xff] %v874
        %1601 = vst [vmem:[#allocation3 + $0x1b8] sm:$0xff] %v875
        %1602 = vst [vmem:[#allocation3 + $0x200] sm:$0xff] %v876
        %1603 = vst [vmem:[#allocation3 + $0x248] sm:$0xff] %v877
        %1604 = vst [vmem:[#allocation3 + $0x290] sm:$0xff] %v878
        %1605 = vst [vmem:[#allocation3 + $0x2d8] sm:$0xff] %v879
        %1606 = vst [vmem:[#allocation3 + $0x320] sm:$0xff] %v880
        %1607 = vst [vmem:[#allocation3 + $0x368] sm:$0xff] %v881
        %1608 = vst [vmem:[#allocation3 + $0x3b0] sm:$0xff] %v882
        %1609 = vst [vmem:[#allocation3 + $0x3f8] sm:$0xff] %v883
        %1610 = vst [vmem:[#allocation3 + $0x440] sm:$0xff] %v884
        %1611 = vst [vmem:[#allocation3 + $0x488] sm:$0xff] %v885
        %1612 = vst [vmem:[#allocation3 + $0x4d0] sm:$0xff] %v886
        %1613 = vst [vmem:[#allocation3 + $0x518] sm:$0xff] %v887
        %1614 = vst [vmem:[#allocation3 + $0x560] sm:$0xff] %v888
        %1615 = vst [vmem:[#allocation3 + $0x5a8] sm:$0xff] %v889
        %1616 = vst [vmem:[#allocation3 + $0x5f0] sm:$0xff] %v890
        %1617 = vst [vmem:[#allocation3 + $0x638] sm:$0xff] %v891
        %1618 = vst [vmem:[#allocation3 + $0x680] sm:$0xff] %v892
        %1619 = vst [vmem:[#allocation3 + $0x6c8] sm:$0xff] %v893
        %1620 = vst [vmem:[#allocation3 + $0x710] sm:$0xff] %v894
        %1621 = vst [vmem:[#allocation3 + $0x758] sm:$0xff] %v895
        %1622 = vst [vmem:[#allocation3 + $0x7a0] sm:$0xff] %v896
        %1623 = vst [vmem:[#allocation3 + $0x7e8] sm:$0xff] %v897
        %1624 = vst [vmem:[#allocation3 + $0x830] sm:$0xff] %v898
        %1625 = vst [vmem:[#allocation3 + $0x878] sm:$0xff] %v899
        %1626 = vst [vmem:[#allocation3 + $0x8c0] sm:$0xff] %v900
        %1627 = vst [vmem:[#allocation3 + $0x908] sm:$0xff] %v901
        %1628 = vst [vmem:[#allocation3 + $0x950] sm:$0xff] %v902
        %1629 = vst [vmem:[#allocation3 + $0x998] sm:$0xff] %v903
        %1630 = vst [vmem:[#allocation3 + $0x9e0] sm:$0xff] %v904
        %1631 = vst [vmem:[#allocation3 + $0xa28] sm:$0xff] %v905
        %1632 = vst [vmem:[#allocation3 + $0xa70] sm:$0xff] %v906
        %1633 = vst [vmem:[#allocation3 + $0xab8] sm:$0xff] %v907
        %1634 = vst [vmem:[#allocation3 + $0xb00] sm:$0xff] %v908
        %1635 = vst [vmem:[#allocation3 + $0x10] sm:$0xff] %v1553
        %1636 = vst [vmem:[#allocation3 + $0x58] sm:$0xff] %v1554
        %1637 = vst [vmem:[#allocation3 + $0xa0] sm:$0xff] %v1515
        %1638 = vst [vmem:[#allocation3 + $0xe8] sm:$0xff] %v1516
        %1639 = vst [vmem:[#allocation3 + $0x130] sm:$0xff] %v1517
        %1640 = vst [vmem:[#allocation3 + $0x178] sm:$0xff] %v1518
        %1641 = vst [vmem:[#allocation3 + $0x1c0] sm:$0xff] %v1519
        %1642 = vst [vmem:[#allocation3 + $0x208] sm:$0xff] %v1520
        %1643 = vst [vmem:[#allocation3 + $0x250] sm:$0xff] %v1521
        %1644 = vst [vmem:[#allocation3 + $0x298] sm:$0xff] %v1522
        %1645 = vst [vmem:[#allocation3 + $0x2e0] sm:$0xff] %v1523
        %1646 = vst [vmem:[#allocation3 + $0x328] sm:$0xff] %v1524
        %1647 = vst [vmem:[#allocation3 + $0x370] sm:$0xff] %v1525
        %1648 = vst [vmem:[#allocation3 + $0x3b8] sm:$0xff] %v1526
        %1649 = vst [vmem:[#allocation3 + $0x400] sm:$0xff] %v1527
        %1650 = vst [vmem:[#allocation3 + $0x448] sm:$0xff] %v1528
        %1651 = vst [vmem:[#allocation3 + $0x490] sm:$0xff] %v1529
        %1652 = vst [vmem:[#allocation3 + $0x4d8] sm:$0xff] %v1530
        %1653 = vst [vmem:[#allocation3 + $0x520] sm:$0xff] %v1531
        %1654 = vst [vmem:[#allocation3 + $0x568] sm:$0xff] %v1532
        %1655 = vst [vmem:[#allocation3 + $0x5b0] sm:$0xff] %v1533
        %1656 = vst [vmem:[#allocation3 + $0x5f8] sm:$0xff] %v1534
        %1657 = vst [vmem:[#allocation3 + $0x640] sm:$0xff] %v1535
        %1658 = vst [vmem:[#allocation3 + $0x688] sm:$0xff] %v1536
        %1659 = vst [vmem:[#allocation3 + $0x6d0] sm:$0xff] %v1537
        %1660 = vst [vmem:[#allocation3 + $0x718] sm:$0xff] %v1538
        %1661 = vst [vmem:[#allocation3 + $0x760] sm:$0xff] %v1539
        %1662 = vst [vmem:[#allocation3 + $0x7a8] sm:$0xff] %v1540
        %1663 = vst [vmem:[#allocation3 + $0x7f0] sm:$0xff] %v1541
        %1664 = vst [vmem:[#allocation3 + $0x838] sm:$0xff] %v1542
        %1665 = vst [vmem:[#allocation3 + $0x880] sm:$0xff] %v1543
        %1666 = vst [vmem:[#allocation3 + $0x8c8] sm:$0xff] %v1544
        %1667 = vst [vmem:[#allocation3 + $0x910] sm:$0xff] %v1545
        %1668 = vst [vmem:[#allocation3 + $0x958] sm:$0xff] %v1546
        %1669 = vst [vmem:[#allocation3 + $0x9a0] sm:$0xff] %v1547
        %1670 = vst [vmem:[#allocation3 + $0x9e8] sm:$0xff] %v1548
        %1671 = vst [vmem:[#allocation3 + $0xa30] sm:$0xff] %v1549
        %1672 = vst [vmem:[#allocation3 + $0xa78] sm:$0xff] %v1550
        %1673 = vst [vmem:[#allocation3 + $0xac0] sm:$0xff] %v1551
        %1674 = vst [vmem:[#allocation3 + $0xb08] sm:$0xff] %v1552
        %1675 = vst [vmem:[#allocation3 + $0x18] sm:$0xff] %v1194
        %1676 = vst [vmem:[#allocation3 + $0x60] sm:$0xff] %v1195
        %1677 = vst [vmem:[#allocation3 + $0xa8] sm:$0xff] %v1196
        %1678 = vst [vmem:[#allocation3 + $0xf0] sm:$0xff] %v1197
        %1679 = vst [vmem:[#allocation3 + $0x138] sm:$0xff] %v1198
        %1680 = vst [vmem:[#allocation3 + $0x180] sm:$0xff] %v1199
        %1681 = vst [vmem:[#allocation3 + $0x1c8] sm:$0xff] %v1200
        %1682 = vst [vmem:[#allocation3 + $0x210] sm:$0xff] %v1201
        %1683 = vst [vmem:[#allocation3 + $0x258] sm:$0xff] %v1202
        %1684 = vst [vmem:[#allocation3 + $0x2a0] sm:$0xff] %v1203
        %1685 = vst [vmem:[#allocation3 + $0x2e8] sm:$0xff] %v1204
        %1686 = vst [vmem:[#allocation3 + $0x330] sm:$0xff] %v1205
        %1687 = vst [vmem:[#allocation3 + $0x378] sm:$0xff] %v1206
        %1688 = vst [vmem:[#allocation3 + $0x3c0] sm:$0xff] %v1207
        %1689 = vst [vmem:[#allocation3 + $0x408] sm:$0xff] %v1208
        %1690 = vst [vmem:[#allocation3 + $0x450] sm:$0xff] %v1209
        %1691 = vst [vmem:[#allocation3 + $0x498] sm:$0xff] %v1210
        %1692 = vst [vmem:[#allocation3 + $0x4e0] sm:$0xff] %v1211
        %1693 = vst [vmem:[#allocation3 + $0x528] sm:$0xff] %v1212
        %1694 = vst [vmem:[#allocation3 + $0x570] sm:$0xff] %v1213
        %1695 = vst [vmem:[#allocation3 + $0x5b8] sm:$0xff] %v1214
        %1696 = vst [vmem:[#allocation3 + $0x600] sm:$0xff] %v1215
        %1697 = vst [vmem:[#allocation3 + $0x648] sm:$0xff] %v1216
        %1698 = vst [vmem:[#allocation3 + $0x690] sm:$0xff] %v1217
        %1699 = vst [vmem:[#allocation3 + $0x6d8] sm:$0xff] %v1218
        %1700 = vst [vmem:[#allocation3 + $0x720] sm:$0xff] %v1219
        %1701 = vst [vmem:[#allocation3 + $0x768] sm:$0xff] %v1220
        %1702 = vst [vmem:[#allocation3 + $0x7b0] sm:$0xff] %v1221
        %1703 = vst [vmem:[#allocation3 + $0x7f8] sm:$0xff] %v1222
        %1704 = vst [vmem:[#allocation3 + $0x840] sm:$0xff] %v1223
        %1705 = vst [vmem:[#allocation3 + $0x888] sm:$0xff] %v1224
        %1706 = vst [vmem:[#allocation3 + $0x8d0] sm:$0xff] %v1225
        %1707 = vst [vmem:[#allocation3 + $0x918] sm:$0xff] %v1226
        %1708 = vst [vmem:[#allocation3 + $0x960] sm:$0xff] %v1227
        %1709 = vst [vmem:[#allocation3 + $0x9a8] sm:$0xff] %v1228
        %1710 = vst [vmem:[#allocation3 + $0x9f0] sm:$0xff] %v1229
        %1711 = vst [vmem:[#allocation3 + $0xa38] sm:$0xff] %v1230
        %1712 = vst [vmem:[#allocation3 + $0xa80] sm:$0xff] %v1231
        %1713 = vst [vmem:[#allocation3 + $0xac8] sm:$0xff] %v1232
        %1714 = vst [vmem:[#allocation3 + $0xb10] sm:$0xff] %v1233
        %1715 = vst [vmem:[#allocation3 + $0x20] sm:$0xff] %v871
        %1716 = vst [vmem:[#allocation3 + $0x68] sm:$0xff] %v872
        %1717 = vst [vmem:[#allocation3 + $0xb0] sm:$0xff] %v873
        %1718 = vst [vmem:[#allocation3 + $0xf8] sm:$0xff] %v874
        %1719 = vst [vmem:[#allocation3 + $0x140] sm:$0xff] %v875
        %1720 = vst [vmem:[#allocation3 + $0x188] sm:$0xff] %v876
        %1721 = vst [vmem:[#allocation3 + $0x1d0] sm:$0xff] %v877
        %1722 = vst [vmem:[#allocation3 + $0x218] sm:$0xff] %v878
        %1723 = vst [vmem:[#allocation3 + $0x260] sm:$0xff] %v879
        %1724 = vst [vmem:[#allocation3 + $0x2a8] sm:$0xff] %v880
        %1725 = vst [vmem:[#allocation3 + $0x2f0] sm:$0xff] %v881
        %1726 = vst [vmem:[#allocation3 + $0x338] sm:$0xff] %v882
        %1727 = vst [vmem:[#allocation3 + $0x380] sm:$0xff] %v883
        %1728 = vst [vmem:[#allocation3 + $0x3c8] sm:$0xff] %v884
        %1729 = vst [vmem:[#allocation3 + $0x410] sm:$0xff] %v885
        %1730 = vst [vmem:[#allocation3 + $0x458] sm:$0xff] %v886
        %1731 = vst [vmem:[#allocation3 + $0x4a0] sm:$0xff] %v887
        %1732 = vst [vmem:[#allocation3 + $0x4e8] sm:$0xff] %v888
        %1733 = vst [vmem:[#allocation3 + $0x530] sm:$0xff] %v889
        %1734 = vst [vmem:[#allocation3 + $0x578] sm:$0xff] %v890
        %1735 = vst [vmem:[#allocation3 + $0x5c0] sm:$0xff] %v891
        %1736 = vst [vmem:[#allocation3 + $0x608] sm:$0xff] %v892
        %1737 = vst [vmem:[#allocation3 + $0x650] sm:$0xff] %v893
        %1738 = vst [vmem:[#allocation3 + $0x698] sm:$0xff] %v894
        %1739 = vst [vmem:[#allocation3 + $0x6e0] sm:$0xff] %v895
        %1740 = vst [vmem:[#allocation3 + $0x728] sm:$0xff] %v896
        %1741 = vst [vmem:[#allocation3 + $0x770] sm:$0xff] %v897
        %1742 = vst [vmem:[#allocation3 + $0x7b8] sm:$0xff] %v898
        %1743 = vst [vmem:[#allocation3 + $0x800] sm:$0xff] %v899
        %1744 = vst [vmem:[#allocation3 + $0x848] sm:$0xff] %v900
        %1745 = vst [vmem:[#allocation3 + $0x890] sm:$0xff] %v901
        %1746 = vst [vmem:[#allocation3 + $0x8d8] sm:$0xff] %v902
        %1747 = vst [vmem:[#allocation3 + $0x920] sm:$0xff] %v903
        %1748 = vst [vmem:[#allocation3 + $0x968] sm:$0xff] %v904
        %1749 = vst [vmem:[#allocation3 + $0x9b0] sm:$0xff] %v905
        %1750 = vst [vmem:[#allocation3 + $0x9f8] sm:$0xff] %v906
        %1751 = vst [vmem:[#allocation3 + $0xa40] sm:$0xff] %v907
        %1752 = vst [vmem:[#allocation3 + $0xa88] sm:$0xff] %v908
        %1753 = vst [vmem:[#allocation3 + $0xad0] sm:$0xff] %v909
        %1754 = vst [vmem:[#allocation3 + $0xb18] sm:$0xff] %v910
        %1755 = vst [vmem:[#allocation3 + $0x28] sm:$0xff] %v1515
        %1756 = vst [vmem:[#allocation3 + $0x70] sm:$0xff] %v1516
        %1757 = vst [vmem:[#allocation3 + $0xb8] sm:$0xff] %v1517
        %1758 = vst [vmem:[#allocation3 + $0x100] sm:$0xff] %v1518
        %1759 = vst [vmem:[#allocation3 + $0x148] sm:$0xff] %v1519
        %1760 = vst [vmem:[#allocation3 + $0x190] sm:$0xff] %v1520
        %1761 = vst [vmem:[#allocation3 + $0x1d8] sm:$0xff] %v1521
        %1762 = vst [vmem:[#allocation3 + $0x220] sm:$0xff] %v1522
        %1763 = vst [vmem:[#allocation3 + $0x268] sm:$0xff] %v1523
        %1764 = vst [vmem:[#allocation3 + $0x2b0] sm:$0xff] %v1524
        %1765 = vst [vmem:[#allocation3 + $0x2f8] sm:$0xff] %v1525
        %1766 = vst [vmem:[#allocation3 + $0x340] sm:$0xff] %v1526
        %1767 = vst [vmem:[#allocation3 + $0x388] sm:$0xff] %v1527
        %1768 = vst [vmem:[#allocation3 + $0x3d0] sm:$0xff] %v1528
        %1769 = vst [vmem:[#allocation3 + $0x418] sm:$0xff] %v1529
        %1770 = vst [vmem:[#allocation3 + $0x460] sm:$0xff] %v1530
        %1771 = vst [vmem:[#allocation3 + $0x4a8] sm:$0xff] %v1531
        %1772 = vst [vmem:[#allocation3 + $0x4f0] sm:$0xff] %v1532
        %1773 = vst [vmem:[#allocation3 + $0x538] sm:$0xff] %v1533
        %1774 = vst [vmem:[#allocation3 + $0x580] sm:$0xff] %v1534
        %1775 = vst [vmem:[#allocation3 + $0x5c8] sm:$0xff] %v1535
        %1776 = vst [vmem:[#allocation3 + $0x610] sm:$0xff] %v1536
        %1777 = vst [vmem:[#allocation3 + $0x658] sm:$0xff] %v1537
        %1778 = vst [vmem:[#allocation3 + $0x6a0] sm:$0xff] %v1538
        %1779 = vst [vmem:[#allocation3 + $0x6e8] sm:$0xff] %v1539
        %1780 = vst [vmem:[#allocation3 + $0x730] sm:$0xff] %v1540
        %1781 = vst [vmem:[#allocation3 + $0x778] sm:$0xff] %v1541
        %1782 = vst [vmem:[#allocation3 + $0x7c0] sm:$0xff] %v1542
        %1783 = vst [vmem:[#allocation3 + $0x808] sm:$0xff] %v1543
        %1784 = vst [vmem:[#allocation3 + $0x850] sm:$0xff] %v1544
        %1785 = vst [vmem:[#allocation3 + $0x898] sm:$0xff] %v1545
        %1786 = vst [vmem:[#allocation3 + $0x8e0] sm:$0xff] %v1546
        %1787 = vst [vmem:[#allocation3 + $0x928] sm:$0xff] %v1547
        %1788 = vst [vmem:[#allocation3 + $0x970] sm:$0xff] %v1548
        %1789 = vst [vmem:[#allocation3 + $0x9b8] sm:$0xff] %v1549
        %1790 = vst [vmem:[#allocation3 + $0xa00] sm:$0xff] %v1550
        %1791 = vst [vmem:[#allocation3 + $0xa48] sm:$0xff] %v1551
        %1792 = vst [vmem:[#allocation3 + $0xa90] sm:$0xff] %v1552
        %1793 = vst [vmem:[#allocation3 + $0xad8] sm:$0xff] %v1553
        %1794 = vst [vmem:[#allocation3 + $0xb20] sm:$0xff] %v1554
        %1795 = vst [vmem:[#allocation3 + $0x30] sm:$0xff] %v1196
        %1796 = vst [vmem:[#allocation3 + $0x78] sm:$0xff] %v1197
        %1797 = vst [vmem:[#allocation3 + $0xc0] sm:$0xff] %v1198
        %1798 = vst [vmem:[#allocation3 + $0x108] sm:$0xff] %v1199
        %1799 = vst [vmem:[#allocation3 + $0x150] sm:$0xff] %v1200
        %1800 = vst [vmem:[#allocation3 + $0x198] sm:$0xff] %v1201
        %1801 = vst [vmem:[#allocation3 + $0x1e0] sm:$0xff] %v1202
        %1802 = vst [vmem:[#allocation3 + $0x228] sm:$0xff] %v1203
        %1803 = vst [vmem:[#allocation3 + $0x270] sm:$0xff] %v1204
        %1804 = vst [vmem:[#allocation3 + $0x2b8] sm:$0xff] %v1205
        %1805 = vst [vmem:[#allocation3 + $0x300] sm:$0xff] %v1206
        %1806 = vst [vmem:[#allocation3 + $0x348] sm:$0xff] %v1207
        %1807 = vst [vmem:[#allocation3 + $0x390] sm:$0xff] %v1208
        %1808 = vst [vmem:[#allocation3 + $0x3d8] sm:$0xff] %v1209
        %1809 = vst [vmem:[#allocation3 + $0x420] sm:$0xff] %v1210
        %1810 = vst [vmem:[#allocation3 + $0x468] sm:$0xff] %v1211
        %1811 = vst [vmem:[#allocation3 + $0x4b0] sm:$0xff] %v1212
        %1812 = vst [vmem:[#allocation3 + $0x4f8] sm:$0xff] %v1213
        %1813 = vst [vmem:[#allocation3 + $0x540] sm:$0xff] %v1214
        %1814 = vst [vmem:[#allocation3 + $0x588] sm:$0xff] %v1215
        %1815 = vst [vmem:[#allocation3 + $0x5d0] sm:$0xff] %v1216
        %1816 = vst [vmem:[#allocation3 + $0x618] sm:$0xff] %v1217
        %1817 = vst [vmem:[#allocation3 + $0x660] sm:$0xff] %v1218
        %1818 = vst [vmem:[#allocation3 + $0x6a8] sm:$0xff] %v1219
        %1819 = vst [vmem:[#allocation3 + $0x6f0] sm:$0xff] %v1220
        %1820 = vst [vmem:[#allocation3 + $0x738] sm:$0xff] %v1221
        %1821 = vst [vmem:[#allocation3 + $0x780] sm:$0xff] %v1222
        %1822 = vst [vmem:[#allocation3 + $0x7c8] sm:$0xff] %v1223
        %1823 = vst [vmem:[#allocation3 + $0x810] sm:$0xff] %v1224
        %1824 = vst [vmem:[#allocation3 + $0x858] sm:$0xff] %v1225
        %1825 = vst [vmem:[#allocation3 + $0x8a0] sm:$0xff] %v1226
        %1826 = vst [vmem:[#allocation3 + $0x8e8] sm:$0xff] %v1227
        %1827 = vst [vmem:[#allocation3 + $0x930] sm:$0xff] %v1228
        %1828 = vst [vmem:[#allocation3 + $0x978] sm:$0xff] %v1229
        %1829 = vst [vmem:[#allocation3 + $0x9c0] sm:$0xff] %v1230
        %1830 = vst [vmem:[#allocation3 + $0xa08] sm:$0xff] %v1231
        %1831 = vst [vmem:[#allocation3 + $0xa50] sm:$0xff] %v1232
        %1832 = vst [vmem:[#allocation3 + $0xa98] sm:$0xff] %v1233
        %1833 = vst [vmem:[#allocation3 + $0xae0] sm:$0xff] %v1194
        %1834 = vst [vmem:[#allocation3 + $0xb28] sm:$0xff] %v1195
        %1835 = vst [vmem:[#allocation3 + $0x38] sm:$0xff] %v873
        %1836 = vst [vmem:[#allocation3 + $0x80] sm:$0xff] %v874
        %1837 = vst [vmem:[#allocation3 + $0xc8] sm:$0xff] %v875
        %1838 = vst [vmem:[#allocation3 + $0x110] sm:$0xff] %v876
        %1839 = vst [vmem:[#allocation3 + $0x158] sm:$0xff] %v877
        %1840 = vst [vmem:[#allocation3 + $0x1a0] sm:$0xff] %v878
        %1841 = vst [vmem:[#allocation3 + $0x1e8] sm:$0xff] %v879
        %1842 = vst [vmem:[#allocation3 + $0x230] sm:$0xff] %v880
        %1843 = vst [vmem:[#allocation3 + $0x278] sm:$0xff] %v881
        %1844 = vst [vmem:[#allocation3 + $0x2c0] sm:$0xff] %v882
        %1845 = vst [vmem:[#allocation3 + $0x308] sm:$0xff] %v883
        %1846 = vst [vmem:[#allocation3 + $0x350] sm:$0xff] %v884
        %1847 = vst [vmem:[#allocation3 + $0x398] sm:$0xff] %v885
        %1848 = vst [vmem:[#allocation3 + $0x3e0] sm:$0xff] %v886
        %1849 = vst [vmem:[#allocation3 + $0x428] sm:$0xff] %v887
        %1850 = vst [vmem:[#allocation3 + $0x470] sm:$0xff] %v888
        %1851 = vst [vmem:[#allocation3 + $0x4b8] sm:$0xff] %v889
        %1852 = vst [vmem:[#allocation3 + $0x500] sm:$0xff] %v890
        %1853 = vst [vmem:[#allocation3 + $0x548] sm:$0xff] %v891
        %1854 = vst [vmem:[#allocation3 + $0x590] sm:$0xff] %v892
        %1855 = vst [vmem:[#allocation3 + $0x5d8] sm:$0xff] %v893
        %1856 = vst [vmem:[#allocation3 + $0x620] sm:$0xff] %v894
        %1857 = vst [vmem:[#allocation3 + $0x668] sm:$0xff] %v895
        %1858 = vst [vmem:[#allocation3 + $0x6b0] sm:$0xff] %v896
        %1859 = vst [vmem:[#allocation3 + $0x6f8] sm:$0xff] %v897
        %1860 = vst [vmem:[#allocation3 + $0x740] sm:$0xff] %v898
        %1861 = vst [vmem:[#allocation3 + $0x788] sm:$0xff] %v899
        %1862 = vst [vmem:[#allocation3 + $0x7d0] sm:$0xff] %v900
        %1863 = vst [vmem:[#allocation3 + $0x818] sm:$0xff] %v901
        %1864 = vst [vmem:[#allocation3 + $0x860] sm:$0xff] %v902
        %1865 = vst [vmem:[#allocation3 + $0x8a8] sm:$0xff] %v903
        %1866 = vst [vmem:[#allocation3 + $0x8f0] sm:$0xff] %v904
        %1867 = vst [vmem:[#allocation3 + $0x938] sm:$0xff] %v905
        %1868 = vst [vmem:[#allocation3 + $0x980] sm:$0xff] %v906
        %1869 = vst [vmem:[#allocation3 + $0x9c8] sm:$0xff] %v907
        %1870 = vst [vmem:[#allocation3 + $0xa10] sm:$0xff] %v908
        %1871 = vst [vmem:[#allocation3 + $0xa58] sm:$0xff] %v909
        %1872 = vst [vmem:[#allocation3 + $0xaa0] sm:$0xff] %v910
        %1873 = vst [vmem:[#allocation3 + $0xae8] sm:$0xff] %v871
        %1874 = vst [vmem:[#allocation3 + $0xb30] sm:$0xff] %v872
        %1875 = vst [vmem:[#allocation3 + $0x40] sm:$0xff] %v1517
        %1876 = vst [vmem:[#allocation3 + $0x88] sm:$0xff] %v1518
        %1877 = vst [vmem:[#allocation3 + $0xd0] sm:$0xff] %v1519
        %1878 = vst [vmem:[#allocation3 + $0x118] sm:$0xff] %v1520
        %1879 = vst [vmem:[#allocation3 + $0x160] sm:$0xff] %v1521
        %1880 = vst [vmem:[#allocation3 + $0x1a8] sm:$0xff] %v1522
        %1881 = vst [vmem:[#allocation3 + $0x1f0] sm:$0xff] %v1523
        %1882 = vst [vmem:[#allocation3 + $0x238] sm:$0xff] %v1524
        %1883 = vst [vmem:[#allocation3 + $0x280] sm:$0xff] %v1525
        %1884 = vst [vmem:[#allocation3 + $0x2c8] sm:$0xff] %v1526
        %1885 = vst [vmem:[#allocation3 + $0x310] sm:$0xff] %v1527
        %1886 = vst [vmem:[#allocation3 + $0x358] sm:$0xff] %v1528
        %1887 = vst [vmem:[#allocation3 + $0x3a0] sm:$0xff] %v1529
        %1888 = vst [vmem:[#allocation3 + $0x3e8] sm:$0xff] %v1530
        %1889 = vst [vmem:[#allocation3 + $0x430] sm:$0xff] %v1531
        %1890 = vst [vmem:[#allocation3 + $0x478] sm:$0xff] %v1532
        %1891 = vst [vmem:[#allocation3 + $0x4c0] sm:$0xff] %v1533
        %1892 = vst [vmem:[#allocation3 + $0x508] sm:$0xff] %v1534
        %1893 = vst [vmem:[#allocation3 + $0x550] sm:$0xff] %v1535
        %1894 = vst [vmem:[#allocation3 + $0x598] sm:$0xff] %v1536
        %1895 = vst [vmem:[#allocation3 + $0x5e0] sm:$0xff] %v1537
        %1896 = vst [vmem:[#allocation3 + $0x628] sm:$0xff] %v1538
        %1897 = vst [vmem:[#allocation3 + $0x670] sm:$0xff] %v1539
        %1898 = vst [vmem:[#allocation3 + $0x6b8] sm:$0xff] %v1540
        %1899 = vst [vmem:[#allocation3 + $0x700] sm:$0xff] %v1541
        %1900 = vst [vmem:[#allocation3 + $0x748] sm:$0xff] %v1542
        %1901 = vst [vmem:[#allocation3 + $0x790] sm:$0xff] %v1543
        %1902 = vst [vmem:[#allocation3 + $0x7d8] sm:$0xff] %v1544
        %1903 = vst [vmem:[#allocation3 + $0x820] sm:$0xff] %v1545
        %1904 = vst [vmem:[#allocation3 + $0x868] sm:$0xff] %v1546
        %1905 = vst [vmem:[#allocation3 + $0x8b0] sm:$0xff] %v1547
        %1906 = vst [vmem:[#allocation3 + $0x8f8] sm:$0xff] %v1548
        %1907 = vst [vmem:[#allocation3 + $0x940] sm:$0xff] %v1549
        %1908 = vst [vmem:[#allocation3 + $0x988] sm:$0xff] %v1550
        %1909 = vst [vmem:[#allocation3 + $0x9d0] sm:$0xff] %v1551
        %1910 = vst [vmem:[#allocation3 + $0xa18] sm:$0xff] %v1552
        %1911 = vst [vmem:[#allocation3 + $0xa60] sm:$0xff] %v1553
        %1912 = vst [vmem:[#allocation3 + $0xaa8] sm:$0xff] %v1554
        %1913 = vst [vmem:[#allocation3 + $0xaf0] sm:$0xff] %v1515
        %1914 = vst [vmem:[#allocation3 + $0xb38] sm:$0xff] %v1516
        %v1915 = vld [vmem:[#allocation3] sm:$0xff]
        %v1916 = vld [vmem:[#allocation3 + $0x8] sm:$0xff]
        %v1917 = vld [vmem:[#allocation3 + $0x10] sm:$0xff]
        %v1918 = vld [vmem:[#allocation3 + $0x18] sm:$0xff]
        %v1919 = vld [vmem:[#allocation3 + $0x20] sm:$0xff]
        %v1920 = vld [vmem:[#allocation3 + $0x28] sm:$0xff]
        %v1921 = vld [vmem:[#allocation3 + $0x30] sm:$0xff]
        %v1922 = vld [vmem:[#allocation3 + $0x38] sm:$0xff]
        %v1923 = vld [vmem:[#allocation3 + $0x40] sm:$0xff]
        %v1924 = vld [vmem:[#allocation3 + $0x48] sm:$0xff]
        %v1925 = vld [vmem:[#allocation3 + $0x50] sm:$0xff]
        %v1926 = vld [vmem:[#allocation3 + $0x58] sm:$0xff]
        %v1927 = vld [vmem:[#allocation3 + $0x60] sm:$0xff]
        %v1928 = vld [vmem:[#allocation3 + $0x68] sm:$0xff]
        %v1929 = vld [vmem:[#allocation3 + $0x70] sm:$0xff]
        %v1930 = vld [vmem:[#allocation3 + $0x78] sm:$0xff]
        %v1931 = vld [vmem:[#allocation3 + $0x80] sm:$0xff]
        %v1932 = vld [vmem:[#allocation3 + $0x88] sm:$0xff]
        %v1933 = vld [vmem:[#allocation3 + $0x90] sm:$0xff]
        %v1934 = vld [vmem:[#allocation3 + $0x98] sm:$0xff]
        %v1935 = vld [vmem:[#allocation3 + $0xa0] sm:$0xff]
        %v1936 = vld [vmem:[#allocation3 + $0xa8] sm:$0xff]
        %v1937 = vld [vmem:[#allocation3 + $0xb0] sm:$0xff]
        %v1938 = vld [vmem:[#allocation3 + $0xb8] sm:$0xff]
        %v1939 = vld [vmem:[#allocation3 + $0xc0] sm:$0xff]
        %v1940 = vld [vmem:[#allocation3 + $0xc8] sm:$0xff]
        %v1941 = vld [vmem:[#allocation3 + $0xd0] sm:$0xff]
        %v1942 = vld [vmem:[#allocation3 + $0xd8] sm:$0xff]
        %v1943 = vld [vmem:[#allocation3 + $0xe0] sm:$0xff]
        %v1944 = vld [vmem:[#allocation3 + $0xe8] sm:$0xff]
        %v1945 = vld [vmem:[#allocation3 + $0xf0] sm:$0xff]
        %v1946 = vld [vmem:[#allocation3 + $0xf8] sm:$0xff]
        %v1947 = vld [vmem:[#allocation3 + $0x100] sm:$0xff]
        %v1948 = vld [vmem:[#allocation3 + $0x108] sm:$0xff]
        %v1949 = vld [vmem:[#allocation3 + $0x110] sm:$0xff]
        %v1950 = vld [vmem:[#allocation3 + $0x118] sm:$0xff]
        %v1951 = vld [vmem:[#allocation3 + $0x120] sm:$0xff]
        %v1952 = vld [vmem:[#allocation3 + $0x128] sm:$0xff]
        %v1953 = vld [vmem:[#allocation3 + $0x130] sm:$0xff]
        %v1954 = vld [vmem:[#allocation3 + $0x138] sm:$0xff]
        %v1955 = vld [vmem:[#allocation3 + $0x140] sm:$0xff]
        %v1956 = vld [vmem:[#allocation3 + $0x148] sm:$0xff]
        %v1957 = vld [vmem:[#allocation3 + $0x150] sm:$0xff]
        %v1958 = vld [vmem:[#allocation3 + $0x158] sm:$0xff]
        %v1959 = vld [vmem:[#allocation3 + $0x160] sm:$0xff]
        %v1960 = vld [vmem:[#allocation3 + $0x168] sm:$0xff]
        %v1961 = vld [vmem:[#allocation3 + $0x170] sm:$0xff]
        %v1962 = vld [vmem:[#allocation3 + $0x178] sm:$0xff]
        %v1963 = vld [vmem:[#allocation3 + $0x180] sm:$0xff]
        %v1964 = vld [vmem:[#allocation3 + $0x188] sm:$0xff]
        %v1965 = vld [vmem:[#allocation3 + $0x190] sm:$0xff]
        %v1966 = vld [vmem:[#allocation3 + $0x198] sm:$0xff]
        %v1967 = vld [vmem:[#allocation3 + $0x1a0] sm:$0xff]
        %v1968 = vld [vmem:[#allocation3 + $0x1a8] sm:$0xff]
        %v1969 = vld [vmem:[#allocation3 + $0x1b0] sm:$0xff]
        %v1970 = vld [vmem:[#allocation3 + $0x1b8] sm:$0xff]
        %v1971 = vld [vmem:[#allocation3 + $0x1c0] sm:$0xff]
        %v1972 = vld [vmem:[#allocation3 + $0x1c8] sm:$0xff]
        %v1973 = vld [vmem:[#allocation3 + $0x1d0] sm:$0xff]
        %v1974 = vld [vmem:[#allocation3 + $0x1d8] sm:$0xff]
        %v1975 = vld [vmem:[#allocation3 + $0x1e0] sm:$0xff]
        %v1976 = vld [vmem:[#allocation3 + $0x1e8] sm:$0xff]
        %v1977 = vld [vmem:[#allocation3 + $0x1f0] sm:$0xff]
        %v1978 = vld [vmem:[#allocation3 + $0x1f8] sm:$0xff]
        %v1979 = vld [vmem:[#allocation3 + $0x200] sm:$0xff]
        %v1980 = vld [vmem:[#allocation3 + $0x208] sm:$0xff]
        %v1981 = vld [vmem:[#allocation3 + $0x210] sm:$0xff]
        %v1982 = vld [vmem:[#allocation3 + $0x218] sm:$0xff]
        %v1983 = vld [vmem:[#allocation3 + $0x220] sm:$0xff]
        %v1984 = vld [vmem:[#allocation3 + $0x228] sm:$0xff]
        %v1985 = vld [vmem:[#allocation3 + $0x230] sm:$0xff]
        %v1986 = vld [vmem:[#allocation3 + $0x238] sm:$0xff]
        %v1987 = vld [vmem:[#allocation3 + $0x240] sm:$0xff]
        %v1988 = vld [vmem:[#allocation3 + $0x248] sm:$0xff]
        %v1989 = vld [vmem:[#allocation3 + $0x250] sm:$0xff]
        %v1990 = vld [vmem:[#allocation3 + $0x258] sm:$0xff]
        %v1991 = vld [vmem:[#allocation3 + $0x260] sm:$0xff]
        %v1992 = vld [vmem:[#allocation3 + $0x268] sm:$0xff]
        %v1993 = vld [vmem:[#allocation3 + $0x270] sm:$0xff]
        %v1994 = vld [vmem:[#allocation3 + $0x278] sm:$0xff]
        %v1995 = vld [vmem:[#allocation3 + $0x280] sm:$0xff]
        %v1996 = vld [vmem:[#allocation3 + $0x288] sm:$0xff]
        %v1997 = vld [vmem:[#allocation3 + $0x290] sm:$0xff]
        %v1998 = vld [vmem:[#allocation3 + $0x298] sm:$0xff]
        %v1999 = vld [vmem:[#allocation3 + $0x2a0] sm:$0xff]
        %v2000 = vld [vmem:[#allocation3 + $0x2a8] sm:$0xff]
        %v2001 = vld [vmem:[#allocation3 + $0x2b0] sm:$0xff]
        %v2002 = vld [vmem:[#allocation3 + $0x2b8] sm:$0xff]
        %v2003 = vld [vmem:[#allocation3 + $0x2c0] sm:$0xff]
        %v2004 = vld [vmem:[#allocation3 + $0x2c8] sm:$0xff]
        %v2005 = vld [vmem:[#allocation3 + $0x2d0] sm:$0xff]
        %v2006 = vld [vmem:[#allocation3 + $0x2d8] sm:$0xff]
        %v2007 = vld [vmem:[#allocation3 + $0x2e0] sm:$0xff]
        %v2008 = vld [vmem:[#allocation3 + $0x2e8] sm:$0xff]
        %v2009 = vld [vmem:[#allocation3 + $0x2f0] sm:$0xff]
        %v2010 = vld [vmem:[#allocation3 + $0x2f8] sm:$0xff]
        %v2011 = vld [vmem:[#allocation3 + $0x300] sm:$0xff]
        %v2012 = vld [vmem:[#allocation3 + $0x308] sm:$0xff]
        %v2013 = vld [vmem:[#allocation3 + $0x310] sm:$0xff]
        %v2014 = vld [vmem:[#allocation3 + $0x318] sm:$0xff]
        %v2015 = vld [vmem:[#allocation3 + $0x320] sm:$0xff]
        %v2016 = vld [vmem:[#allocation3 + $0x328] sm:$0xff]
        %v2017 = vld [vmem:[#allocation3 + $0x330] sm:$0xff]
        %v2018 = vld [vmem:[#allocation3 + $0x338] sm:$0xff]
        %v2019 = vld [vmem:[#allocation3 + $0x340] sm:$0xff]
        %v2020 = vld [vmem:[#allocation3 + $0x348] sm:$0xff]
        %v2021 = vld [vmem:[#allocation3 + $0x350] sm:$0xff]
        %v2022 = vld [vmem:[#allocation3 + $0x358] sm:$0xff]
        %v2023 = vld [vmem:[#allocation3 + $0x360] sm:$0xff]
        %v2024 = vld [vmem:[#allocation3 + $0x368] sm:$0xff]
        %v2025 = vld [vmem:[#allocation3 + $0x370] sm:$0xff]
        %v2026 = vld [vmem:[#allocation3 + $0x378] sm:$0xff]
        %v2027 = vld [vmem:[#allocation3 + $0x380] sm:$0xff]
        %v2028 = vld [vmem:[#allocation3 + $0x388] sm:$0xff]
        %v2029 = vld [vmem:[#allocation3 + $0x390] sm:$0xff]
        %v2030 = vld [vmem:[#allocation3 + $0x398] sm:$0xff]
        %v2031 = vld [vmem:[#allocation3 + $0x3a0] sm:$0xff]
        %v2032 = vld [vmem:[#allocation3 + $0x3a8] sm:$0xff]
        %v2033 = vld [vmem:[#allocation3 + $0x3b0] sm:$0xff]
        %v2034 = vld [vmem:[#allocation3 + $0x3b8] sm:$0xff]
        %v2035 = vld [vmem:[#allocation3 + $0x3c0] sm:$0xff]
        %v2036 = vld [vmem:[#allocation3 + $0x3c8] sm:$0xff]
        %v2037 = vld [vmem:[#allocation3 + $0x3d0] sm:$0xff]
        %v2038 = vld [vmem:[#allocation3 + $0x3d8] sm:$0xff]
        %v2039 = vld [vmem:[#allocation3 + $0x3e0] sm:$0xff]
        %v2040 = vld [vmem:[#allocation3 + $0x3e8] sm:$0xff]
        %v2041 = vld [vmem:[#allocation3 + $0x3f0] sm:$0xff]
        %v2042 = vld [vmem:[#allocation3 + $0x3f8] sm:$0xff]
        %v2043 = vld [vmem:[#allocation3 + $0x400] sm:$0xff]
        %v2044 = vld [vmem:[#allocation3 + $0x408] sm:$0xff]
        %v2045 = vld [vmem:[#allocation3 + $0x410] sm:$0xff]
        %v2046 = vld [vmem:[#allocation3 + $0x418] sm:$0xff]
        %v2047 = vld [vmem:[#allocation3 + $0x420] sm:$0xff]
        %v2048 = vld [vmem:[#allocation3 + $0x428] sm:$0xff]
        %v2049 = vld [vmem:[#allocation3 + $0x430] sm:$0xff]
        %v2050 = vld [vmem:[#allocation3 + $0x438] sm:$0xff]
        %v2051 = vld [vmem:[#allocation3 + $0x440] sm:$0xff]
        %v2052 = vld [vmem:[#allocation3 + $0x448] sm:$0xff]
        %v2053 = vld [vmem:[#allocation3 + $0x450] sm:$0xff]
        %v2054 = vld [vmem:[#allocation3 + $0x458] sm:$0xff]
        %v2055 = vld [vmem:[#allocation3 + $0x460] sm:$0xff]
        %v2056 = vld [vmem:[#allocation3 + $0x468] sm:$0xff]
        %v2057 = vld [vmem:[#allocation3 + $0x470] sm:$0xff]
        %v2058 = vld [vmem:[#allocation3 + $0x478] sm:$0xff]
        %v2059 = vld [vmem:[#allocation3 + $0x480] sm:$0xff]
        %v2060 = vld [vmem:[#allocation3 + $0x488] sm:$0xff]
        %v2061 = vld [vmem:[#allocation3 + $0x490] sm:$0xff]
        %v2062 = vld [vmem:[#allocation3 + $0x498] sm:$0xff]
        %v2063 = vld [vmem:[#allocation3 + $0x4a0] sm:$0xff]
        %v2064 = vld [vmem:[#allocation3 + $0x4a8] sm:$0xff]
        %v2065 = vld [vmem:[#allocation3 + $0x4b0] sm:$0xff]
        %v2066 = vld [vmem:[#allocation3 + $0x4b8] sm:$0xff]
        %v2067 = vld [vmem:[#allocation3 + $0x4c0] sm:$0xff]
        %v2068 = vld [vmem:[#allocation3 + $0x4c8] sm:$0xff]
        %v2069 = vld [vmem:[#allocation3 + $0x4d0] sm:$0xff]
        %v2070 = vld [vmem:[#allocation3 + $0x4d8] sm:$0xff]
        %v2071 = vld [vmem:[#allocation3 + $0x4e0] sm:$0xff]
        %v2072 = vld [vmem:[#allocation3 + $0x4e8] sm:$0xff]
        %v2073 = vld [vmem:[#allocation3 + $0x4f0] sm:$0xff]
        %v2074 = vld [vmem:[#allocation3 + $0x4f8] sm:$0xff]
        %v2075 = vld [vmem:[#allocation3 + $0x500] sm:$0xff]
        %v2076 = vld [vmem:[#allocation3 + $0x508] sm:$0xff]
        %v2077 = vld [vmem:[#allocation3 + $0x510] sm:$0xff]
        %v2078 = vld [vmem:[#allocation3 + $0x518] sm:$0xff]
        %v2079 = vld [vmem:[#allocation3 + $0x520] sm:$0xff]
        %v2080 = vld [vmem:[#allocation3 + $0x528] sm:$0xff]
        %v2081 = vld [vmem:[#allocation3 + $0x530] sm:$0xff]
        %v2082 = vld [vmem:[#allocation3 + $0x538] sm:$0xff]
        %v2083 = vld [vmem:[#allocation3 + $0x540] sm:$0xff]
        %v2084 = vld [vmem:[#allocation3 + $0x548] sm:$0xff]
        %v2085 = vld [vmem:[#allocation3 + $0x550] sm:$0xff]
        %v2086 = vld [vmem:[#allocation3 + $0x558] sm:$0xff]
        %v2087 = vld [vmem:[#allocation3 + $0x560] sm:$0xff]
        %v2088 = vld [vmem:[#allocation3 + $0x568] sm:$0xff]
        %v2089 = vld [vmem:[#allocation3 + $0x570] sm:$0xff]
        %v2090 = vld [vmem:[#allocation3 + $0x578] sm:$0xff]
        %v2091 = vld [vmem:[#allocation3 + $0x580] sm:$0xff]
        %v2092 = vld [vmem:[#allocation3 + $0x588] sm:$0xff]
        %v2093 = vld [vmem:[#allocation3 + $0x590] sm:$0xff]
        %v2094 = vld [vmem:[#allocation3 + $0x598] sm:$0xff]
        %v2095 = vld [vmem:[#allocation3 + $0x5a0] sm:$0xff]
        %v2096 = vld [vmem:[#allocation3 + $0x5a8] sm:$0xff]
        %v2097 = vld [vmem:[#allocation3 + $0x5b0] sm:$0xff]
        %v2098 = vld [vmem:[#allocation3 + $0x5b8] sm:$0xff]
        %v2099 = vld [vmem:[#allocation3 + $0x5c0] sm:$0xff]
        %v2100 = vld [vmem:[#allocation3 + $0x5c8] sm:$0xff]
        %v2101 = vld [vmem:[#allocation3 + $0x5d0] sm:$0xff]
        %v2102 = vld [vmem:[#allocation3 + $0x5d8] sm:$0xff]
        %v2103 = vld [vmem:[#allocation3 + $0x5e0] sm:$0xff]
        %v2104 = vld [vmem:[#allocation3 + $0x5e8] sm:$0xff]
        %v2105 = vld [vmem:[#allocation3 + $0x5f0] sm:$0xff]
        %v2106 = vld [vmem:[#allocation3 + $0x5f8] sm:$0xff]
        %v2107 = vld [vmem:[#allocation3 + $0x600] sm:$0xff]
        %v2108 = vld [vmem:[#allocation3 + $0x608] sm:$0xff]
        %v2109 = vld [vmem:[#allocation3 + $0x610] sm:$0xff]
        %v2110 = vld [vmem:[#allocation3 + $0x618] sm:$0xff]
        %v2111 = vld [vmem:[#allocation3 + $0x620] sm:$0xff]
        %v2112 = vld [vmem:[#allocation3 + $0x628] sm:$0xff]
        %v2113 = vld [vmem:[#allocation3 + $0x630] sm:$0xff]
        %v2114 = vld [vmem:[#allocation3 + $0x638] sm:$0xff]
        %v2115 = vld [vmem:[#allocation3 + $0x640] sm:$0xff]
        %v2116 = vld [vmem:[#allocation3 + $0x648] sm:$0xff]
        %v2117 = vld [vmem:[#allocation3 + $0x650] sm:$0xff]
        %v2118 = vld [vmem:[#allocation3 + $0x658] sm:$0xff]
        %v2119 = vld [vmem:[#allocation3 + $0x660] sm:$0xff]
        %v2120 = vld [vmem:[#allocation3 + $0x668] sm:$0xff]
        %v2121 = vld [vmem:[#allocation3 + $0x670] sm:$0xff]
        %v2122 = vld [vmem:[#allocation3 + $0x678] sm:$0xff]
        %v2123 = vld [vmem:[#allocation3 + $0x680] sm:$0xff]
        %v2124 = vld [vmem:[#allocation3 + $0x688] sm:$0xff]
        %v2125 = vld [vmem:[#allocation3 + $0x690] sm:$0xff]
        %v2126 = vld [vmem:[#allocation3 + $0x698] sm:$0xff]
        %v2127 = vld [vmem:[#allocation3 + $0x6a0] sm:$0xff]
        %v2128 = vld [vmem:[#allocation3 + $0x6a8] sm:$0xff]
        %v2129 = vld [vmem:[#allocation3 + $0x6b0] sm:$0xff]
        %v2130 = vld [vmem:[#allocation3 + $0x6b8] sm:$0xff]
        %v2131 = vld [vmem:[#allocation3 + $0x6c0] sm:$0xff]
        %v2132 = vld [vmem:[#allocation3 + $0x6c8] sm:$0xff]
        %v2133 = vld [vmem:[#allocation3 + $0x6d0] sm:$0xff]
        %v2134 = vld [vmem:[#allocation3 + $0x6d8] sm:$0xff]
        %v2135 = vld [vmem:[#allocation3 + $0x6e0] sm:$0xff]
        %v2136 = vld [vmem:[#allocation3 + $0x6e8] sm:$0xff]
        %v2137 = vld [vmem:[#allocation3 + $0x6f0] sm:$0xff]
        %v2138 = vld [vmem:[#allocation3 + $0x6f8] sm:$0xff]
        %v2139 = vld [vmem:[#allocation3 + $0x700] sm:$0xff]
        %v2140 = vld [vmem:[#allocation3 + $0x708] sm:$0xff]
        %v2141 = vld [vmem:[#allocation3 + $0x710] sm:$0xff]
        %v2142 = vld [vmem:[#allocation3 + $0x718] sm:$0xff]
        %v2143 = vld [vmem:[#allocation3 + $0x720] sm:$0xff]
        %v2144 = vld [vmem:[#allocation3 + $0x728] sm:$0xff]
        %v2145 = vld [vmem:[#allocation3 + $0x730] sm:$0xff]
        %v2146 = vld [vmem:[#allocation3 + $0x738] sm:$0xff]
        %v2147 = vld [vmem:[#allocation3 + $0x740] sm:$0xff]
        %v2148 = vld [vmem:[#allocation3 + $0x748] sm:$0xff]
        %v2149 = vld [vmem:[#allocation3 + $0x750] sm:$0xff]
        %v2150 = vld [vmem:[#allocation3 + $0x758] sm:$0xff]
        %v2151 = vld [vmem:[#allocation3 + $0x760] sm:$0xff]
        %v2152 = vld [vmem:[#allocation3 + $0x768] sm:$0xff]
        %v2153 = vld [vmem:[#allocation3 + $0x770] sm:$0xff]
        %v2154 = vld [vmem:[#allocation3 + $0x778] sm:$0xff]
        %v2155 = vld [vmem:[#allocation3 + $0x780] sm:$0xff]
        %v2156 = vld [vmem:[#allocation3 + $0x788] sm:$0xff]
        %v2157 = vld [vmem:[#allocation3 + $0x790] sm:$0xff]
        %v2158 = vld [vmem:[#allocation3 + $0x798] sm:$0xff]
        %v2159 = vld [vmem:[#allocation3 + $0x7a0] sm:$0xff]
        %v2160 = vld [vmem:[#allocation3 + $0x7a8] sm:$0xff]
        %v2161 = vld [vmem:[#allocation3 + $0x7b0] sm:$0xff]
        %v2162 = vld [vmem:[#allocation3 + $0x7b8] sm:$0xff]
        %v2163 = vld [vmem:[#allocation3 + $0x7c0] sm:$0xff]
        %v2164 = vld [vmem:[#allocation3 + $0x7c8] sm:$0xff]
        %v2165 = vld [vmem:[#allocation3 + $0x7d0] sm:$0xff]
        %v2166 = vld [vmem:[#allocation3 + $0x7d8] sm:$0xff]
        %v2167 = vld [vmem:[#allocation3 + $0x7e0] sm:$0xff]
        %v2168 = vld [vmem:[#allocation3 + $0x7e8] sm:$0xff]
        %v2169 = vld [vmem:[#allocation3 + $0x7f0] sm:$0xff]
        %v2170 = vld [vmem:[#allocation3 + $0x7f8] sm:$0xff]
        %v2171 = vld [vmem:[#allocation3 + $0x800] sm:$0xff]
        %v2172 = vld [vmem:[#allocation3 + $0x808] sm:$0xff]
        %v2173 = vld [vmem:[#allocation3 + $0x810] sm:$0xff]
        %v2174 = vld [vmem:[#allocation3 + $0x818] sm:$0xff]
        %v2175 = vld [vmem:[#allocation3 + $0x820] sm:$0xff]
        %v2176 = vld [vmem:[#allocation3 + $0x828] sm:$0xff]
        %v2177 = vld [vmem:[#allocation3 + $0x830] sm:$0xff]
        %v2178 = vld [vmem:[#allocation3 + $0x838] sm:$0xff]
        %v2179 = vld [vmem:[#allocation3 + $0x840] sm:$0xff]
        %v2180 = vld [vmem:[#allocation3 + $0x848] sm:$0xff]
        %v2181 = vld [vmem:[#allocation3 + $0x850] sm:$0xff]
        %v2182 = vld [vmem:[#allocation3 + $0x858] sm:$0xff]
        %v2183 = vld [vmem:[#allocation3 + $0x860] sm:$0xff]
        %v2184 = vld [vmem:[#allocation3 + $0x868] sm:$0xff]
        %v2185 = vld [vmem:[#allocation3 + $0x870] sm:$0xff]
        %v2186 = vld [vmem:[#allocation3 + $0x878] sm:$0xff]
        %v2187 = vld [vmem:[#allocation3 + $0x880] sm:$0xff]
        %v2188 = vld [vmem:[#allocation3 + $0x888] sm:$0xff]
        %v2189 = vld [vmem:[#allocation3 + $0x890] sm:$0xff]
        %v2190 = vld [vmem:[#allocation3 + $0x898] sm:$0xff]
        %v2191 = vld [vmem:[#allocation3 + $0x8a0] sm:$0xff]
        %v2192 = vld [vmem:[#allocation3 + $0x8a8] sm:$0xff]
        %v2193 = vld [vmem:[#allocation3 + $0x8b0] sm:$0xff]
        %v2194 = vld [vmem:[#allocation3 + $0x8b8] sm:$0xff]
        %v2195 = vld [vmem:[#allocation3 + $0x8c0] sm:$0xff]
        %v2196 = vld [vmem:[#allocation3 + $0x8c8] sm:$0xff]
        %v2197 = vld [vmem:[#allocation3 + $0x8d0] sm:$0xff]
        %v2198 = vld [vmem:[#allocation3 + $0x8d8] sm:$0xff]
        %v2199 = vld [vmem:[#allocation3 + $0x8e0] sm:$0xff]
        %v2200 = vld [vmem:[#allocation3 + $0x8e8] sm:$0xff]
        %v2201 = vld [vmem:[#allocation3 + $0x8f0] sm:$0xff]
        %v2202 = vld [vmem:[#allocation3 + $0x8f8] sm:$0xff]
        %v2203 = vld [vmem:[#allocation3 + $0x900] sm:$0xff]
        %v2204 = vld [vmem:[#allocation3 + $0x908] sm:$0xff]
        %v2205 = vld [vmem:[#allocation3 + $0x910] sm:$0xff]
        %v2206 = vld [vmem:[#allocation3 + $0x918] sm:$0xff]
        %v2207 = vld [vmem:[#allocation3 + $0x920] sm:$0xff]
        %v2208 = vld [vmem:[#allocation3 + $0x928] sm:$0xff]
        %v2209 = vld [vmem:[#allocation3 + $0x930] sm:$0xff]
        %v2210 = vld [vmem:[#allocation3 + $0x938] sm:$0xff]
        %v2211 = vld [vmem:[#allocation3 + $0x940] sm:$0xff]
        %v2212 = vld [vmem:[#allocation3 + $0x948] sm:$0xff]
        %v2213 = vld [vmem:[#allocation3 + $0x950] sm:$0xff]
        %v2214 = vld [vmem:[#allocation3 + $0x958] sm:$0xff]
        %v2215 = vld [vmem:[#allocation3 + $0x960] sm:$0xff]
        %v2216 = vld [vmem:[#allocation3 + $0x968] sm:$0xff]
        %v2217 = vld [vmem:[#allocation3 + $0x970] sm:$0xff]
        %v2218 = vld [vmem:[#allocation3 + $0x978] sm:$0xff]
        %v2219 = vld [vmem:[#allocation3 + $0x980] sm:$0xff]
        %v2220 = vld [vmem:[#allocation3 + $0x988] sm:$0xff]
        %v2221 = vld [vmem:[#allocation3 + $0x990] sm:$0xff]
        %v2222 = vld [vmem:[#allocation3 + $0x998] sm:$0xff]
        %v2223 = vld [vmem:[#allocation3 + $0x9a0] sm:$0xff]
        %v2224 = vld [vmem:[#allocation3 + $0x9a8] sm:$0xff]
        %v2225 = vld [vmem:[#allocation3 + $0x9b0] sm:$0xff]
        %v2226 = vld [vmem:[#allocation3 + $0x9b8] sm:$0xff]
        %v2227 = vld [vmem:[#allocation3 + $0x9c0] sm:$0xff]
        %v2228 = vld [vmem:[#allocation3 + $0x9c8] sm:$0xff]
        %v2229 = vld [vmem:[#allocation3 + $0x9d0] sm:$0xff]
        %v2230 = vld [vmem:[#allocation3 + $0x9d8] sm:$0xff]
        %v2231 = vld [vmem:[#allocation3 + $0x9e0] sm:$0xff]
        %v2232 = vld [vmem:[#allocation3 + $0x9e8] sm:$0xff]
        %v2233 = vld [vmem:[#allocation3 + $0x9f0] sm:$0xff]
        %v2234 = vld [vmem:[#allocation3 + $0x9f8] sm:$0xff]
        %v2235 = vld [vmem:[#allocation3 + $0xa00] sm:$0xff]
        %v2236 = vld [vmem:[#allocation3 + $0xa08] sm:$0xff]
        %v2237 = vld [vmem:[#allocation3 + $0xa10] sm:$0xff]
        %v2238 = vld [vmem:[#allocation3 + $0xa18] sm:$0xff]
        %v2239 = vld [vmem:[#allocation3 + $0xa20] sm:$0xff]
        %v2240 = vld [vmem:[#allocation3 + $0xa28] sm:$0xff]
        %v2241 = vld [vmem:[#allocation3 + $0xa30] sm:$0xff]
        %v2242 = vld [vmem:[#allocation3 + $0xa38] sm:$0xff]
        %v2243 = vld [vmem:[#allocation3 + $0xa40] sm:$0xff]
        %v2244 = vld [vmem:[#allocation3 + $0xa48] sm:$0xff]
        %v2245 = vld [vmem:[#allocation3 + $0xa50] sm:$0xff]
        %v2246 = vld [vmem:[#allocation3 + $0xa58] sm:$0xff]
        %v2247 = vld [vmem:[#allocation3 + $0xa60] sm:$0xff]
        %v2248 = vld [vmem:[#allocation3 + $0xa68] sm:$0xff]
        %v2249 = vld [vmem:[#allocation3 + $0xa70] sm:$0xff]
        %v2250 = vld [vmem:[#allocation3 + $0xa78] sm:$0xff]
        %v2251 = vld [vmem:[#allocation3 + $0xa80] sm:$0xff]
        %v2252 = vld [vmem:[#allocation3 + $0xa88] sm:$0xff]
        %v2253 = vld [vmem:[#allocation3 + $0xa90] sm:$0xff]
        %v2254 = vld [vmem:[#allocation3 + $0xa98] sm:$0xff]
        %v2255 = vld [vmem:[#allocation3 + $0xaa0] sm:$0xff]
        %v2256 = vld [vmem:[#allocation3 + $0xaa8] sm:$0xff]
        %v2257 = vld [vmem:[#allocation3 + $0xab0] sm:$0xff]
        %v2258 = vld [vmem:[#allocation3 + $0xab8] sm:$0xff]
        %v2259 = vld [vmem:[#allocation3 + $0xac0] sm:$0xff]
        %v2260 = vld [vmem:[#allocation3 + $0xac8] sm:$0xff]
        %v2261 = vld [vmem:[#allocation3 + $0xad0] sm:$0xff]
        %v2262 = vld [vmem:[#allocation3 + $0xad8] sm:$0xff]
        %v2263 = vld [vmem:[#allocation3 + $0xae0] sm:$0xff]
        %v2264 = vld [vmem:[#allocation3 + $0xae8] sm:$0xff]
        %v2265 = vld [vmem:[#allocation3 + $0xaf0] sm:$0xff]
        %v2266 = vld [vmem:[#allocation3 + $0xaf8] sm:$0xff]
        %v2267 = vld [vmem:[#allocation3 + $0xb00] sm:$0xff]
        %v2268 = vld [vmem:[#allocation3 + $0xb08] sm:$0xff]
        %v2269 = vld [vmem:[#allocation3 + $0xb10] sm:$0xff]
        %v2270 = vld [vmem:[#allocation3 + $0xb18] sm:$0xff]
        %v2271 = vld [vmem:[#allocation3 + $0xb20] sm:$0xff]
        %v2272 = vld [vmem:[#allocation3 + $0xb28] sm:$0xff]
        %v2273 = vld [vmem:[#allocation3 + $0xb30] sm:$0xff]
        %v2274 = vld [vmem:[#allocation3 + $0xb38] sm:$0xff]
        %v2275 = vld [vmem:[#allocation10] sm:$0xff]
        %v2276 = vld [vmem:[#allocation10 + $0x8] sm:$0xff]
        %v2277 = vld [vmem:[#allocation10 + $0x10] sm:$0xff]
        %v2278 = vld [vmem:[#allocation10 + $0x18] sm:$0xff]
        %v2279 = vld [vmem:[#allocation10 + $0x20] sm:$0xff]
        %v2280 = vld [vmem:[#allocation10 + $0x28] sm:$0xff]
        %v2281 = vld [vmem:[#allocation10 + $0x30] sm:$0xff]
        %v2282 = vld [vmem:[#allocation10 + $0x38] sm:$0xff]
        %v2283 = vld [vmem:[#allocation10 + $0x40] sm:$0xff]
        %v2284 = vld [vmem:[#allocation10 + $0x48] sm:$0xff]
        %v2285 = vld [vmem:[#allocation10 + $0x50] sm:$0xff]
        %v2286 = vld [vmem:[#allocation10 + $0x58] sm:$0xff]
        %v2287 = vld [vmem:[#allocation10 + $0x60] sm:$0xff]
        %v2288 = vld [vmem:[#allocation10 + $0x68] sm:$0xff]
        %v2289 = vld [vmem:[#allocation10 + $0x70] sm:$0xff]
        %v2290 = vld [vmem:[#allocation10 + $0x78] sm:$0xff]
        %v2291 = vld [vmem:[#allocation10 + $0x80] sm:$0xff]
        %v2292 = vld [vmem:[#allocation10 + $0x88] sm:$0xff]
        %v2293 = vld [vmem:[#allocation10 + $0x90] sm:$0xff]
        %v2294 = vld [vmem:[#allocation10 + $0x98] sm:$0xff]
        %v2295 = vld [vmem:[#allocation10 + $0xa0] sm:$0xff]
        %v2296 = vld [vmem:[#allocation10 + $0xa8] sm:$0xff]
        %v2297 = vld [vmem:[#allocation10 + $0xb0] sm:$0xff]
        %v2298 = vld [vmem:[#allocation10 + $0xb8] sm:$0xff]
        %v2299 = vld [vmem:[#allocation10 + $0xc0] sm:$0xff]
        %v2300 = vld [vmem:[#allocation10 + $0xc8] sm:$0xff]
        %v2301 = vld [vmem:[#allocation10 + $0xd0] sm:$0xff]
        %v2302 = vld [vmem:[#allocation10 + $0xd8] sm:$0xff]
        %v2303 = vld [vmem:[#allocation10 + $0xe0] sm:$0xff]
        %v2304 = vld [vmem:[#allocation10 + $0xe8] sm:$0xff]
        %v2305 = vld [vmem:[#allocation10 + $0xf0] sm:$0xff]
        %v2306 = vld [vmem:[#allocation10 + $0xf8] sm:$0xff]
        %v2307 = vld [vmem:[#allocation10 + $0x100] sm:$0xff]
        %v2308 = vld [vmem:[#allocation10 + $0x108] sm:$0xff]
        %v2309 = vld [vmem:[#allocation10 + $0x110] sm:$0xff]
        %v2310 = vld [vmem:[#allocation10 + $0x118] sm:$0xff]
        %v2311 = vld [vmem:[#allocation10 + $0x120] sm:$0xff]
        %v2312 = vld [vmem:[#allocation10 + $0x128] sm:$0xff]
        %v2313 = vld [vmem:[#allocation10 + $0x130] sm:$0xff]
        %v2314 = vld [vmem:[#allocation10 + $0x138] sm:$0xff]
        %v2315 = vld [vmem:[#allocation10 + $0x140] sm:$0xff]
        %v2316 = vld [vmem:[#allocation10 + $0x148] sm:$0xff]
        %v2317 = vld [vmem:[#allocation10 + $0x150] sm:$0xff]
        %v2318 = vld [vmem:[#allocation10 + $0x158] sm:$0xff]
        %v2319 = vld [vmem:[#allocation10 + $0x160] sm:$0xff]
        %v2320 = vld [vmem:[#allocation10 + $0x168] sm:$0xff]
        %v2321 = vld [vmem:[#allocation10 + $0x170] sm:$0xff]
        %v2322 = vld [vmem:[#allocation10 + $0x178] sm:$0xff]
        %v2323 = vld [vmem:[#allocation10 + $0x180] sm:$0xff]
        %v2324 = vld [vmem:[#allocation10 + $0x188] sm:$0xff]
        %v2325 = vld [vmem:[#allocation10 + $0x190] sm:$0xff]
        %v2326 = vld [vmem:[#allocation10 + $0x198] sm:$0xff]
        %v2327 = vld [vmem:[#allocation10 + $0x1a0] sm:$0xff]
        %v2328 = vld [vmem:[#allocation10 + $0x1a8] sm:$0xff]
        %v2329 = vld [vmem:[#allocation10 + $0x1b0] sm:$0xff]
        %v2330 = vld [vmem:[#allocation10 + $0x1b8] sm:$0xff]
        %v2331 = vld [vmem:[#allocation10 + $0x1c0] sm:$0xff]
        %v2332 = vld [vmem:[#allocation10 + $0x1c8] sm:$0xff]
        %v2333 = vld [vmem:[#allocation10 + $0x1d0] sm:$0xff]
        %v2334 = vld [vmem:[#allocation10 + $0x1d8] sm:$0xff]
        %v2335 = vld [vmem:[#allocation10 + $0x1e0] sm:$0xff]
        %v2336 = vld [vmem:[#allocation10 + $0x1e8] sm:$0xff]
        %v2337 = vld [vmem:[#allocation10 + $0x1f0] sm:$0xff]
        %v2338 = vld [vmem:[#allocation10 + $0x1f8] sm:$0xff]
        %v2339 = vld [vmem:[#allocation10 + $0x200] sm:$0xff]
        %v2340 = vld [vmem:[#allocation10 + $0x208] sm:$0xff]
        %v2341 = vld [vmem:[#allocation10 + $0x210] sm:$0xff]
        %v2342 = vld [vmem:[#allocation10 + $0x218] sm:$0xff]
        %v2343 = vld [vmem:[#allocation10 + $0x220] sm:$0xff]
        %v2344 = vld [vmem:[#allocation10 + $0x228] sm:$0xff]
        %v2345 = vld [vmem:[#allocation10 + $0x230] sm:$0xff]
        %v2346 = vld [vmem:[#allocation10 + $0x238] sm:$0xff]
        %v2347 = vld [vmem:[#allocation10 + $0x240] sm:$0xff]
        %v2348 = vld [vmem:[#allocation10 + $0x248] sm:$0xff]
        %v2349 = vld [vmem:[#allocation10 + $0x250] sm:$0xff]
        %v2350 = vld [vmem:[#allocation10 + $0x258] sm:$0xff]
        %v2351 = vld [vmem:[#allocation10 + $0x260] sm:$0xff]
        %v2352 = vld [vmem:[#allocation10 + $0x268] sm:$0xff]
        %v2353 = vld [vmem:[#allocation10 + $0x270] sm:$0xff]
        %v2354 = vld [vmem:[#allocation10 + $0x278] sm:$0xff]
        %v2355 = vld [vmem:[#allocation10 + $0x280] sm:$0xff]
        %v2356 = vld [vmem:[#allocation10 + $0x288] sm:$0xff]
        %v2357 = vld [vmem:[#allocation10 + $0x290] sm:$0xff]
        %v2358 = vld [vmem:[#allocation10 + $0x298] sm:$0xff]
        %v2359 = vld [vmem:[#allocation10 + $0x2a0] sm:$0xff]
        %v2360 = vld [vmem:[#allocation10 + $0x2a8] sm:$0xff]
        %v2361 = vld [vmem:[#allocation10 + $0x2b0] sm:$0xff]
        %v2362 = vld [vmem:[#allocation10 + $0x2b8] sm:$0xff]
        %v2363 = vld [vmem:[#allocation10 + $0x2c0] sm:$0xff]
        %v2364 = vld [vmem:[#allocation10 + $0x2c8] sm:$0xff]
        %v2365 = vld [vmem:[#allocation10 + $0x2d0] sm:$0xff]
        %v2366 = vld [vmem:[#allocation10 + $0x2d8] sm:$0xff]
        %v2367 = vld [vmem:[#allocation10 + $0x2e0] sm:$0xff]
        %v2368 = vld [vmem:[#allocation10 + $0x2e8] sm:$0xff]
        %v2369 = vld [vmem:[#allocation10 + $0x2f0] sm:$0xff]
        %v2370 = vld [vmem:[#allocation10 + $0x2f8] sm:$0xff]
        %v2371 = vld [vmem:[#allocation10 + $0x300] sm:$0xff]
        %v2372 = vld [vmem:[#allocation10 + $0x308] sm:$0xff]
        %v2373 = vld [vmem:[#allocation10 + $0x310] sm:$0xff]
        %v2374 = vld [vmem:[#allocation10 + $0x318] sm:$0xff]
        %v2375 = vld [vmem:[#allocation10 + $0x320] sm:$0xff]
        %v2376 = vld [vmem:[#allocation10 + $0x328] sm:$0xff]
        %v2377 = vld [vmem:[#allocation10 + $0x330] sm:$0xff]
        %v2378 = vld [vmem:[#allocation10 + $0x338] sm:$0xff]
        %v2379 = vld [vmem:[#allocation10 + $0x340] sm:$0xff]
        %v2380 = vld [vmem:[#allocation10 + $0x348] sm:$0xff]
        %v2381 = vld [vmem:[#allocation10 + $0x350] sm:$0xff]
        %v2382 = vld [vmem:[#allocation10 + $0x358] sm:$0xff]
        %v2383 = vld [vmem:[#allocation10 + $0x360] sm:$0xff]
        %v2384 = vld [vmem:[#allocation10 + $0x368] sm:$0xff]
        %v2385 = vld [vmem:[#allocation10 + $0x370] sm:$0xff]
        %v2386 = vld [vmem:[#allocation10 + $0x378] sm:$0xff]
        %v2387 = vld [vmem:[#allocation10 + $0x380] sm:$0xff]
        %v2388 = vld [vmem:[#allocation10 + $0x388] sm:$0xff]
        %v2389 = vld [vmem:[#allocation10 + $0x390] sm:$0xff]
        %v2390 = vld [vmem:[#allocation10 + $0x398] sm:$0xff]
        %v2391 = vld [vmem:[#allocation10 + $0x3a0] sm:$0xff]
        %v2392 = vld [vmem:[#allocation10 + $0x3a8] sm:$0xff]
        %v2393 = vld [vmem:[#allocation10 + $0x3b0] sm:$0xff]
        %v2394 = vld [vmem:[#allocation10 + $0x3b8] sm:$0xff]
        %v2395 = vld [vmem:[#allocation10 + $0x3c0] sm:$0xff]
        %v2396 = vld [vmem:[#allocation10 + $0x3c8] sm:$0xff]
        %v2397 = vld [vmem:[#allocation10 + $0x3d0] sm:$0xff]
        %v2398 = vld [vmem:[#allocation10 + $0x3d8] sm:$0xff]
        %v2399 = vld [vmem:[#allocation10 + $0x3e0] sm:$0xff]
        %v2400 = vld [vmem:[#allocation10 + $0x3e8] sm:$0xff]
        %v2401 = vld [vmem:[#allocation10 + $0x3f0] sm:$0xff]
        %v2402 = vld [vmem:[#allocation10 + $0x3f8] sm:$0xff]
        %v2403 = vld [vmem:[#allocation10 + $0x400] sm:$0xff]
        %v2404 = vld [vmem:[#allocation10 + $0x408] sm:$0xff]
        %v2405 = vld [vmem:[#allocation10 + $0x410] sm:$0xff]
        %v2406 = vld [vmem:[#allocation10 + $0x418] sm:$0xff]
        %v2407 = vld [vmem:[#allocation10 + $0x420] sm:$0xff]
        %v2408 = vld [vmem:[#allocation10 + $0x428] sm:$0xff]
        %v2409 = vld [vmem:[#allocation10 + $0x430] sm:$0xff]
        %v2410 = vld [vmem:[#allocation10 + $0x438] sm:$0xff]
        %v2411 = vld [vmem:[#allocation10 + $0x440] sm:$0xff]
        %v2412 = vld [vmem:[#allocation10 + $0x448] sm:$0xff]
        %v2413 = vld [vmem:[#allocation10 + $0x450] sm:$0xff]
        %v2414 = vld [vmem:[#allocation10 + $0x458] sm:$0xff]
        %v2415 = vld [vmem:[#allocation10 + $0x460] sm:$0xff]
        %v2416 = vld [vmem:[#allocation10 + $0x468] sm:$0xff]
        %v2417 = vld [vmem:[#allocation10 + $0x470] sm:$0xff]
        %v2418 = vld [vmem:[#allocation10 + $0x478] sm:$0xff]
        %2419 = vmatprep.subr.mxu0 0.0
        %2420 = vmatpush1.msra.mxu0 %v2275
        %2421 = vmatprep.subr.mxu0 0.0
        %2422 = vmatpush1.msra.mxu0 %v2276
        %2423 = vmatprep.subr.mxu0 0.0
        %2424 = vmatpush1.msra.mxu0 %v2277
        %2425 = vmatprep.subr.mxu0 0.0
        %2426 = vmatpush1.msra.mxu0 %v2278
        %2427 = vmatprep.subr.mxu0 0.0
        %2428 = vmatpush1.msra.mxu0 %v2279
        %2429 = vmatprep.subr.mxu0 0.0
        %2430 = vmatpush1.msra.mxu0 %v2280
        %2431 = vmatprep.subr.mxu0 0.0
        %2432 = vmatpush1.msra.mxu0 %v2281
        %2433 = vmatprep.subr.mxu0 0.0
        %2434 = vmatpush1.msra.mxu0 %v2282
        %2435 = vmatprep.subr.mxu0 0.0
        %2436 = vmatpush1.msra.mxu0 %v2283
        %2437 = vmatprep.subr.mxu0 0.0
        %2438 = vmatpush1.msra.mxu0 %v2284
        %2439 = vmatprep.subr.mxu0 0.0
        %2440 = vmatpush1.msra.mxu0 %v2285
        %2441 = vmatprep.subr.mxu0 0.0
        %2442 = vmatpush1.msra.mxu0 %v2286
        %2443 = vmatprep.subr.mxu0 0.0
        %2444 = vmatpush1.msra.mxu0 %v2287
        %2445 = vmatprep.subr.mxu0 0.0
        %2446 = vmatpush1.msra.mxu0 %v2288
        %2447 = vmatprep.subr.mxu0 0.0
        %2448 = vmatpush1.msra.mxu0 %v2289
        %2449 = vmatprep.subr.mxu0 0.0
        %2450 = vmatpush1.msra.mxu0 %v2290
        %2451 = vmatprep.subr.mxu0 0.0
        %2452 = vmatpush1.msra.mxu0 %v2291
        %2453 = vmatprep.subr.mxu0 0.0
        %2454 = vmatpush1.msra.mxu0 %v2292
        %2455 = vmatprep.subr.mxu0 0.0
        %2456 = vmatpush1.msra.mxu0 %v2293
        %2457 = vmatprep.subr.mxu0 0.0
        %2458 = vmatpush1.msra.mxu0 %v2294
        %2459 = vmatprep.subr.mxu0 0.0
        %2460 = vmatpush1.msra.mxu0 %v2295
        %2461 = vmatprep.subr.mxu0 0.0
        %2462 = vmatpush1.msra.mxu0 %v2296
        %2463 = vmatprep.subr.mxu0 0.0
        %2464 = vmatpush1.msra.mxu0 %v2297
        %2465 = vmatprep.subr.mxu0 0.0
        %2466 = vmatpush1.msra.mxu0 %v2298
        %2467 = vmatprep.subr.mxu0 0.0
        %2468 = vmatpush1.msra.mxu0 %v2299
        %2469 = vmatprep.subr.mxu0 0.0
        %2470 = vmatpush1.msra.mxu0 %v2300
        %2471 = vmatprep.subr.mxu0 0.0
        %2472 = vmatpush1.msra.mxu0 %v2301
        %2473 = vmatprep.subr.mxu0 0.0
        %2474 = vmatpush1.msra.mxu0 %v2302
        %2475 = vmatprep.subr.mxu0 0.0
        %2476 = vmatpush1.msra.mxu0 %v2303
        %2477 = vmatprep.subr.mxu0 0.0
        %2478 = vmatpush1.msra.mxu0 %v2304
        %2479 = vmatprep.subr.mxu0 0.0
        %2480 = vmatpush1.msra.mxu0 %v2305
        %2481 = vmatprep.subr.mxu0 0.0
        %2482 = vmatpush1.msra.mxu0 %v2306
        %2483 = vmatprep.mubr.f32.mxu0 %v1916
        %2484 = vmatmul.mubr.f32.gmra.mrb[0].mxu0 %v1915
        %v2485 = vpop.f32.mrb[0].mxu0
        %v2486 = vadd.f32 0.0, %v2485
        %v2487 = vpop.f32.mrb[0].mxu0
        %2488 = vmatprep.mubr.f32.mxu0 %v1925
        %2489 = vmatmul.mubr.f32.gmra.mrb[0].mxu0 %v1924
        %v2490 = vpop.f32.mrb[0].mxu0
        %v2491 = vadd.f32 0.0, %v2490
        %v2492 = vpop.f32.mrb[0].mxu0
        %2493 = vmatprep.mubr.f32.mxu0 %v1934
        %2494 = vmatmul.mubr.f32.gmra.mrb[0].mxu0 %v1933
        %v2495 = vpop.f32.mrb[0].mxu0
        %v2496 = vadd.f32 0.0, %v2495
        %v2497 = vpop.f32.mrb[0].mxu0
        %2498 = vmatprep.mubr.f32.mxu0 %v1943
        %2499 = vmatmul.mubr.f32.gmra.mrb[0].mxu0 %v1942
        %v2500 = vpop.f32.mrb[0].mxu0
        %v2501 = vadd.f32 0.0, %v2500
        %v2502 = vpop.f32.mrb[0].mxu0
        %2503 = vmatprep.mubr.f32.mxu0 %v1952
        %2504 = vmatmul.mubr.f32.gmra.mrb[0].mxu0 %v1951
        %v2505 = vpop.f32.mrb[0].mxu0
        %v2506 = vadd.f32 0.0, %v2505
        %v2507 = vpop.f32.mrb[0].mxu0
        %2508 = vmatprep.mubr.f32.mxu0 %v1961
        %2509 = vmatmul.mubr.f32.gmra.mrb[0].mxu0 %v1960
        %v2510 = vpop.f32.mrb[0].mxu0
        %v2511 = vadd.f32 0.0, %v2510
        %v2512 = vpop.f32.mrb[0].mxu0
        %2513 = vmatprep.mubr.f32.mxu0 %v1970
        %2514 = vmatmul.mubr.f32.gmra.mrb[0].mxu0 %v1969
        %v2515 = vpop.f32.mrb[0].mxu0
        %v2516 = vadd.f32 0.0, %v2515
        %v2517 = vpop.f32.mrb[0].mxu0
        %2518 = vmatprep.mubr.f32.mxu0 %v1979
        %2519 = vmatmul.mubr.f32.gmra.mrb[0].mxu0 %v1978
        %v2520 = vpop.f32.mrb[0].mxu0
        %v2521 = vadd.f32 0.0, %v2520
        %v2522 = vpop.f32.mrb[0].mxu0
        %2523 = vmatprep.mubr.f32.mxu0 %v1988
        %2524 = vmatmul.mubr.f32.gmra.mrb[0].mxu0 %v1987
        %v2525 = vpop.f32.mrb[0].mxu0
        %v2526 = vadd.f32 0.0, %v2525
        %v2527 = vpop.f32.mrb[0].mxu0
        %2528 = vmatprep.mubr.f32.mxu0 %v1997
        %2529 = vmatmul.mubr.f32.gmra.mrb[0].mxu0 %v1996
        %v2530 = vpop.f32.mrb[0].mxu0
        %v2531 = vadd.f32 0.0, %v2530
        %v2532 = vpop.f32.mrb[0].mxu0
        %2533 = vmatprep.mubr.f32.mxu0 %v2006
        %2534 = vmatmul.mubr.f32.gmra.mrb[0].mxu0 %v2005
        %v2535 = vpop.f32.mrb[0].mxu0
        %v2536 = vadd.f32 0.0, %v2535
        %v2537 = vpop.f32.mrb[0].mxu0
        %2538 = vmatprep.mubr.f32.mxu0 %v2015
        %2539 = vmatmul.mubr.f32.gmra.mrb[0].mxu0 %v2014
        %v2540 = vpop.f32.mrb[0].mxu0
        %v2541 = vadd.f32 0.0, %v2540
        %v2542 = vpop.f32.mrb[0].mxu0
        %2543 = vmatprep.mubr.f32.mxu0 %v2024
        %2544 = vmatmul.mubr.f32.gmra.mrb[0].mxu0 %v2023
        %v2545 = vpop.f32.mrb[0].mxu0
        %v2546 = vadd.f32 0.0, %v2545
        %v2547 = vpop.f32.mrb[0].mxu0
        %2548 = vmatprep.mubr.f32.mxu0 %v2033
        %2549 = vmatmul.mubr.f32.gmra.mrb[0].mxu0 %v2032
        %v2550 = vpop.f32.mrb[0].mxu0
        %v2551 = vadd.f32 0.0, %v2550
        %v2552 = vpop.f32.mrb[0].mxu0
        %2553 = vmatprep.mubr.f32.mxu0 %v2042
        %2554 = vmatmul.mubr.f32.gmra.mrb[0].mxu0 %v2041
        %v2555 = vpop.f32.mrb[0].mxu0
        %v2556 = vadd.f32 0.0, %v2555
        %v2557 = vpop.f32.mrb[0].mxu0
        %2558 = vmatprep.mubr.f32.mxu0 %v2051
        %2559 = vmatmul.mubr.f32.gmra.mrb[0].mxu0 %v2050
        %v2560 = vpop.f32.mrb[0].mxu0
        %v2561 = vadd.f32 0.0, %v2560
        %v2562 = vpop.f32.mrb[0].mxu0
        %2563 = vmatprep.mubr.f32.mxu0 %v2060
        %2564 = vmatmul.mubr.f32.gmra.mrb[0].mxu0 %v2059
        %v2565 = vpop.f32.mrb[0].mxu0
        %v2566 = vadd.f32 0.0, %v2565
        %v2567 = vpop.f32.mrb[0].mxu0
        %2568 = vmatprep.mubr.f32.mxu0 %v2069
        %2569 = vmatmul.mubr.f32.gmra.mrb[0].mxu0 %v2068
        %v2570 = vpop.f32.mrb[0].mxu0
        %v2571 = vadd.f32 0.0, %v2570
        %v2572 = vpop.f32.mrb[0].mxu0
        %2573 = vmatprep.mubr.f32.mxu0 %v2078
        %2574 = vmatmul.mubr.f32.gmra.mrb[0].mxu0 %v2077
        %v2575 = vpop.f32.mrb[0].mxu0
        %v2576 = vadd.f32 0.0, %v2575
        %v2577 = vpop.f32.mrb[0].mxu0
        %2578 = vmatprep.mubr.f32.mxu0 %v2087
        %2579 = vmatmul.mubr.f32.gmra.mrb[0].mxu0 %v2086
        %v2580 = vpop.f32.mrb[0].mxu0
        %v2581 = vadd.f32 0.0, %v2580
        %v2582 = vpop.f32.mrb[0].mxu0
        %2583 = vmatprep.mubr.f32.mxu0 %v2096
        %2584 = vmatmul.mubr.f32.gmra.mrb[0].mxu0 %v2095
        %v2585 = vpop.f32.mrb[0].mxu0
        %v2586 = vadd.f32 0.0, %v2585
        %v2587 = vpop.f32.mrb[0].mxu0
        %2588 = vmatprep.mubr.f32.mxu0 %v2105
        %2589 = vmatmul.mubr.f32.gmra.mrb[0].mxu0 %v2104
        %v2590 = vpop.f32.mrb[0].mxu0
        %v2591 = vadd.f32 0.0, %v2590
        %v2592 = vpop.f32.mrb[0].mxu0
        %2593 = vmatprep.mubr.f32.mxu0 %v2114
        %2594 = vmatmul.mubr.f32.gmra.mrb[0].mxu0 %v2113
        %v2595 = vpop.f32.mrb[0].mxu0
        %v2596 = vadd.f32 0.0, %v2595
        %v2597 = vpop.f32.mrb[0].mxu0
        %2598 = vmatprep.mubr.f32.mxu0 %v2123
        %2599 = vmatmul.mubr.f32.gmra.mrb[0].mxu0 %v2122
        %v2600 = vpop.f32.mrb[0].mxu0
        %v2601 = vadd.f32 0.0, %v2600
        %v2602 = vpop.f32.mrb[0].mxu0
        %2603 = vmatprep.mubr.f32.mxu0 %v2132
        %2604 = vmatmul.mubr.f32.gmra.mrb[0].mxu0 %v2131
        %v2605 = vpop.f32.mrb[0].mxu0
        %v2606 = vadd.f32 0.0, %v2605
        %v2607 = vpop.f32.mrb[0].mxu0
        %2608 = vmatprep.mubr.f32.mxu0 %v2141
        %2609 = vmatmul.mubr.f32.gmra.mrb[0].mxu0 %v2140
        %v2610 = vpop.f32.mrb[0].mxu0
        %v2611 = vadd.f32 0.0, %v2610
        %v2612 = vpop.f32.mrb[0].mxu0
        %2613 = vmatprep.mubr.f32.mxu0 %v2150
        %2614 = vmatmul.mubr.f32.gmra.mrb[0].mxu0 %v2149
        %v2615 = vpop.f32.mrb[0].mxu0
        %v2616 = vadd.f32 0.0, %v2615
        %v2617 = vpop.f32.mrb[0].mxu0
        %2618 = vmatprep.mubr.f32.mxu0 %v2159
        %2619 = vmatmul.mubr.f32.gmra.mrb[0].mxu0 %v2158
        %v2620 = vpop.f32.mrb[0].mxu0
        %v2621 = vadd.f32 0.0, %v2620
        %v2622 = vpop.f32.mrb[0].mxu0
        %2623 = vmatprep.mubr.f32.mxu0 %v2168
        %2624 = vmatmul.mubr.f32.gmra.mrb[0].mxu0 %v2167
        %v2625 = vpop.f32.mrb[0].mxu0
        %v2626 = vadd.f32 0.0, %v2625
        %v2627 = vpop.f32.mrb[0].mxu0
        %2628 = vmatprep.mubr.f32.mxu0 %v2177
        %2629 = vmatmul.mubr.f32.gmra.mrb[0].mxu0 %v2176
        %v2630 = vpop.f32.mrb[0].mxu0
        %v2631 = vadd.f32 0.0, %v2630
        %v2632 = vpop.f32.mrb[0].mxu0
        %2633 = vmatprep.mubr.f32.mxu0 %v2186
        %2634 = vmatmul.mubr.f32.gmra.mrb[0].mxu0 %v2185
        %v2635 = vpop.f32.mrb[0].mxu0
        %v2636 = vadd.f32 0.0, %v2635
        %v2637 = vpop.f32.mrb[0].mxu0
        %2638 = vmatprep.mubr.f32.mxu0 %v2195
        %2639 = vmatmul.mubr.f32.gmra.mrb[0].mxu0 %v2194
        %v2640 = vpop.f32.mrb[0].mxu0
        %v2641 = vadd.f32 0.0, %v2640
        %v2642 = vpop.f32.mrb[0].mxu0
        %2643 = vmatprep.mubr.f32.mxu0 %v2204
        %2644 = vmatmul.mubr.f32.gmra.mrb[0].mxu0 %v2203
        %v2645 = vpop.f32.mrb[0].mxu0
        %v2646 = vadd.f32 0.0, %v2645
        %v2647 = vpop.f32.mrb[0].mxu0
        %2648 = vmatprep.mubr.f32.mxu0 %v2213
        %2649 = vmatmul.mubr.f32.gmra.mrb[0].mxu0 %v2212
        %v2650 = vpop.f32.mrb[0].mxu0
        %v2651 = vadd.f32 0.0, %v2650
        %v2652 = vpop.f32.mrb[0].mxu0
        %2653 = vmatprep.mubr.f32.mxu0 %v2222
        %2654 = vmatmul.mubr.f32.gmra.mrb[0].mxu0 %v2221
        %v2655 = vpop.f32.mrb[0].mxu0
        %v2656 = vadd.f32 0.0, %v2655
        %v2657 = vpop.f32.mrb[0].mxu0
        %2658 = vmatprep.mubr.f32.mxu0 %v2231
        %2659 = vmatmul.mubr.f32.gmra.mrb[0].mxu0 %v2230
        %v2660 = vpop.f32.mrb[0].mxu0
        %v2661 = vadd.f32 0.0, %v2660
        %v2662 = vpop.f32.mrb[0].mxu0
        %2663 = vmatprep.mubr.f32.mxu0 %v2240
        %2664 = vmatmul.mubr.f32.gmra.mrb[0].mxu0 %v2239
        %v2665 = vpop.f32.mrb[0].mxu0
        %v2666 = vadd.f32 0.0, %v2665
        %v2667 = vpop.f32.mrb[0].mxu0
        %2668 = vmatprep.mubr.f32.mxu0 %v2249
        %2669 = vmatmul.mubr.f32.gmra.mrb[0].mxu0 %v2248
        %v2670 = vpop.f32.mrb[0].mxu0
        %v2671 = vadd.f32 0.0, %v2670
        %v2672 = vpop.f32.mrb[0].mxu0
        %2673 = vmatprep.mubr.f32.mxu0 %v2258
        %2674 = vmatmul.mubr.f32.gmra.mrb[0].mxu0 %v2257
        %v2675 = vpop.f32.mrb[0].mxu0
        %v2676 = vadd.f32 0.0, %v2675
        %v2677 = vpop.f32.mrb[0].mxu0
        %2678 = vmatprep.mubr.f32.mxu0 %v2267
        %2679 = vmatmul.mubr.f32.gmra.mrb[0].mxu0 %v2266
        %v2680 = vpop.f32.mrb[0].mxu0
        %v2681 = vadd.f32 0.0, %v2680
        %v2682 = vpop.f32.mrb[0].mxu0
        %2683 = vdwg.mxu0
        %2684 = vmatprep.subr.mxu0 0.0
        %2685 = vmatpush1.msra.mxu0 %v2307
        %2686 = vmatprep.subr.mxu0 0.0
        %2687 = vmatpush1.msra.mxu0 %v2308
        %2688 = vmatprep.subr.mxu0 0.0
        %2689 = vmatpush1.msra.mxu0 %v2309
        %2690 = vmatprep.subr.mxu0 0.0
        %2691 = vmatpush1.msra.mxu0 %v2310
        %2692 = vmatprep.subr.mxu0 0.0
        %2693 = vmatpush1.msra.mxu0 %v2311
        %2694 = vmatprep.subr.mxu0 0.0
        %2695 = vmatpush1.msra.mxu0 %v2312
        %2696 = vmatprep.subr.mxu0 0.0
        %2697 = vmatpush1.msra.mxu0 %v2313
        %2698 = vmatprep.subr.mxu0 0.0
        %2699 = vmatpush1.msra.mxu0 %v2314
        %2700 = vmatprep.subr.mxu0 0.0
        %2701 = vmatpush1.msra.mxu0 %v2315
        %2702 = vmatprep.subr.mxu0 0.0
        %2703 = vmatpush1.msra.mxu0 %v2316
        %2704 = vmatprep.subr.mxu0 0.0
        %2705 = vmatpush1.msra.mxu0 %v2317
        %2706 = vmatprep.subr.mxu0 0.0
        %2707 = vmatpush1.msra.mxu0 %v2318
        %2708 = vmatprep.subr.mxu0 0.0
        %2709 = vmatpush1.msra.mxu0 %v2319
        %2710 = vmatprep.subr.mxu0 0.0
        %2711 = vmatpush1.msra.mxu0 %v2320
        %2712 = vmatprep.subr.mxu0 0.0
        %2713 = vmatpush1.msra.mxu0 %v2321
        %2714 = vmatprep.subr.mxu0 0.0
        %2715 = vmatpush1.msra.mxu0 %v2322
        %2716 = vmatprep.subr.mxu0 0.0
        %2717 = vmatpush1.msra.mxu0 %v2323
        %2718 = vmatprep.subr.mxu0 0.0
        %2719 = vmatpush1.msra.mxu0 %v2324
        %2720 = vmatprep.subr.mxu0 0.0
        %2721 = vmatpush1.msra.mxu0 %v2325
        %2722 = vmatprep.subr.mxu0 0.0
        %2723 = vmatpush1.msra.mxu0 %v2326
        %2724 = vmatprep.subr.mxu0 0.0
        %2725 = vmatpush1.msra.mxu0 %v2327
        %2726 = vmatprep.subr.mxu0 0.0
        %2727 = vmatpush1.msra.mxu0 %v2328
        %2728 = vmatprep.subr.mxu0 0.0
        %2729 = vmatpush1.msra.mxu0 %v2329
        %2730 = vmatprep.subr.mxu0 0.0
        %2731 = vmatpush1.msra.mxu0 %v2330
        %2732 = vmatprep.subr.mxu0 0.0
        %2733 = vmatpush1.msra.mxu0 %v2331
        %2734 = vmatprep.subr.mxu0 0.0
        %2735 = vmatpush1.msra.mxu0 %v2332
        %2736 = vmatprep.subr.mxu0 0.0
        %2737 = vmatpush1.msra.mxu0 %v2333
        %2738 = vmatprep.subr.mxu0 0.0
        %2739 = vmatpush1.msra.mxu0 %v2334
        %2740 = vmatprep.subr.mxu0 0.0
        %2741 = vmatpush1.msra.mxu0 %v2335
        %2742 = vmatprep.subr.mxu0 0.0
        %2743 = vmatpush1.msra.mxu0 %v2336
        %2744 = vmatprep.subr.mxu0 0.0
        %2745 = vmatpush1.msra.mxu0 %v2337
        %2746 = vmatprep.subr.mxu0 0.0
        %2747 = vmatpush1.msra.mxu0 %v2338
        %2748 = vmatprep.mubr.f32.mxu0 %v1918
        %2749 = vmatmul.mubr.f32.gmra.mrb[0].mxu0 %v1917
        %v2750 = vpop.f32.mrb[0].mxu0
        %v2751 = vadd.f32 %v2486, %v2750
        %v2752 = vpop.f32.mrb[0].mxu0
        %2753 = vmatprep.mubr.f32.mxu0 %v1927
        %2754 = vmatmul.mubr.f32.gmra.mrb[0].mxu0 %v1926
        %v2755 = vpop.f32.mrb[0].mxu0
        %v2756 = vadd.f32 %v2491, %v2755
        %v2757 = vpop.f32.mrb[0].mxu0
        %2758 = vmatprep.mubr.f32.mxu0 %v1936
        %2759 = vmatmul.mubr.f32.gmra.mrb[0].mxu0 %v1935
        %v2760 = vpop.f32.mrb[0].mxu0
        %v2761 = vadd.f32 %v2496, %v2760
        %v2762 = vpop.f32.mrb[0].mxu0
        %2763 = vmatprep.mubr.f32.mxu0 %v1945
        %2764 = vmatmul.mubr.f32.gmra.mrb[0].mxu0 %v1944
        %v2765 = vpop.f32.mrb[0].mxu0
        %v2766 = vadd.f32 %v2501, %v2765
        %v2767 = vpop.f32.mrb[0].mxu0
        %2768 = vmatprep.mubr.f32.mxu0 %v1954
        %2769 = vmatmul.mubr.f32.gmra.mrb[0].mxu0 %v1953
        %v2770 = vpop.f32.mrb[0].mxu0
        %v2771 = vadd.f32 %v2506, %v2770
        %v2772 = vpop.f32.mrb[0].mxu0
        %2773 = vmatprep.mubr.f32.mxu0 %v1963
        %2774 = vmatmul.mubr.f32.gmra.mrb[0].mxu0 %v1962
        %v2775 = vpop.f32.mrb[0].mxu0
        %v2776 = vadd.f32 %v2511, %v2775
        %v2777 = vpop.f32.mrb[0].mxu0
        %2778 = vmatprep.mubr.f32.mxu0 %v1972
        %2779 = vmatmul.mubr.f32.gmra.mrb[0].mxu0 %v1971
        %v2780 = vpop.f32.mrb[0].mxu0
        %v2781 = vadd.f32 %v2516, %v2780
        %v2782 = vpop.f32.mrb[0].mxu0
        %2783 = vmatprep.mubr.f32.mxu0 %v1981
        %2784 = vmatmul.mubr.f32.gmra.mrb[0].mxu0 %v1980
        %v2785 = vpop.f32.mrb[0].mxu0
        %v2786 = vadd.f32 %v2521, %v2785
        %v2787 = vpop.f32.mrb[0].mxu0
        %2788 = vmatprep.mubr.f32.mxu0 %v1990
        %2789 = vmatmul.mubr.f32.gmra.mrb[0].mxu0 %v1989
        %v2790 = vpop.f32.mrb[0].mxu0
        %v2791 = vadd.f32 %v2526, %v2790
        %v2792 = vpop.f32.mrb[0].mxu0
        %2793 = vmatprep.mubr.f32.mxu0 %v1999
        %2794 = vmatmul.mubr.f32.gmra.mrb[0].mxu0 %v1998
        %v2795 = vpop.f32.mrb[0].mxu0
        %v2796 = vadd.f32 %v2531, %v2795
        %v2797 = vpop.f32.mrb[0].mxu0
        %2798 = vmatprep.mubr.f32.mxu0 %v2008
        %2799 = vmatmul.mubr.f32.gmra.mrb[0].mxu0 %v2007
        %v2800 = vpop.f32.mrb[0].mxu0
        %v2801 = vadd.f32 %v2536, %v2800
        %v2802 = vpop.f32.mrb[0].mxu0
        %2803 = vmatprep.mubr.f32.mxu0 %v2017
        %2804 = vmatmul.mubr.f32.gmra.mrb[0].mxu0 %v2016
        %v2805 = vpop.f32.mrb[0].mxu0
        %v2806 = vadd.f32 %v2541, %v2805
        %v2807 = vpop.f32.mrb[0].mxu0
        %2808 = vmatprep.mubr.f32.mxu0 %v2026
        %2809 = vmatmul.mubr.f32.gmra.mrb[0].mxu0 %v2025
        %v2810 = vpop.f32.mrb[0].mxu0
        %v2811 = vadd.f32 %v2546, %v2810
        %v2812 = vpop.f32.mrb[0].mxu0
        %2813 = vmatprep.mubr.f32.mxu0 %v2035
        %2814 = vmatmul.mubr.f32.gmra.mrb[0].mxu0 %v2034
        %v2815 = vpop.f32.mrb[0].mxu0
        %v2816 = vadd.f32 %v2551, %v2815
        %v2817 = vpop.f32.mrb[0].mxu0
        %2818 = vmatprep.mubr.f32.mxu0 %v2044
        %2819 = vmatmul.mubr.f32.gmra.mrb[0].mxu0 %v2043
        %v2820 = vpop.f32.mrb[0].mxu0
        %v2821 = vadd.f32 %v2556, %v2820
        %v2822 = vpop.f32.mrb[0].mxu0
        %2823 = vmatprep.mubr.f32.mxu0 %v2053
        %2824 = vmatmul.mubr.f32.gmra.mrb[0].mxu0 %v2052
        %v2825 = vpop.f32.mrb[0].mxu0
        %v2826 = vadd.f32 %v2561, %v2825
        %v2827 = vpop.f32.mrb[0].mxu0
        %2828 = vmatprep.mubr.f32.mxu0 %v2062
        %2829 = vmatmul.mubr.f32.gmra.mrb[0].mxu0 %v2061
        %v2830 = vpop.f32.mrb[0].mxu0
        %v2831 = vadd.f32 %v2566, %v2830
        %v2832 = vpop.f32.mrb[0].mxu0
        %2833 = vmatprep.mubr.f32.mxu0 %v2071
        %2834 = vmatmul.mubr.f32.gmra.mrb[0].mxu0 %v2070
        %v2835 = vpop.f32.mrb[0].mxu0
        %v2836 = vadd.f32 %v2571, %v2835
        %v2837 = vpop.f32.mrb[0].mxu0
        %2838 = vmatprep.mubr.f32.mxu0 %v2080
        %2839 = vmatmul.mubr.f32.gmra.mrb[0].mxu0 %v2079
        %v2840 = vpop.f32.mrb[0].mxu0
        %v2841 = vadd.f32 %v2576, %v2840
        %v2842 = vpop.f32.mrb[0].mxu0
        %2843 = vmatprep.mubr.f32.mxu0 %v2089
        %2844 = vmatmul.mubr.f32.gmra.mrb[0].mxu0 %v2088
        %v2845 = vpop.f32.mrb[0].mxu0
        %v2846 = vadd.f32 %v2581, %v2845
        %v2847 = vpop.f32.mrb[0].mxu0
        %2848 = vmatprep.mubr.f32.mxu0 %v2098
        %2849 = vmatmul.mubr.f32.gmra.mrb[0].mxu0 %v2097
        %v2850 = vpop.f32.mrb[0].mxu0
        %v2851 = vadd.f32 %v2586, %v2850
        %v2852 = vpop.f32.mrb[0].mxu0
        %2853 = vmatprep.mubr.f32.mxu0 %v2107
        %2854 = vmatmul.mubr.f32.gmra.mrb[0].mxu0 %v2106
        %v2855 = vpop.f32.mrb[0].mxu0
        %v2856 = vadd.f32 %v2591, %v2855
        %v2857 = vpop.f32.mrb[0].mxu0
        %2858 = vmatprep.mubr.f32.mxu0 %v2116
        %2859 = vmatmul.mubr.f32.gmra.mrb[0].mxu0 %v2115
        %v2860 = vpop.f32.mrb[0].mxu0
        %v2861 = vadd.f32 %v2596, %v2860
        %v2862 = vpop.f32.mrb[0].mxu0
        %2863 = vmatprep.mubr.f32.mxu0 %v2125
        %2864 = vmatmul.mubr.f32.gmra.mrb[0].mxu0 %v2124
        %v2865 = vpop.f32.mrb[0].mxu0
        %v2866 = vadd.f32 %v2601, %v2865
        %v2867 = vpop.f32.mrb[0].mxu0
        %2868 = vmatprep.mubr.f32.mxu0 %v2134
        %2869 = vmatmul.mubr.f32.gmra.mrb[0].mxu0 %v2133
        %v2870 = vpop.f32.mrb[0].mxu0
        %v2871 = vadd.f32 %v2606, %v2870
        %v2872 = vpop.f32.mrb[0].mxu0
        %2873 = vmatprep.mubr.f32.mxu0 %v2143
        %2874 = vmatmul.mubr.f32.gmra.mrb[0].mxu0 %v2142
        %v2875 = vpop.f32.mrb[0].mxu0
        %v2876 = vadd.f32 %v2611, %v2875
        %v2877 = vpop.f32.mrb[0].mxu0
        %2878 = vmatprep.mubr.f32.mxu0 %v2152
        %2879 = vmatmul.mubr.f32.gmra.mrb[0].mxu0 %v2151
        %v2880 = vpop.f32.mrb[0].mxu0
        %v2881 = vadd.f32 %v2616, %v2880
        %v2882 = vpop.f32.mrb[0].mxu0
        %2883 = vmatprep.mubr.f32.mxu0 %v2161
        %2884 = vmatmul.mubr.f32.gmra.mrb[0].mxu0 %v2160
        %v2885 = vpop.f32.mrb[0].mxu0
        %v2886 = vadd.f32 %v2621, %v2885
        %v2887 = vpop.f32.mrb[0].mxu0
        %2888 = vmatprep.mubr.f32.mxu0 %v2170
        %2889 = vmatmul.mubr.f32.gmra.mrb[0].mxu0 %v2169
        %v2890 = vpop.f32.mrb[0].mxu0
        %v2891 = vadd.f32 %v2626, %v2890
        %v2892 = vpop.f32.mrb[0].mxu0
        %2893 = vmatprep.mubr.f32.mxu0 %v2179
        %2894 = vmatmul.mubr.f32.gmra.mrb[0].mxu0 %v2178
        %v2895 = vpop.f32.mrb[0].mxu0
        %v2896 = vadd.f32 %v2631, %v2895
        %v2897 = vpop.f32.mrb[0].mxu0
        %2898 = vmatprep.mubr.f32.mxu0 %v2188
        %2899 = vmatmul.mubr.f32.gmra.mrb[0].mxu0 %v2187
        %v2900 = vpop.f32.mrb[0].mxu0
        %v2901 = vadd.f32 %v2636, %v2900
        %v2902 = vpop.f32.mrb[0].mxu0
        %2903 = vmatprep.mubr.f32.mxu0 %v2197
        %2904 = vmatmul.mubr.f32.gmra.mrb[0].mxu0 %v2196
        %v2905 = vpop.f32.mrb[0].mxu0
        %v2906 = vadd.f32 %v2641, %v2905
        %v2907 = vpop.f32.mrb[0].mxu0
        %2908 = vmatprep.mubr.f32.mxu0 %v2206
        %2909 = vmatmul.mubr.f32.gmra.mrb[0].mxu0 %v2205
        %v2910 = vpop.f32.mrb[0].mxu0
        %v2911 = vadd.f32 %v2646, %v2910
        %v2912 = vpop.f32.mrb[0].mxu0
        %2913 = vmatprep.mubr.f32.mxu0 %v2215
        %2914 = vmatmul.mubr.f32.gmra.mrb[0].mxu0 %v2214
        %v2915 = vpop.f32.mrb[0].mxu0
        %v2916 = vadd.f32 %v2651, %v2915
        %v2917 = vpop.f32.mrb[0].mxu0
        %2918 = vmatprep.mubr.f32.mxu0 %v2224
        %2919 = vmatmul.mubr.f32.gmra.mrb[0].mxu0 %v2223
        %v2920 = vpop.f32.mrb[0].mxu0
        %v2921 = vadd.f32 %v2656, %v2920
        %v2922 = vpop.f32.mrb[0].mxu0
        %2923 = vmatprep.mubr.f32.mxu0 %v2233
        %2924 = vmatmul.mubr.f32.gmra.mrb[0].mxu0 %v2232
        %v2925 = vpop.f32.mrb[0].mxu0
        %v2926 = vadd.f32 %v2661, %v2925
        %v2927 = vpop.f32.mrb[0].mxu0
        %2928 = vmatprep.mubr.f32.mxu0 %v2242
        %2929 = vmatmul.mubr.f32.gmra.mrb[0].mxu0 %v2241
        %v2930 = vpop.f32.mrb[0].mxu0
        %v2931 = vadd.f32 %v2666, %v2930
        %v2932 = vpop.f32.mrb[0].mxu0
        %2933 = vmatprep.mubr.f32.mxu0 %v2251
        %2934 = vmatmul.mubr.f32.gmra.mrb[0].mxu0 %v2250
        %v2935 = vpop.f32.mrb[0].mxu0
        %v2936 = vadd.f32 %v2671, %v2935
        %v2937 = vpop.f32.mrb[0].mxu0
        %2938 = vmatprep.mubr.f32.mxu0 %v2260
        %2939 = vmatmul.mubr.f32.gmra.mrb[0].mxu0 %v2259
        %v2940 = vpop.f32.mrb[0].mxu0
        %v2941 = vadd.f32 %v2676, %v2940
        %v2942 = vpop.f32.mrb[0].mxu0
        %2943 = vmatprep.mubr.f32.mxu0 %v2269
        %2944 = vmatmul.mubr.f32.gmra.mrb[0].mxu0 %v2268
        %v2945 = vpop.f32.mrb[0].mxu0
        %v2946 = vadd.f32 %v2681, %v2945
        %v2947 = vpop.f32.mrb[0].mxu0
        %2948 = vdwg.mxu0
        %2949 = vmatprep.subr.mxu0 0.0
        %2950 = vmatpush1.msra.mxu0 %v2339
        %2951 = vmatprep.subr.mxu0 0.0
        %2952 = vmatpush1.msra.mxu0 %v2340
        %2953 = vmatprep.subr.mxu0 0.0
        %2954 = vmatpush1.msra.mxu0 %v2341
        %2955 = vmatprep.subr.mxu0 0.0
        %2956 = vmatpush1.msra.mxu0 %v2342
        %2957 = vmatprep.subr.mxu0 0.0
        %2958 = vmatpush1.msra.mxu0 %v2343
        %2959 = vmatprep.subr.mxu0 0.0
        %2960 = vmatpush1.msra.mxu0 %v2344
        %2961 = vmatprep.subr.mxu0 0.0
        %2962 = vmatpush1.msra.mxu0 %v2345
        %2963 = vmatprep.subr.mxu0 0.0
        %2964 = vmatpush1.msra.mxu0 %v2346
        %2965 = vmatprep.subr.mxu0 0.0
        %2966 = vmatpush1.msra.mxu0 %v2347
        %2967 = vmatprep.subr.mxu0 0.0
        %2968 = vmatpush1.msra.mxu0 %v2348
        %2969 = vmatprep.subr.mxu0 0.0
        %2970 = vmatpush1.msra.mxu0 %v2349
        %2971 = vmatprep.subr.mxu0 0.0
        %2972 = vmatpush1.msra.mxu0 %v2350
        %2973 = vmatprep.subr.mxu0 0.0
        %2974 = vmatpush1.msra.mxu0 %v2351
        %2975 = vmatprep.subr.mxu0 0.0
        %2976 = vmatpush1.msra.mxu0 %v2352
        %2977 = vmatprep.subr.mxu0 0.0
        %2978 = vmatpush1.msra.mxu0 %v2353
        %2979 = vmatprep.subr.mxu0 0.0
        %2980 = vmatpush1.msra.mxu0 %v2354
        %2981 = vmatprep.subr.mxu0 0.0
        %2982 = vmatpush1.msra.mxu0 %v2355
        %2983 = vmatprep.subr.mxu0 0.0
        %2984 = vmatpush1.msra.mxu0 %v2356
        %2985 = vmatprep.subr.mxu0 0.0
        %2986 = vmatpush1.msra.mxu0 %v2357
        %2987 = vmatprep.subr.mxu0 0.0
        %2988 = vmatpush1.msra.mxu0 %v2358
        %2989 = vmatprep.subr.mxu0 0.0
        %2990 = vmatpush1.msra.mxu0 %v2359
        %2991 = vmatprep.subr.mxu0 0.0
        %2992 = vmatpush1.msra.mxu0 %v2360
        %2993 = vmatprep.subr.mxu0 0.0
        %2994 = vmatpush1.msra.mxu0 %v2361
        %2995 = vmatprep.subr.mxu0 0.0
        %2996 = vmatpush1.msra.mxu0 %v2362
        %2997 = vmatprep.subr.mxu0 0.0
        %2998 = vmatpush1.msra.mxu0 %v2363
        %2999 = vmatprep.subr.mxu0 0.0
        %3000 = vmatpush1.msra.mxu0 %v2364
        %3001 = vmatprep.subr.mxu0 0.0
        %3002 = vmatpush1.msra.mxu0 %v2365
        %3003 = vmatprep.subr.mxu0 0.0
        %3004 = vmatpush1.msra.mxu0 %v2366
        %3005 = vmatprep.subr.mxu0 0.0
        %3006 = vmatpush1.msra.mxu0 %v2367
        %3007 = vmatprep.subr.mxu0 0.0
        %3008 = vmatpush1.msra.mxu0 %v2368
        %3009 = vmatprep.subr.mxu0 0.0
        %3010 = vmatpush1.msra.mxu0 %v2369
        %3011 = vmatprep.subr.mxu0 0.0
        %3012 = vmatpush1.msra.mxu0 %v2370
        %3013 = vmatprep.mubr.f32.mxu0 %v1920
        %3014 = vmatmul.mubr.f32.gmra.mrb[0].mxu0 %v1919
        %v3015 = vpop.f32.mrb[0].mxu0
        %v3016 = vadd.f32 %v2751, %v3015
        %v3017 = vpop.f32.mrb[0].mxu0
        %3018 = vmatprep.mubr.f32.mxu0 %v1929
        %3019 = vmatmul.mubr.f32.gmra.mrb[0].mxu0 %v1928
        %v3020 = vpop.f32.mrb[0].mxu0
        %v3021 = vadd.f32 %v2756, %v3020
        %v3022 = vpop.f32.mrb[0].mxu0
        %3023 = vmatprep.mubr.f32.mxu0 %v1938
        %3024 = vmatmul.mubr.f32.gmra.mrb[0].mxu0 %v1937
        %v3025 = vpop.f32.mrb[0].mxu0
        %v3026 = vadd.f32 %v2761, %v3025
        %v3027 = vpop.f32.mrb[0].mxu0
        %3028 = vmatprep.mubr.f32.mxu0 %v1947
        %3029 = vmatmul.mubr.f32.gmra.mrb[0].mxu0 %v1946
        %v3030 = vpop.f32.mrb[0].mxu0
        %v3031 = vadd.f32 %v2766, %v3030
        %v3032 = vpop.f32.mrb[0].mxu0
        %3033 = vmatprep.mubr.f32.mxu0 %v1956
        %3034 = vmatmul.mubr.f32.gmra.mrb[0].mxu0 %v1955
        %v3035 = vpop.f32.mrb[0].mxu0
        %v3036 = vadd.f32 %v2771, %v3035
        %v3037 = vpop.f32.mrb[0].mxu0
        %3038 = vmatprep.mubr.f32.mxu0 %v1965
        %3039 = vmatmul.mubr.f32.gmra.mrb[0].mxu0 %v1964
        %v3040 = vpop.f32.mrb[0].mxu0
        %v3041 = vadd.f32 %v2776, %v3040
        %v3042 = vpop.f32.mrb[0].mxu0
        %3043 = vmatprep.mubr.f32.mxu0 %v1974
        %3044 = vmatmul.mubr.f32.gmra.mrb[0].mxu0 %v1973
        %v3045 = vpop.f32.mrb[0].mxu0
        %v3046 = vadd.f32 %v2781, %v3045
        %v3047 = vpop.f32.mrb[0].mxu0
        %3048 = vmatprep.mubr.f32.mxu0 %v1983
        %3049 = vmatmul.mubr.f32.gmra.mrb[0].mxu0 %v1982
        %v3050 = vpop.f32.mrb[0].mxu0
        %v3051 = vadd.f32 %v2786, %v3050
        %v3052 = vpop.f32.mrb[0].mxu0
        %3053 = vmatprep.mubr.f32.mxu0 %v1992
        %3054 = vmatmul.mubr.f32.gmra.mrb[0].mxu0 %v1991
        %v3055 = vpop.f32.mrb[0].mxu0
        %v3056 = vadd.f32 %v2791, %v3055
        %v3057 = vpop.f32.mrb[0].mxu0
        %3058 = vmatprep.mubr.f32.mxu0 %v2001
        %3059 = vmatmul.mubr.f32.gmra.mrb[0].mxu0 %v2000
        %v3060 = vpop.f32.mrb[0].mxu0
        %v3061 = vadd.f32 %v2796, %v3060
        %v3062 = vpop.f32.mrb[0].mxu0
        %3063 = vmatprep.mubr.f32.mxu0 %v2010
        %3064 = vmatmul.mubr.f32.gmra.mrb[0].mxu0 %v2009
        %v3065 = vpop.f32.mrb[0].mxu0
        %v3066 = vadd.f32 %v2801, %v3065
        %v3067 = vpop.f32.mrb[0].mxu0
        %3068 = vmatprep.mubr.f32.mxu0 %v2019
        %3069 = vmatmul.mubr.f32.gmra.mrb[0].mxu0 %v2018
        %v3070 = vpop.f32.mrb[0].mxu0
        %v3071 = vadd.f32 %v2806, %v3070
        %v3072 = vpop.f32.mrb[0].mxu0
        %3073 = vmatprep.mubr.f32.mxu0 %v2028
        %3074 = vmatmul.mubr.f32.gmra.mrb[0].mxu0 %v2027
        %v3075 = vpop.f32.mrb[0].mxu0
        %v3076 = vadd.f32 %v2811, %v3075
        %v3077 = vpop.f32.mrb[0].mxu0
        %3078 = vmatprep.mubr.f32.mxu0 %v2037
        %3079 = vmatmul.mubr.f32.gmra.mrb[0].mxu0 %v2036
        %v3080 = vpop.f32.mrb[0].mxu0
        %v3081 = vadd.f32 %v2816, %v3080
        %v3082 = vpop.f32.mrb[0].mxu0
        %3083 = vmatprep.mubr.f32.mxu0 %v2046
        %3084 = vmatmul.mubr.f32.gmra.mrb[0].mxu0 %v2045
        %v3085 = vpop.f32.mrb[0].mxu0
        %v3086 = vadd.f32 %v2821, %v3085
        %v3087 = vpop.f32.mrb[0].mxu0
        %3088 = vmatprep.mubr.f32.mxu0 %v2055
        %3089 = vmatmul.mubr.f32.gmra.mrb[0].mxu0 %v2054
        %v3090 = vpop.f32.mrb[0].mxu0
        %v3091 = vadd.f32 %v2826, %v3090
        %v3092 = vpop.f32.mrb[0].mxu0
        %3093 = vmatprep.mubr.f32.mxu0 %v2064
        %3094 = vmatmul.mubr.f32.gmra.mrb[0].mxu0 %v2063
        %v3095 = vpop.f32.mrb[0].mxu0
        %v3096 = vadd.f32 %v2831, %v3095
        %v3097 = vpop.f32.mrb[0].mxu0
        %3098 = vmatprep.mubr.f32.mxu0 %v2073
        %3099 = vmatmul.mubr.f32.gmra.mrb[0].mxu0 %v2072
        %v3100 = vpop.f32.mrb[0].mxu0
        %v3101 = vadd.f32 %v2836, %v3100
        %v3102 = vpop.f32.mrb[0].mxu0
        %3103 = vmatprep.mubr.f32.mxu0 %v2082
        %3104 = vmatmul.mubr.f32.gmra.mrb[0].mxu0 %v2081
        %v3105 = vpop.f32.mrb[0].mxu0
        %v3106 = vadd.f32 %v2841, %v3105
        %v3107 = vpop.f32.mrb[0].mxu0
        %3108 = vmatprep.mubr.f32.mxu0 %v2091
        %3109 = vmatmul.mubr.f32.gmra.mrb[0].mxu0 %v2090
        %v3110 = vpop.f32.mrb[0].mxu0
        %v3111 = vadd.f32 %v2846, %v3110
        %v3112 = vpop.f32.mrb[0].mxu0
        %3113 = vmatprep.mubr.f32.mxu0 %v2100
        %3114 = vmatmul.mubr.f32.gmra.mrb[0].mxu0 %v2099
        %v3115 = vpop.f32.mrb[0].mxu0
        %v3116 = vadd.f32 %v2851, %v3115
        %v3117 = vpop.f32.mrb[0].mxu0
        %3118 = vmatprep.mubr.f32.mxu0 %v2109
        %3119 = vmatmul.mubr.f32.gmra.mrb[0].mxu0 %v2108
        %v3120 = vpop.f32.mrb[0].mxu0
        %v3121 = vadd.f32 %v2856, %v3120
        %v3122 = vpop.f32.mrb[0].mxu0
        %3123 = vmatprep.mubr.f32.mxu0 %v2118
        %3124 = vmatmul.mubr.f32.gmra.mrb[0].mxu0 %v2117
        %v3125 = vpop.f32.mrb[0].mxu0
        %v3126 = vadd.f32 %v2861, %v3125
        %v3127 = vpop.f32.mrb[0].mxu0
        %3128 = vmatprep.mubr.f32.mxu0 %v2127
        %3129 = vmatmul.mubr.f32.gmra.mrb[0].mxu0 %v2126
        %v3130 = vpop.f32.mrb[0].mxu0
        %v3131 = vadd.f32 %v2866, %v3130
        %v3132 = vpop.f32.mrb[0].mxu0
        %3133 = vmatprep.mubr.f32.mxu0 %v2136
        %3134 = vmatmul.mubr.f32.gmra.mrb[0].mxu0 %v2135
        %v3135 = vpop.f32.mrb[0].mxu0
        %v3136 = vadd.f32 %v2871, %v3135
        %v3137 = vpop.f32.mrb[0].mxu0
        %3138 = vmatprep.mubr.f32.mxu0 %v2145
        %3139 = vmatmul.mubr.f32.gmra.mrb[0].mxu0 %v2144
        %v3140 = vpop.f32.mrb[0].mxu0
        %v3141 = vadd.f32 %v2876, %v3140
        %v3142 = vpop.f32.mrb[0].mxu0
        %3143 = vmatprep.mubr.f32.mxu0 %v2154
        %3144 = vmatmul.mubr.f32.gmra.mrb[0].mxu0 %v2153
        %v3145 = vpop.f32.mrb[0].mxu0
        %v3146 = vadd.f32 %v2881, %v3145
        %v3147 = vpop.f32.mrb[0].mxu0
        %3148 = vmatprep.mubr.f32.mxu0 %v2163
        %3149 = vmatmul.mubr.f32.gmra.mrb[0].mxu0 %v2162
        %v3150 = vpop.f32.mrb[0].mxu0
        %v3151 = vadd.f32 %v2886, %v3150
        %v3152 = vpop.f32.mrb[0].mxu0
        %3153 = vmatprep.mubr.f32.mxu0 %v2172
        %3154 = vmatmul.mubr.f32.gmra.mrb[0].mxu0 %v2171
        %v3155 = vpop.f32.mrb[0].mxu0
        %v3156 = vadd.f32 %v2891, %v3155
        %v3157 = vpop.f32.mrb[0].mxu0
        %3158 = vmatprep.mubr.f32.mxu0 %v2181
        %3159 = vmatmul.mubr.f32.gmra.mrb[0].mxu0 %v2180
        %v3160 = vpop.f32.mrb[0].mxu0
        %v3161 = vadd.f32 %v2896, %v3160
        %v3162 = vpop.f32.mrb[0].mxu0
        %3163 = vmatprep.mubr.f32.mxu0 %v2190
        %3164 = vmatmul.mubr.f32.gmra.mrb[0].mxu0 %v2189
        %v3165 = vpop.f32.mrb[0].mxu0
        %v3166 = vadd.f32 %v2901, %v3165
        %v3167 = vpop.f32.mrb[0].mxu0
        %3168 = vmatprep.mubr.f32.mxu0 %v2199
        %3169 = vmatmul.mubr.f32.gmra.mrb[0].mxu0 %v2198
        %v3170 = vpop.f32.mrb[0].mxu0
        %v3171 = vadd.f32 %v2906, %v3170
        %v3172 = vpop.f32.mrb[0].mxu0
        %3173 = vmatprep.mubr.f32.mxu0 %v2208
        %3174 = vmatmul.mubr.f32.gmra.mrb[0].mxu0 %v2207
        %v3175 = vpop.f32.mrb[0].mxu0
        %v3176 = vadd.f32 %v2911, %v3175
        %v3177 = vpop.f32.mrb[0].mxu0
        %3178 = vmatprep.mubr.f32.mxu0 %v2217
        %3179 = vmatmul.mubr.f32.gmra.mrb[0].mxu0 %v2216
        %v3180 = vpop.f32.mrb[0].mxu0
        %v3181 = vadd.f32 %v2916, %v3180
        %v3182 = vpop.f32.mrb[0].mxu0
        %3183 = vmatprep.mubr.f32.mxu0 %v2226
        %3184 = vmatmul.mubr.f32.gmra.mrb[0].mxu0 %v2225
        %v3185 = vpop.f32.mrb[0].mxu0
        %v3186 = vadd.f32 %v2921, %v3185
        %v3187 = vpop.f32.mrb[0].mxu0
        %3188 = vmatprep.mubr.f32.mxu0 %v2235
        %3189 = vmatmul.mubr.f32.gmra.mrb[0].mxu0 %v2234
        %v3190 = vpop.f32.mrb[0].mxu0
        %v3191 = vadd.f32 %v2926, %v3190
        %v3192 = vpop.f32.mrb[0].mxu0
        %3193 = vmatprep.mubr.f32.mxu0 %v2244
        %3194 = vmatmul.mubr.f32.gmra.mrb[0].mxu0 %v2243
        %v3195 = vpop.f32.mrb[0].mxu0
        %v3196 = vadd.f32 %v2931, %v3195
        %v3197 = vpop.f32.mrb[0].mxu0
        %3198 = vmatprep.mubr.f32.mxu0 %v2253
        %3199 = vmatmul.mubr.f32.gmra.mrb[0].mxu0 %v2252
        %v3200 = vpop.f32.mrb[0].mxu0
        %v3201 = vadd.f32 %v2936, %v3200
        %v3202 = vpop.f32.mrb[0].mxu0
        %3203 = vmatprep.mubr.f32.mxu0 %v2262
        %3204 = vmatmul.mubr.f32.gmra.mrb[0].mxu0 %v2261
        %v3205 = vpop.f32.mrb[0].mxu0
        %v3206 = vadd.f32 %v2941, %v3205
        %v3207 = vpop.f32.mrb[0].mxu0
        %3208 = vmatprep.mubr.f32.mxu0 %v2271
        %3209 = vmatmul.mubr.f32.gmra.mrb[0].mxu0 %v2270
        %v3210 = vpop.f32.mrb[0].mxu0
        %v3211 = vadd.f32 %v2946, %v3210
        %v3212 = vpop.f32.mrb[0].mxu0
        %3213 = vdwg.mxu0
        %3214 = vmatprep.subr.mxu0 0.0
        %3215 = vmatpush1.msra.mxu0 %v2371
        %3216 = vmatprep.subr.mxu0 0.0
        %3217 = vmatpush1.msra.mxu0 %v2372
        %3218 = vmatprep.subr.mxu0 0.0
        %3219 = vmatpush1.msra.mxu0 %v2373
        %3220 = vmatprep.subr.mxu0 0.0
        %3221 = vmatpush1.msra.mxu0 %v2374
        %3222 = vmatprep.subr.mxu0 0.0
        %3223 = vmatpush1.msra.mxu0 %v2375
        %3224 = vmatprep.subr.mxu0 0.0
        %3225 = vmatpush1.msra.mxu0 %v2376
        %3226 = vmatprep.subr.mxu0 0.0
        %3227 = vmatpush1.msra.mxu0 %v2377
        %3228 = vmatprep.subr.mxu0 0.0
        %3229 = vmatpush1.msra.mxu0 %v2378
        %3230 = vmatprep.subr.mxu0 0.0
        %3231 = vmatpush1.msra.mxu0 %v2379
        %3232 = vmatprep.subr.mxu0 0.0
        %3233 = vmatpush1.msra.mxu0 %v2380
        %3234 = vmatprep.subr.mxu0 0.0
        %3235 = vmatpush1.msra.mxu0 %v2381
        %3236 = vmatprep.subr.mxu0 0.0
        %3237 = vmatpush1.msra.mxu0 %v2382
        %3238 = vmatprep.subr.mxu0 0.0
        %3239 = vmatpush1.msra.mxu0 %v2383
        %3240 = vmatprep.subr.mxu0 0.0
        %3241 = vmatpush1.msra.mxu0 %v2384
        %3242 = vmatprep.subr.mxu0 0.0
        %3243 = vmatpush1.msra.mxu0 %v2385
        %3244 = vmatprep.subr.mxu0 0.0
        %3245 = vmatpush1.msra.mxu0 %v2386
        %3246 = vmatprep.subr.mxu0 0.0
        %3247 = vmatpush1.msra.mxu0 %v2387
        %3248 = vmatprep.subr.mxu0 0.0
        %3249 = vmatpush1.msra.mxu0 %v2388
        %3250 = vmatprep.subr.mxu0 0.0
        %3251 = vmatpush1.msra.mxu0 %v2389
        %3252 = vmatprep.subr.mxu0 0.0
        %3253 = vmatpush1.msra.mxu0 %v2390
        %3254 = vmatprep.subr.mxu0 0.0
        %3255 = vmatpush1.msra.mxu0 %v2391
        %3256 = vmatprep.subr.mxu0 0.0
        %3257 = vmatpush1.msra.mxu0 %v2392
        %3258 = vmatprep.subr.mxu0 0.0
        %3259 = vmatpush1.msra.mxu0 %v2393
        %3260 = vmatprep.subr.mxu0 0.0
        %3261 = vmatpush1.msra.mxu0 %v2394
        %3262 = vmatprep.subr.mxu0 0.0
        %3263 = vmatpush1.msra.mxu0 %v2395
        %3264 = vmatprep.subr.mxu0 0.0
        %3265 = vmatpush1.msra.mxu0 %v2396
        %3266 = vmatprep.subr.mxu0 0.0
        %3267 = vmatpush1.msra.mxu0 %v2397
        %3268 = vmatprep.subr.mxu0 0.0
        %3269 = vmatpush1.msra.mxu0 %v2398
        %3270 = vmatprep.subr.mxu0 0.0
        %3271 = vmatpush1.msra.mxu0 %v2399
        %3272 = vmatprep.subr.mxu0 0.0
        %3273 = vmatpush1.msra.mxu0 %v2400
        %3274 = vmatprep.subr.mxu0 0.0
        %3275 = vmatpush1.msra.mxu0 %v2401
        %3276 = vmatprep.subr.mxu0 0.0
        %3277 = vmatpush1.msra.mxu0 %v2402
        %3278 = vmatprep.mubr.f32.mxu0 %v1922
        %3279 = vmatmul.mubr.f32.gmra.mrb[0].mxu0 %v1921
        %v3280 = vpop.f32.mrb[0].mxu0
        %v3281 = vadd.f32 %v3016, %v3280
        %v3282 = vpop.f32.mrb[0].mxu0
        %3283 = vmatprep.mubr.f32.mxu0 %v1931
        %3284 = vmatmul.mubr.f32.gmra.mrb[0].mxu0 %v1930
        %v3285 = vpop.f32.mrb[0].mxu0
        %v3286 = vadd.f32 %v3021, %v3285
        %v3287 = vpop.f32.mrb[0].mxu0
        %3288 = vmatprep.mubr.f32.mxu0 %v1940
        %3289 = vmatmul.mubr.f32.gmra.mrb[0].mxu0 %v1939
        %v3290 = vpop.f32.mrb[0].mxu0
        %v3291 = vadd.f32 %v3026, %v3290
        %v3292 = vpop.f32.mrb[0].mxu0
        %3293 = vmatprep.mubr.f32.mxu0 %v1949
        %3294 = vmatmul.mubr.f32.gmra.mrb[0].mxu0 %v1948
        %v3295 = vpop.f32.mrb[0].mxu0
        %v3296 = vadd.f32 %v3031, %v3295
        %v3297 = vpop.f32.mrb[0].mxu0
        %3298 = vmatprep.mubr.f32.mxu0 %v1958
        %3299 = vmatmul.mubr.f32.gmra.mrb[0].mxu0 %v1957
        %v3300 = vpop.f32.mrb[0].mxu0
        %v3301 = vadd.f32 %v3036, %v3300
        %v3302 = vpop.f32.mrb[0].mxu0
        %3303 = vmatprep.mubr.f32.mxu0 %v1967
        %3304 = vmatmul.mubr.f32.gmra.mrb[0].mxu0 %v1966
        %v3305 = vpop.f32.mrb[0].mxu0
        %v3306 = vadd.f32 %v3041, %v3305
        %v3307 = vpop.f32.mrb[0].mxu0
        %3308 = vmatprep.mubr.f32.mxu0 %v1976
        %3309 = vmatmul.mubr.f32.gmra.mrb[0].mxu0 %v1975
        %v3310 = vpop.f32.mrb[0].mxu0
        %v3311 = vadd.f32 %v3046, %v3310
        %v3312 = vpop.f32.mrb[0].mxu0
        %3313 = vmatprep.mubr.f32.mxu0 %v1985
        %3314 = vmatmul.mubr.f32.gmra.mrb[0].mxu0 %v1984
        %v3315 = vpop.f32.mrb[0].mxu0
        %v3316 = vadd.f32 %v3051, %v3315
        %v3317 = vpop.f32.mrb[0].mxu0
        %3318 = vmatprep.mubr.f32.mxu0 %v1994
        %3319 = vmatmul.mubr.f32.gmra.mrb[0].mxu0 %v1993
        %v3320 = vpop.f32.mrb[0].mxu0
        %v3321 = vadd.f32 %v3056, %v3320
        %v3322 = vpop.f32.mrb[0].mxu0
        %3323 = vmatprep.mubr.f32.mxu0 %v2003
        %3324 = vmatmul.mubr.f32.gmra.mrb[0].mxu0 %v2002
        %v3325 = vpop.f32.mrb[0].mxu0
        %v3326 = vadd.f32 %v3061, %v3325
        %v3327 = vpop.f32.mrb[0].mxu0
        %3328 = vmatprep.mubr.f32.mxu0 %v2012
        %3329 = vmatmul.mubr.f32.gmra.mrb[0].mxu0 %v2011
        %v3330 = vpop.f32.mrb[0].mxu0
        %v3331 = vadd.f32 %v3066, %v3330
        %v3332 = vpop.f32.mrb[0].mxu0
        %3333 = vmatprep.mubr.f32.mxu0 %v2021
        %3334 = vmatmul.mubr.f32.gmra.mrb[0].mxu0 %v2020
        %v3335 = vpop.f32.mrb[0].mxu0
        %v3336 = vadd.f32 %v3071, %v3335
        %v3337 = vpop.f32.mrb[0].mxu0
        %3338 = vmatprep.mubr.f32.mxu0 %v2030
        %3339 = vmatmul.mubr.f32.gmra.mrb[0].mxu0 %v2029
        %v3340 = vpop.f32.mrb[0].mxu0
        %v3341 = vadd.f32 %v3076, %v3340
        %v3342 = vpop.f32.mrb[0].mxu0
        %3343 = vmatprep.mubr.f32.mxu0 %v2039
        %3344 = vmatmul.mubr.f32.gmra.mrb[0].mxu0 %v2038
        %v3345 = vpop.f32.mrb[0].mxu0
        %v3346 = vadd.f32 %v3081, %v3345
        %v3347 = vpop.f32.mrb[0].mxu0
        %3348 = vmatprep.mubr.f32.mxu0 %v2048
        %3349 = vmatmul.mubr.f32.gmra.mrb[0].mxu0 %v2047
        %v3350 = vpop.f32.mrb[0].mxu0
        %v3351 = vadd.f32 %v3086, %v3350
        %v3352 = vpop.f32.mrb[0].mxu0
        %3353 = vmatprep.mubr.f32.mxu0 %v2057
        %3354 = vmatmul.mubr.f32.gmra.mrb[0].mxu0 %v2056
        %v3355 = vpop.f32.mrb[0].mxu0
        %v3356 = vadd.f32 %v3091, %v3355
        %v3357 = vpop.f32.mrb[0].mxu0
        %3358 = vmatprep.mubr.f32.mxu0 %v2066
        %3359 = vmatmul.mubr.f32.gmra.mrb[0].mxu0 %v2065
        %v3360 = vpop.f32.mrb[0].mxu0
        %v3361 = vadd.f32 %v3096, %v3360
        %v3362 = vpop.f32.mrb[0].mxu0
        %3363 = vmatprep.mubr.f32.mxu0 %v2075
        %3364 = vmatmul.mubr.f32.gmra.mrb[0].mxu0 %v2074
        %v3365 = vpop.f32.mrb[0].mxu0
        %v3366 = vadd.f32 %v3101, %v3365
        %v3367 = vpop.f32.mrb[0].mxu0
        %3368 = vmatprep.mubr.f32.mxu0 %v2084
        %3369 = vmatmul.mubr.f32.gmra.mrb[0].mxu0 %v2083
        %v3370 = vpop.f32.mrb[0].mxu0
        %v3371 = vadd.f32 %v3106, %v3370
        %v3372 = vpop.f32.mrb[0].mxu0
        %3373 = vmatprep.mubr.f32.mxu0 %v2093
        %3374 = vmatmul.mubr.f32.gmra.mrb[0].mxu0 %v2092
        %v3375 = vpop.f32.mrb[0].mxu0
        %v3376 = vadd.f32 %v3111, %v3375
        %v3377 = vpop.f32.mrb[0].mxu0
        %3378 = vmatprep.mubr.f32.mxu0 %v2102
        %3379 = vmatmul.mubr.f32.gmra.mrb[0].mxu0 %v2101
        %v3380 = vpop.f32.mrb[0].mxu0
        %v3381 = vadd.f32 %v3116, %v3380
        %v3382 = vpop.f32.mrb[0].mxu0
        %3383 = vmatprep.mubr.f32.mxu0 %v2111
        %3384 = vmatmul.mubr.f32.gmra.mrb[0].mxu0 %v2110
        %v3385 = vpop.f32.mrb[0].mxu0
        %v3386 = vadd.f32 %v3121, %v3385
        %v3387 = vpop.f32.mrb[0].mxu0
        %3388 = vmatprep.mubr.f32.mxu0 %v2120
        %3389 = vmatmul.mubr.f32.gmra.mrb[0].mxu0 %v2119
        %v3390 = vpop.f32.mrb[0].mxu0
        %v3391 = vadd.f32 %v3126, %v3390
        %v3392 = vpop.f32.mrb[0].mxu0
        %3393 = vmatprep.mubr.f32.mxu0 %v2129
        %3394 = vmatmul.mubr.f32.gmra.mrb[0].mxu0 %v2128
        %v3395 = vpop.f32.mrb[0].mxu0
        %v3396 = vadd.f32 %v3131, %v3395
        %v3397 = vpop.f32.mrb[0].mxu0
        %3398 = vmatprep.mubr.f32.mxu0 %v2138
        %3399 = vmatmul.mubr.f32.gmra.mrb[0].mxu0 %v2137
        %v3400 = vpop.f32.mrb[0].mxu0
        %v3401 = vadd.f32 %v3136, %v3400
        %v3402 = vpop.f32.mrb[0].mxu0
        %3403 = vmatprep.mubr.f32.mxu0 %v2147
        %3404 = vmatmul.mubr.f32.gmra.mrb[0].mxu0 %v2146
        %v3405 = vpop.f32.mrb[0].mxu0
        %v3406 = vadd.f32 %v3141, %v3405
        %v3407 = vpop.f32.mrb[0].mxu0
        %3408 = vmatprep.mubr.f32.mxu0 %v2156
        %3409 = vmatmul.mubr.f32.gmra.mrb[0].mxu0 %v2155
        %v3410 = vpop.f32.mrb[0].mxu0
        %v3411 = vadd.f32 %v3146, %v3410
        %v3412 = vpop.f32.mrb[0].mxu0
        %3413 = vmatprep.mubr.f32.mxu0 %v2165
        %3414 = vmatmul.mubr.f32.gmra.mrb[0].mxu0 %v2164
        %v3415 = vpop.f32.mrb[0].mxu0
        %v3416 = vadd.f32 %v3151, %v3415
        %v3417 = vpop.f32.mrb[0].mxu0
        %3418 = vmatprep.mubr.f32.mxu0 %v2174
        %3419 = vmatmul.mubr.f32.gmra.mrb[0].mxu0 %v2173
        %v3420 = vpop.f32.mrb[0].mxu0
        %v3421 = vadd.f32 %v3156, %v3420
        %v3422 = vpop.f32.mrb[0].mxu0
        %3423 = vmatprep.mubr.f32.mxu0 %v2183
        %3424 = vmatmul.mubr.f32.gmra.mrb[0].mxu0 %v2182
        %v3425 = vpop.f32.mrb[0].mxu0
        %v3426 = vadd.f32 %v3161, %v3425
        %v3427 = vpop.f32.mrb[0].mxu0
        %3428 = vmatprep.mubr.f32.mxu0 %v2192
        %3429 = vmatmul.mubr.f32.gmra.mrb[0].mxu0 %v2191
        %v3430 = vpop.f32.mrb[0].mxu0
        %v3431 = vadd.f32 %v3166, %v3430
        %v3432 = vpop.f32.mrb[0].mxu0
        %3433 = vmatprep.mubr.f32.mxu0 %v2201
        %3434 = vmatmul.mubr.f32.gmra.mrb[0].mxu0 %v2200
        %v3435 = vpop.f32.mrb[0].mxu0
        %v3436 = vadd.f32 %v3171, %v3435
        %v3437 = vpop.f32.mrb[0].mxu0
        %3438 = vmatprep.mubr.f32.mxu0 %v2210
        %3439 = vmatmul.mubr.f32.gmra.mrb[0].mxu0 %v2209
        %v3440 = vpop.f32.mrb[0].mxu0
        %v3441 = vadd.f32 %v3176, %v3440
        %v3442 = vpop.f32.mrb[0].mxu0
        %3443 = vmatprep.mubr.f32.mxu0 %v2219
        %3444 = vmatmul.mubr.f32.gmra.mrb[0].mxu0 %v2218
        %v3445 = vpop.f32.mrb[0].mxu0
        %v3446 = vadd.f32 %v3181, %v3445
        %v3447 = vpop.f32.mrb[0].mxu0
        %3448 = vmatprep.mubr.f32.mxu0 %v2228
        %3449 = vmatmul.mubr.f32.gmra.mrb[0].mxu0 %v2227
        %v3450 = vpop.f32.mrb[0].mxu0
        %v3451 = vadd.f32 %v3186, %v3450
        %v3452 = vpop.f32.mrb[0].mxu0
        %3453 = vmatprep.mubr.f32.mxu0 %v2237
        %3454 = vmatmul.mubr.f32.gmra.mrb[0].mxu0 %v2236
        %v3455 = vpop.f32.mrb[0].mxu0
        %v3456 = vadd.f32 %v3191, %v3455
        %v3457 = vpop.f32.mrb[0].mxu0
        %3458 = vmatprep.mubr.f32.mxu0 %v2246
        %3459 = vmatmul.mubr.f32.gmra.mrb[0].mxu0 %v2245
        %v3460 = vpop.f32.mrb[0].mxu0
        %v3461 = vadd.f32 %v3196, %v3460
        %v3462 = vpop.f32.mrb[0].mxu0
        %3463 = vmatprep.mubr.f32.mxu0 %v2255
        %3464 = vmatmul.mubr.f32.gmra.mrb[0].mxu0 %v2254
        %v3465 = vpop.f32.mrb[0].mxu0
        %v3466 = vadd.f32 %v3201, %v3465
        %v3467 = vpop.f32.mrb[0].mxu0
        %3468 = vmatprep.mubr.f32.mxu0 %v2264
        %3469 = vmatmul.mubr.f32.gmra.mrb[0].mxu0 %v2263
        %v3470 = vpop.f32.mrb[0].mxu0
        %v3471 = vadd.f32 %v3206, %v3470
        %v3472 = vpop.f32.mrb[0].mxu0
        %3473 = vmatprep.mubr.f32.mxu0 %v2273
        %3474 = vmatmul.mubr.f32.gmra.mrb[0].mxu0 %v2272
        %v3475 = vpop.f32.mrb[0].mxu0
        %v3476 = vadd.f32 %v3211, %v3475
        %v3477 = vpop.f32.mrb[0].mxu0
        %3478 = vdwg.mxu0
        %3479 = vmatprep.subr.mxu0 0.0
        %3480 = vmatpush1.msra.mxu0 %v2403
        %3481 = vmatprep.subr.mxu0 0.0
        %3482 = vmatpush1.msra.mxu0 %v2404
        %3483 = vmatprep.subr.mxu0 0.0
        %3484 = vmatpush1.msra.mxu0 %v2405
        %3485 = vmatprep.subr.mxu0 0.0
        %3486 = vmatpush1.msra.mxu0 %v2406
        %3487 = vmatprep.subr.mxu0 0.0
        %3488 = vmatpush1.msra.mxu0 %v2407
        %3489 = vmatprep.subr.mxu0 0.0
        %3490 = vmatpush1.msra.mxu0 %v2408
        %3491 = vmatprep.subr.mxu0 0.0
        %3492 = vmatpush1.msra.mxu0 %v2409
        %3493 = vmatprep.subr.mxu0 0.0
        %3494 = vmatpush1.msra.mxu0 %v2410
        %3495 = vmatprep.subr.mxu0 0.0
        %3496 = vmatpush1.msra.mxu0 %v2411
        %3497 = vmatprep.subr.mxu0 0.0
        %3498 = vmatpush1.msra.mxu0 %v2412
        %3499 = vmatprep.subr.mxu0 0.0
        %3500 = vmatpush1.msra.mxu0 %v2413
        %3501 = vmatprep.subr.mxu0 0.0
        %3502 = vmatpush1.msra.mxu0 %v2414
        %3503 = vmatprep.subr.mxu0 0.0
        %3504 = vmatpush1.msra.mxu0 %v2415
        %3505 = vmatprep.subr.mxu0 0.0
        %3506 = vmatpush1.msra.mxu0 %v2416
        %3507 = vmatprep.subr.mxu0 0.0
        %3508 = vmatpush1.msra.mxu0 %v2417
        %3509 = vmatprep.subr.mxu0 0.0
        %3510 = vmatpush1.msra.mxu0 %v2418
        %3511 = vmatprep.subr.mxu0 0.0
        %3512 = vmatpush1.msra.mxu0 0.0
        %3513 = vmatprep.subr.mxu0 0.0
        %3514 = vmatpush1.msra.mxu0 0.0
        %3515 = vmatprep.subr.mxu0 0.0
        %3516 = vmatpush1.msra.mxu0 0.0
        %3517 = vmatprep.subr.mxu0 0.0
        %3518 = vmatpush1.msra.mxu0 0.0
        %3519 = vmatprep.subr.mxu0 0.0
        %3520 = vmatpush1.msra.mxu0 0.0
        %3521 = vmatprep.subr.mxu0 0.0
        %3522 = vmatpush1.msra.mxu0 0.0
        %3523 = vmatprep.subr.mxu0 0.0
        %3524 = vmatpush1.msra.mxu0 0.0
        %3525 = vmatprep.subr.mxu0 0.0
        %3526 = vmatpush1.msra.mxu0 0.0
        %3527 = vmatprep.subr.mxu0 0.0
        %3528 = vmatpush1.msra.mxu0 0.0
        %3529 = vmatprep.subr.mxu0 0.0
        %3530 = vmatpush1.msra.mxu0 0.0
        %3531 = vmatprep.subr.mxu0 0.0
        %3532 = vmatpush1.msra.mxu0 0.0
        %3533 = vmatprep.subr.mxu0 0.0
        %3534 = vmatpush1.msra.mxu0 0.0
        %3535 = vmatprep.subr.mxu0 0.0
        %3536 = vmatpush1.msra.mxu0 0.0
        %3537 = vmatprep.subr.mxu0 0.0
        %3538 = vmatpush1.msra.mxu0 0.0
        %3539 = vmatprep.subr.mxu0 0.0
        %3540 = vmatpush1.msra.mxu0 0.0
        %3541 = vmatprep.subr.mxu0 0.0
        %3542 = vmatpush1.msra.mxu0 0.0
        %3543 = vmatprep.mubr.f32.mxu0 0.0
        %3544 = vmatmul.mubr.f32.gmra.mrb[0].mxu0 %v1923
        %v3545 = vpop.f32.mrb[0].mxu0
        %v3546 = vadd.f32 %v3281, %v3545
        %v3547 = vpop.f32.mrb[0].mxu0
        %3548 = vmatprep.mubr.f32.mxu0 0.0
        %3549 = vmatmul.mubr.f32.gmra.mrb[0].mxu0 %v1932
        %v3550 = vpop.f32.mrb[0].mxu0
        %v3551 = vadd.f32 %v3286, %v3550
        %v3552 = vpop.f32.mrb[0].mxu0
        %3553 = vmatprep.mubr.f32.mxu0 0.0
        %3554 = vmatmul.mubr.f32.gmra.mrb[0].mxu0 %v1941
        %v3555 = vpop.f32.mrb[0].mxu0
        %v3556 = vadd.f32 %v3291, %v3555
        %v3557 = vpop.f32.mrb[0].mxu0
        %3558 = vmatprep.mubr.f32.mxu0 0.0
        %3559 = vmatmul.mubr.f32.gmra.mrb[0].mxu0 %v1950
        %v3560 = vpop.f32.mrb[0].mxu0
        %v3561 = vadd.f32 %v3296, %v3560
        %v3562 = vpop.f32.mrb[0].mxu0
        %3563 = vmatprep.mubr.f32.mxu0 0.0
        %3564 = vmatmul.mubr.f32.gmra.mrb[0].mxu0 %v1959
        %v3565 = vpop.f32.mrb[0].mxu0
        %v3566 = vadd.f32 %v3301, %v3565
        %v3567 = vpop.f32.mrb[0].mxu0
        %3568 = vmatprep.mubr.f32.mxu0 0.0
        %3569 = vmatmul.mubr.f32.gmra.mrb[0].mxu0 %v1968
        %v3570 = vpop.f32.mrb[0].mxu0
        %v3571 = vadd.f32 %v3306, %v3570
        %v3572 = vpop.f32.mrb[0].mxu0
        %3573 = vmatprep.mubr.f32.mxu0 0.0
        %3574 = vmatmul.mubr.f32.gmra.mrb[0].mxu0 %v1977
        %v3575 = vpop.f32.mrb[0].mxu0
        %v3576 = vadd.f32 %v3311, %v3575
        %v3577 = vpop.f32.mrb[0].mxu0
        %3578 = vmatprep.mubr.f32.mxu0 0.0
        %3579 = vmatmul.mubr.f32.gmra.mrb[0].mxu0 %v1986
        %v3580 = vpop.f32.mrb[0].mxu0
        %v3581 = vadd.f32 %v3316, %v3580
        %v3582 = vpop.f32.mrb[0].mxu0
        %3583 = vmatprep.mubr.f32.mxu0 0.0
        %3584 = vmatmul.mubr.f32.gmra.mrb[0].mxu0 %v1995
        %v3585 = vpop.f32.mrb[0].mxu0
        %v3586 = vadd.f32 %v3321, %v3585
        %v3587 = vpop.f32.mrb[0].mxu0
        %3588 = vmatprep.mubr.f32.mxu0 0.0
        %3589 = vmatmul.mubr.f32.gmra.mrb[0].mxu0 %v2004
        %v3590 = vpop.f32.mrb[0].mxu0
        %v3591 = vadd.f32 %v3326, %v3590
        %v3592 = vpop.f32.mrb[0].mxu0
        %3593 = vmatprep.mubr.f32.mxu0 0.0
        %3594 = vmatmul.mubr.f32.gmra.mrb[0].mxu0 %v2013
        %v3595 = vpop.f32.mrb[0].mxu0
        %v3596 = vadd.f32 %v3331, %v3595
        %v3597 = vpop.f32.mrb[0].mxu0
        %3598 = vmatprep.mubr.f32.mxu0 0.0
        %3599 = vmatmul.mubr.f32.gmra.mrb[0].mxu0 %v2022
        %v3600 = vpop.f32.mrb[0].mxu0
        %v3601 = vadd.f32 %v3336, %v3600
        %v3602 = vpop.f32.mrb[0].mxu0
        %3603 = vmatprep.mubr.f32.mxu0 0.0
        %3604 = vmatmul.mubr.f32.gmra.mrb[0].mxu0 %v2031
        %v3605 = vpop.f32.mrb[0].mxu0
        %v3606 = vadd.f32 %v3341, %v3605
        %v3607 = vpop.f32.mrb[0].mxu0
        %3608 = vmatprep.mubr.f32.mxu0 0.0
        %3609 = vmatmul.mubr.f32.gmra.mrb[0].mxu0 %v2040
        %v3610 = vpop.f32.mrb[0].mxu0
        %v3611 = vadd.f32 %v3346, %v3610
        %v3612 = vpop.f32.mrb[0].mxu0
        %3613 = vmatprep.mubr.f32.mxu0 0.0
        %3614 = vmatmul.mubr.f32.gmra.mrb[0].mxu0 %v2049
        %v3615 = vpop.f32.mrb[0].mxu0
        %v3616 = vadd.f32 %v3351, %v3615
        %v3617 = vpop.f32.mrb[0].mxu0
        %3618 = vmatprep.mubr.f32.mxu0 0.0
        %3619 = vmatmul.mubr.f32.gmra.mrb[0].mxu0 %v2058
        %v3620 = vpop.f32.mrb[0].mxu0
        %v3621 = vadd.f32 %v3356, %v3620
        %v3622 = vpop.f32.mrb[0].mxu0
        %3623 = vmatprep.mubr.f32.mxu0 0.0
        %3624 = vmatmul.mubr.f32.gmra.mrb[0].mxu0 %v2067
        %v3625 = vpop.f32.mrb[0].mxu0
        %v3626 = vadd.f32 %v3361, %v3625
        %v3627 = vpop.f32.mrb[0].mxu0
        %3628 = vmatprep.mubr.f32.mxu0 0.0
        %3629 = vmatmul.mubr.f32.gmra.mrb[0].mxu0 %v2076
        %v3630 = vpop.f32.mrb[0].mxu0
        %v3631 = vadd.f32 %v3366, %v3630
        %v3632 = vpop.f32.mrb[0].mxu0
        %3633 = vmatprep.mubr.f32.mxu0 0.0
        %3634 = vmatmul.mubr.f32.gmra.mrb[0].mxu0 %v2085
        %v3635 = vpop.f32.mrb[0].mxu0
        %v3636 = vadd.f32 %v3371, %v3635
        %v3637 = vpop.f32.mrb[0].mxu0
        %3638 = vmatprep.mubr.f32.mxu0 0.0
        %3639 = vmatmul.mubr.f32.gmra.mrb[0].mxu0 %v2094
        %v3640 = vpop.f32.mrb[0].mxu0
        %v3641 = vadd.f32 %v3376, %v3640
        %v3642 = vpop.f32.mrb[0].mxu0
        %3643 = vmatprep.mubr.f32.mxu0 0.0
        %3644 = vmatmul.mubr.f32.gmra.mrb[0].mxu0 %v2103
        %v3645 = vpop.f32.mrb[0].mxu0
        %v3646 = vadd.f32 %v3381, %v3645
        %v3647 = vpop.f32.mrb[0].mxu0
        %3648 = vmatprep.mubr.f32.mxu0 0.0
        %3649 = vmatmul.mubr.f32.gmra.mrb[0].mxu0 %v2112
        %v3650 = vpop.f32.mrb[0].mxu0
        %v3651 = vadd.f32 %v3386, %v3650
        %v3652 = vpop.f32.mrb[0].mxu0
        %3653 = vmatprep.mubr.f32.mxu0 0.0
        %3654 = vmatmul.mubr.f32.gmra.mrb[0].mxu0 %v2121
        %v3655 = vpop.f32.mrb[0].mxu0
        %v3656 = vadd.f32 %v3391, %v3655
        %v3657 = vpop.f32.mrb[0].mxu0
        %3658 = vmatprep.mubr.f32.mxu0 0.0
        %3659 = vmatmul.mubr.f32.gmra.mrb[0].mxu0 %v2130
        %v3660 = vpop.f32.mrb[0].mxu0
        %v3661 = vadd.f32 %v3396, %v3660
        %v3662 = vpop.f32.mrb[0].mxu0
        %3663 = vmatprep.mubr.f32.mxu0 0.0
        %3664 = vmatmul.mubr.f32.gmra.mrb[0].mxu0 %v2139
        %v3665 = vpop.f32.mrb[0].mxu0
        %v3666 = vadd.f32 %v3401, %v3665
        %v3667 = vpop.f32.mrb[0].mxu0
        %3668 = vmatprep.mubr.f32.mxu0 0.0
        %3669 = vmatmul.mubr.f32.gmra.mrb[0].mxu0 %v2148
        %v3670 = vpop.f32.mrb[0].mxu0
        %v3671 = vadd.f32 %v3406, %v3670
        %v3672 = vpop.f32.mrb[0].mxu0
        %3673 = vmatprep.mubr.f32.mxu0 0.0
        %3674 = vmatmul.mubr.f32.gmra.mrb[0].mxu0 %v2157
        %v3675 = vpop.f32.mrb[0].mxu0
        %v3676 = vadd.f32 %v3411, %v3675
        %v3677 = vpop.f32.mrb[0].mxu0
        %3678 = vmatprep.mubr.f32.mxu0 0.0
        %3679 = vmatmul.mubr.f32.gmra.mrb[0].mxu0 %v2166
        %v3680 = vpop.f32.mrb[0].mxu0
        %v3681 = vadd.f32 %v3416, %v3680
        %v3682 = vpop.f32.mrb[0].mxu0
        %3683 = vmatprep.mubr.f32.mxu0 0.0
        %3684 = vmatmul.mubr.f32.gmra.mrb[0].mxu0 %v2175
        %v3685 = vpop.f32.mrb[0].mxu0
        %v3686 = vadd.f32 %v3421, %v3685
        %v3687 = vpop.f32.mrb[0].mxu0
        %3688 = vmatprep.mubr.f32.mxu0 0.0
        %3689 = vmatmul.mubr.f32.gmra.mrb[0].mxu0 %v2184
        %v3690 = vpop.f32.mrb[0].mxu0
        %v3691 = vadd.f32 %v3426, %v3690
        %v3692 = vpop.f32.mrb[0].mxu0
        %3693 = vmatprep.mubr.f32.mxu0 0.0
        %3694 = vmatmul.mubr.f32.gmra.mrb[0].mxu0 %v2193
        %v3695 = vpop.f32.mrb[0].mxu0
        %v3696 = vadd.f32 %v3431, %v3695
        %v3697 = vpop.f32.mrb[0].mxu0
        %3698 = vmatprep.mubr.f32.mxu0 0.0
        %3699 = vmatmul.mubr.f32.gmra.mrb[0].mxu0 %v2202
        %v3700 = vpop.f32.mrb[0].mxu0
        %v3701 = vadd.f32 %v3436, %v3700
        %v3702 = vpop.f32.mrb[0].mxu0
        %3703 = vmatprep.mubr.f32.mxu0 0.0
        %3704 = vmatmul.mubr.f32.gmra.mrb[0].mxu0 %v2211
        %v3705 = vpop.f32.mrb[0].mxu0
        %v3706 = vadd.f32 %v3441, %v3705
        %v3707 = vpop.f32.mrb[0].mxu0
        %3708 = vmatprep.mubr.f32.mxu0 0.0
        %3709 = vmatmul.mubr.f32.gmra.mrb[0].mxu0 %v2220
        %v3710 = vpop.f32.mrb[0].mxu0
        %v3711 = vadd.f32 %v3446, %v3710
        %v3712 = vpop.f32.mrb[0].mxu0
        %3713 = vmatprep.mubr.f32.mxu0 0.0
        %3714 = vmatmul.mubr.f32.gmra.mrb[0].mxu0 %v2229
        %v3715 = vpop.f32.mrb[0].mxu0
        %v3716 = vadd.f32 %v3451, %v3715
        %v3717 = vpop.f32.mrb[0].mxu0
        %3718 = vmatprep.mubr.f32.mxu0 0.0
        %3719 = vmatmul.mubr.f32.gmra.mrb[0].mxu0 %v2238
        %v3720 = vpop.f32.mrb[0].mxu0
        %v3721 = vadd.f32 %v3456, %v3720
        %v3722 = vpop.f32.mrb[0].mxu0
        %3723 = vmatprep.mubr.f32.mxu0 0.0
        %3724 = vmatmul.mubr.f32.gmra.mrb[0].mxu0 %v2247
        %v3725 = vpop.f32.mrb[0].mxu0
        %v3726 = vadd.f32 %v3461, %v3725
        %v3727 = vpop.f32.mrb[0].mxu0
        %3728 = vmatprep.mubr.f32.mxu0 0.0
        %3729 = vmatmul.mubr.f32.gmra.mrb[0].mxu0 %v2256
        %v3730 = vpop.f32.mrb[0].mxu0
        %v3731 = vadd.f32 %v3466, %v3730
        %v3732 = vpop.f32.mrb[0].mxu0
        %3733 = vmatprep.mubr.f32.mxu0 0.0
        %3734 = vmatmul.mubr.f32.gmra.mrb[0].mxu0 %v2265
        %v3735 = vpop.f32.mrb[0].mxu0
        %v3736 = vadd.f32 %v3471, %v3735
        %v3737 = vpop.f32.mrb[0].mxu0
        %3738 = vmatprep.mubr.f32.mxu0 0.0
        %3739 = vmatmul.mubr.f32.gmra.mrb[0].mxu0 %v2274
        %v3740 = vpop.f32.mrb[0].mxu0
        %v3741 = vadd.f32 %v3476, %v3740
        %v3742 = vpop.f32.mrb[0].mxu0
        %3743 = vdwg.mxu0
        %v3744 = vld [vmem:[#allocation11] sm:$0x1]
        %v3746 = vlaneseq
        %v3747 = vshrl.u32 %v3746, 7
        %v3748 = vsub.s32 0, %v3747
        %v3749 = vrot.slane %v3744, %v3748
        %v3751 = vmul.f32 %v3546, %v3749
        %v3752 = vmul.f32 %v3551, %v3749
        %v3753 = vmul.f32 %v3556, %v3749
        %v3754 = vmul.f32 %v3561, %v3749
        %v3755 = vmul.f32 %v3566, %v3749
        %v3756 = vmul.f32 %v3571, %v3749
        %v3757 = vmul.f32 %v3576, %v3749
        %v3758 = vmul.f32 %v3581, %v3749
        %v3759 = vmul.f32 %v3586, %v3749
        %v3760 = vmul.f32 %v3591, %v3749
        %v3761 = vmul.f32 %v3596, %v3749
        %v3762 = vmul.f32 %v3601, %v3749
        %v3763 = vmul.f32 %v3606, %v3749
        %v3764 = vmul.f32 %v3611, %v3749
        %v3765 = vmul.f32 %v3616, %v3749
        %v3766 = vmul.f32 %v3621, %v3749
        %v3767 = vmul.f32 %v3626, %v3749
        %v3768 = vmul.f32 %v3631, %v3749
        %v3769 = vmul.f32 %v3636, %v3749
        %v3770 = vmul.f32 %v3641, %v3749
        %v3771 = vmul.f32 %v3646, %v3749
        %v3772 = vmul.f32 %v3651, %v3749
        %v3773 = vmul.f32 %v3656, %v3749
        %v3774 = vmul.f32 %v3661, %v3749
        %v3775 = vmul.f32 %v3666, %v3749
        %v3776 = vmul.f32 %v3671, %v3749
        %v3777 = vmul.f32 %v3676, %v3749
        %v3778 = vmul.f32 %v3681, %v3749
        %v3779 = vmul.f32 %v3686, %v3749
        %v3780 = vmul.f32 %v3691, %v3749
        %v3781 = vmul.f32 %v3696, %v3749
        %v3782 = vmul.f32 %v3701, %v3749
        %v3783 = vmul.f32 %v3706, %v3749
        %v3784 = vmul.f32 %v3711, %v3749
        %v3785 = vmul.f32 %v3716, %v3749
        %v3786 = vmul.f32 %v3721, %v3749
        %v3787 = vmul.f32 %v3726, %v3749
        %v3788 = vmul.f32 %v3731, %v3749
        %v3789 = vmul.f32 %v3736, %v3749
        %v3790 = vmul.f32 %v3741, %v3749
        %v3791 = vld [vmem:[#allocation13] sm:$0x1]
        %v3793 = vlaneseq
        %v3794 = vshrl.u32 %v3793, 7
        %v3795 = vsub.s32 0, %v3794
        %v3796 = vrot.slane %v3791, %v3795
        %v3798 = vadd.f32 %v3751, %v3796
        %v3799 = vadd.f32 %v3752, %v3796
        %v3800 = vadd.f32 %v3753, %v3796
        %v3801 = vadd.f32 %v3754, %v3796
        %v3802 = vadd.f32 %v3755, %v3796
        %v3803 = vadd.f32 %v3756, %v3796
        %v3804 = vadd.f32 %v3757, %v3796
        %v3805 = vadd.f32 %v3758, %v3796
        %v3806 = vadd.f32 %v3759, %v3796
        %v3807 = vadd.f32 %v3760, %v3796
        %v3808 = vadd.f32 %v3761, %v3796
        %v3809 = vadd.f32 %v3762, %v3796
        %v3810 = vadd.f32 %v3763, %v3796
        %v3811 = vadd.f32 %v3764, %v3796
        %v3812 = vadd.f32 %v3765, %v3796
        %v3813 = vadd.f32 %v3766, %v3796
        %v3814 = vadd.f32 %v3767, %v3796
        %v3815 = vadd.f32 %v3768, %v3796
        %v3816 = vadd.f32 %v3769, %v3796
        %v3817 = vadd.f32 %v3770, %v3796
        %v3818 = vadd.f32 %v3771, %v3796
        %v3819 = vadd.f32 %v3772, %v3796
        %v3820 = vadd.f32 %v3773, %v3796
        %v3821 = vadd.f32 %v3774, %v3796
        %v3822 = vadd.f32 %v3775, %v3796
        %v3823 = vadd.f32 %v3776, %v3796
        %v3824 = vadd.f32 %v3777, %v3796
        %v3825 = vadd.f32 %v3778, %v3796
        %v3826 = vadd.f32 %v3779, %v3796
        %v3827 = vadd.f32 %v3780, %v3796
        %v3828 = vadd.f32 %v3781, %v3796
        %v3829 = vadd.f32 %v3782, %v3796
        %v3830 = vadd.f32 %v3783, %v3796
        %v3831 = vadd.f32 %v3784, %v3796
        %v3832 = vadd.f32 %v3785, %v3796
        %v3833 = vadd.f32 %v3786, %v3796
        %v3834 = vadd.f32 %v3787, %v3796
        %v3835 = vadd.f32 %v3788, %v3796
        %v3836 = vadd.f32 %v3789, %v3796
        %v3837 = vadd.f32 %v3790, %v3796
        %v3838 = vmax.f32 %v3798, 0.0
        %v3839 = vmax.f32 %v3799, 0.0
        %v3840 = vmax.f32 %v3800, 0.0
        %v3841 = vmax.f32 %v3801, 0.0
        %v3842 = vmax.f32 %v3802, 0.0
        %v3843 = vmax.f32 %v3803, 0.0
        %v3844 = vmax.f32 %v3804, 0.0
        %v3845 = vmax.f32 %v3805, 0.0
        %v3846 = vmax.f32 %v3806, 0.0
        %v3847 = vmax.f32 %v3807, 0.0
        %v3848 = vmax.f32 %v3808, 0.0
        %v3849 = vmax.f32 %v3809, 0.0
        %v3850 = vmax.f32 %v3810, 0.0
        %v3851 = vmax.f32 %v3811, 0.0
        %v3852 = vmax.f32 %v3812, 0.0
        %v3853 = vmax.f32 %v3813, 0.0
        %v3854 = vmax.f32 %v3814, 0.0
        %v3855 = vmax.f32 %v3815, 0.0
        %v3856 = vmax.f32 %v3816, 0.0
        %v3857 = vmax.f32 %v3817, 0.0
        %v3858 = vmax.f32 %v3818, 0.0
        %v3859 = vmax.f32 %v3819, 0.0
        %v3860 = vmax.f32 %v3820, 0.0
        %v3861 = vmax.f32 %v3821, 0.0
        %v3862 = vmax.f32 %v3822, 0.0
        %v3863 = vmax.f32 %v3823, 0.0
        %v3864 = vmax.f32 %v3824, 0.0
        %v3865 = vmax.f32 %v3825, 0.0
        %v3866 = vmax.f32 %v3826, 0.0
        %v3867 = vmax.f32 %v3827, 0.0
        %v3868 = vmax.f32 %v3828, 0.0
        %v3869 = vmax.f32 %v3829, 0.0
        %v3870 = vmax.f32 %v3830, 0.0
        %v3871 = vmax.f32 %v3831, 0.0
        %v3872 = vmax.f32 %v3832, 0.0
        %v3873 = vmax.f32 %v3833, 0.0
        %v3874 = vmax.f32 %v3834, 0.0
        %v3875 = vmax.f32 %v3835, 0.0
        %v3876 = vmax.f32 %v3836, 0.0
        %v3877 = vmax.f32 %v3837, 0.0
        %v3878 = vsel %vm827, 1, 0
        %v3879 = vsel %vm828, 1, 0
        %v3880 = vsel %vm829, 1, 0
        %v3881 = vsel %vm830, 1, 0
        %v3882 = vsel %vm831, 1, 0
        %v3883 = vsel %vm832, 1, 0
        %v3884 = vsel %vm833, 1, 0
        %v3885 = vsel %vm834, 1, 0
        %v3886 = vsel %vm835, 1, 0
        %v3887 = vsel %vm836, 1, 0
        %v3888 = vsel %vm837, 1, 0
        %v3889 = vsel %vm838, 1, 0
        %v3890 = vsel %vm839, 1, 0
        %v3891 = vsel %vm840, 1, 0
        %v3892 = vsel %vm841, 1, 0
        %v3893 = vsel %vm842, 1, 0
        %v3894 = vsel %vm843, 1, 0
        %v3895 = vsel %vm844, 1, 0
        %v3896 = vsel %vm845, 1, 0
        %v3897 = vsel %vm846, 1, 0
        %v3898 = vsel %vm847, 1, 0
        %v3899 = vsel %vm848, 1, 0
        %v3900 = vsel %vm849, 1, 0
        %v3901 = vsel %vm850, 1, 0
        %v3902 = vsel %vm851, 1, 0
        %v3903 = vsel %vm852, 1, 0
        %v3904 = vsel %vm853, 1, 0
        %v3905 = vsel %vm854, 1, 0
        %v3906 = vsel %vm855, 1, 0
        %v3907 = vsel %vm856, 1, 0
        %v3908 = vsel %vm857, 1, 0
        %v3909 = vsel %vm858, 1, 0
        %v3910 = vsel %vm859, 1, 0
        %v3911 = vsel %vm860, 1, 0
        %v3912 = vsel %vm861, 1, 0
        %v3913 = vsel %vm862, 1, 0
        %v3914 = vsel %vm863, 1, 0
        %v3915 = vsel %vm864, 1, 0
        %v3916 = vsel %vm865, 1, 0
        %v3917 = vsel %vm866, 1, 0
        %3918 = vset.pattern.permute.xlu0 0
        %3919 = vperm.xlu0 %3918, %v3878
        %v3920 = vpop.permute.xlu0 %3919
        %3921 = vset.pattern.permute.xlu0 0
        %3922 = vperm.xlu0 %3921, %v3879
        %v3923 = vpop.permute.xlu0 %3922
        %3924 = vset.pattern.permute.xlu0 0
        %3925 = vperm.xlu0 %3924, %v3880
        %v3926 = vpop.permute.xlu0 %3925
        %3927 = vset.pattern.permute.xlu0 0
        %3928 = vperm.xlu0 %3927, %v3881
        %v3929 = vpop.permute.xlu0 %3928
        %3930 = vset.pattern.permute.xlu0 0
        %3931 = vperm.xlu0 %3930, %v3882
        %v3932 = vpop.permute.xlu0 %3931
        %3933 = vset.pattern.permute.xlu0 0
        %3934 = vperm.xlu0 %3933, %v3883
        %v3935 = vpop.permute.xlu0 %3934
        %3936 = vset.pattern.permute.xlu0 0
        %3937 = vperm.xlu0 %3936, %v3884
        %v3938 = vpop.permute.xlu0 %3937
        %3939 = vset.pattern.permute.xlu0 0
        %3940 = vperm.xlu0 %3939, %v3885
        %v3941 = vpop.permute.xlu0 %3940
        %3942 = vset.pattern.permute.xlu0 0
        %3943 = vperm.xlu0 %3942, %v3886
        %v3944 = vpop.permute.xlu0 %3943
        %3945 = vset.pattern.permute.xlu0 0
        %3946 = vperm.xlu0 %3945, %v3887
        %v3947 = vpop.permute.xlu0 %3946
        %3948 = vset.pattern.permute.xlu0 0
        %3949 = vperm.xlu0 %3948, %v3888
        %v3950 = vpop.permute.xlu0 %3949
        %3951 = vset.pattern.permute.xlu0 0
        %3952 = vperm.xlu0 %3951, %v3889
        %v3953 = vpop.permute.xlu0 %3952
        %3954 = vset.pattern.permute.xlu0 0
        %3955 = vperm.xlu0 %3954, %v3890
        %v3956 = vpop.permute.xlu0 %3955
        %3957 = vset.pattern.permute.xlu0 0
        %3958 = vperm.xlu0 %3957, %v3891
        %v3959 = vpop.permute.xlu0 %3958
        %3960 = vset.pattern.permute.xlu0 0
        %3961 = vperm.xlu0 %3960, %v3892
        %v3962 = vpop.permute.xlu0 %3961
        %3963 = vset.pattern.permute.xlu0 0
        %3964 = vperm.xlu0 %3963, %v3893
        %v3965 = vpop.permute.xlu0 %3964
        %3966 = vset.pattern.permute.xlu0 0
        %3967 = vperm.xlu0 %3966, %v3894
        %v3968 = vpop.permute.xlu0 %3967
        %3969 = vset.pattern.permute.xlu0 0
        %3970 = vperm.xlu0 %3969, %v3895
        %v3971 = vpop.permute.xlu0 %3970
        %3972 = vset.pattern.permute.xlu0 0
        %3973 = vperm.xlu0 %3972, %v3896
        %v3974 = vpop.permute.xlu0 %3973
        %3975 = vset.pattern.permute.xlu0 0
        %3976 = vperm.xlu0 %3975, %v3897
        %v3977 = vpop.permute.xlu0 %3976
        %3978 = vset.pattern.permute.xlu0 0
        %3979 = vperm.xlu0 %3978, %v3898
        %v3980 = vpop.permute.xlu0 %3979
        %3981 = vset.pattern.permute.xlu0 0
        %3982 = vperm.xlu0 %3981, %v3899
        %v3983 = vpop.permute.xlu0 %3982
        %3984 = vset.pattern.permute.xlu0 0
        %3985 = vperm.xlu0 %3984, %v3900
        %v3986 = vpop.permute.xlu0 %3985
        %3987 = vset.pattern.permute.xlu0 0
        %3988 = vperm.xlu0 %3987, %v3901
        %v3989 = vpop.permute.xlu0 %3988
        %3990 = vset.pattern.permute.xlu0 0
        %3991 = vperm.xlu0 %3990, %v3902
        %v3992 = vpop.permute.xlu0 %3991
        %3993 = vset.pattern.permute.xlu0 0
        %3994 = vperm.xlu0 %3993, %v3903
        %v3995 = vpop.permute.xlu0 %3994
        %3996 = vset.pattern.permute.xlu0 0
        %3997 = vperm.xlu0 %3996, %v3904
        %v3998 = vpop.permute.xlu0 %3997
        %3999 = vset.pattern.permute.xlu0 0
        %4000 = vperm.xlu0 %3999, %v3905
        %v4001 = vpop.permute.xlu0 %4000
        %4002 = vset.pattern.permute.xlu0 0
        %4003 = vperm.xlu0 %4002, %v3906
        %v4004 = vpop.permute.xlu0 %4003
        %4005 = vset.pattern.permute.xlu0 0
        %4006 = vperm.xlu0 %4005, %v3907
        %v4007 = vpop.permute.xlu0 %4006
        %4008 = vset.pattern.permute.xlu0 0
        %4009 = vperm.xlu0 %4008, %v3908
        %v4010 = vpop.permute.xlu0 %4009
        %4011 = vset.pattern.permute.xlu0 0
        %4012 = vperm.xlu0 %4011, %v3909
        %v4013 = vpop.permute.xlu0 %4012
        %4014 = vset.pattern.permute.xlu0 0
        %4015 = vperm.xlu0 %4014, %v3910
        %v4016 = vpop.permute.xlu0 %4015
        %4017 = vset.pattern.permute.xlu0 0
        %4018 = vperm.xlu0 %4017, %v3911
        %v4019 = vpop.permute.xlu0 %4018
        %4020 = vset.pattern.permute.xlu0 0
        %4021 = vperm.xlu0 %4020, %v3912
        %v4022 = vpop.permute.xlu0 %4021
        %4023 = vset.pattern.permute.xlu0 0
        %4024 = vperm.xlu0 %4023, %v3913
        %v4025 = vpop.permute.xlu0 %4024
        %4026 = vset.pattern.permute.xlu0 0
        %4027 = vperm.xlu0 %4026, %v3914
        %v4028 = vpop.permute.xlu0 %4027
        %4029 = vset.pattern.permute.xlu0 0
        %4030 = vperm.xlu0 %4029, %v3915
        %v4031 = vpop.permute.xlu0 %4030
        %4032 = vset.pattern.permute.xlu0 0
        %4033 = vperm.xlu0 %4032, %v3916
        %v4034 = vpop.permute.xlu0 %4033
        %4035 = vset.pattern.permute.xlu0 0
        %4036 = vperm.xlu0 %4035, %v3917
        %v4037 = vpop.permute.xlu0 %4036
        %vm4038 = vcmp.eq.s32.totalorder %v3920, 1
        %vm4039 = vcmp.eq.s32.totalorder %v3923, 1
        %vm4040 = vcmp.eq.s32.totalorder %v3926, 1
        %vm4041 = vcmp.eq.s32.totalorder %v3929, 1
        %vm4042 = vcmp.eq.s32.totalorder %v3932, 1
        %vm4043 = vcmp.eq.s32.totalorder %v3935, 1
        %vm4044 = vcmp.eq.s32.totalorder %v3938, 1
        %vm4045 = vcmp.eq.s32.totalorder %v3941, 1
        %vm4046 = vcmp.eq.s32.totalorder %v3944, 1
        %vm4047 = vcmp.eq.s32.totalorder %v3947, 1
        %vm4048 = vcmp.eq.s32.totalorder %v3950, 1
        %vm4049 = vcmp.eq.s32.totalorder %v3953, 1
        %vm4050 = vcmp.eq.s32.totalorder %v3956, 1
        %vm4051 = vcmp.eq.s32.totalorder %v3959, 1
        %vm4052 = vcmp.eq.s32.totalorder %v3962, 1
        %vm4053 = vcmp.eq.s32.totalorder %v3965, 1
        %vm4054 = vcmp.eq.s32.totalorder %v3968, 1
        %vm4055 = vcmp.eq.s32.totalorder %v3971, 1
        %vm4056 = vcmp.eq.s32.totalorder %v3974, 1
        %vm4057 = vcmp.eq.s32.totalorder %v3977, 1
        %vm4058 = vcmp.eq.s32.totalorder %v3980, 1
        %vm4059 = vcmp.eq.s32.totalorder %v3983, 1
        %vm4060 = vcmp.eq.s32.totalorder %v3986, 1
        %vm4061 = vcmp.eq.s32.totalorder %v3989, 1
        %vm4062 = vcmp.eq.s32.totalorder %v3992, 1
        %vm4063 = vcmp.eq.s32.totalorder %v3995, 1
        %vm4064 = vcmp.eq.s32.totalorder %v3998, 1
        %vm4065 = vcmp.eq.s32.totalorder %v4001, 1
        %vm4066 = vcmp.eq.s32.totalorder %v4004, 1
        %vm4067 = vcmp.eq.s32.totalorder %v4007, 1
        %vm4068 = vcmp.eq.s32.totalorder %v4010, 1
        %vm4069 = vcmp.eq.s32.totalorder %v4013, 1
        %vm4070 = vcmp.eq.s32.totalorder %v4016, 1
        %vm4071 = vcmp.eq.s32.totalorder %v4019, 1
        %vm4072 = vcmp.eq.s32.totalorder %v4022, 1
        %vm4073 = vcmp.eq.s32.totalorder %v4025, 1
        %vm4074 = vcmp.eq.s32.totalorder %v4028, 1
        %vm4075 = vcmp.eq.s32.totalorder %v4031, 1
        %vm4076 = vcmp.eq.s32.totalorder %v4034, 1
        %vm4077 = vcmp.eq.s32.totalorder %v4037, 1
        %v4078 = vsel %vm4038, %v3838, 0.0
        %v4079 = vsel %vm4039, %v3839, 0.0
        %v4080 = vsel %vm4040, %v3840, 0.0
        %v4081 = vsel %vm4041, %v3841, 0.0
        %v4082 = vsel %vm4042, %v3842, 0.0
        %v4083 = vsel %vm4043, %v3843, 0.0
        %v4084 = vsel %vm4044, %v3844, 0.0
        %v4085 = vsel %vm4045, %v3845, 0.0
        %v4086 = vsel %vm4046, %v3846, 0.0
        %v4087 = vsel %vm4047, %v3847, 0.0
        %v4088 = vsel %vm4048, %v3848, 0.0
        %v4089 = vsel %vm4049, %v3849, 0.0
        %v4090 = vsel %vm4050, %v3850, 0.0
        %v4091 = vsel %vm4051, %v3851, 0.0
        %v4092 = vsel %vm4052, %v3852, 0.0
        %v4093 = vsel %vm4053, %v3853, 0.0
        %v4094 = vsel %vm4054, %v3854, 0.0
        %v4095 = vsel %vm4055, %v3855, 0.0
        %v4096 = vsel %vm4056, %v3856, 0.0
        %v4097 = vsel %vm4057, %v3857, 0.0
        %v4098 = vsel %vm4058, %v3858, 0.0
        %v4099 = vsel %vm4059, %v3859, 0.0
        %v4100 = vsel %vm4060, %v3860, 0.0
        %v4101 = vsel %vm4061, %v3861, 0.0
        %v4102 = vsel %vm4062, %v3862, 0.0
        %v4103 = vsel %vm4063, %v3863, 0.0
        %v4104 = vsel %vm4064, %v3864, 0.0
        %v4105 = vsel %vm4065, %v3865, 0.0
        %v4106 = vsel %vm4066, %v3866, 0.0
        %v4107 = vsel %vm4067, %v3867, 0.0
        %v4108 = vsel %vm4068, %v3868, 0.0
        %v4109 = vsel %vm4069, %v3869, 0.0
        %v4110 = vsel %vm4070, %v3870, 0.0
        %v4111 = vsel %vm4071, %v3871, 0.0
        %v4112 = vsel %vm4072, %v3872, 0.0
        %v4113 = vsel %vm4073, %v3873, 0.0
        %v4114 = vsel %vm4074, %v3874, 0.0
        %v4115 = vsel %vm4075, %v3875, 0.0
        %v4116 = vsel %vm4076, %v3876, 0.0
        %v4117 = vsel %vm4077, %v3877, 0.0
        %v4118 = vrot.slane %v4078, 7
        %v4119 = vrot.slane %v4079, 7
        %v4120 = vrot.slane %v4080, 7
        %v4121 = vrot.slane %v4081, 7
        %v4122 = vrot.slane %v4082, 7
        %v4123 = vrot.slane %v4083, 7
        %v4124 = vrot.slane %v4084, 7
        %v4125 = vrot.slane %v4085, 7
        %v4126 = vrot.slane %v4086, 7
        %v4127 = vrot.slane %v4087, 7
        %v4128 = vrot.slane %v4088, 7
        %v4129 = vrot.slane %v4089, 7
        %v4130 = vrot.slane %v4090, 7
        %v4131 = vrot.slane %v4091, 7
        %v4132 = vrot.slane %v4092, 7
        %v4133 = vrot.slane %v4093, 7
        %v4134 = vrot.slane %v4094, 7
        %v4135 = vrot.slane %v4095, 7
        %v4136 = vrot.slane %v4096, 7
        %v4137 = vrot.slane %v4097, 7
        %v4138 = vrot.slane %v4098, 7
        %v4139 = vrot.slane %v4099, 7
        %v4140 = vrot.slane %v4100, 7
        %v4141 = vrot.slane %v4101, 7
        %v4142 = vrot.slane %v4102, 7
        %v4143 = vrot.slane %v4103, 7
        %v4144 = vrot.slane %v4104, 7
        %v4145 = vrot.slane %v4105, 7
        %v4146 = vrot.slane %v4106, 7
        %v4147 = vrot.slane %v4107, 7
        %v4148 = vrot.slane %v4108, 7
        %v4149 = vrot.slane %v4109, 7
        %v4150 = vrot.slane %v4110, 7
        %v4151 = vrot.slane %v4111, 7
        %v4152 = vrot.slane %v4112, 7
        %v4153 = vrot.slane %v4113, 7
        %v4154 = vrot.slane %v4114, 7
        %v4155 = vrot.slane %v4115, 7
        %v4156 = vrot.slane %v4116, 7
        %v4157 = vrot.slane %v4117, 7
        %v4158 = vsel %vm953, %v4156, %v4157
        %v4159 = vsel %vm953, %v4155, %v4156
        %v4160 = vsel %vm953, %v4154, %v4155
        %v4161 = vsel %vm953, %v4153, %v4154
        %v4162 = vsel %vm953, %v4152, %v4153
        %v4163 = vsel %vm953, %v4151, %v4152
        %v4164 = vsel %vm953, %v4150, %v4151
        %v4165 = vsel %vm953, %v4149, %v4150
        %v4166 = vsel %vm953, %v4148, %v4149
        %v4167 = vsel %vm953, %v4147, %v4148
        %v4168 = vsel %vm953, %v4146, %v4147
        %v4169 = vsel %vm953, %v4145, %v4146
        %v4170 = vsel %vm953, %v4144, %v4145
        %v4171 = vsel %vm953, %v4143, %v4144
        %v4172 = vsel %vm953, %v4142, %v4143
        %v4173 = vsel %vm953, %v4141, %v4142
        %v4174 = vsel %vm953, %v4140, %v4141
        %v4175 = vsel %vm953, %v4139, %v4140
        %v4176 = vsel %vm953, %v4138, %v4139
        %v4177 = vsel %vm953, %v4137, %v4138
        %v4178 = vsel %vm953, %v4136, %v4137
        %v4179 = vsel %vm953, %v4135, %v4136
        %v4180 = vsel %vm953, %v4134, %v4135
        %v4181 = vsel %vm953, %v4133, %v4134
        %v4182 = vsel %vm953, %v4132, %v4133
        %v4183 = vsel %vm953, %v4131, %v4132
        %v4184 = vsel %vm953, %v4130, %v4131
        %v4185 = vsel %vm953, %v4129, %v4130
        %v4186 = vsel %vm953, %v4128, %v4129
        %v4187 = vsel %vm953, %v4127, %v4128
        %v4188 = vsel %vm953, %v4126, %v4127
        %v4189 = vsel %vm953, %v4125, %v4126
        %v4190 = vsel %vm953, %v4124, %v4125
        %v4191 = vsel %vm953, %v4123, %v4124
        %v4192 = vsel %vm953, %v4122, %v4123
        %v4193 = vsel %vm953, %v4121, %v4122
        %v4194 = vsel %vm953, %v4120, %v4121
        %v4195 = vsel %vm953, %v4119, %v4120
        %v4196 = vsel %vm953, %v4118, %v4119
        %v4197 = vsel %vm953, %v4157, %v4118
        %v4198 = vsel %vm1154, 0.0, %v4197
        %v4199 = vsel %vm1155, 0.0, %v4196
        %v4200 = vsel %vm1156, 0.0, %v4195
        %v4201 = vsel %vm1157, 0.0, %v4194
        %v4202 = vsel %vm1158, 0.0, %v4193
        %v4203 = vsel %vm1159, 0.0, %v4192
        %v4204 = vsel %vm1160, 0.0, %v4191
        %v4205 = vsel %vm1161, 0.0, %v4190
        %v4206 = vsel %vm1162, 0.0, %v4189
        %v4207 = vsel %vm1163, 0.0, %v4188
        %v4208 = vsel %vm1164, 0.0, %v4187
        %v4209 = vsel %vm1165, 0.0, %v4186
        %v4210 = vsel %vm1166, 0.0, %v4185
        %v4211 = vsel %vm1167, 0.0, %v4184
        %v4212 = vsel %vm1168, 0.0, %v4183
        %v4213 = vsel %vm1169, 0.0, %v4182
        %v4214 = vsel %vm1170, 0.0, %v4181
        %v4215 = vsel %vm1171, 0.0, %v4180
        %v4216 = vsel %vm1172, 0.0, %v4179
        %v4217 = vsel %vm1173, 0.0, %v4178
        %v4218 = vsel %vm1174, 0.0, %v4177
        %v4219 = vsel %vm1175, 0.0, %v4176
        %v4220 = vsel %vm1176, 0.0, %v4175
        %v4221 = vsel %vm1177, 0.0, %v4174
        %v4222 = vsel %vm1178, 0.0, %v4173
        %v4223 = vsel %vm1179, 0.0, %v4172
        %v4224 = vsel %vm1180, 0.0, %v4171
        %v4225 = vsel %vm1181, 0.0, %v4170
        %v4226 = vsel %vm1182, 0.0, %v4169
        %v4227 = vsel %vm1183, 0.0, %v4168
        %v4228 = vsel %vm1184, 0.0, %v4167
        %v4229 = vsel %vm1185, 0.0, %v4166
        %v4230 = vsel %vm1186, 0.0, %v4165
        %v4231 = vsel %vm1187, 0.0, %v4164
        %v4232 = vsel %vm1188, 0.0, %v4163
        %v4233 = vsel %vm1189, 0.0, %v4162
        %v4234 = vsel %vm1190, 0.0, %v4161
        %v4235 = vsel %vm1191, 0.0, %v4160
        %v4236 = vsel %vm1192, 0.0, %v4159
        %v4237 = vsel %vm1193, 0.0, %v4158
        %v4238 = vrot.slane %v4078, 1
        %v4239 = vrot.slane %v4079, 1
        %v4240 = vrot.slane %v4080, 1
        %v4241 = vrot.slane %v4081, 1
        %v4242 = vrot.slane %v4082, 1
        %v4243 = vrot.slane %v4083, 1
        %v4244 = vrot.slane %v4084, 1
        %v4245 = vrot.slane %v4085, 1
        %v4246 = vrot.slane %v4086, 1
        %v4247 = vrot.slane %v4087, 1
        %v4248 = vrot.slane %v4088, 1
        %v4249 = vrot.slane %v4089, 1
        %v4250 = vrot.slane %v4090, 1
        %v4251 = vrot.slane %v4091, 1
        %v4252 = vrot.slane %v4092, 1
        %v4253 = vrot.slane %v4093, 1
        %v4254 = vrot.slane %v4094, 1
        %v4255 = vrot.slane %v4095, 1
        %v4256 = vrot.slane %v4096, 1
        %v4257 = vrot.slane %v4097, 1
        %v4258 = vrot.slane %v4098, 1
        %v4259 = vrot.slane %v4099, 1
        %v4260 = vrot.slane %v4100, 1
        %v4261 = vrot.slane %v4101, 1
        %v4262 = vrot.slane %v4102, 1
        %v4263 = vrot.slane %v4103, 1
        %v4264 = vrot.slane %v4104, 1
        %v4265 = vrot.slane %v4105, 1
        %v4266 = vrot.slane %v4106, 1
        %v4267 = vrot.slane %v4107, 1
        %v4268 = vrot.slane %v4108, 1
        %v4269 = vrot.slane %v4109, 1
        %v4270 = vrot.slane %v4110, 1
        %v4271 = vrot.slane %v4111, 1
        %v4272 = vrot.slane %v4112, 1
        %v4273 = vrot.slane %v4113, 1
        %v4274 = vrot.slane %v4114, 1
        %v4275 = vrot.slane %v4115, 1
        %v4276 = vrot.slane %v4116, 1
        %v4277 = vrot.slane %v4117, 1
        %v4278 = vsel %vm1274, %v4276, %v4277
        %v4279 = vsel %vm1274, %v4275, %v4276
        %v4280 = vsel %vm1274, %v4274, %v4275
        %v4281 = vsel %vm1274, %v4273, %v4274
        %v4282 = vsel %vm1274, %v4272, %v4273
        %v4283 = vsel %vm1274, %v4271, %v4272
        %v4284 = vsel %vm1274, %v4270, %v4271
        %v4285 = vsel %vm1274, %v4269, %v4270
        %v4286 = vsel %vm1274, %v4268, %v4269
        %v4287 = vsel %vm1274, %v4267, %v4268
        %v4288 = vsel %vm1274, %v4266, %v4267
        %v4289 = vsel %vm1274, %v4265, %v4266
        %v4290 = vsel %vm1274, %v4264, %v4265
        %v4291 = vsel %vm1274, %v4263, %v4264
        %v4292 = vsel %vm1274, %v4262, %v4263
        %v4293 = vsel %vm1274, %v4261, %v4262
        %v4294 = vsel %vm1274, %v4260, %v4261
        %v4295 = vsel %vm1274, %v4259, %v4260
        %v4296 = vsel %vm1274, %v4258, %v4259
        %v4297 = vsel %vm1274, %v4257, %v4258
        %v4298 = vsel %vm1274, %v4256, %v4257
        %v4299 = vsel %vm1274, %v4255, %v4256
        %v4300 = vsel %vm1274, %v4254, %v4255
        %v4301 = vsel %vm1274, %v4253, %v4254
        %v4302 = vsel %vm1274, %v4252, %v4253
        %v4303 = vsel %vm1274, %v4251, %v4252
        %v4304 = vsel %vm1274, %v4250, %v4251
        %v4305 = vsel %vm1274, %v4249, %v4250
        %v4306 = vsel %vm1274, %v4248, %v4249
        %v4307 = vsel %vm1274, %v4247, %v4248
        %v4308 = vsel %vm1274, %v4246, %v4247
        %v4309 = vsel %vm1274, %v4245, %v4246
        %v4310 = vsel %vm1274, %v4244, %v4245
        %v4311 = vsel %vm1274, %v4243, %v4244
        %v4312 = vsel %vm1274, %v4242, %v4243
        %v4313 = vsel %vm1274, %v4241, %v4242
        %v4314 = vsel %vm1274, %v4240, %v4241
        %v4315 = vsel %vm1274, %v4239, %v4240
        %v4316 = vsel %vm1274, %v4238, %v4239
        %v4317 = vsel %vm1274, %v4277, %v4238
        %v4318 = vsel %vm1475, 0.0, %v4316
        %v4319 = vsel %vm1476, 0.0, %v4315
        %v4320 = vsel %vm1477, 0.0, %v4314
        %v4321 = vsel %vm1478, 0.0, %v4313
        %v4322 = vsel %vm1479, 0.0, %v4312
        %v4323 = vsel %vm1480, 0.0, %v4311
        %v4324 = vsel %vm1481, 0.0, %v4310
        %v4325 = vsel %vm1482, 0.0, %v4309
        %v4326 = vsel %vm1483, 0.0, %v4308
        %v4327 = vsel %vm1484, 0.0, %v4307
        %v4328 = vsel %vm1485, 0.0, %v4306
        %v4329 = vsel %vm1486, 0.0, %v4305
        %v4330 = vsel %vm1487, 0.0, %v4304
        %v4331 = vsel %vm1488, 0.0, %v4303
        %v4332 = vsel %vm1489, 0.0, %v4302
        %v4333 = vsel %vm1490, 0.0, %v4301
        %v4334 = vsel %vm1491, 0.0, %v4300
        %v4335 = vsel %vm1492, 0.0, %v4299
        %v4336 = vsel %vm1493, 0.0, %v4298
        %v4337 = vsel %vm1494, 0.0, %v4297
        %v4338 = vsel %vm1495, 0.0, %v4296
        %v4339 = vsel %vm1496, 0.0, %v4295
        %v4340 = vsel %vm1497, 0.0, %v4294
        %v4341 = vsel %vm1498, 0.0, %v4293
        %v4342 = vsel %vm1499, 0.0, %v4292
        %v4343 = vsel %vm1500, 0.0, %v4291
        %v4344 = vsel %vm1501, 0.0, %v4290
        %v4345 = vsel %vm1502, 0.0, %v4289
        %v4346 = vsel %vm1503, 0.0, %v4288
        %v4347 = vsel %vm1504, 0.0, %v4287
        %v4348 = vsel %vm1505, 0.0, %v4286
        %v4349 = vsel %vm1506, 0.0, %v4285
        %v4350 = vsel %vm1507, 0.0, %v4284
        %v4351 = vsel %vm1508, 0.0, %v4283
        %v4352 = vsel %vm1509, 0.0, %v4282
        %v4353 = vsel %vm1510, 0.0, %v4281
        %v4354 = vsel %vm1511, 0.0, %v4280
        %v4355 = vsel %vm1512, 0.0, %v4279
        %v4356 = vsel %vm1513, 0.0, %v4278
        %v4357 = vsel %vm1514, 0.0, %v4317
        %4358 = vst [vmem:[#allocation3] sm:$0xff] %v4236
        %4359 = vst [vmem:[#allocation3 + $0x48] sm:$0xff] %v4237
        %4360 = vst [vmem:[#allocation3 + $0x90] sm:$0xff] %v4198
        %4361 = vst [vmem:[#allocation3 + $0xd8] sm:$0xff] %v4199
        %4362 = vst [vmem:[#allocation3 + $0x120] sm:$0xff] %v4200
        %4363 = vst [vmem:[#allocation3 + $0x168] sm:$0xff] %v4201
        %4364 = vst [vmem:[#allocation3 + $0x1b0] sm:$0xff] %v4202
        %4365 = vst [vmem:[#allocation3 + $0x1f8] sm:$0xff] %v4203
        %4366 = vst [vmem:[#allocation3 + $0x240] sm:$0xff] %v4204
        %4367 = vst [vmem:[#allocation3 + $0x288] sm:$0xff] %v4205
        %4368 = vst [vmem:[#allocation3 + $0x2d0] sm:$0xff] %v4206
        %4369 = vst [vmem:[#allocation3 + $0x318] sm:$0xff] %v4207
        %4370 = vst [vmem:[#allocation3 + $0x360] sm:$0xff] %v4208
        %4371 = vst [vmem:[#allocation3 + $0x3a8] sm:$0xff] %v4209
        %4372 = vst [vmem:[#allocation3 + $0x3f0] sm:$0xff] %v4210
        %4373 = vst [vmem:[#allocation3 + $0x438] sm:$0xff] %v4211
        %4374 = vst [vmem:[#allocation3 + $0x480] sm:$0xff] %v4212
        %4375 = vst [vmem:[#allocation3 + $0x4c8] sm:$0xff] %v4213
        %4376 = vst [vmem:[#allocation3 + $0x510] sm:$0xff] %v4214
        %4377 = vst [vmem:[#allocation3 + $0x558] sm:$0xff] %v4215
        %4378 = vst [vmem:[#allocation3 + $0x5a0] sm:$0xff] %v4216
        %4379 = vst [vmem:[#allocation3 + $0x5e8] sm:$0xff] %v4217
        %4380 = vst [vmem:[#allocation3 + $0x630] sm:$0xff] %v4218
        %4381 = vst [vmem:[#allocation3 + $0x678] sm:$0xff] %v4219
        %4382 = vst [vmem:[#allocation3 + $0x6c0] sm:$0xff] %v4220
        %4383 = vst [vmem:[#allocation3 + $0x708] sm:$0xff] %v4221
        %4384 = vst [vmem:[#allocation3 + $0x750] sm:$0xff] %v4222
        %4385 = vst [vmem:[#allocation3 + $0x798] sm:$0xff] %v4223
        %4386 = vst [vmem:[#allocation3 + $0x7e0] sm:$0xff] %v4224
        %4387 = vst [vmem:[#allocation3 + $0x828] sm:$0xff] %v4225
        %4388 = vst [vmem:[#allocation3 + $0x870] sm:$0xff] %v4226
        %4389 = vst [vmem:[#allocation3 + $0x8b8] sm:$0xff] %v4227
        %4390 = vst [vmem:[#allocation3 + $0x900] sm:$0xff] %v4228
        %4391 = vst [vmem:[#allocation3 + $0x948] sm:$0xff] %v4229
        %4392 = vst [vmem:[#allocation3 + $0x990] sm:$0xff] %v4230
        %4393 = vst [vmem:[#allocation3 + $0x9d8] sm:$0xff] %v4231
        %4394 = vst [vmem:[#allocation3 + $0xa20] sm:$0xff] %v4232
        %4395 = vst [vmem:[#allocation3 + $0xa68] sm:$0xff] %v4233
        %4396 = vst [vmem:[#allocation3 + $0xab0] sm:$0xff] %v4234
        %4397 = vst [vmem:[#allocation3 + $0xaf8] sm:$0xff] %v4235
        %4398 = vst [vmem:[#allocation3 + $0x8] sm:$0xff] %v4116
        %4399 = vst [vmem:[#allocation3 + $0x50] sm:$0xff] %v4117
        %4400 = vst [vmem:[#allocation3 + $0x98] sm:$0xff] %v4078
        %4401 = vst [vmem:[#allocation3 + $0xe0] sm:$0xff] %v4079
        %4402 = vst [vmem:[#allocation3 + $0x128] sm:$0xff] %v4080
        %4403 = vst [vmem:[#allocation3 + $0x170] sm:$0xff] %v4081
        %4404 = vst [vmem:[#allocation3 + $0x1b8] sm:$0xff] %v4082
        %4405 = vst [vmem:[#allocation3 + $0x200] sm:$0xff] %v4083
        %4406 = vst [vmem:[#allocation3 + $0x248] sm:$0xff] %v4084
        %4407 = vst [vmem:[#allocation3 + $0x290] sm:$0xff] %v4085
        %4408 = vst [vmem:[#allocation3 + $0x2d8] sm:$0xff] %v4086
        %4409 = vst [vmem:[#allocation3 + $0x320] sm:$0xff] %v4087
        %4410 = vst [vmem:[#allocation3 + $0x368] sm:$0xff] %v4088
        %4411 = vst [vmem:[#allocation3 + $0x3b0] sm:$0xff] %v4089
        %4412 = vst [vmem:[#allocation3 + $0x3f8] sm:$0xff] %v4090
        %4413 = vst [vmem:[#allocation3 + $0x440] sm:$0xff] %v4091
        %4414 = vst [vmem:[#allocation3 + $0x488] sm:$0xff] %v4092
        %4415 = vst [vmem:[#allocation3 + $0x4d0] sm:$0xff] %v4093
        %4416 = vst [vmem:[#allocation3 + $0x518] sm:$0xff] %v4094
        %4417 = vst [vmem:[#allocation3 + $0x560] sm:$0xff] %v4095
        %4418 = vst [vmem:[#allocation3 + $0x5a8] sm:$0xff] %v4096
        %4419 = vst [vmem:[#allocation3 + $0x5f0] sm:$0xff] %v4097
        %4420 = vst [vmem:[#allocation3 + $0x638] sm:$0xff] %v4098
        %4421 = vst [vmem:[#allocation3 + $0x680] sm:$0xff] %v4099
        %4422 = vst [vmem:[#allocation3 + $0x6c8] sm:$0xff] %v4100
        %4423 = vst [vmem:[#allocation3 + $0x710] sm:$0xff] %v4101
        %4424 = vst [vmem:[#allocation3 + $0x758] sm:$0xff] %v4102
        %4425 = vst [vmem:[#allocation3 + $0x7a0] sm:$0xff] %v4103
        %4426 = vst [vmem:[#allocation3 + $0x7e8] sm:$0xff] %v4104
        %4427 = vst [vmem:[#allocation3 + $0x830] sm:$0xff] %v4105
        %4428 = vst [vmem:[#allocation3 + $0x878] sm:$0xff] %v4106
        %4429 = vst [vmem:[#allocation3 + $0x8c0] sm:$0xff] %v4107
        %4430 = vst [vmem:[#allocation3 + $0x908] sm:$0xff] %v4108
        %4431 = vst [vmem:[#allocation3 + $0x950] sm:$0xff] %v4109
        %4432 = vst [vmem:[#allocation3 + $0x998] sm:$0xff] %v4110
        %4433 = vst [vmem:[#allocation3 + $0x9e0] sm:$0xff] %v4111
        %4434 = vst [vmem:[#allocation3 + $0xa28] sm:$0xff] %v4112
        %4435 = vst [vmem:[#allocation3 + $0xa70] sm:$0xff] %v4113
        %4436 = vst [vmem:[#allocation3 + $0xab8] sm:$0xff] %v4114
        %4437 = vst [vmem:[#allocation3 + $0xb00] sm:$0xff] %v4115
        %4438 = vst [vmem:[#allocation3 + $0x10] sm:$0xff] %v4356
        %4439 = vst [vmem:[#allocation3 + $0x58] sm:$0xff] %v4357
        %4440 = vst [vmem:[#allocation3 + $0xa0] sm:$0xff] %v4318
        %4441 = vst [vmem:[#allocation3 + $0xe8] sm:$0xff] %v4319
        %4442 = vst [vmem:[#allocation3 + $0x130] sm:$0xff] %v4320
        %4443 = vst [vmem:[#allocation3 + $0x178] sm:$0xff] %v4321
        %4444 = vst [vmem:[#allocation3 + $0x1c0] sm:$0xff] %v4322
        %4445 = vst [vmem:[#allocation3 + $0x208] sm:$0xff] %v4323
        %4446 = vst [vmem:[#allocation3 + $0x250] sm:$0xff] %v4324
        %4447 = vst [vmem:[#allocation3 + $0x298] sm:$0xff] %v4325
        %4448 = vst [vmem:[#allocation3 + $0x2e0] sm:$0xff] %v4326
        %4449 = vst [vmem:[#allocation3 + $0x328] sm:$0xff] %v4327
        %4450 = vst [vmem:[#allocation3 + $0x370] sm:$0xff] %v4328
        %4451 = vst [vmem:[#allocation3 + $0x3b8] sm:$0xff] %v4329
        %4452 = vst [vmem:[#allocation3 + $0x400] sm:$0xff] %v4330
        %4453 = vst [vmem:[#allocation3 + $0x448] sm:$0xff] %v4331
        %4454 = vst [vmem:[#allocation3 + $0x490] sm:$0xff] %v4332
        %4455 = vst [vmem:[#allocation3 + $0x4d8] sm:$0xff] %v4333
        %4456 = vst [vmem:[#allocation3 + $0x520] sm:$0xff] %v4334
        %4457 = vst [vmem:[#allocation3 + $0x568] sm:$0xff] %v4335
        %4458 = vst [vmem:[#allocation3 + $0x5b0] sm:$0xff] %v4336
        %4459 = vst [vmem:[#allocation3 + $0x5f8] sm:$0xff] %v4337
        %4460 = vst [vmem:[#allocation3 + $0x640] sm:$0xff] %v4338
        %4461 = vst [vmem:[#allocation3 + $0x688] sm:$0xff] %v4339
        %4462 = vst [vmem:[#allocation3 + $0x6d0] sm:$0xff] %v4340
        %4463 = vst [vmem:[#allocation3 + $0x718] sm:$0xff] %v4341
        %4464 = vst [vmem:[#allocation3 + $0x760] sm:$0xff] %v4342
        %4465 = vst [vmem:[#allocation3 + $0x7a8] sm:$0xff] %v4343
        %4466 = vst [vmem:[#allocation3 + $0x7f0] sm:$0xff] %v4344
        %4467 = vst [vmem:[#allocation3 + $0x838] sm:$0xff] %v4345
        %4468 = vst [vmem:[#allocation3 + $0x880] sm:$0xff] %v4346
        %4469 = vst [vmem:[#allocation3 + $0x8c8] sm:$0xff] %v4347
        %4470 = vst [vmem:[#allocation3 + $0x910] sm:$0xff] %v4348
        %4471 = vst [vmem:[#allocation3 + $0x958] sm:$0xff] %v4349
        %4472 = vst [vmem:[#allocation3 + $0x9a0] sm:$0xff] %v4350
        %4473 = vst [vmem:[#allocation3 + $0x9e8] sm:$0xff] %v4351
        %4474 = vst [vmem:[#allocation3 + $0xa30] sm:$0xff] %v4352
        %4475 = vst [vmem:[#allocation3 + $0xa78] sm:$0xff] %v4353
        %4476 = vst [vmem:[#allocation3 + $0xac0] sm:$0xff] %v4354
        %4477 = vst [vmem:[#allocation3 + $0xb08] sm:$0xff] %v4355
        %4478 = vst [vmem:[#allocation3 + $0x18] sm:$0xff] %v4198
        %4479 = vst [vmem:[#allocation3 + $0x60] sm:$0xff] %v4199
        %4480 = vst [vmem:[#allocation3 + $0xa8] sm:$0xff] %v4200
        %4481 = vst [vmem:[#allocation3 + $0xf0] sm:$0xff] %v4201
        %4482 = vst [vmem:[#allocation3 + $0x138] sm:$0xff] %v4202
        %4483 = vst [vmem:[#allocation3 + $0x180] sm:$0xff] %v4203
        %4484 = vst [vmem:[#allocation3 + $0x1c8] sm:$0xff] %v4204
        %4485 = vst [vmem:[#allocation3 + $0x210] sm:$0xff] %v4205
        %4486 = vst [vmem:[#allocation3 + $0x258] sm:$0xff] %v4206
        %4487 = vst [vmem:[#allocation3 + $0x2a0] sm:$0xff] %v4207
        %4488 = vst [vmem:[#allocation3 + $0x2e8] sm:$0xff] %v4208
        %4489 = vst [vmem:[#allocation3 + $0x330] sm:$0xff] %v4209
        %4490 = vst [vmem:[#allocation3 + $0x378] sm:$0xff] %v4210
        %4491 = vst [vmem:[#allocation3 + $0x3c0] sm:$0xff] %v4211
        %4492 = vst [vmem:[#allocation3 + $0x408] sm:$0xff] %v4212
        %4493 = vst [vmem:[#allocation3 + $0x450] sm:$0xff] %v4213
        %4494 = vst [vmem:[#allocation3 + $0x498] sm:$0xff] %v4214
        %4495 = vst [vmem:[#allocation3 + $0x4e0] sm:$0xff] %v4215
        %4496 = vst [vmem:[#allocation3 + $0x528] sm:$0xff] %v4216
        %4497 = vst [vmem:[#allocation3 + $0x570] sm:$0xff] %v4217
        %4498 = vst [vmem:[#allocation3 + $0x5b8] sm:$0xff] %v4218
        %4499 = vst [vmem:[#allocation3 + $0x600] sm:$0xff] %v4219
        %4500 = vst [vmem:[#allocation3 + $0x648] sm:$0xff] %v4220
        %4501 = vst [vmem:[#allocation3 + $0x690] sm:$0xff] %v4221
        %4502 = vst [vmem:[#allocation3 + $0x6d8] sm:$0xff] %v4222
        %4503 = vst [vmem:[#allocation3 + $0x720] sm:$0xff] %v4223
        %4504 = vst [vmem:[#allocation3 + $0x768] sm:$0xff] %v4224
        %4505 = vst [vmem:[#allocation3 + $0x7b0] sm:$0xff] %v4225
        %4506 = vst [vmem:[#allocation3 + $0x7f8] sm:$0xff] %v4226
        %4507 = vst [vmem:[#allocation3 + $0x840] sm:$0xff] %v4227
        %4508 = vst [vmem:[#allocation3 + $0x888] sm:$0xff] %v4228
        %4509 = vst [vmem:[#allocation3 + $0x8d0] sm:$0xff] %v4229
        %4510 = vst [vmem:[#allocation3 + $0x918] sm:$0xff] %v4230
        %4511 = vst [vmem:[#allocation3 + $0x960] sm:$0xff] %v4231
        %4512 = vst [vmem:[#allocation3 + $0x9a8] sm:$0xff] %v4232
        %4513 = vst [vmem:[#allocation3 + $0x9f0] sm:$0xff] %v4233
        %4514 = vst [vmem:[#allocation3 + $0xa38] sm:$0xff] %v4234
        %4515 = vst [vmem:[#allocation3 + $0xa80] sm:$0xff] %v4235
        %4516 = vst [vmem:[#allocation3 + $0xac8] sm:$0xff] %v4236
        %4517 = vst [vmem:[#allocation3 + $0xb10] sm:$0xff] %v4237
        %4518 = vst [vmem:[#allocation3 + $0x20] sm:$0xff] %v4078
        %4519 = vst [vmem:[#allocation3 + $0x68] sm:$0xff] %v4079
        %4520 = vst [vmem:[#allocation3 + $0xb0] sm:$0xff] %v4080
        %4521 = vst [vmem:[#allocation3 + $0xf8] sm:$0xff] %v4081
        %4522 = vst [vmem:[#allocation3 + $0x140] sm:$0xff] %v4082
        %4523 = vst [vmem:[#allocation3 + $0x188] sm:$0xff] %v4083
        %4524 = vst [vmem:[#allocation3 + $0x1d0] sm:$0xff] %v4084
        %4525 = vst [vmem:[#allocation3 + $0x218] sm:$0xff] %v4085
        %4526 = vst [vmem:[#allocation3 + $0x260] sm:$0xff] %v4086
        %4527 = vst [vmem:[#allocation3 + $0x2a8] sm:$0xff] %v4087
        %4528 = vst [vmem:[#allocation3 + $0x2f0] sm:$0xff] %v4088
        %4529 = vst [vmem:[#allocation3 + $0x338] sm:$0xff] %v4089
        %4530 = vst [vmem:[#allocation3 + $0x380] sm:$0xff] %v4090
        %4531 = vst [vmem:[#allocation3 + $0x3c8] sm:$0xff] %v4091
        %4532 = vst [vmem:[#allocation3 + $0x410] sm:$0xff] %v4092
        %4533 = vst [vmem:[#allocation3 + $0x458] sm:$0xff] %v4093
        %4534 = vst [vmem:[#allocation3 + $0x4a0] sm:$0xff] %v4094
        %4535 = vst [vmem:[#allocation3 + $0x4e8] sm:$0xff] %v4095
        %4536 = vst [vmem:[#allocation3 + $0x530] sm:$0xff] %v4096
        %4537 = vst [vmem:[#allocation3 + $0x578] sm:$0xff] %v4097
        %4538 = vst [vmem:[#allocation3 + $0x5c0] sm:$0xff] %v4098
        %4539 = vst [vmem:[#allocation3 + $0x608] sm:$0xff] %v4099
        %4540 = vst [vmem:[#allocation3 + $0x650] sm:$0xff] %v4100
        %4541 = vst [vmem:[#allocation3 + $0x698] sm:$0xff] %v4101
        %4542 = vst [vmem:[#allocation3 + $0x6e0] sm:$0xff] %v4102
        %4543 = vst [vmem:[#allocation3 + $0x728] sm:$0xff] %v4103
        %4544 = vst [vmem:[#allocation3 + $0x770] sm:$0xff] %v4104
        %4545 = vst [vmem:[#allocation3 + $0x7b8] sm:$0xff] %v4105
        %4546 = vst [vmem:[#allocation3 + $0x800] sm:$0xff] %v4106
        %4547 = vst [vmem:[#allocation3 + $0x848] sm:$0xff] %v4107
        %4548 = vst [vmem:[#allocation3 + $0x890] sm:$0xff] %v4108
        %4549 = vst [vmem:[#allocation3 + $0x8d8] sm:$0xff] %v4109
        %4550 = vst [vmem:[#allocation3 + $0x920] sm:$0xff] %v4110
        %4551 = vst [vmem:[#allocation3 + $0x968] sm:$0xff] %v4111
        %4552 = vst [vmem:[#allocation3 + $0x9b0] sm:$0xff] %v4112
        %4553 = vst [vmem:[#allocation3 + $0x9f8] sm:$0xff] %v4113
        %4554 = vst [vmem:[#allocation3 + $0xa40] sm:$0xff] %v4114
        %4555 = vst [vmem:[#allocation3 + $0xa88] sm:$0xff] %v4115
        %4556 = vst [vmem:[#allocation3 + $0xad0] sm:$0xff] %v4116
        %4557 = vst [vmem:[#allocation3 + $0xb18] sm:$0xff] %v4117
        %4558 = vst [vmem:[#allocation3 + $0x28] sm:$0xff] %v4318
        %4559 = vst [vmem:[#allocation3 + $0x70] sm:$0xff] %v4319
        %4560 = vst [vmem:[#allocation3 + $0xb8] sm:$0xff] %v4320
        %4561 = vst [vmem:[#allocation3 + $0x100] sm:$0xff] %v4321
        %4562 = vst [vmem:[#allocation3 + $0x148] sm:$0xff] %v4322
        %4563 = vst [vmem:[#allocation3 + $0x190] sm:$0xff] %v4323
        %4564 = vst [vmem:[#allocation3 + $0x1d8] sm:$0xff] %v4324
        %4565 = vst [vmem:[#allocation3 + $0x220] sm:$0xff] %v4325
        %4566 = vst [vmem:[#allocation3 + $0x268] sm:$0xff] %v4326
        %4567 = vst [vmem:[#allocation3 + $0x2b0] sm:$0xff] %v4327
        %4568 = vst [vmem:[#allocation3 + $0x2f8] sm:$0xff] %v4328
        %4569 = vst [vmem:[#allocation3 + $0x340] sm:$0xff] %v4329
        %4570 = vst [vmem:[#allocation3 + $0x388] sm:$0xff] %v4330
        %4571 = vst [vmem:[#allocation3 + $0x3d0] sm:$0xff] %v4331
        %4572 = vst [vmem:[#allocation3 + $0x418] sm:$0xff] %v4332
        %4573 = vst [vmem:[#allocation3 + $0x460] sm:$0xff] %v4333
        %4574 = vst [vmem:[#allocation3 + $0x4a8] sm:$0xff] %v4334
        %4575 = vst [vmem:[#allocation3 + $0x4f0] sm:$0xff] %v4335
        %4576 = vst [vmem:[#allocation3 + $0x538] sm:$0xff] %v4336
        %4577 = vst [vmem:[#allocation3 + $0x580] sm:$0xff] %v4337
        %4578 = vst [vmem:[#allocation3 + $0x5c8] sm:$0xff] %v4338
        %4579 = vst [vmem:[#allocation3 + $0x610] sm:$0xff] %v4339
        %4580 = vst [vmem:[#allocation3 + $0x658] sm:$0xff] %v4340
        %4581 = vst [vmem:[#allocation3 + $0x6a0] sm:$0xff] %v4341
        %4582 = vst [vmem:[#allocation3 + $0x6e8] sm:$0xff] %v4342
        %4583 = vst [vmem:[#allocation3 + $0x730] sm:$0xff] %v4343
        %4584 = vst [vmem:[#allocation3 + $0x778] sm:$0xff] %v4344
        %4585 = vst [vmem:[#allocation3 + $0x7c0] sm:$0xff] %v4345
        %4586 = vst [vmem:[#allocation3 + $0x808] sm:$0xff] %v4346
        %4587 = vst [vmem:[#allocation3 + $0x850] sm:$0xff] %v4347
        %4588 = vst [vmem:[#allocation3 + $0x898] sm:$0xff] %v4348
        %4589 = vst [vmem:[#allocation3 + $0x8e0] sm:$0xff] %v4349
        %4590 = vst [vmem:[#allocation3 + $0x928] sm:$0xff] %v4350
        %4591 = vst [vmem:[#allocation3 + $0x970] sm:$0xff] %v4351
        %4592 = vst [vmem:[#allocation3 + $0x9b8] sm:$0xff] %v4352
        %4593 = vst [vmem:[#allocation3 + $0xa00] sm:$0xff] %v4353
        %4594 = vst [vmem:[#allocation3 + $0xa48] sm:$0xff] %v4354
        %4595 = vst [vmem:[#allocation3 + $0xa90] sm:$0xff] %v4355
        %4596 = vst [vmem:[#allocation3 + $0xad8] sm:$0xff] %v4356
        %4597 = vst [vmem:[#allocation3 + $0xb20] sm:$0xff] %v4357
        %4598 = vst [vmem:[#allocation3 + $0x30] sm:$0xff] %v4200
        %4599 = vst [vmem:[#allocation3 + $0x78] sm:$0xff] %v4201
        %4600 = vst [vmem:[#allocation3 + $0xc0] sm:$0xff] %v4202
        %4601 = vst [vmem:[#allocation3 + $0x108] sm:$0xff] %v4203
        %4602 = vst [vmem:[#allocation3 + $0x150] sm:$0xff] %v4204
        %4603 = vst [vmem:[#allocation3 + $0x198] sm:$0xff] %v4205
        %4604 = vst [vmem:[#allocation3 + $0x1e0] sm:$0xff] %v4206
        %4605 = vst [vmem:[#allocation3 + $0x228] sm:$0xff] %v4207
        %4606 = vst [vmem:[#allocation3 + $0x270] sm:$0xff] %v4208
        %4607 = vst [vmem:[#allocation3 + $0x2b8] sm:$0xff] %v4209
        %4608 = vst [vmem:[#allocation3 + $0x300] sm:$0xff] %v4210
        %4609 = vst [vmem:[#allocation3 + $0x348] sm:$0xff] %v4211
        %4610 = vst [vmem:[#allocation3 + $0x390] sm:$0xff] %v4212
        %4611 = vst [vmem:[#allocation3 + $0x3d8] sm:$0xff] %v4213
        %4612 = vst [vmem:[#allocation3 + $0x420] sm:$0xff] %v4214
        %4613 = vst [vmem:[#allocation3 + $0x468] sm:$0xff] %v4215
        %4614 = vst [vmem:[#allocation3 + $0x4b0] sm:$0xff] %v4216
        %4615 = vst [vmem:[#allocation3 + $0x4f8] sm:$0xff] %v4217
        %4616 = vst [vmem:[#allocation3 + $0x540] sm:$0xff] %v4218
        %4617 = vst [vmem:[#allocation3 + $0x588] sm:$0xff] %v4219
        %4618 = vst [vmem:[#allocation3 + $0x5d0] sm:$0xff] %v4220
        %4619 = vst [vmem:[#allocation3 + $0x618] sm:$0xff] %v4221
        %4620 = vst [vmem:[#allocation3 + $0x660] sm:$0xff] %v4222
        %4621 = vst [vmem:[#allocation3 + $0x6a8] sm:$0xff] %v4223
        %4622 = vst [vmem:[#allocation3 + $0x6f0] sm:$0xff] %v4224
        %4623 = vst [vmem:[#allocation3 + $0x738] sm:$0xff] %v4225
        %4624 = vst [vmem:[#allocation3 + $0x780] sm:$0xff] %v4226
        %4625 = vst [vmem:[#allocation3 + $0x7c8] sm:$0xff] %v4227
        %4626 = vst [vmem:[#allocation3 + $0x810] sm:$0xff] %v4228
        %4627 = vst [vmem:[#allocation3 + $0x858] sm:$0xff] %v4229
        %4628 = vst [vmem:[#allocation3 + $0x8a0] sm:$0xff] %v4230
        %4629 = vst [vmem:[#allocation3 + $0x8e8] sm:$0xff] %v4231
        %4630 = vst [vmem:[#allocation3 + $0x930] sm:$0xff] %v4232
        %4631 = vst [vmem:[#allocation3 + $0x978] sm:$0xff] %v4233
        %4632 = vst [vmem:[#allocation3 + $0x9c0] sm:$0xff] %v4234
        %4633 = vst [vmem:[#allocation3 + $0xa08] sm:$0xff] %v4235
        %4634 = vst [vmem:[#allocation3 + $0xa50] sm:$0xff] %v4236
        %4635 = vst [vmem:[#allocation3 + $0xa98] sm:$0xff] %v4237
        %4636 = vst [vmem:[#allocation3 + $0xae0] sm:$0xff] %v4198
        %4637 = vst [vmem:[#allocation3 + $0xb28] sm:$0xff] %v4199
        %4638 = vst [vmem:[#allocation3 + $0x38] sm:$0xff] %v4080
        %4639 = vst [vmem:[#allocation3 + $0x80] sm:$0xff] %v4081
        %4640 = vst [vmem:[#allocation3 + $0xc8] sm:$0xff] %v4082
        %4641 = vst [vmem:[#allocation3 + $0x110] sm:$0xff] %v4083
        %4642 = vst [vmem:[#allocation3 + $0x158] sm:$0xff] %v4084
        %4643 = vst [vmem:[#allocation3 + $0x1a0] sm:$0xff] %v4085
        %4644 = vst [vmem:[#allocation3 + $0x1e8] sm:$0xff] %v4086
        %4645 = vst [vmem:[#allocation3 + $0x230] sm:$0xff] %v4087
        %4646 = vst [vmem:[#allocation3 + $0x278] sm:$0xff] %v4088
        %4647 = vst [vmem:[#allocation3 + $0x2c0] sm:$0xff] %v4089
        %4648 = vst [vmem:[#allocation3 + $0x308] sm:$0xff] %v4090
        %4649 = vst [vmem:[#allocation3 + $0x350] sm:$0xff] %v4091
        %4650 = vst [vmem:[#allocation3 + $0x398] sm:$0xff] %v4092
        %4651 = vst [vmem:[#allocation3 + $0x3e0] sm:$0xff] %v4093
        %4652 = vst [vmem:[#allocation3 + $0x428] sm:$0xff] %v4094
        %4653 = vst [vmem:[#allocation3 + $0x470] sm:$0xff] %v4095
        %4654 = vst [vmem:[#allocation3 + $0x4b8] sm:$0xff] %v4096
        %4655 = vst [vmem:[#allocation3 + $0x500] sm:$0xff] %v4097
        %4656 = vst [vmem:[#allocation3 + $0x548] sm:$0xff] %v4098
        %4657 = vst [vmem:[#allocation3 + $0x590] sm:$0xff] %v4099
        %4658 = vst [vmem:[#allocation3 + $0x5d8] sm:$0xff] %v4100
        %4659 = vst [vmem:[#allocation3 + $0x620] sm:$0xff] %v4101
        %4660 = vst [vmem:[#allocation3 + $0x668] sm:$0xff] %v4102
        %4661 = vst [vmem:[#allocation3 + $0x6b0] sm:$0xff] %v4103
        %4662 = vst [vmem:[#allocation3 + $0x6f8] sm:$0xff] %v4104
        %4663 = vst [vmem:[#allocation3 + $0x740] sm:$0xff] %v4105
        %4664 = vst [vmem:[#allocation3 + $0x788] sm:$0xff] %v4106
        %4665 = vst [vmem:[#allocation3 + $0x7d0] sm:$0xff] %v4107
        %4666 = vst [vmem:[#allocation3 + $0x818] sm:$0xff] %v4108
        %4667 = vst [vmem:[#allocation3 + $0x860] sm:$0xff] %v4109
        %4668 = vst [vmem:[#allocation3 + $0x8a8] sm:$0xff] %v4110
        %4669 = vst [vmem:[#allocation3 + $0x8f0] sm:$0xff] %v4111
        %4670 = vst [vmem:[#allocation3 + $0x938] sm:$0xff] %v4112
        %4671 = vst [vmem:[#allocation3 + $0x980] sm:$0xff] %v4113
        %4672 = vst [vmem:[#allocation3 + $0x9c8] sm:$0xff] %v4114
        %4673 = vst [vmem:[#allocation3 + $0xa10] sm:$0xff] %v4115
        %4674 = vst [vmem:[#allocation3 + $0xa58] sm:$0xff] %v4116
        %4675 = vst [vmem:[#allocation3 + $0xaa0] sm:$0xff] %v4117
        %4676 = vst [vmem:[#allocation3 + $0xae8] sm:$0xff] %v4078
        %4677 = vst [vmem:[#allocation3 + $0xb30] sm:$0xff] %v4079
        %4678 = vst [vmem:[#allocation3 + $0x40] sm:$0xff] %v4320
        %4679 = vst [vmem:[#allocation3 + $0x88] sm:$0xff] %v4321
        %4680 = vst [vmem:[#allocation3 + $0xd0] sm:$0xff] %v4322
        %4681 = vst [vmem:[#allocation3 + $0x118] sm:$0xff] %v4323
        %4682 = vst [vmem:[#allocation3 + $0x160] sm:$0xff] %v4324
        %4683 = vst [vmem:[#allocation3 + $0x1a8] sm:$0xff] %v4325
        %4684 = vst [vmem:[#allocation3 + $0x1f0] sm:$0xff] %v4326
        %4685 = vst [vmem:[#allocation3 + $0x238] sm:$0xff] %v4327
        %4686 = vst [vmem:[#allocation3 + $0x280] sm:$0xff] %v4328
        %4687 = vst [vmem:[#allocation3 + $0x2c8] sm:$0xff] %v4329
        %4688 = vst [vmem:[#allocation3 + $0x310] sm:$0xff] %v4330
        %4689 = vst [vmem:[#allocation3 + $0x358] sm:$0xff] %v4331
        %4690 = vst [vmem:[#allocation3 + $0x3a0] sm:$0xff] %v4332
        %4691 = vst [vmem:[#allocation3 + $0x3e8] sm:$0xff] %v4333
        %4692 = vst [vmem:[#allocation3 + $0x430] sm:$0xff] %v4334
        %4693 = vst [vmem:[#allocation3 + $0x478] sm:$0xff] %v4335
        %4694 = vst [vmem:[#allocation3 + $0x4c0] sm:$0xff] %v4336
        %4695 = vst [vmem:[#allocation3 + $0x508] sm:$0xff] %v4337
        %4696 = vst [vmem:[#allocation3 + $0x550] sm:$0xff] %v4338
        %4697 = vst [vmem:[#allocation3 + $0x598] sm:$0xff] %v4339
        %4698 = vst [vmem:[#allocation3 + $0x5e0] sm:$0xff] %v4340
        %4699 = vst [vmem:[#allocation3 + $0x628] sm:$0xff] %v4341
        %4700 = vst [vmem:[#allocation3 + $0x670] sm:$0xff] %v4342
        %4701 = vst [vmem:[#allocation3 + $0x6b8] sm:$0xff] %v4343
        %4702 = vst [vmem:[#allocation3 + $0x700] sm:$0xff] %v4344
        %4703 = vst [vmem:[#allocation3 + $0x748] sm:$0xff] %v4345
        %4704 = vst [vmem:[#allocation3 + $0x790] sm:$0xff] %v4346
        %4705 = vst [vmem:[#allocation3 + $0x7d8] sm:$0xff] %v4347
        %4706 = vst [vmem:[#allocation3 + $0x820] sm:$0xff] %v4348
        %4707 = vst [vmem:[#allocation3 + $0x868] sm:$0xff] %v4349
        %4708 = vst [vmem:[#allocation3 + $0x8b0] sm:$0xff] %v4350
        %4709 = vst [vmem:[#allocation3 + $0x8f8] sm:$0xff] %v4351
        %4710 = vst [vmem:[#allocation3 + $0x940] sm:$0xff] %v4352
        %4711 = vst [vmem:[#allocation3 + $0x988] sm:$0xff] %v4353
        %4712 = vst [vmem:[#allocation3 + $0x9d0] sm:$0xff] %v4354
        %4713 = vst [vmem:[#allocation3 + $0xa18] sm:$0xff] %v4355
        %4714 = vst [vmem:[#allocation3 + $0xa60] sm:$0xff] %v4356
        %4715 = vst [vmem:[#allocation3 + $0xaa8] sm:$0xff] %v4357
        %4716 = vst [vmem:[#allocation3 + $0xaf0] sm:$0xff] %v4318
        %4717 = vst [vmem:[#allocation3 + $0xb38] sm:$0xff] %v4319
        %v4718 = vld [vmem:[#allocation3] sm:$0xff]
        %v4719 = vld [vmem:[#allocation3 + $0x8] sm:$0xff]
        %v4720 = vld [vmem:[#allocation3 + $0x10] sm:$0xff]
        %v4721 = vld [vmem:[#allocation3 + $0x18] sm:$0xff]
        %v4722 = vld [vmem:[#allocation3 + $0x20] sm:$0xff]
        %v4723 = vld [vmem:[#allocation3 + $0x28] sm:$0xff]
        %v4724 = vld [vmem:[#allocation3 + $0x30] sm:$0xff]
        %v4725 = vld [vmem:[#allocation3 + $0x38] sm:$0xff]
        %v4726 = vld [vmem:[#allocation3 + $0x40] sm:$0xff]
        %v4727 = vld [vmem:[#allocation3 + $0x48] sm:$0xff]
        %v4728 = vld [vmem:[#allocation3 + $0x50] sm:$0xff]
        %v4729 = vld [vmem:[#allocation3 + $0x58] sm:$0xff]
        %v4730 = vld [vmem:[#allocation3 + $0x60] sm:$0xff]
        %v4731 = vld [vmem:[#allocation3 + $0x68] sm:$0xff]
        %v4732 = vld [vmem:[#allocation3 + $0x70] sm:$0xff]
        %v4733 = vld [vmem:[#allocation3 + $0x78] sm:$0xff]
        %v4734 = vld [vmem:[#allocation3 + $0x80] sm:$0xff]
        %v4735 = vld [vmem:[#allocation3 + $0x88] sm:$0xff]
        %v4736 = vld [vmem:[#allocation3 + $0x90] sm:$0xff]
        %v4737 = vld [vmem:[#allocation3 + $0x98] sm:$0xff]
        %v4738 = vld [vmem:[#allocation3 + $0xa0] sm:$0xff]
        %v4739 = vld [vmem:[#allocation3 + $0xa8] sm:$0xff]
        %v4740 = vld [vmem:[#allocation3 + $0xb0] sm:$0xff]
        %v4741 = vld [vmem:[#allocation3 + $0xb8] sm:$0xff]
        %v4742 = vld [vmem:[#allocation3 + $0xc0] sm:$0xff]
        %v4743 = vld [vmem:[#allocation3 + $0xc8] sm:$0xff]
        %v4744 = vld [vmem:[#allocation3 + $0xd0] sm:$0xff]
        %v4745 = vld [vmem:[#allocation3 + $0xd8] sm:$0xff]
        %v4746 = vld [vmem:[#allocation3 + $0xe0] sm:$0xff]
        %v4747 = vld [vmem:[#allocation3 + $0xe8] sm:$0xff]
        %v4748 = vld [vmem:[#allocation3 + $0xf0] sm:$0xff]
        %v4749 = vld [vmem:[#allocation3 + $0xf8] sm:$0xff]
        %v4750 = vld [vmem:[#allocation3 + $0x100] sm:$0xff]
        %v4751 = vld [vmem:[#allocation3 + $0x108] sm:$0xff]
        %v4752 = vld [vmem:[#allocation3 + $0x110] sm:$0xff]
        %v4753 = vld [vmem:[#allocation3 + $0x118] sm:$0xff]
        %v4754 = vld [vmem:[#allocation3 + $0x120] sm:$0xff]
        %v4755 = vld [vmem:[#allocation3 + $0x128] sm:$0xff]
        %v4756 = vld [vmem:[#allocation3 + $0x130] sm:$0xff]
        %v4757 = vld [vmem:[#allocation3 + $0x138] sm:$0xff]
        %v4758 = vld [vmem:[#allocation3 + $0x140] sm:$0xff]
        %v4759 = vld [vmem:[#allocation3 + $0x148] sm:$0xff]
        %v4760 = vld [vmem:[#allocation3 + $0x150] sm:$0xff]
        %v4761 = vld [vmem:[#allocation3 + $0x158] sm:$0xff]
        %v4762 = vld [vmem:[#allocation3 + $0x160] sm:$0xff]
        %v4763 = vld [vmem:[#allocation3 + $0x168] sm:$0xff]
        %v4764 = vld [vmem:[#allocation3 + $0x170] sm:$0xff]
        %v4765 = vld [vmem:[#allocation3 + $0x178] sm:$0xff]
        %v4766 = vld [vmem:[#allocation3 + $0x180] sm:$0xff]
        %v4767 = vld [vmem:[#allocation3 + $0x188] sm:$0xff]
        %v4768 = vld [vmem:[#allocation3 + $0x190] sm:$0xff]
        %v4769 = vld [vmem:[#allocation3 + $0x198] sm:$0xff]
        %v4770 = vld [vmem:[#allocation3 + $0x1a0] sm:$0xff]
        %v4771 = vld [vmem:[#allocation3 + $0x1a8] sm:$0xff]
        %v4772 = vld [vmem:[#allocation3 + $0x1b0] sm:$0xff]
        %v4773 = vld [vmem:[#allocation3 + $0x1b8] sm:$0xff]
        %v4774 = vld [vmem:[#allocation3 + $0x1c0] sm:$0xff]
        %v4775 = vld [vmem:[#allocation3 + $0x1c8] sm:$0xff]
        %v4776 = vld [vmem:[#allocation3 + $0x1d0] sm:$0xff]
        %v4777 = vld [vmem:[#allocation3 + $0x1d8] sm:$0xff]
        %v4778 = vld [vmem:[#allocation3 + $0x1e0] sm:$0xff]
        %v4779 = vld [vmem:[#allocation3 + $0x1e8] sm:$0xff]
        %v4780 = vld [vmem:[#allocation3 + $0x1f0] sm:$0xff]
        %v4781 = vld [vmem:[#allocation3 + $0x1f8] sm:$0xff]
        %v4782 = vld [vmem:[#allocation3 + $0x200] sm:$0xff]
        %v4783 = vld [vmem:[#allocation3 + $0x208] sm:$0xff]
        %v4784 = vld [vmem:[#allocation3 + $0x210] sm:$0xff]
        %v4785 = vld [vmem:[#allocation3 + $0x218] sm:$0xff]
        %v4786 = vld [vmem:[#allocation3 + $0x220] sm:$0xff]
        %v4787 = vld [vmem:[#allocation3 + $0x228] sm:$0xff]
        %v4788 = vld [vmem:[#allocation3 + $0x230] sm:$0xff]
        %v4789 = vld [vmem:[#allocation3 + $0x238] sm:$0xff]
        %v4790 = vld [vmem:[#allocation3 + $0x240] sm:$0xff]
        %v4791 = vld [vmem:[#allocation3 + $0x248] sm:$0xff]
        %v4792 = vld [vmem:[#allocation3 + $0x250] sm:$0xff]
        %v4793 = vld [vmem:[#allocation3 + $0x258] sm:$0xff]
        %v4794 = vld [vmem:[#allocation3 + $0x260] sm:$0xff]
        %v4795 = vld [vmem:[#allocation3 + $0x268] sm:$0xff]
        %v4796 = vld [vmem:[#allocation3 + $0x270] sm:$0xff]
        %v4797 = vld [vmem:[#allocation3 + $0x278] sm:$0xff]
        %v4798 = vld [vmem:[#allocation3 + $0x280] sm:$0xff]
        %v4799 = vld [vmem:[#allocation3 + $0x288] sm:$0xff]
        %v4800 = vld [vmem:[#allocation3 + $0x290] sm:$0xff]
        %v4801 = vld [vmem:[#allocation3 + $0x298] sm:$0xff]
        %v4802 = vld [vmem:[#allocation3 + $0x2a0] sm:$0xff]
        %v4803 = vld [vmem:[#allocation3 + $0x2a8] sm:$0xff]
        %v4804 = vld [vmem:[#allocation3 + $0x2b0] sm:$0xff]
        %v4805 = vld [vmem:[#allocation3 + $0x2b8] sm:$0xff]
        %v4806 = vld [vmem:[#allocation3 + $0x2c0] sm:$0xff]
        %v4807 = vld [vmem:[#allocation3 + $0x2c8] sm:$0xff]
        %v4808 = vld [vmem:[#allocation3 + $0x2d0] sm:$0xff]
        %v4809 = vld [vmem:[#allocation3 + $0x2d8] sm:$0xff]
        %v4810 = vld [vmem:[#allocation3 + $0x2e0] sm:$0xff]
        %v4811 = vld [vmem:[#allocation3 + $0x2e8] sm:$0xff]
        %v4812 = vld [vmem:[#allocation3 + $0x2f0] sm:$0xff]
        %v4813 = vld [vmem:[#allocation3 + $0x2f8] sm:$0xff]
        %v4814 = vld [vmem:[#allocation3 + $0x300] sm:$0xff]
        %v4815 = vld [vmem:[#allocation3 + $0x308] sm:$0xff]
        %v4816 = vld [vmem:[#allocation3 + $0x310] sm:$0xff]
        %v4817 = vld [vmem:[#allocation3 + $0x318] sm:$0xff]
        %v4818 = vld [vmem:[#allocation3 + $0x320] sm:$0xff]
        %v4819 = vld [vmem:[#allocation3 + $0x328] sm:$0xff]
        %v4820 = vld [vmem:[#allocation3 + $0x330] sm:$0xff]
        %v4821 = vld [vmem:[#allocation3 + $0x338] sm:$0xff]
        %v4822 = vld [vmem:[#allocation3 + $0x340] sm:$0xff]
        %v4823 = vld [vmem:[#allocation3 + $0x348] sm:$0xff]
        %v4824 = vld [vmem:[#allocation3 + $0x350] sm:$0xff]
        %v4825 = vld [vmem:[#allocation3 + $0x358] sm:$0xff]
        %v4826 = vld [vmem:[#allocation3 + $0x360] sm:$0xff]
        %v4827 = vld [vmem:[#allocation3 + $0x368] sm:$0xff]
        %v4828 = vld [vmem:[#allocation3 + $0x370] sm:$0xff]
        %v4829 = vld [vmem:[#allocation3 + $0x378] sm:$0xff]
        %v4830 = vld [vmem:[#allocation3 + $0x380] sm:$0xff]
        %v4831 = vld [vmem:[#allocation3 + $0x388] sm:$0xff]
        %v4832 = vld [vmem:[#allocation3 + $0x390] sm:$0xff]
        %v4833 = vld [vmem:[#allocation3 + $0x398] sm:$0xff]
        %v4834 = vld [vmem:[#allocation3 + $0x3a0] sm:$0xff]
        %v4835 = vld [vmem:[#allocation3 + $0x3a8] sm:$0xff]
        %v4836 = vld [vmem:[#allocation3 + $0x3b0] sm:$0xff]
        %v4837 = vld [vmem:[#allocation3 + $0x3b8] sm:$0xff]
        %v4838 = vld [vmem:[#allocation3 + $0x3c0] sm:$0xff]
        %v4839 = vld [vmem:[#allocation3 + $0x3c8] sm:$0xff]
        %v4840 = vld [vmem:[#allocation3 + $0x3d0] sm:$0xff]
        %v4841 = vld [vmem:[#allocation3 + $0x3d8] sm:$0xff]
        %v4842 = vld [vmem:[#allocation3 + $0x3e0] sm:$0xff]
        %v4843 = vld [vmem:[#allocation3 + $0x3e8] sm:$0xff]
        %v4844 = vld [vmem:[#allocation3 + $0x3f0] sm:$0xff]
        %v4845 = vld [vmem:[#allocation3 + $0x3f8] sm:$0xff]
        %v4846 = vld [vmem:[#allocation3 + $0x400] sm:$0xff]
        %v4847 = vld [vmem:[#allocation3 + $0x408] sm:$0xff]
        %v4848 = vld [vmem:[#allocation3 + $0x410] sm:$0xff]
        %v4849 = vld [vmem:[#allocation3 + $0x418] sm:$0xff]
        %v4850 = vld [vmem:[#allocation3 + $0x420] sm:$0xff]
        %v4851 = vld [vmem:[#allocation3 + $0x428] sm:$0xff]
        %v4852 = vld [vmem:[#allocation3 + $0x430] sm:$0xff]
        %v4853 = vld [vmem:[#allocation3 + $0x438] sm:$0xff]
        %v4854 = vld [vmem:[#allocation3 + $0x440] sm:$0xff]
        %v4855 = vld [vmem:[#allocation3 + $0x448] sm:$0xff]
        %v4856 = vld [vmem:[#allocation3 + $0x450] sm:$0xff]
        %v4857 = vld [vmem:[#allocation3 + $0x458] sm:$0xff]
        %v4858 = vld [vmem:[#allocation3 + $0x460] sm:$0xff]
        %v4859 = vld [vmem:[#allocation3 + $0x468] sm:$0xff]
        %v4860 = vld [vmem:[#allocation3 + $0x470] sm:$0xff]
        %v4861 = vld [vmem:[#allocation3 + $0x478] sm:$0xff]
        %v4862 = vld [vmem:[#allocation3 + $0x480] sm:$0xff]
        %v4863 = vld [vmem:[#allocation3 + $0x488] sm:$0xff]
        %v4864 = vld [vmem:[#allocation3 + $0x490] sm:$0xff]
        %v4865 = vld [vmem:[#allocation3 + $0x498] sm:$0xff]
        %v4866 = vld [vmem:[#allocation3 + $0x4a0] sm:$0xff]
        %v4867 = vld [vmem:[#allocation3 + $0x4a8] sm:$0xff]
        %v4868 = vld [vmem:[#allocation3 + $0x4b0] sm:$0xff]
        %v4869 = vld [vmem:[#allocation3 + $0x4b8] sm:$0xff]
        %v4870 = vld [vmem:[#allocation3 + $0x4c0] sm:$0xff]
        %v4871 = vld [vmem:[#allocation3 + $0x4c8] sm:$0xff]
        %v4872 = vld [vmem:[#allocation3 + $0x4d0] sm:$0xff]
        %v4873 = vld [vmem:[#allocation3 + $0x4d8] sm:$0xff]
        %v4874 = vld [vmem:[#allocation3 + $0x4e0] sm:$0xff]
        %v4875 = vld [vmem:[#allocation3 + $0x4e8] sm:$0xff]
        %v4876 = vld [vmem:[#allocation3 + $0x4f0] sm:$0xff]
        %v4877 = vld [vmem:[#allocation3 + $0x4f8] sm:$0xff]
        %v4878 = vld [vmem:[#allocation3 + $0x500] sm:$0xff]
        %v4879 = vld [vmem:[#allocation3 + $0x508] sm:$0xff]
        %v4880 = vld [vmem:[#allocation3 + $0x510] sm:$0xff]
        %v4881 = vld [vmem:[#allocation3 + $0x518] sm:$0xff]
        %v4882 = vld [vmem:[#allocation3 + $0x520] sm:$0xff]
        %v4883 = vld [vmem:[#allocation3 + $0x528] sm:$0xff]
        %v4884 = vld [vmem:[#allocation3 + $0x530] sm:$0xff]
        %v4885 = vld [vmem:[#allocation3 + $0x538] sm:$0xff]
        %v4886 = vld [vmem:[#allocation3 + $0x540] sm:$0xff]
        %v4887 = vld [vmem:[#allocation3 + $0x548] sm:$0xff]
        %v4888 = vld [vmem:[#allocation3 + $0x550] sm:$0xff]
        %v4889 = vld [vmem:[#allocation3 + $0x558] sm:$0xff]
        %v4890 = vld [vmem:[#allocation3 + $0x560] sm:$0xff]
        %v4891 = vld [vmem:[#allocation3 + $0x568] sm:$0xff]
        %v4892 = vld [vmem:[#allocation3 + $0x570] sm:$0xff]
        %v4893 = vld [vmem:[#allocation3 + $0x578] sm:$0xff]
        %v4894 = vld [vmem:[#allocation3 + $0x580] sm:$0xff]
        %v4895 = vld [vmem:[#allocation3 + $0x588] sm:$0xff]
        %v4896 = vld [vmem:[#allocation3 + $0x590] sm:$0xff]
        %v4897 = vld [vmem:[#allocation3 + $0x598] sm:$0xff]
        %v4898 = vld [vmem:[#allocation3 + $0x5a0] sm:$0xff]
        %v4899 = vld [vmem:[#allocation3 + $0x5a8] sm:$0xff]
        %v4900 = vld [vmem:[#allocation3 + $0x5b0] sm:$0xff]
        %v4901 = vld [vmem:[#allocation3 + $0x5b8] sm:$0xff]
        %v4902 = vld [vmem:[#allocation3 + $0x5c0] sm:$0xff]
        %v4903 = vld [vmem:[#allocation3 + $0x5c8] sm:$0xff]
        %v4904 = vld [vmem:[#allocation3 + $0x5d0] sm:$0xff]
        %v4905 = vld [vmem:[#allocation3 + $0x5d8] sm:$0xff]
        %v4906 = vld [vmem:[#allocation3 + $0x5e0] sm:$0xff]
        %v4907 = vld [vmem:[#allocation3 + $0x5e8] sm:$0xff]
        %v4908 = vld [vmem:[#allocation3 + $0x5f0] sm:$0xff]
        %v4909 = vld [vmem:[#allocation3 + $0x5f8] sm:$0xff]
        %v4910 = vld [vmem:[#allocation3 + $0x600] sm:$0xff]
        %v4911 = vld [vmem:[#allocation3 + $0x608] sm:$0xff]
        %v4912 = vld [vmem:[#allocation3 + $0x610] sm:$0xff]
        %v4913 = vld [vmem:[#allocation3 + $0x618] sm:$0xff]
        %v4914 = vld [vmem:[#allocation3 + $0x620] sm:$0xff]
        %v4915 = vld [vmem:[#allocation3 + $0x628] sm:$0xff]
        %v4916 = vld [vmem:[#allocation3 + $0x630] sm:$0xff]
        %v4917 = vld [vmem:[#allocation3 + $0x638] sm:$0xff]
        %v4918 = vld [vmem:[#allocation3 + $0x640] sm:$0xff]
        %v4919 = vld [vmem:[#allocation3 + $0x648] sm:$0xff]
        %v4920 = vld [vmem:[#allocation3 + $0x650] sm:$0xff]
        %v4921 = vld [vmem:[#allocation3 + $0x658] sm:$0xff]
        %v4922 = vld [vmem:[#allocation3 + $0x660] sm:$0xff]
        %v4923 = vld [vmem:[#allocation3 + $0x668] sm:$0xff]
        %v4924 = vld [vmem:[#allocation3 + $0x670] sm:$0xff]
        %v4925 = vld [vmem:[#allocation3 + $0x678] sm:$0xff]
        %v4926 = vld [vmem:[#allocation3 + $0x680] sm:$0xff]
        %v4927 = vld [vmem:[#allocation3 + $0x688] sm:$0xff]
        %v4928 = vld [vmem:[#allocation3 + $0x690] sm:$0xff]
        %v4929 = vld [vmem:[#allocation3 + $0x698] sm:$0xff]
        %v4930 = vld [vmem:[#allocation3 + $0x6a0] sm:$0xff]
        %v4931 = vld [vmem:[#allocation3 + $0x6a8] sm:$0xff]
        %v4932 = vld [vmem:[#allocation3 + $0x6b0] sm:$0xff]
        %v4933 = vld [vmem:[#allocation3 + $0x6b8] sm:$0xff]
        %v4934 = vld [vmem:[#allocation3 + $0x6c0] sm:$0xff]
        %v4935 = vld [vmem:[#allocation3 + $0x6c8] sm:$0xff]
        %v4936 = vld [vmem:[#allocation3 + $0x6d0] sm:$0xff]
        %v4937 = vld [vmem:[#allocation3 + $0x6d8] sm:$0xff]
        %v4938 = vld [vmem:[#allocation3 + $0x6e0] sm:$0xff]
        %v4939 = vld [vmem:[#allocation3 + $0x6e8] sm:$0xff]
        %v4940 = vld [vmem:[#allocation3 + $0x6f0] sm:$0xff]
        %v4941 = vld [vmem:[#allocation3 + $0x6f8] sm:$0xff]
        %v4942 = vld [vmem:[#allocation3 + $0x700] sm:$0xff]
        %v4943 = vld [vmem:[#allocation3 + $0x708] sm:$0xff]
        %v4944 = vld [vmem:[#allocation3 + $0x710] sm:$0xff]
        %v4945 = vld [vmem:[#allocation3 + $0x718] sm:$0xff]
        %v4946 = vld [vmem:[#allocation3 + $0x720] sm:$0xff]
        %v4947 = vld [vmem:[#allocation3 + $0x728] sm:$0xff]
        %v4948 = vld [vmem:[#allocation3 + $0x730] sm:$0xff]
        %v4949 = vld [vmem:[#allocation3 + $0x738] sm:$0xff]
        %v4950 = vld [vmem:[#allocation3 + $0x740] sm:$0xff]
        %v4951 = vld [vmem:[#allocation3 + $0x748] sm:$0xff]
        %v4952 = vld [vmem:[#allocation3 + $0x750] sm:$0xff]
        %v4953 = vld [vmem:[#allocation3 + $0x758] sm:$0xff]
        %v4954 = vld [vmem:[#allocation3 + $0x760] sm:$0xff]
        %v4955 = vld [vmem:[#allocation3 + $0x768] sm:$0xff]
        %v4956 = vld [vmem:[#allocation3 + $0x770] sm:$0xff]
        %v4957 = vld [vmem:[#allocation3 + $0x778] sm:$0xff]
        %v4958 = vld [vmem:[#allocation3 + $0x780] sm:$0xff]
        %v4959 = vld [vmem:[#allocation3 + $0x788] sm:$0xff]
        %v4960 = vld [vmem:[#allocation3 + $0x790] sm:$0xff]
        %v4961 = vld [vmem:[#allocation3 + $0x798] sm:$0xff]
        %v4962 = vld [vmem:[#allocation3 + $0x7a0] sm:$0xff]
        %v4963 = vld [vmem:[#allocation3 + $0x7a8] sm:$0xff]
        %v4964 = vld [vmem:[#allocation3 + $0x7b0] sm:$0xff]
        %v4965 = vld [vmem:[#allocation3 + $0x7b8] sm:$0xff]
        %v4966 = vld [vmem:[#allocation3 + $0x7c0] sm:$0xff]
        %v4967 = vld [vmem:[#allocation3 + $0x7c8] sm:$0xff]
        %v4968 = vld [vmem:[#allocation3 + $0x7d0] sm:$0xff]
        %v4969 = vld [vmem:[#allocation3 + $0x7d8] sm:$0xff]
        %v4970 = vld [vmem:[#allocation3 + $0x7e0] sm:$0xff]
        %v4971 = vld [vmem:[#allocation3 + $0x7e8] sm:$0xff]
        %v4972 = vld [vmem:[#allocation3 + $0x7f0] sm:$0xff]
        %v4973 = vld [vmem:[#allocation3 + $0x7f8] sm:$0xff]
        %v4974 = vld [vmem:[#allocation3 + $0x800] sm:$0xff]
        %v4975 = vld [vmem:[#allocation3 + $0x808] sm:$0xff]
        %v4976 = vld [vmem:[#allocation3 + $0x810] sm:$0xff]
        %v4977 = vld [vmem:[#allocation3 + $0x818] sm:$0xff]
        %v4978 = vld [vmem:[#allocation3 + $0x820] sm:$0xff]
        %v4979 = vld [vmem:[#allocation3 + $0x828] sm:$0xff]
        %v4980 = vld [vmem:[#allocation3 + $0x830] sm:$0xff]
        %v4981 = vld [vmem:[#allocation3 + $0x838] sm:$0xff]
        %v4982 = vld [vmem:[#allocation3 + $0x840] sm:$0xff]
        %v4983 = vld [vmem:[#allocation3 + $0x848] sm:$0xff]
        %v4984 = vld [vmem:[#allocation3 + $0x850] sm:$0xff]
        %v4985 = vld [vmem:[#allocation3 + $0x858] sm:$0xff]
        %v4986 = vld [vmem:[#allocation3 + $0x860] sm:$0xff]
        %v4987 = vld [vmem:[#allocation3 + $0x868] sm:$0xff]
        %v4988 = vld [vmem:[#allocation3 + $0x870] sm:$0xff]
        %v4989 = vld [vmem:[#allocation3 + $0x878] sm:$0xff]
        %v4990 = vld [vmem:[#allocation3 + $0x880] sm:$0xff]
        %v4991 = vld [vmem:[#allocation3 + $0x888] sm:$0xff]
        %v4992 = vld [vmem:[#allocation3 + $0x890] sm:$0xff]
        %v4993 = vld [vmem:[#allocation3 + $0x898] sm:$0xff]
        %v4994 = vld [vmem:[#allocation3 + $0x8a0] sm:$0xff]
        %v4995 = vld [vmem:[#allocation3 + $0x8a8] sm:$0xff]
        %v4996 = vld [vmem:[#allocation3 + $0x8b0] sm:$0xff]
        %v4997 = vld [vmem:[#allocation3 + $0x8b8] sm:$0xff]
        %v4998 = vld [vmem:[#allocation3 + $0x8c0] sm:$0xff]
        %v4999 = vld [vmem:[#allocation3 + $0x8c8] sm:$0xff]
        %v5000 = vld [vmem:[#allocation3 + $0x8d0] sm:$0xff]
        %v5001 = vld [vmem:[#allocation3 + $0x8d8] sm:$0xff]
        %v5002 = vld [vmem:[#allocation3 + $0x8e0] sm:$0xff]
        %v5003 = vld [vmem:[#allocation3 + $0x8e8] sm:$0xff]
        %v5004 = vld [vmem:[#allocation3 + $0x8f0] sm:$0xff]
        %v5005 = vld [vmem:[#allocation3 + $0x8f8] sm:$0xff]
        %v5006 = vld [vmem:[#allocation3 + $0x900] sm:$0xff]
        %v5007 = vld [vmem:[#allocation3 + $0x908] sm:$0xff]
        %v5008 = vld [vmem:[#allocation3 + $0x910] sm:$0xff]
        %v5009 = vld [vmem:[#allocation3 + $0x918] sm:$0xff]
        %v5010 = vld [vmem:[#allocation3 + $0x920] sm:$0xff]
        %v5011 = vld [vmem:[#allocation3 + $0x928] sm:$0xff]
        %v5012 = vld [vmem:[#allocation3 + $0x930] sm:$0xff]
        %v5013 = vld [vmem:[#allocation3 + $0x938] sm:$0xff]
        %v5014 = vld [vmem:[#allocation3 + $0x940] sm:$0xff]
        %v5015 = vld [vmem:[#allocation3 + $0x948] sm:$0xff]
        %v5016 = vld [vmem:[#allocation3 + $0x950] sm:$0xff]
        %v5017 = vld [vmem:[#allocation3 + $0x958] sm:$0xff]
        %v5018 = vld [vmem:[#allocation3 + $0x960] sm:$0xff]
        %v5019 = vld [vmem:[#allocation3 + $0x968] sm:$0xff]
        %v5020 = vld [vmem:[#allocation3 + $0x970] sm:$0xff]
        %v5021 = vld [vmem:[#allocation3 + $0x978] sm:$0xff]
        %v5022 = vld [vmem:[#allocation3 + $0x980] sm:$0xff]
        %v5023 = vld [vmem:[#allocation3 + $0x988] sm:$0xff]
        %v5024 = vld [vmem:[#allocation3 + $0x990] sm:$0xff]
        %v5025 = vld [vmem:[#allocation3 + $0x998] sm:$0xff]
        %v5026 = vld [vmem:[#allocation3 + $0x9a0] sm:$0xff]
        %v5027 = vld [vmem:[#allocation3 + $0x9a8] sm:$0xff]
        %v5028 = vld [vmem:[#allocation3 + $0x9b0] sm:$0xff]
        %v5029 = vld [vmem:[#allocation3 + $0x9b8] sm:$0xff]
        %v5030 = vld [vmem:[#allocation3 + $0x9c0] sm:$0xff]
        %v5031 = vld [vmem:[#allocation3 + $0x9c8] sm:$0xff]
        %v5032 = vld [vmem:[#allocation3 + $0x9d0] sm:$0xff]
        %v5033 = vld [vmem:[#allocation3 + $0x9d8] sm:$0xff]
        %v5034 = vld [vmem:[#allocation3 + $0x9e0] sm:$0xff]
        %v5035 = vld [vmem:[#allocation3 + $0x9e8] sm:$0xff]
        %v5036 = vld [vmem:[#allocation3 + $0x9f0] sm:$0xff]
        %v5037 = vld [vmem:[#allocation3 + $0x9f8] sm:$0xff]
        %v5038 = vld [vmem:[#allocation3 + $0xa00] sm:$0xff]
        %v5039 = vld [vmem:[#allocation3 + $0xa08] sm:$0xff]
        %v5040 = vld [vmem:[#allocation3 + $0xa10] sm:$0xff]
        %v5041 = vld [vmem:[#allocation3 + $0xa18] sm:$0xff]
        %v5042 = vld [vmem:[#allocation3 + $0xa20] sm:$0xff]
        %v5043 = vld [vmem:[#allocation3 + $0xa28] sm:$0xff]
        %v5044 = vld [vmem:[#allocation3 + $0xa30] sm:$0xff]
        %v5045 = vld [vmem:[#allocation3 + $0xa38] sm:$0xff]
        %v5046 = vld [vmem:[#allocation3 + $0xa40] sm:$0xff]
        %v5047 = vld [vmem:[#allocation3 + $0xa48] sm:$0xff]
        %v5048 = vld [vmem:[#allocation3 + $0xa50] sm:$0xff]
        %v5049 = vld [vmem:[#allocation3 + $0xa58] sm:$0xff]
        %v5050 = vld [vmem:[#allocation3 + $0xa60] sm:$0xff]
        %v5051 = vld [vmem:[#allocation3 + $0xa68] sm:$0xff]
        %v5052 = vld [vmem:[#allocation3 + $0xa70] sm:$0xff]
        %v5053 = vld [vmem:[#allocation3 + $0xa78] sm:$0xff]
        %v5054 = vld [vmem:[#allocation3 + $0xa80] sm:$0xff]
        %v5055 = vld [vmem:[#allocation3 + $0xa88] sm:$0xff]
        %v5056 = vld [vmem:[#allocation3 + $0xa90] sm:$0xff]
        %v5057 = vld [vmem:[#allocation3 + $0xa98] sm:$0xff]
        %v5058 = vld [vmem:[#allocation3 + $0xaa0] sm:$0xff]
        %v5059 = vld [vmem:[#allocation3 + $0xaa8] sm:$0xff]
        %v5060 = vld [vmem:[#allocation3 + $0xab0] sm:$0xff]
        %v5061 = vld [vmem:[#allocation3 + $0xab8] sm:$0xff]
        %v5062 = vld [vmem:[#allocation3 + $0xac0] sm:$0xff]
        %v5063 = vld [vmem:[#allocation3 + $0xac8] sm:$0xff]
        %v5064 = vld [vmem:[#allocation3 + $0xad0] sm:$0xff]
        %v5065 = vld [vmem:[#allocation3 + $0xad8] sm:$0xff]
        %v5066 = vld [vmem:[#allocation3 + $0xae0] sm:$0xff]
        %v5067 = vld [vmem:[#allocation3 + $0xae8] sm:$0xff]
        %v5068 = vld [vmem:[#allocation3 + $0xaf0] sm:$0xff]
        %v5069 = vld [vmem:[#allocation3 + $0xaf8] sm:$0xff]
        %v5070 = vld [vmem:[#allocation3 + $0xb00] sm:$0xff]
        %v5071 = vld [vmem:[#allocation3 + $0xb08] sm:$0xff]
        %v5072 = vld [vmem:[#allocation3 + $0xb10] sm:$0xff]
        %v5073 = vld [vmem:[#allocation3 + $0xb18] sm:$0xff]
        %v5074 = vld [vmem:[#allocation3 + $0xb20] sm:$0xff]
        %v5075 = vld [vmem:[#allocation3 + $0xb28] sm:$0xff]
        %v5076 = vld [vmem:[#allocation3 + $0xb30] sm:$0xff]
        %v5077 = vld [vmem:[#allocation3 + $0xb38] sm:$0xff]
        %v5078 = vld [vmem:[#allocation14] sm:$0xff]
        %v5079 = vld [vmem:[#allocation14 + $0x8] sm:$0xff]
        %v5080 = vld [vmem:[#allocation14 + $0x10] sm:$0xff]
        %v5081 = vld [vmem:[#allocation14 + $0x18] sm:$0xff]
        %v5082 = vld [vmem:[#allocation14 + $0x20] sm:$0xff]
        %v5083 = vld [vmem:[#allocation14 + $0x28] sm:$0xff]
        %v5084 = vld [vmem:[#allocation14 + $0x30] sm:$0xff]
        %v5085 = vld [vmem:[#allocation14 + $0x38] sm:$0xff]
        %v5086 = vld [vmem:[#allocation14 + $0x40] sm:$0xff]
        %v5087 = vld [vmem:[#allocation14 + $0x48] sm:$0xff]
        %v5088 = vld [vmem:[#allocation14 + $0x50] sm:$0xff]
        %v5089 = vld [vmem:[#allocation14 + $0x58] sm:$0xff]
        %v5090 = vld [vmem:[#allocation14 + $0x60] sm:$0xff]
        %v5091 = vld [vmem:[#allocation14 + $0x68] sm:$0xff]
        %v5092 = vld [vmem:[#allocation14 + $0x70] sm:$0xff]
        %v5093 = vld [vmem:[#allocation14 + $0x78] sm:$0xff]
        %v5094 = vld [vmem:[#allocation14 + $0x80] sm:$0xff]
        %v5095 = vld [vmem:[#allocation14 + $0x88] sm:$0xff]
        %v5096 = vld [vmem:[#allocation14 + $0x90] sm:$0xff]
        %v5097 = vld [vmem:[#allocation14 + $0x98] sm:$0xff]
        %v5098 = vld [vmem:[#allocation14 + $0xa0] sm:$0xff]
        %v5099 = vld [vmem:[#allocation14 + $0xa8] sm:$0xff]
        %v5100 = vld [vmem:[#allocation14 + $0xb0] sm:$0xff]
        %v5101 = vld [vmem:[#allocation14 + $0xb8] sm:$0xff]
        %v5102 = vld [vmem:[#allocation14 + $0xc0] sm:$0xff]
        %v5103 = vld [vmem:[#allocation14 + $0xc8] sm:$0xff]
        %v5104 = vld [vmem:[#allocation14 + $0xd0] sm:$0xff]
        %v5105 = vld [vmem:[#allocation14 + $0xd8] sm:$0xff]
        %v5106 = vld [vmem:[#allocation14 + $0xe0] sm:$0xff]
        %v5107 = vld [vmem:[#allocation14 + $0xe8] sm:$0xff]
        %v5108 = vld [vmem:[#allocation14 + $0xf0] sm:$0xff]
        %v5109 = vld [vmem:[#allocation14 + $0xf8] sm:$0xff]
        %v5110 = vld [vmem:[#allocation14 + $0x100] sm:$0xff]
        %v5111 = vld [vmem:[#allocation14 + $0x108] sm:$0xff]
        %v5112 = vld [vmem:[#allocation14 + $0x110] sm:$0xff]
        %v5113 = vld [vmem:[#allocation14 + $0x118] sm:$0xff]
        %v5114 = vld [vmem:[#allocation14 + $0x120] sm:$0xff]
        %v5115 = vld [vmem:[#allocation14 + $0x128] sm:$0xff]
        %v5116 = vld [vmem:[#allocation14 + $0x130] sm:$0xff]
        %v5117 = vld [vmem:[#allocation14 + $0x138] sm:$0xff]
        %v5118 = vld [vmem:[#allocation14 + $0x140] sm:$0xff]
        %v5119 = vld [vmem:[#allocation14 + $0x148] sm:$0xff]
        %v5120 = vld [vmem:[#allocation14 + $0x150] sm:$0xff]
        %v5121 = vld [vmem:[#allocation14 + $0x158] sm:$0xff]
        %v5122 = vld [vmem:[#allocation14 + $0x160] sm:$0xff]
        %v5123 = vld [vmem:[#allocation14 + $0x168] sm:$0xff]
        %v5124 = vld [vmem:[#allocation14 + $0x170] sm:$0xff]
        %v5125 = vld [vmem:[#allocation14 + $0x178] sm:$0xff]
        %v5126 = vld [vmem:[#allocation14 + $0x180] sm:$0xff]
        %v5127 = vld [vmem:[#allocation14 + $0x188] sm:$0xff]
        %v5128 = vld [vmem:[#allocation14 + $0x190] sm:$0xff]
        %v5129 = vld [vmem:[#allocation14 + $0x198] sm:$0xff]
        %v5130 = vld [vmem:[#allocation14 + $0x1a0] sm:$0xff]
        %v5131 = vld [vmem:[#allocation14 + $0x1a8] sm:$0xff]
        %v5132 = vld [vmem:[#allocation14 + $0x1b0] sm:$0xff]
        %v5133 = vld [vmem:[#allocation14 + $0x1b8] sm:$0xff]
        %v5134 = vld [vmem:[#allocation14 + $0x1c0] sm:$0xff]
        %v5135 = vld [vmem:[#allocation14 + $0x1c8] sm:$0xff]
        %v5136 = vld [vmem:[#allocation14 + $0x1d0] sm:$0xff]
        %v5137 = vld [vmem:[#allocation14 + $0x1d8] sm:$0xff]
        %v5138 = vld [vmem:[#allocation14 + $0x1e0] sm:$0xff]
        %v5139 = vld [vmem:[#allocation14 + $0x1e8] sm:$0xff]
        %v5140 = vld [vmem:[#allocation14 + $0x1f0] sm:$0xff]
        %v5141 = vld [vmem:[#allocation14 + $0x1f8] sm:$0xff]
        %v5142 = vld [vmem:[#allocation14 + $0x200] sm:$0xff]
        %v5143 = vld [vmem:[#allocation14 + $0x208] sm:$0xff]
        %v5144 = vld [vmem:[#allocation14 + $0x210] sm:$0xff]
        %v5145 = vld [vmem:[#allocation14 + $0x218] sm:$0xff]
        %v5146 = vld [vmem:[#allocation14 + $0x220] sm:$0xff]
        %v5147 = vld [vmem:[#allocation14 + $0x228] sm:$0xff]
        %v5148 = vld [vmem:[#allocation14 + $0x230] sm:$0xff]
        %v5149 = vld [vmem:[#allocation14 + $0x238] sm:$0xff]
        %v5150 = vld [vmem:[#allocation14 + $0x240] sm:$0xff]
        %v5151 = vld [vmem:[#allocation14 + $0x248] sm:$0xff]
        %v5152 = vld [vmem:[#allocation14 + $0x250] sm:$0xff]
        %v5153 = vld [vmem:[#allocation14 + $0x258] sm:$0xff]
        %v5154 = vld [vmem:[#allocation14 + $0x260] sm:$0xff]
        %v5155 = vld [vmem:[#allocation14 + $0x268] sm:$0xff]
        %v5156 = vld [vmem:[#allocation14 + $0x270] sm:$0xff]
        %v5157 = vld [vmem:[#allocation14 + $0x278] sm:$0xff]
        %v5158 = vld [vmem:[#allocation14 + $0x280] sm:$0xff]
        %v5159 = vld [vmem:[#allocation14 + $0x288] sm:$0xff]
        %v5160 = vld [vmem:[#allocation14 + $0x290] sm:$0xff]
        %v5161 = vld [vmem:[#allocation14 + $0x298] sm:$0xff]
        %v5162 = vld [vmem:[#allocation14 + $0x2a0] sm:$0xff]
        %v5163 = vld [vmem:[#allocation14 + $0x2a8] sm:$0xff]
        %v5164 = vld [vmem:[#allocation14 + $0x2b0] sm:$0xff]
        %v5165 = vld [vmem:[#allocation14 + $0x2b8] sm:$0xff]
        %v5166 = vld [vmem:[#allocation14 + $0x2c0] sm:$0xff]
        %v5167 = vld [vmem:[#allocation14 + $0x2c8] sm:$0xff]
        %v5168 = vld [vmem:[#allocation14 + $0x2d0] sm:$0xff]
        %v5169 = vld [vmem:[#allocation14 + $0x2d8] sm:$0xff]
        %v5170 = vld [vmem:[#allocation14 + $0x2e0] sm:$0xff]
        %v5171 = vld [vmem:[#allocation14 + $0x2e8] sm:$0xff]
        %v5172 = vld [vmem:[#allocation14 + $0x2f0] sm:$0xff]
        %v5173 = vld [vmem:[#allocation14 + $0x2f8] sm:$0xff]
        %v5174 = vld [vmem:[#allocation14 + $0x300] sm:$0xff]
        %v5175 = vld [vmem:[#allocation14 + $0x308] sm:$0xff]
        %v5176 = vld [vmem:[#allocation14 + $0x310] sm:$0xff]
        %v5177 = vld [vmem:[#allocation14 + $0x318] sm:$0xff]
        %v5178 = vld [vmem:[#allocation14 + $0x320] sm:$0xff]
        %v5179 = vld [vmem:[#allocation14 + $0x328] sm:$0xff]
        %v5180 = vld [vmem:[#allocation14 + $0x330] sm:$0xff]
        %v5181 = vld [vmem:[#allocation14 + $0x338] sm:$0xff]
        %v5182 = vld [vmem:[#allocation14 + $0x340] sm:$0xff]
        %v5183 = vld [vmem:[#allocation14 + $0x348] sm:$0xff]
        %v5184 = vld [vmem:[#allocation14 + $0x350] sm:$0xff]
        %v5185 = vld [vmem:[#allocation14 + $0x358] sm:$0xff]
        %v5186 = vld [vmem:[#allocation14 + $0x360] sm:$0xff]
        %v5187 = vld [vmem:[#allocation14 + $0x368] sm:$0xff]
        %v5188 = vld [vmem:[#allocation14 + $0x370] sm:$0xff]
        %v5189 = vld [vmem:[#allocation14 + $0x378] sm:$0xff]
        %v5190 = vld [vmem:[#allocation14 + $0x380] sm:$0xff]
        %v5191 = vld [vmem:[#allocation14 + $0x388] sm:$0xff]
        %v5192 = vld [vmem:[#allocation14 + $0x390] sm:$0xff]
        %v5193 = vld [vmem:[#allocation14 + $0x398] sm:$0xff]
        %v5194 = vld [vmem:[#allocation14 + $0x3a0] sm:$0xff]
        %v5195 = vld [vmem:[#allocation14 + $0x3a8] sm:$0xff]
        %v5196 = vld [vmem:[#allocation14 + $0x3b0] sm:$0xff]
        %v5197 = vld [vmem:[#allocation14 + $0x3b8] sm:$0xff]
        %v5198 = vld [vmem:[#allocation14 + $0x3c0] sm:$0xff]
        %v5199 = vld [vmem:[#allocation14 + $0x3c8] sm:$0xff]
        %v5200 = vld [vmem:[#allocation14 + $0x3d0] sm:$0xff]
        %v5201 = vld [vmem:[#allocation14 + $0x3d8] sm:$0xff]
        %v5202 = vld [vmem:[#allocation14 + $0x3e0] sm:$0xff]
        %v5203 = vld [vmem:[#allocation14 + $0x3e8] sm:$0xff]
        %v5204 = vld [vmem:[#allocation14 + $0x3f0] sm:$0xff]
        %v5205 = vld [vmem:[#allocation14 + $0x3f8] sm:$0xff]
        %v5206 = vld [vmem:[#allocation14 + $0x400] sm:$0xff]
        %v5207 = vld [vmem:[#allocation14 + $0x408] sm:$0xff]
        %v5208 = vld [vmem:[#allocation14 + $0x410] sm:$0xff]
        %v5209 = vld [vmem:[#allocation14 + $0x418] sm:$0xff]
        %v5210 = vld [vmem:[#allocation14 + $0x420] sm:$0xff]
        %v5211 = vld [vmem:[#allocation14 + $0x428] sm:$0xff]
        %v5212 = vld [vmem:[#allocation14 + $0x430] sm:$0xff]
        %v5213 = vld [vmem:[#allocation14 + $0x438] sm:$0xff]
        %v5214 = vld [vmem:[#allocation14 + $0x440] sm:$0xff]
        %v5215 = vld [vmem:[#allocation14 + $0x448] sm:$0xff]
        %v5216 = vld [vmem:[#allocation14 + $0x450] sm:$0xff]
        %v5217 = vld [vmem:[#allocation14 + $0x458] sm:$0xff]
        %v5218 = vld [vmem:[#allocation14 + $0x460] sm:$0xff]
        %v5219 = vld [vmem:[#allocation14 + $0x468] sm:$0xff]
        %v5220 = vld [vmem:[#allocation14 + $0x470] sm:$0xff]
        %v5221 = vld [vmem:[#allocation14 + $0x478] sm:$0xff]
        %5222 = vmatprep.subr.mxu0 0.0
        %5223 = vmatpush1.msra.mxu0 %v5078
        %5224 = vmatprep.subr.mxu0 0.0
        %5225 = vmatpush1.msra.mxu0 %v5079
        %5226 = vmatprep.subr.mxu0 0.0
        %5227 = vmatpush1.msra.mxu0 %v5080
        %5228 = vmatprep.subr.mxu0 0.0
        %5229 = vmatpush1.msra.mxu0 %v5081
        %5230 = vmatprep.subr.mxu0 0.0
        %5231 = vmatpush1.msra.mxu0 %v5082
        %5232 = vmatprep.subr.mxu0 0.0
        %5233 = vmatpush1.msra.mxu0 %v5083
        %5234 = vmatprep.subr.mxu0 0.0
        %5235 = vmatpush1.msra.mxu0 %v5084
        %5236 = vmatprep.subr.mxu0 0.0
        %5237 = vmatpush1.msra.mxu0 %v5085
        %5238 = vmatprep.subr.mxu0 0.0
        %5239 = vmatpush1.msra.mxu0 %v5086
        %5240 = vmatprep.subr.mxu0 0.0
        %5241 = vmatpush1.msra.mxu0 %v5087
        %5242 = vmatprep.subr.mxu0 0.0
        %5243 = vmatpush1.msra.mxu0 %v5088
        %5244 = vmatprep.subr.mxu0 0.0
        %5245 = vmatpush1.msra.mxu0 %v5089
        %5246 = vmatprep.subr.mxu0 0.0
        %5247 = vmatpush1.msra.mxu0 %v5090
        %5248 = vmatprep.subr.mxu0 0.0
        %5249 = vmatpush1.msra.mxu0 %v5091
        %5250 = vmatprep.subr.mxu0 0.0
        %5251 = vmatpush1.msra.mxu0 %v5092
        %5252 = vmatprep.subr.mxu0 0.0
        %5253 = vmatpush1.msra.mxu0 %v5093
        %5254 = vmatprep.subr.mxu0 0.0
        %5255 = vmatpush1.msra.mxu0 %v5094
        %5256 = vmatprep.subr.mxu0 0.0
        %5257 = vmatpush1.msra.mxu0 %v5095
        %5258 = vmatprep.subr.mxu0 0.0
        %5259 = vmatpush1.msra.mxu0 %v5096
        %5260 = vmatprep.subr.mxu0 0.0
        %5261 = vmatpush1.msra.mxu0 %v5097
        %5262 = vmatprep.subr.mxu0 0.0
        %5263 = vmatpush1.msra.mxu0 %v5098
        %5264 = vmatprep.subr.mxu0 0.0
        %5265 = vmatpush1.msra.mxu0 %v5099
        %5266 = vmatprep.subr.mxu0 0.0
        %5267 = vmatpush1.msra.mxu0 %v5100
        %5268 = vmatprep.subr.mxu0 0.0
        %5269 = vmatpush1.msra.mxu0 %v5101
        %5270 = vmatprep.subr.mxu0 0.0
        %5271 = vmatpush1.msra.mxu0 %v5102
        %5272 = vmatprep.subr.mxu0 0.0
        %5273 = vmatpush1.msra.mxu0 %v5103
        %5274 = vmatprep.subr.mxu0 0.0
        %5275 = vmatpush1.msra.mxu0 %v5104
        %5276 = vmatprep.subr.mxu0 0.0
        %5277 = vmatpush1.msra.mxu0 %v5105
        %5278 = vmatprep.subr.mxu0 0.0
        %5279 = vmatpush1.msra.mxu0 %v5106
        %5280 = vmatprep.subr.mxu0 0.0
        %5281 = vmatpush1.msra.mxu0 %v5107
        %5282 = vmatprep.subr.mxu0 0.0
        %5283 = vmatpush1.msra.mxu0 %v5108
        %5284 = vmatprep.subr.mxu0 0.0
        %5285 = vmatpush1.msra.mxu0 %v5109
        %5286 = vmatprep.mubr.f32.mxu0 %v4719
        %5287 = vmatmul.mubr.f32.gmra.mrb[0].mxu0 %v4718
        %v5288 = vpop.f32.mrb[0].mxu0
        %v5289 = vpop.f32.mrb[0].mxu0
        %5290 = vmatprep.mubr.f32.mxu0 %v4728
        %5291 = vmatmul.mubr.f32.gmra.mrb[0].mxu0 %v4727
        %v5292 = vpop.f32.mrb[0].mxu0
        %v5293 = vpop.f32.mrb[0].mxu0
        %5294 = vmatprep.mubr.f32.mxu0 %v4737
        %5295 = vmatmul.mubr.f32.gmra.mrb[0].mxu0 %v4736
        %v5296 = vpop.f32.mrb[0].mxu0
        %v5297 = vpop.f32.mrb[0].mxu0
        %5298 = vmatprep.mubr.f32.mxu0 %v4746
        %5299 = vmatmul.mubr.f32.gmra.mrb[0].mxu0 %v4745
        %v5300 = vpop.f32.mrb[0].mxu0
        %v5301 = vpop.f32.mrb[0].mxu0
        %5302 = vmatprep.mubr.f32.mxu0 %v4755
        %5303 = vmatmul.mubr.f32.gmra.mrb[0].mxu0 %v4754
        %v5304 = vpop.f32.mrb[0].mxu0
        %v5305 = vadd.f32 0.0, %v5304
        %v5306 = vpop.f32.mrb[0].mxu0
        %5307 = vmatprep.mubr.f32.mxu0 %v4764
        %5308 = vmatmul.mubr.f32.gmra.mrb[0].mxu0 %v4763
        %v5309 = vpop.f32.mrb[0].mxu0
        %v5310 = vadd.f32 0.0, %v5309
        %v5311 = vpop.f32.mrb[0].mxu0
        %5312 = vmatprep.mubr.f32.mxu0 %v4773
        %5313 = vmatmul.mubr.f32.gmra.mrb[0].mxu0 %v4772
        %v5314 = vpop.f32.mrb[0].mxu0
        %v5315 = vadd.f32 0.0, %v5314
        %v5316 = vpop.f32.mrb[0].mxu0
        %5317 = vmatprep.mubr.f32.mxu0 %v4782
        %5318 = vmatmul.mubr.f32.gmra.mrb[0].mxu0 %v4781
        %v5319 = vpop.f32.mrb[0].mxu0
        %v5320 = vadd.f32 0.0, %v5319
        %v5321 = vpop.f32.mrb[0].mxu0
        %5322 = vmatprep.mubr.f32.mxu0 %v4791
        %5323 = vmatmul.mubr.f32.gmra.mrb[0].mxu0 %v4790
        %v5324 = vpop.f32.mrb[0].mxu0
        %v5325 = vadd.f32 0.0, %v5324
        %v5326 = vpop.f32.mrb[0].mxu0
        %5327 = vmatprep.mubr.f32.mxu0 %v4800
        %5328 = vmatmul.mubr.f32.gmra.mrb[0].mxu0 %v4799
        %v5329 = vpop.f32.mrb[0].mxu0
        %v5330 = vadd.f32 0.0, %v5329
        %v5331 = vpop.f32.mrb[0].mxu0
        %5332 = vmatprep.mubr.f32.mxu0 %v4809
        %5333 = vmatmul.mubr.f32.gmra.mrb[0].mxu0 %v4808
        %v5334 = vpop.f32.mrb[0].mxu0
        %v5335 = vadd.f32 0.0, %v5334
        %v5336 = vpop.f32.mrb[0].mxu0
        %5337 = vmatprep.mubr.f32.mxu0 %v4818
        %5338 = vmatmul.mubr.f32.gmra.mrb[0].mxu0 %v4817
        %v5339 = vpop.f32.mrb[0].mxu0
        %v5340 = vadd.f32 0.0, %v5339
        %v5341 = vpop.f32.mrb[0].mxu0
        %5342 = vmatprep.mubr.f32.mxu0 %v4827
        %5343 = vmatmul.mubr.f32.gmra.mrb[0].mxu0 %v4826
        %v5344 = vpop.f32.mrb[0].mxu0
        %v5345 = vadd.f32 0.0, %v5344
        %v5346 = vpop.f32.mrb[0].mxu0
        %5347 = vmatprep.mubr.f32.mxu0 %v4836
        %5348 = vmatmul.mubr.f32.gmra.mrb[0].mxu0 %v4835
        %v5349 = vpop.f32.mrb[0].mxu0
        %v5350 = vadd.f32 0.0, %v5349
        %v5351 = vpop.f32.mrb[0].mxu0
        %5352 = vmatprep.mubr.f32.mxu0 %v4845
        %5353 = vmatmul.mubr.f32.gmra.mrb[0].mxu0 %v4844
        %v5354 = vpop.f32.mrb[0].mxu0
        %v5355 = vadd.f32 0.0, %v5354
        %v5356 = vpop.f32.mrb[0].mxu0
        %5357 = vmatprep.mubr.f32.mxu0 %v4854
        %5358 = vmatmul.mubr.f32.gmra.mrb[0].mxu0 %v4853
        %v5359 = vpop.f32.mrb[0].mxu0
        %v5360 = vadd.f32 0.0, %v5359
        %v5361 = vpop.f32.mrb[0].mxu0
        %5362 = vmatprep.mubr.f32.mxu0 %v4863
        %5363 = vmatmul.mubr.f32.gmra.mrb[0].mxu0 %v4862
        %v5364 = vpop.f32.mrb[0].mxu0
        %v5365 = vadd.f32 0.0, %v5364
        %v5366 = vpop.f32.mrb[0].mxu0
        %5367 = vmatprep.mubr.f32.mxu0 %v4872
        %5368 = vmatmul.mubr.f32.gmra.mrb[0].mxu0 %v4871
        %v5369 = vpop.f32.mrb[0].mxu0
        %v5370 = vadd.f32 0.0, %v5369
        %v5371 = vpop.f32.mrb[0].mxu0
        %5372 = vmatprep.mubr.f32.mxu0 %v4881
        %5373 = vmatmul.mubr.f32.gmra.mrb[0].mxu0 %v4880
        %v5374 = vpop.f32.mrb[0].mxu0
        %v5375 = vadd.f32 0.0, %v5374
        %v5376 = vpop.f32.mrb[0].mxu0
        %5377 = vmatprep.mubr.f32.mxu0 %v4890
        %5378 = vmatmul.mubr.f32.gmra.mrb[0].mxu0 %v4889
        %v5379 = vpop.f32.mrb[0].mxu0
        %v5380 = vadd.f32 0.0, %v5379
        %v5381 = vpop.f32.mrb[0].mxu0
        %5382 = vmatprep.mubr.f32.mxu0 %v4899
        %5383 = vmatmul.mubr.f32.gmra.mrb[0].mxu0 %v4898
        %v5384 = vpop.f32.mrb[0].mxu0
        %v5385 = vadd.f32 0.0, %v5384
        %v5386 = vpop.f32.mrb[0].mxu0
        %5387 = vmatprep.mubr.f32.mxu0 %v4908
        %5388 = vmatmul.mubr.f32.gmra.mrb[0].mxu0 %v4907
        %v5389 = vpop.f32.mrb[0].mxu0
        %v5390 = vadd.f32 0.0, %v5389
        %v5391 = vpop.f32.mrb[0].mxu0
        %5392 = vmatprep.mubr.f32.mxu0 %v4917
        %5393 = vmatmul.mubr.f32.gmra.mrb[0].mxu0 %v4916
        %v5394 = vpop.f32.mrb[0].mxu0
        %v5395 = vadd.f32 0.0, %v5394
        %v5396 = vpop.f32.mrb[0].mxu0
        %5397 = vmatprep.mubr.f32.mxu0 %v4926
        %5398 = vmatmul.mubr.f32.gmra.mrb[0].mxu0 %v4925
        %v5399 = vpop.f32.mrb[0].mxu0
        %v5400 = vadd.f32 0.0, %v5399
        %v5401 = vpop.f32.mrb[0].mxu0
        %5402 = vmatprep.mubr.f32.mxu0 %v4935
        %5403 = vmatmul.mubr.f32.gmra.mrb[0].mxu0 %v4934
        %v5404 = vpop.f32.mrb[0].mxu0
        %v5405 = vadd.f32 0.0, %v5404
        %v5406 = vpop.f32.mrb[0].mxu0
        %5407 = vmatprep.mubr.f32.mxu0 %v4944
        %5408 = vmatmul.mubr.f32.gmra.mrb[0].mxu0 %v4943
        %v5409 = vpop.f32.mrb[0].mxu0
        %v5410 = vadd.f32 0.0, %v5409
        %v5411 = vpop.f32.mrb[0].mxu0
        %5412 = vmatprep.mubr.f32.mxu0 %v4953
        %5413 = vmatmul.mubr.f32.gmra.mrb[0].mxu0 %v4952
        %v5414 = vpop.f32.mrb[0].mxu0
        %v5415 = vadd.f32 0.0, %v5414
        %v5416 = vpop.f32.mrb[0].mxu0
        %5417 = vmatprep.mubr.f32.mxu0 %v4962
        %5418 = vmatmul.mubr.f32.gmra.mrb[0].mxu0 %v4961
        %v5419 = vpop.f32.mrb[0].mxu0
        %v5420 = vadd.f32 0.0, %v5419
        %v5421 = vpop.f32.mrb[0].mxu0
        %5422 = vmatprep.mubr.f32.mxu0 %v4971
        %5423 = vmatmul.mubr.f32.gmra.mrb[0].mxu0 %v4970
        %v5424 = vpop.f32.mrb[0].mxu0
        %v5425 = vadd.f32 0.0, %v5424
        %v5426 = vpop.f32.mrb[0].mxu0
        %5427 = vmatprep.mubr.f32.mxu0 %v4980
        %5428 = vmatmul.mubr.f32.gmra.mrb[0].mxu0 %v4979
        %v5429 = vpop.f32.mrb[0].mxu0
        %v5430 = vadd.f32 0.0, %v5429
        %v5431 = vpop.f32.mrb[0].mxu0
        %5432 = vmatprep.mubr.f32.mxu0 %v4989
        %5433 = vmatmul.mubr.f32.gmra.mrb[0].mxu0 %v4988
        %v5434 = vpop.f32.mrb[0].mxu0
        %v5435 = vadd.f32 0.0, %v5434
        %v5436 = vpop.f32.mrb[0].mxu0
        %5437 = vmatprep.mubr.f32.mxu0 %v4998
        %5438 = vmatmul.mubr.f32.gmra.mrb[0].mxu0 %v4997
        %v5439 = vpop.f32.mrb[0].mxu0
        %v5440 = vadd.f32 0.0, %v5439
        %v5441 = vpop.f32.mrb[0].mxu0
        %5442 = vmatprep.mubr.f32.mxu0 %v5007
        %5443 = vmatmul.mubr.f32.gmra.mrb[0].mxu0 %v5006
        %v5444 = vpop.f32.mrb[0].mxu0
        %v5445 = vadd.f32 0.0, %v5444
        %v5446 = vpop.f32.mrb[0].mxu0
        %5447 = vmatprep.mubr.f32.mxu0 %v5016
        %5448 = vmatmul.mubr.f32.gmra.mrb[0].mxu0 %v5015
        %v5449 = vpop.f32.mrb[0].mxu0
        %v5450 = vadd.f32 0.0, %v5449
        %v5451 = vpop.f32.mrb[0].mxu0
        %5452 = vmatprep.mubr.f32.mxu0 %v5025
        %5453 = vmatmul.mubr.f32.gmra.mrb[0].mxu0 %v5024
        %v5454 = vpop.f32.mrb[0].mxu0
        %v5455 = vadd.f32 0.0, %v5454
        %v5456 = vpop.f32.mrb[0].mxu0
        %5457 = vmatprep.mubr.f32.mxu0 %v5034
        %5458 = vmatmul.mubr.f32.gmra.mrb[0].mxu0 %v5033
        %v5459 = vpop.f32.mrb[0].mxu0
        %v5460 = vadd.f32 0.0, %v5459
        %v5461 = vpop.f32.mrb[0].mxu0
        %5462 = vmatprep.mubr.f32.mxu0 %v5043
        %5463 = vmatmul.mubr.f32.gmra.mrb[0].mxu0 %v5042
        %v5464 = vpop.f32.mrb[0].mxu0
        %v5465 = vpop.f32.mrb[0].mxu0
        %5466 = vmatprep.mubr.f32.mxu0 %v5052
        %5467 = vmatmul.mubr.f32.gmra.mrb[0].mxu0 %v5051
        %v5468 = vpop.f32.mrb[0].mxu0
        %v5469 = vpop.f32.mrb[0].mxu0
        %5470 = vmatprep.mubr.f32.mxu0 %v5061
        %5471 = vmatmul.mubr.f32.gmra.mrb[0].mxu0 %v5060
        %v5472 = vpop.f32.mrb[0].mxu0
        %v5473 = vpop.f32.mrb[0].mxu0
        %5474 = vmatprep.mubr.f32.mxu0 %v5070
        %5475 = vmatmul.mubr.f32.gmra.mrb[0].mxu0 %v5069
        %v5476 = vpop.f32.mrb[0].mxu0
        %v5477 = vpop.f32.mrb[0].mxu0
        %5478 = vdwg.mxu0
        %5479 = vmatprep.subr.mxu0 0.0
        %5480 = vmatpush1.msra.mxu0 %v5110
        %5481 = vmatprep.subr.mxu0 0.0
        %5482 = vmatpush1.msra.mxu0 %v5111
        %5483 = vmatprep.subr.mxu0 0.0
        %5484 = vmatpush1.msra.mxu0 %v5112
        %5485 = vmatprep.subr.mxu0 0.0
        %5486 = vmatpush1.msra.mxu0 %v5113
        %5487 = vmatprep.subr.mxu0 0.0
        %5488 = vmatpush1.msra.mxu0 %v5114
        %5489 = vmatprep.subr.mxu0 0.0
        %5490 = vmatpush1.msra.mxu0 %v5115
        %5491 = vmatprep.subr.mxu0 0.0
        %5492 = vmatpush1.msra.mxu0 %v5116
        %5493 = vmatprep.subr.mxu0 0.0
        %5494 = vmatpush1.msra.mxu0 %v5117
        %5495 = vmatprep.subr.mxu0 0.0
        %5496 = vmatpush1.msra.mxu0 %v5118
        %5497 = vmatprep.subr.mxu0 0.0
        %5498 = vmatpush1.msra.mxu0 %v5119
        %5499 = vmatprep.subr.mxu0 0.0
        %5500 = vmatpush1.msra.mxu0 %v5120
        %5501 = vmatprep.subr.mxu0 0.0
        %5502 = vmatpush1.msra.mxu0 %v5121
        %5503 = vmatprep.subr.mxu0 0.0
        %5504 = vmatpush1.msra.mxu0 %v5122
        %5505 = vmatprep.subr.mxu0 0.0
        %5506 = vmatpush1.msra.mxu0 %v5123
        %5507 = vmatprep.subr.mxu0 0.0
        %5508 = vmatpush1.msra.mxu0 %v5124
        %5509 = vmatprep.subr.mxu0 0.0
        %5510 = vmatpush1.msra.mxu0 %v5125
        %5511 = vmatprep.subr.mxu0 0.0
        %5512 = vmatpush1.msra.mxu0 %v5126
        %5513 = vmatprep.subr.mxu0 0.0
        %5514 = vmatpush1.msra.mxu0 %v5127
        %5515 = vmatprep.subr.mxu0 0.0
        %5516 = vmatpush1.msra.mxu0 %v5128
        %5517 = vmatprep.subr.mxu0 0.0
        %5518 = vmatpush1.msra.mxu0 %v5129
        %5519 = vmatprep.subr.mxu0 0.0
        %5520 = vmatpush1.msra.mxu0 %v5130
        %5521 = vmatprep.subr.mxu0 0.0
        %5522 = vmatpush1.msra.mxu0 %v5131
        %5523 = vmatprep.subr.mxu0 0.0
        %5524 = vmatpush1.msra.mxu0 %v5132
        %5525 = vmatprep.subr.mxu0 0.0
        %5526 = vmatpush1.msra.mxu0 %v5133
        %5527 = vmatprep.subr.mxu0 0.0
        %5528 = vmatpush1.msra.mxu0 %v5134
        %5529 = vmatprep.subr.mxu0 0.0
        %5530 = vmatpush1.msra.mxu0 %v5135
        %5531 = vmatprep.subr.mxu0 0.0
        %5532 = vmatpush1.msra.mxu0 %v5136
        %5533 = vmatprep.subr.mxu0 0.0
        %5534 = vmatpush1.msra.mxu0 %v5137
        %5535 = vmatprep.subr.mxu0 0.0
        %5536 = vmatpush1.msra.mxu0 %v5138
        %5537 = vmatprep.subr.mxu0 0.0
        %5538 = vmatpush1.msra.mxu0 %v5139
        %5539 = vmatprep.subr.mxu0 0.0
        %5540 = vmatpush1.msra.mxu0 %v5140
        %5541 = vmatprep.subr.mxu0 0.0
        %5542 = vmatpush1.msra.mxu0 %v5141
        %5543 = vmatprep.mubr.f32.mxu0 %v4721
        %5544 = vmatmul.mubr.f32.gmra.mrb[0].mxu0 %v4720
        %v5545 = vpop.f32.mrb[0].mxu0
        %v5546 = vpop.f32.mrb[0].mxu0
        %5547 = vmatprep.mubr.f32.mxu0 %v4730
        %5548 = vmatmul.mubr.f32.gmra.mrb[0].mxu0 %v4729
        %v5549 = vpop.f32.mrb[0].mxu0
        %v5550 = vpop.f32.mrb[0].mxu0
        %5551 = vmatprep.mubr.f32.mxu0 %v4739
        %5552 = vmatmul.mubr.f32.gmra.mrb[0].mxu0 %v4738
        %v5553 = vpop.f32.mrb[0].mxu0
        %v5554 = vpop.f32.mrb[0].mxu0
        %5555 = vmatprep.mubr.f32.mxu0 %v4748
        %5556 = vmatmul.mubr.f32.gmra.mrb[0].mxu0 %v4747
        %v5557 = vpop.f32.mrb[0].mxu0
        %v5558 = vpop.f32.mrb[0].mxu0
        %5559 = vmatprep.mubr.f32.mxu0 %v4757
        %5560 = vmatmul.mubr.f32.gmra.mrb[0].mxu0 %v4756
        %v5561 = vpop.f32.mrb[0].mxu0
        %v5562 = vadd.f32 %v5305, %v5561
        %v5563 = vpop.f32.mrb[0].mxu0
        %5564 = vmatprep.mubr.f32.mxu0 %v4766
        %5565 = vmatmul.mubr.f32.gmra.mrb[0].mxu0 %v4765
        %v5566 = vpop.f32.mrb[0].mxu0
        %v5567 = vadd.f32 %v5310, %v5566
        %v5568 = vpop.f32.mrb[0].mxu0
        %5569 = vmatprep.mubr.f32.mxu0 %v4775
        %5570 = vmatmul.mubr.f32.gmra.mrb[0].mxu0 %v4774
        %v5571 = vpop.f32.mrb[0].mxu0
        %v5572 = vadd.f32 %v5315, %v5571
        %v5573 = vpop.f32.mrb[0].mxu0
        %5574 = vmatprep.mubr.f32.mxu0 %v4784
        %5575 = vmatmul.mubr.f32.gmra.mrb[0].mxu0 %v4783
        %v5576 = vpop.f32.mrb[0].mxu0
        %v5577 = vadd.f32 %v5320, %v5576
        %v5578 = vpop.f32.mrb[0].mxu0
        %5579 = vmatprep.mubr.f32.mxu0 %v4793
        %5580 = vmatmul.mubr.f32.gmra.mrb[0].mxu0 %v4792
        %v5581 = vpop.f32.mrb[0].mxu0
        %v5582 = vadd.f32 %v5325, %v5581
        %v5583 = vpop.f32.mrb[0].mxu0
        %5584 = vmatprep.mubr.f32.mxu0 %v4802
        %5585 = vmatmul.mubr.f32.gmra.mrb[0].mxu0 %v4801
        %v5586 = vpop.f32.mrb[0].mxu0
        %v5587 = vadd.f32 %v5330, %v5586
        %v5588 = vpop.f32.mrb[0].mxu0
        %5589 = vmatprep.mubr.f32.mxu0 %v4811
        %5590 = vmatmul.mubr.f32.gmra.mrb[0].mxu0 %v4810
        %v5591 = vpop.f32.mrb[0].mxu0
        %v5592 = vadd.f32 %v5335, %v5591
        %v5593 = vpop.f32.mrb[0].mxu0
        %5594 = vmatprep.mubr.f32.mxu0 %v4820
        %5595 = vmatmul.mubr.f32.gmra.mrb[0].mxu0 %v4819
        %v5596 = vpop.f32.mrb[0].mxu0
        %v5597 = vadd.f32 %v5340, %v5596
        %v5598 = vpop.f32.mrb[0].mxu0
        %5599 = vmatprep.mubr.f32.mxu0 %v4829
        %5600 = vmatmul.mubr.f32.gmra.mrb[0].mxu0 %v4828
        %v5601 = vpop.f32.mrb[0].mxu0
        %v5602 = vadd.f32 %v5345, %v5601
        %v5603 = vpop.f32.mrb[0].mxu0
        %5604 = vmatprep.mubr.f32.mxu0 %v4838
        %5605 = vmatmul.mubr.f32.gmra.mrb[0].mxu0 %v4837
        %v5606 = vpop.f32.mrb[0].mxu0
        %v5607 = vadd.f32 %v5350, %v5606
        %v5608 = vpop.f32.mrb[0].mxu0
        %5609 = vmatprep.mubr.f32.mxu0 %v4847
        %5610 = vmatmul.mubr.f32.gmra.mrb[0].mxu0 %v4846
        %v5611 = vpop.f32.mrb[0].mxu0
        %v5612 = vadd.f32 %v5355, %v5611
        %v5613 = vpop.f32.mrb[0].mxu0
        %5614 = vmatprep.mubr.f32.mxu0 %v4856
        %5615 = vmatmul.mubr.f32.gmra.mrb[0].mxu0 %v4855
        %v5616 = vpop.f32.mrb[0].mxu0
        %v5617 = vadd.f32 %v5360, %v5616
        %v5618 = vpop.f32.mrb[0].mxu0
        %5619 = vmatprep.mubr.f32.mxu0 %v4865
        %5620 = vmatmul.mubr.f32.gmra.mrb[0].mxu0 %v4864
        %v5621 = vpop.f32.mrb[0].mxu0
        %v5622 = vadd.f32 %v5365, %v5621
        %v5623 = vpop.f32.mrb[0].mxu0
        %5624 = vmatprep.mubr.f32.mxu0 %v4874
        %5625 = vmatmul.mubr.f32.gmra.mrb[0].mxu0 %v4873
        %v5626 = vpop.f32.mrb[0].mxu0
        %v5627 = vadd.f32 %v5370, %v5626
        %v5628 = vpop.f32.mrb[0].mxu0
        %5629 = vmatprep.mubr.f32.mxu0 %v4883
        %5630 = vmatmul.mubr.f32.gmra.mrb[0].mxu0 %v4882
        %v5631 = vpop.f32.mrb[0].mxu0
        %v5632 = vadd.f32 %v5375, %v5631
        %v5633 = vpop.f32.mrb[0].mxu0
        %5634 = vmatprep.mubr.f32.mxu0 %v4892
        %5635 = vmatmul.mubr.f32.gmra.mrb[0].mxu0 %v4891
        %v5636 = vpop.f32.mrb[0].mxu0
        %v5637 = vadd.f32 %v5380, %v5636
        %v5638 = vpop.f32.mrb[0].mxu0
        %5639 = vmatprep.mubr.f32.mxu0 %v4901
        %5640 = vmatmul.mubr.f32.gmra.mrb[0].mxu0 %v4900
        %v5641 = vpop.f32.mrb[0].mxu0
        %v5642 = vadd.f32 %v5385, %v5641
        %v5643 = vpop.f32.mrb[0].mxu0
        %5644 = vmatprep.mubr.f32.mxu0 %v4910
        %5645 = vmatmul.mubr.f32.gmra.mrb[0].mxu0 %v4909
        %v5646 = vpop.f32.mrb[0].mxu0
        %v5647 = vadd.f32 %v5390, %v5646
        %v5648 = vpop.f32.mrb[0].mxu0
        %5649 = vmatprep.mubr.f32.mxu0 %v4919
        %5650 = vmatmul.mubr.f32.gmra.mrb[0].mxu0 %v4918
        %v5651 = vpop.f32.mrb[0].mxu0
        %v5652 = vadd.f32 %v5395, %v5651
        %v5653 = vpop.f32.mrb[0].mxu0
        %5654 = vmatprep.mubr.f32.mxu0 %v4928
        %5655 = vmatmul.mubr.f32.gmra.mrb[0].mxu0 %v4927
        %v5656 = vpop.f32.mrb[0].mxu0
        %v5657 = vadd.f32 %v5400, %v5656
        %v5658 = vpop.f32.mrb[0].mxu0
        %5659 = vmatprep.mubr.f32.mxu0 %v4937
        %5660 = vmatmul.mubr.f32.gmra.mrb[0].mxu0 %v4936
        %v5661 = vpop.f32.mrb[0].mxu0
        %v5662 = vadd.f32 %v5405, %v5661
        %v5663 = vpop.f32.mrb[0].mxu0
        %5664 = vmatprep.mubr.f32.mxu0 %v4946
        %5665 = vmatmul.mubr.f32.gmra.mrb[0].mxu0 %v4945
        %v5666 = vpop.f32.mrb[0].mxu0
        %v5667 = vadd.f32 %v5410, %v5666
        %v5668 = vpop.f32.mrb[0].mxu0
        %5669 = vmatprep.mubr.f32.mxu0 %v4955
        %5670 = vmatmul.mubr.f32.gmra.mrb[0].mxu0 %v4954
        %v5671 = vpop.f32.mrb[0].mxu0
        %v5672 = vadd.f32 %v5415, %v5671
        %v5673 = vpop.f32.mrb[0].mxu0
        %5674 = vmatprep.mubr.f32.mxu0 %v4964
        %5675 = vmatmul.mubr.f32.gmra.mrb[0].mxu0 %v4963
        %v5676 = vpop.f32.mrb[0].mxu0
        %v5677 = vadd.f32 %v5420, %v5676
        %v5678 = vpop.f32.mrb[0].mxu0
        %5679 = vmatprep.mubr.f32.mxu0 %v4973
        %5680 = vmatmul.mubr.f32.gmra.mrb[0].mxu0 %v4972
        %v5681 = vpop.f32.mrb[0].mxu0
        %v5682 = vadd.f32 %v5425, %v5681
        %v5683 = vpop.f32.mrb[0].mxu0
        %5684 = vmatprep.mubr.f32.mxu0 %v4982
        %5685 = vmatmul.mubr.f32.gmra.mrb[0].mxu0 %v4981
        %v5686 = vpop.f32.mrb[0].mxu0
        %v5687 = vadd.f32 %v5430, %v5686
        %v5688 = vpop.f32.mrb[0].mxu0
        %5689 = vmatprep.mubr.f32.mxu0 %v4991
        %5690 = vmatmul.mubr.f32.gmra.mrb[0].mxu0 %v4990
        %v5691 = vpop.f32.mrb[0].mxu0
        %v5692 = vadd.f32 %v5435, %v5691
        %v5693 = vpop.f32.mrb[0].mxu0
        %5694 = vmatprep.mubr.f32.mxu0 %v5000
        %5695 = vmatmul.mubr.f32.gmra.mrb[0].mxu0 %v4999
        %v5696 = vpop.f32.mrb[0].mxu0
        %v5697 = vadd.f32 %v5440, %v5696
        %v5698 = vpop.f32.mrb[0].mxu0
        %5699 = vmatprep.mubr.f32.mxu0 %v5009
        %5700 = vmatmul.mubr.f32.gmra.mrb[0].mxu0 %v5008
        %v5701 = vpop.f32.mrb[0].mxu0
        %v5702 = vadd.f32 %v5445, %v5701
        %v5703 = vpop.f32.mrb[0].mxu0
        %5704 = vmatprep.mubr.f32.mxu0 %v5018
        %5705 = vmatmul.mubr.f32.gmra.mrb[0].mxu0 %v5017
        %v5706 = vpop.f32.mrb[0].mxu0
        %v5707 = vadd.f32 %v5450, %v5706
        %v5708 = vpop.f32.mrb[0].mxu0
        %5709 = vmatprep.mubr.f32.mxu0 %v5027
        %5710 = vmatmul.mubr.f32.gmra.mrb[0].mxu0 %v5026
        %v5711 = vpop.f32.mrb[0].mxu0
        %v5712 = vadd.f32 %v5455, %v5711
        %v5713 = vpop.f32.mrb[0].mxu0
        %5714 = vmatprep.mubr.f32.mxu0 %v5036
        %5715 = vmatmul.mubr.f32.gmra.mrb[0].mxu0 %v5035
        %v5716 = vpop.f32.mrb[0].mxu0
        %v5717 = vadd.f32 %v5460, %v5716
        %v5718 = vpop.f32.mrb[0].mxu0
        %5719 = vmatprep.mubr.f32.mxu0 %v5045
        %5720 = vmatmul.mubr.f32.gmra.mrb[0].mxu0 %v5044
        %v5721 = vpop.f32.mrb[0].mxu0
        %v5722 = vpop.f32.mrb[0].mxu0
        %5723 = vmatprep.mubr.f32.mxu0 %v5054
        %5724 = vmatmul.mubr.f32.gmra.mrb[0].mxu0 %v5053
        %v5725 = vpop.f32.mrb[0].mxu0
        %v5726 = vpop.f32.mrb[0].mxu0
        %5727 = vmatprep.mubr.f32.mxu0 %v5063
        %5728 = vmatmul.mubr.f32.gmra.mrb[0].mxu0 %v5062
        %v5729 = vpop.f32.mrb[0].mxu0
        %v5730 = vpop.f32.mrb[0].mxu0
        %5731 = vmatprep.mubr.f32.mxu0 %v5072
        %5732 = vmatmul.mubr.f32.gmra.mrb[0].mxu0 %v5071
        %v5733 = vpop.f32.mrb[0].mxu0
        %v5734 = vpop.f32.mrb[0].mxu0
        %5735 = vdwg.mxu0
        %5736 = vmatprep.subr.mxu0 0.0
        %5737 = vmatpush1.msra.mxu0 %v5142
        %5738 = vmatprep.subr.mxu0 0.0
        %5739 = vmatpush1.msra.mxu0 %v5143
        %5740 = vmatprep.subr.mxu0 0.0
        %5741 = vmatpush1.msra.mxu0 %v5144
        %5742 = vmatprep.subr.mxu0 0.0
        %5743 = vmatpush1.msra.mxu0 %v5145
        %5744 = vmatprep.subr.mxu0 0.0
        %5745 = vmatpush1.msra.mxu0 %v5146
        %5746 = vmatprep.subr.mxu0 0.0
        %5747 = vmatpush1.msra.mxu0 %v5147
        %5748 = vmatprep.subr.mxu0 0.0
        %5749 = vmatpush1.msra.mxu0 %v5148
        %5750 = vmatprep.subr.mxu0 0.0
        %5751 = vmatpush1.msra.mxu0 %v5149
        %5752 = vmatprep.subr.mxu0 0.0
        %5753 = vmatpush1.msra.mxu0 %v5150
        %5754 = vmatprep.subr.mxu0 0.0
        %5755 = vmatpush1.msra.mxu0 %v5151
        %5756 = vmatprep.subr.mxu0 0.0
        %5757 = vmatpush1.msra.mxu0 %v5152
        %5758 = vmatprep.subr.mxu0 0.0
        %5759 = vmatpush1.msra.mxu0 %v5153
        %5760 = vmatprep.subr.mxu0 0.0
        %5761 = vmatpush1.msra.mxu0 %v5154
        %5762 = vmatprep.subr.mxu0 0.0
        %5763 = vmatpush1.msra.mxu0 %v5155
        %5764 = vmatprep.subr.mxu0 0.0
        %5765 = vmatpush1.msra.mxu0 %v5156
        %5766 = vmatprep.subr.mxu0 0.0
        %5767 = vmatpush1.msra.mxu0 %v5157
        %5768 = vmatprep.subr.mxu0 0.0
        %5769 = vmatpush1.msra.mxu0 %v5158
        %5770 = vmatprep.subr.mxu0 0.0
        %5771 = vmatpush1.msra.mxu0 %v5159
        %5772 = vmatprep.subr.mxu0 0.0
        %5773 = vmatpush1.msra.mxu0 %v5160
        %5774 = vmatprep.subr.mxu0 0.0
        %5775 = vmatpush1.msra.mxu0 %v5161
        %5776 = vmatprep.subr.mxu0 0.0
        %5777 = vmatpush1.msra.mxu0 %v5162
        %5778 = vmatprep.subr.mxu0 0.0
        %5779 = vmatpush1.msra.mxu0 %v5163
        %5780 = vmatprep.subr.mxu0 0.0
        %5781 = vmatpush1.msra.mxu0 %v5164
        %5782 = vmatprep.subr.mxu0 0.0
        %5783 = vmatpush1.msra.mxu0 %v5165
        %5784 = vmatprep.subr.mxu0 0.0
        %5785 = vmatpush1.msra.mxu0 %v5166
        %5786 = vmatprep.subr.mxu0 0.0
        %5787 = vmatpush1.msra.mxu0 %v5167
        %5788 = vmatprep.subr.mxu0 0.0
        %5789 = vmatpush1.msra.mxu0 %v5168
        %5790 = vmatprep.subr.mxu0 0.0
        %5791 = vmatpush1.msra.mxu0 %v5169
        %5792 = vmatprep.subr.mxu0 0.0
        %5793 = vmatpush1.msra.mxu0 %v5170
        %5794 = vmatprep.subr.mxu0 0.0
        %5795 = vmatpush1.msra.mxu0 %v5171
        %5796 = vmatprep.subr.mxu0 0.0
        %5797 = vmatpush1.msra.mxu0 %v5172
        %5798 = vmatprep.subr.mxu0 0.0
        %5799 = vmatpush1.msra.mxu0 %v5173
        %5800 = vmatprep.mubr.f32.mxu0 %v4723
        %5801 = vmatmul.mubr.f32.gmra.mrb[0].mxu0 %v4722
        %v5802 = vpop.f32.mrb[0].mxu0
        %v5803 = vpop.f32.mrb[0].mxu0
        %5804 = vmatprep.mubr.f32.mxu0 %v4732
        %5805 = vmatmul.mubr.f32.gmra.mrb[0].mxu0 %v4731
        %v5806 = vpop.f32.mrb[0].mxu0
        %v5807 = vpop.f32.mrb[0].mxu0
        %5808 = vmatprep.mubr.f32.mxu0 %v4741
        %5809 = vmatmul.mubr.f32.gmra.mrb[0].mxu0 %v4740
        %v5810 = vpop.f32.mrb[0].mxu0
        %v5811 = vpop.f32.mrb[0].mxu0
        %5812 = vmatprep.mubr.f32.mxu0 %v4750
        %5813 = vmatmul.mubr.f32.gmra.mrb[0].mxu0 %v4749
        %v5814 = vpop.f32.mrb[0].mxu0
        %v5815 = vpop.f32.mrb[0].mxu0
        %5816 = vmatprep.mubr.f32.mxu0 %v4759
        %5817 = vmatmul.mubr.f32.gmra.mrb[0].mxu0 %v4758
        %v5818 = vpop.f32.mrb[0].mxu0
        %v5819 = vadd.f32 %v5562, %v5818
        %v5820 = vpop.f32.mrb[0].mxu0
        %5821 = vmatprep.mubr.f32.mxu0 %v4768
        %5822 = vmatmul.mubr.f32.gmra.mrb[0].mxu0 %v4767
        %v5823 = vpop.f32.mrb[0].mxu0
        %v5824 = vadd.f32 %v5567, %v5823
        %v5825 = vpop.f32.mrb[0].mxu0
        %5826 = vmatprep.mubr.f32.mxu0 %v4777
        %5827 = vmatmul.mubr.f32.gmra.mrb[0].mxu0 %v4776
        %v5828 = vpop.f32.mrb[0].mxu0
        %v5829 = vadd.f32 %v5572, %v5828
        %v5830 = vpop.f32.mrb[0].mxu0
        %5831 = vmatprep.mubr.f32.mxu0 %v4786
        %5832 = vmatmul.mubr.f32.gmra.mrb[0].mxu0 %v4785
        %v5833 = vpop.f32.mrb[0].mxu0
        %v5834 = vadd.f32 %v5577, %v5833
        %v5835 = vpop.f32.mrb[0].mxu0
        %5836 = vmatprep.mubr.f32.mxu0 %v4795
        %5837 = vmatmul.mubr.f32.gmra.mrb[0].mxu0 %v4794
        %v5838 = vpop.f32.mrb[0].mxu0
        %v5839 = vadd.f32 %v5582, %v5838
        %v5840 = vpop.f32.mrb[0].mxu0
        %5841 = vmatprep.mubr.f32.mxu0 %v4804
        %5842 = vmatmul.mubr.f32.gmra.mrb[0].mxu0 %v4803
        %v5843 = vpop.f32.mrb[0].mxu0
        %v5844 = vadd.f32 %v5587, %v5843
        %v5845 = vpop.f32.mrb[0].mxu0
        %5846 = vmatprep.mubr.f32.mxu0 %v4813
        %5847 = vmatmul.mubr.f32.gmra.mrb[0].mxu0 %v4812
        %v5848 = vpop.f32.mrb[0].mxu0
        %v5849 = vadd.f32 %v5592, %v5848
        %v5850 = vpop.f32.mrb[0].mxu0
        %5851 = vmatprep.mubr.f32.mxu0 %v4822
        %5852 = vmatmul.mubr.f32.gmra.mrb[0].mxu0 %v4821
        %v5853 = vpop.f32.mrb[0].mxu0
        %v5854 = vadd.f32 %v5597, %v5853
        %v5855 = vpop.f32.mrb[0].mxu0
        %5856 = vmatprep.mubr.f32.mxu0 %v4831
        %5857 = vmatmul.mubr.f32.gmra.mrb[0].mxu0 %v4830
        %v5858 = vpop.f32.mrb[0].mxu0
        %v5859 = vadd.f32 %v5602, %v5858
        %v5860 = vpop.f32.mrb[0].mxu0
        %5861 = vmatprep.mubr.f32.mxu0 %v4840
        %5862 = vmatmul.mubr.f32.gmra.mrb[0].mxu0 %v4839
        %v5863 = vpop.f32.mrb[0].mxu0
        %v5864 = vadd.f32 %v5607, %v5863
        %v5865 = vpop.f32.mrb[0].mxu0
        %5866 = vmatprep.mubr.f32.mxu0 %v4849
        %5867 = vmatmul.mubr.f32.gmra.mrb[0].mxu0 %v4848
        %v5868 = vpop.f32.mrb[0].mxu0
        %v5869 = vadd.f32 %v5612, %v5868
        %v5870 = vpop.f32.mrb[0].mxu0
        %5871 = vmatprep.mubr.f32.mxu0 %v4858
        %5872 = vmatmul.mubr.f32.gmra.mrb[0].mxu0 %v4857
        %v5873 = vpop.f32.mrb[0].mxu0
        %v5874 = vadd.f32 %v5617, %v5873
        %v5875 = vpop.f32.mrb[0].mxu0
        %5876 = vmatprep.mubr.f32.mxu0 %v4867
        %5877 = vmatmul.mubr.f32.gmra.mrb[0].mxu0 %v4866
        %v5878 = vpop.f32.mrb[0].mxu0
        %v5879 = vadd.f32 %v5622, %v5878
        %v5880 = vpop.f32.mrb[0].mxu0
        %5881 = vmatprep.mubr.f32.mxu0 %v4876
        %5882 = vmatmul.mubr.f32.gmra.mrb[0].mxu0 %v4875
        %v5883 = vpop.f32.mrb[0].mxu0
        %v5884 = vadd.f32 %v5627, %v5883
        %v5885 = vpop.f32.mrb[0].mxu0
        %5886 = vmatprep.mubr.f32.mxu0 %v4885
        %5887 = vmatmul.mubr.f32.gmra.mrb[0].mxu0 %v4884
        %v5888 = vpop.f32.mrb[0].mxu0
        %v5889 = vadd.f32 %v5632, %v5888
        %v5890 = vpop.f32.mrb[0].mxu0
        %5891 = vmatprep.mubr.f32.mxu0 %v4894
        %5892 = vmatmul.mubr.f32.gmra.mrb[0].mxu0 %v4893
        %v5893 = vpop.f32.mrb[0].mxu0
        %v5894 = vadd.f32 %v5637, %v5893
        %v5895 = vpop.f32.mrb[0].mxu0
        %5896 = vmatprep.mubr.f32.mxu0 %v4903
        %5897 = vmatmul.mubr.f32.gmra.mrb[0].mxu0 %v4902
        %v5898 = vpop.f32.mrb[0].mxu0
        %v5899 = vadd.f32 %v5642, %v5898
        %v5900 = vpop.f32.mrb[0].mxu0
        %5901 = vmatprep.mubr.f32.mxu0 %v4912
        %5902 = vmatmul.mubr.f32.gmra.mrb[0].mxu0 %v4911
        %v5903 = vpop.f32.mrb[0].mxu0
        %v5904 = vadd.f32 %v5647, %v5903
        %v5905 = vpop.f32.mrb[0].mxu0
        %5906 = vmatprep.mubr.f32.mxu0 %v4921
        %5907 = vmatmul.mubr.f32.gmra.mrb[0].mxu0 %v4920
        %v5908 = vpop.f32.mrb[0].mxu0
        %v5909 = vadd.f32 %v5652, %v5908
        %v5910 = vpop.f32.mrb[0].mxu0
        %5911 = vmatprep.mubr.f32.mxu0 %v4930
        %5912 = vmatmul.mubr.f32.gmra.mrb[0].mxu0 %v4929
        %v5913 = vpop.f32.mrb[0].mxu0
        %v5914 = vadd.f32 %v5657, %v5913
        %v5915 = vpop.f32.mrb[0].mxu0
        %5916 = vmatprep.mubr.f32.mxu0 %v4939
        %5917 = vmatmul.mubr.f32.gmra.mrb[0].mxu0 %v4938
        %v5918 = vpop.f32.mrb[0].mxu0
        %v5919 = vadd.f32 %v5662, %v5918
        %v5920 = vpop.f32.mrb[0].mxu0
        %5921 = vmatprep.mubr.f32.mxu0 %v4948
        %5922 = vmatmul.mubr.f32.gmra.mrb[0].mxu0 %v4947
        %v5923 = vpop.f32.mrb[0].mxu0
        %v5924 = vadd.f32 %v5667, %v5923
        %v5925 = vpop.f32.mrb[0].mxu0
        %5926 = vmatprep.mubr.f32.mxu0 %v4957
        %5927 = vmatmul.mubr.f32.gmra.mrb[0].mxu0 %v4956
        %v5928 = vpop.f32.mrb[0].mxu0
        %v5929 = vadd.f32 %v5672, %v5928
        %v5930 = vpop.f32.mrb[0].mxu0
        %5931 = vmatprep.mubr.f32.mxu0 %v4966
        %5932 = vmatmul.mubr.f32.gmra.mrb[0].mxu0 %v4965
        %v5933 = vpop.f32.mrb[0].mxu0
        %v5934 = vadd.f32 %v5677, %v5933
        %v5935 = vpop.f32.mrb[0].mxu0
        %5936 = vmatprep.mubr.f32.mxu0 %v4975
        %5937 = vmatmul.mubr.f32.gmra.mrb[0].mxu0 %v4974
        %v5938 = vpop.f32.mrb[0].mxu0
        %v5939 = vadd.f32 %v5682, %v5938
        %v5940 = vpop.f32.mrb[0].mxu0
        %5941 = vmatprep.mubr.f32.mxu0 %v4984
        %5942 = vmatmul.mubr.f32.gmra.mrb[0].mxu0 %v4983
        %v5943 = vpop.f32.mrb[0].mxu0
        %v5944 = vadd.f32 %v5687, %v5943
        %v5945 = vpop.f32.mrb[0].mxu0
        %5946 = vmatprep.mubr.f32.mxu0 %v4993
        %5947 = vmatmul.mubr.f32.gmra.mrb[0].mxu0 %v4992
        %v5948 = vpop.f32.mrb[0].mxu0
        %v5949 = vadd.f32 %v5692, %v5948
        %v5950 = vpop.f32.mrb[0].mxu0
        %5951 = vmatprep.mubr.f32.mxu0 %v5002
        %5952 = vmatmul.mubr.f32.gmra.mrb[0].mxu0 %v5001
        %v5953 = vpop.f32.mrb[0].mxu0
        %v5954 = vadd.f32 %v5697, %v5953
        %v5955 = vpop.f32.mrb[0].mxu0
        %5956 = vmatprep.mubr.f32.mxu0 %v5011
        %5957 = vmatmul.mubr.f32.gmra.mrb[0].mxu0 %v5010
        %v5958 = vpop.f32.mrb[0].mxu0
        %v5959 = vadd.f32 %v5702, %v5958
        %v5960 = vpop.f32.mrb[0].mxu0
        %5961 = vmatprep.mubr.f32.mxu0 %v5020
        %5962 = vmatmul.mubr.f32.gmra.mrb[0].mxu0 %v5019
        %v5963 = vpop.f32.mrb[0].mxu0
        %v5964 = vadd.f32 %v5707, %v5963
        %v5965 = vpop.f32.mrb[0].mxu0
        %5966 = vmatprep.mubr.f32.mxu0 %v5029
        %5967 = vmatmul.mubr.f32.gmra.mrb[0].mxu0 %v5028
        %v5968 = vpop.f32.mrb[0].mxu0
        %v5969 = vadd.f32 %v5712, %v5968
        %v5970 = vpop.f32.mrb[0].mxu0
        %5971 = vmatprep.mubr.f32.mxu0 %v5038
        %5972 = vmatmul.mubr.f32.gmra.mrb[0].mxu0 %v5037
        %v5973 = vpop.f32.mrb[0].mxu0
        %v5974 = vadd.f32 %v5717, %v5973
        %v5975 = vpop.f32.mrb[0].mxu0
        %5976 = vmatprep.mubr.f32.mxu0 %v5047
        %5977 = vmatmul.mubr.f32.gmra.mrb[0].mxu0 %v5046
        %v5978 = vpop.f32.mrb[0].mxu0
        %v5979 = vpop.f32.mrb[0].mxu0
        %5980 = vmatprep.mubr.f32.mxu0 %v5056
        %5981 = vmatmul.mubr.f32.gmra.mrb[0].mxu0 %v5055
        %v5982 = vpop.f32.mrb[0].mxu0
        %v5983 = vpop.f32.mrb[0].mxu0
        %5984 = vmatprep.mubr.f32.mxu0 %v5065
        %5985 = vmatmul.mubr.f32.gmra.mrb[0].mxu0 %v5064
        %v5986 = vpop.f32.mrb[0].mxu0
        %v5987 = vpop.f32.mrb[0].mxu0
        %5988 = vmatprep.mubr.f32.mxu0 %v5074
        %5989 = vmatmul.mubr.f32.gmra.mrb[0].mxu0 %v5073
        %v5990 = vpop.f32.mrb[0].mxu0
        %v5991 = vpop.f32.mrb[0].mxu0
        %5992 = vdwg.mxu0
        %5993 = vmatprep.subr.mxu0 0.0
        %5994 = vmatpush1.msra.mxu0 %v5174
        %5995 = vmatprep.subr.mxu0 0.0
        %5996 = vmatpush1.msra.mxu0 %v5175
        %5997 = vmatprep.subr.mxu0 0.0
        %5998 = vmatpush1.msra.mxu0 %v5176
        %5999 = vmatprep.subr.mxu0 0.0
        %6000 = vmatpush1.msra.mxu0 %v5177
        %6001 = vmatprep.subr.mxu0 0.0
        %6002 = vmatpush1.msra.mxu0 %v5178
        %6003 = vmatprep.subr.mxu0 0.0
        %6004 = vmatpush1.msra.mxu0 %v5179
        %6005 = vmatprep.subr.mxu0 0.0
        %6006 = vmatpush1.msra.mxu0 %v5180
        %6007 = vmatprep.subr.mxu0 0.0
        %6008 = vmatpush1.msra.mxu0 %v5181
        %6009 = vmatprep.subr.mxu0 0.0
        %6010 = vmatpush1.msra.mxu0 %v5182
        %6011 = vmatprep.subr.mxu0 0.0
        %6012 = vmatpush1.msra.mxu0 %v5183
        %6013 = vmatprep.subr.mxu0 0.0
        %6014 = vmatpush1.msra.mxu0 %v5184
        %6015 = vmatprep.subr.mxu0 0.0
        %6016 = vmatpush1.msra.mxu0 %v5185
        %6017 = vmatprep.subr.mxu0 0.0
        %6018 = vmatpush1.msra.mxu0 %v5186
        %6019 = vmatprep.subr.mxu0 0.0
        %6020 = vmatpush1.msra.mxu0 %v5187
        %6021 = vmatprep.subr.mxu0 0.0
        %6022 = vmatpush1.msra.mxu0 %v5188
        %6023 = vmatprep.subr.mxu0 0.0
        %6024 = vmatpush1.msra.mxu0 %v5189
        %6025 = vmatprep.subr.mxu0 0.0
        %6026 = vmatpush1.msra.mxu0 %v5190
        %6027 = vmatprep.subr.mxu0 0.0
        %6028 = vmatpush1.msra.mxu0 %v5191
        %6029 = vmatprep.subr.mxu0 0.0
        %6030 = vmatpush1.msra.mxu0 %v5192
        %6031 = vmatprep.subr.mxu0 0.0
        %6032 = vmatpush1.msra.mxu0 %v5193
        %6033 = vmatprep.subr.mxu0 0.0
        %6034 = vmatpush1.msra.mxu0 %v5194
        %6035 = vmatprep.subr.mxu0 0.0
        %6036 = vmatpush1.msra.mxu0 %v5195
        %6037 = vmatprep.subr.mxu0 0.0
        %6038 = vmatpush1.msra.mxu0 %v5196
        %6039 = vmatprep.subr.mxu0 0.0
        %6040 = vmatpush1.msra.mxu0 %v5197
        %6041 = vmatprep.subr.mxu0 0.0
        %6042 = vmatpush1.msra.mxu0 %v5198
        %6043 = vmatprep.subr.mxu0 0.0
        %6044 = vmatpush1.msra.mxu0 %v5199
        %6045 = vmatprep.subr.mxu0 0.0
        %6046 = vmatpush1.msra.mxu0 %v5200
        %6047 = vmatprep.subr.mxu0 0.0
        %6048 = vmatpush1.msra.mxu0 %v5201
        %6049 = vmatprep.subr.mxu0 0.0
        %6050 = vmatpush1.msra.mxu0 %v5202
        %6051 = vmatprep.subr.mxu0 0.0
        %6052 = vmatpush1.msra.mxu0 %v5203
        %6053 = vmatprep.subr.mxu0 0.0
        %6054 = vmatpush1.msra.mxu0 %v5204
        %6055 = vmatprep.subr.mxu0 0.0
        %6056 = vmatpush1.msra.mxu0 %v5205
        %6057 = vmatprep.mubr.f32.mxu0 %v4725
        %6058 = vmatmul.mubr.f32.gmra.mrb[0].mxu0 %v4724
        %v6059 = vpop.f32.mrb[0].mxu0
        %v6060 = vpop.f32.mrb[0].mxu0
        %6061 = vmatprep.mubr.f32.mxu0 %v4734
        %6062 = vmatmul.mubr.f32.gmra.mrb[0].mxu0 %v4733
        %v6063 = vpop.f32.mrb[0].mxu0
        %v6064 = vpop.f32.mrb[0].mxu0
        %6065 = vmatprep.mubr.f32.mxu0 %v4743
        %6066 = vmatmul.mubr.f32.gmra.mrb[0].mxu0 %v4742
        %v6067 = vpop.f32.mrb[0].mxu0
        %v6068 = vpop.f32.mrb[0].mxu0
        %6069 = vmatprep.mubr.f32.mxu0 %v4752
        %6070 = vmatmul.mubr.f32.gmra.mrb[0].mxu0 %v4751
        %v6071 = vpop.f32.mrb[0].mxu0
        %v6072 = vpop.f32.mrb[0].mxu0
        %6073 = vmatprep.mubr.f32.mxu0 %v4761
        %6074 = vmatmul.mubr.f32.gmra.mrb[0].mxu0 %v4760
        %v6075 = vpop.f32.mrb[0].mxu0
        %v6076 = vadd.f32 %v5819, %v6075
        %v6077 = vpop.f32.mrb[0].mxu0
        %6078 = vmatprep.mubr.f32.mxu0 %v4770
        %6079 = vmatmul.mubr.f32.gmra.mrb[0].mxu0 %v4769
        %v6080 = vpop.f32.mrb[0].mxu0
        %v6081 = vadd.f32 %v5824, %v6080
        %v6082 = vpop.f32.mrb[0].mxu0
        %6083 = vmatprep.mubr.f32.mxu0 %v4779
        %6084 = vmatmul.mubr.f32.gmra.mrb[0].mxu0 %v4778
        %v6085 = vpop.f32.mrb[0].mxu0
        %v6086 = vadd.f32 %v5829, %v6085
        %v6087 = vpop.f32.mrb[0].mxu0
        %6088 = vmatprep.mubr.f32.mxu0 %v4788
        %6089 = vmatmul.mubr.f32.gmra.mrb[0].mxu0 %v4787
        %v6090 = vpop.f32.mrb[0].mxu0
        %v6091 = vadd.f32 %v5834, %v6090
        %v6092 = vpop.f32.mrb[0].mxu0
        %6093 = vmatprep.mubr.f32.mxu0 %v4797
        %6094 = vmatmul.mubr.f32.gmra.mrb[0].mxu0 %v4796
        %v6095 = vpop.f32.mrb[0].mxu0
        %v6096 = vadd.f32 %v5839, %v6095
        %v6097 = vpop.f32.mrb[0].mxu0
        %6098 = vmatprep.mubr.f32.mxu0 %v4806
        %6099 = vmatmul.mubr.f32.gmra.mrb[0].mxu0 %v4805
        %v6100 = vpop.f32.mrb[0].mxu0
        %v6101 = vadd.f32 %v5844, %v6100
        %v6102 = vpop.f32.mrb[0].mxu0
        %6103 = vmatprep.mubr.f32.mxu0 %v4815
        %6104 = vmatmul.mubr.f32.gmra.mrb[0].mxu0 %v4814
        %v6105 = vpop.f32.mrb[0].mxu0
        %v6106 = vadd.f32 %v5849, %v6105
        %v6107 = vpop.f32.mrb[0].mxu0
        %6108 = vmatprep.mubr.f32.mxu0 %v4824
        %6109 = vmatmul.mubr.f32.gmra.mrb[0].mxu0 %v4823
        %v6110 = vpop.f32.mrb[0].mxu0
        %v6111 = vadd.f32 %v5854, %v6110
        %v6112 = vpop.f32.mrb[0].mxu0
        %6113 = vmatprep.mubr.f32.mxu0 %v4833
        %6114 = vmatmul.mubr.f32.gmra.mrb[0].mxu0 %v4832
        %v6115 = vpop.f32.mrb[0].mxu0
        %v6116 = vadd.f32 %v5859, %v6115
        %v6117 = vpop.f32.mrb[0].mxu0
        %6118 = vmatprep.mubr.f32.mxu0 %v4842
        %6119 = vmatmul.mubr.f32.gmra.mrb[0].mxu0 %v4841
        %v6120 = vpop.f32.mrb[0].mxu0
        %v6121 = vadd.f32 %v5864, %v6120
        %v6122 = vpop.f32.mrb[0].mxu0
        %6123 = vmatprep.mubr.f32.mxu0 %v4851
        %6124 = vmatmul.mubr.f32.gmra.mrb[0].mxu0 %v4850
        %v6125 = vpop.f32.mrb[0].mxu0
        %v6126 = vadd.f32 %v5869, %v6125
        %v6127 = vpop.f32.mrb[0].mxu0
        %6128 = vmatprep.mubr.f32.mxu0 %v4860
        %6129 = vmatmul.mubr.f32.gmra.mrb[0].mxu0 %v4859
        %v6130 = vpop.f32.mrb[0].mxu0
        %v6131 = vadd.f32 %v5874, %v6130
        %v6132 = vpop.f32.mrb[0].mxu0
        %6133 = vmatprep.mubr.f32.mxu0 %v4869
        %6134 = vmatmul.mubr.f32.gmra.mrb[0].mxu0 %v4868
        %v6135 = vpop.f32.mrb[0].mxu0
        %v6136 = vadd.f32 %v5879, %v6135
        %v6137 = vpop.f32.mrb[0].mxu0
        %6138 = vmatprep.mubr.f32.mxu0 %v4878
        %6139 = vmatmul.mubr.f32.gmra.mrb[0].mxu0 %v4877
        %v6140 = vpop.f32.mrb[0].mxu0
        %v6141 = vadd.f32 %v5884, %v6140
        %v6142 = vpop.f32.mrb[0].mxu0
        %6143 = vmatprep.mubr.f32.mxu0 %v4887
        %6144 = vmatmul.mubr.f32.gmra.mrb[0].mxu0 %v4886
        %v6145 = vpop.f32.mrb[0].mxu0
        %v6146 = vadd.f32 %v5889, %v6145
        %v6147 = vpop.f32.mrb[0].mxu0
        %6148 = vmatprep.mubr.f32.mxu0 %v4896
        %6149 = vmatmul.mubr.f32.gmra.mrb[0].mxu0 %v4895
        %v6150 = vpop.f32.mrb[0].mxu0
        %v6151 = vadd.f32 %v5894, %v6150
        %v6152 = vpop.f32.mrb[0].mxu0
        %6153 = vmatprep.mubr.f32.mxu0 %v4905
        %6154 = vmatmul.mubr.f32.gmra.mrb[0].mxu0 %v4904
        %v6155 = vpop.f32.mrb[0].mxu0
        %v6156 = vadd.f32 %v5899, %v6155
        %v6157 = vpop.f32.mrb[0].mxu0
        %6158 = vmatprep.mubr.f32.mxu0 %v4914
        %6159 = vmatmul.mubr.f32.gmra.mrb[0].mxu0 %v4913
        %v6160 = vpop.f32.mrb[0].mxu0
        %v6161 = vadd.f32 %v5904, %v6160
        %v6162 = vpop.f32.mrb[0].mxu0
        %6163 = vmatprep.mubr.f32.mxu0 %v4923
        %6164 = vmatmul.mubr.f32.gmra.mrb[0].mxu0 %v4922
        %v6165 = vpop.f32.mrb[0].mxu0
        %v6166 = vadd.f32 %v5909, %v6165
        %v6167 = vpop.f32.mrb[0].mxu0
        %6168 = vmatprep.mubr.f32.mxu0 %v4932
        %6169 = vmatmul.mubr.f32.gmra.mrb[0].mxu0 %v4931
        %v6170 = vpop.f32.mrb[0].mxu0
        %v6171 = vadd.f32 %v5914, %v6170
        %v6172 = vpop.f32.mrb[0].mxu0
        %6173 = vmatprep.mubr.f32.mxu0 %v4941
        %6174 = vmatmul.mubr.f32.gmra.mrb[0].mxu0 %v4940
        %v6175 = vpop.f32.mrb[0].mxu0
        %v6176 = vadd.f32 %v5919, %v6175
        %v6177 = vpop.f32.mrb[0].mxu0
        %6178 = vmatprep.mubr.f32.mxu0 %v4950
        %6179 = vmatmul.mubr.f32.gmra.mrb[0].mxu0 %v4949
        %v6180 = vpop.f32.mrb[0].mxu0
        %v6181 = vadd.f32 %v5924, %v6180
        %v6182 = vpop.f32.mrb[0].mxu0
        %6183 = vmatprep.mubr.f32.mxu0 %v4959
        %6184 = vmatmul.mubr.f32.gmra.mrb[0].mxu0 %v4958
        %v6185 = vpop.f32.mrb[0].mxu0
        %v6186 = vadd.f32 %v5929, %v6185
        %v6187 = vpop.f32.mrb[0].mxu0
        %6188 = vmatprep.mubr.f32.mxu0 %v4968
        %6189 = vmatmul.mubr.f32.gmra.mrb[0].mxu0 %v4967
        %v6190 = vpop.f32.mrb[0].mxu0
        %v6191 = vadd.f32 %v5934, %v6190
        %v6192 = vpop.f32.mrb[0].mxu0
        %6193 = vmatprep.mubr.f32.mxu0 %v4977
        %6194 = vmatmul.mubr.f32.gmra.mrb[0].mxu0 %v4976
        %v6195 = vpop.f32.mrb[0].mxu0
        %v6196 = vadd.f32 %v5939, %v6195
        %v6197 = vpop.f32.mrb[0].mxu0
        %6198 = vmatprep.mubr.f32.mxu0 %v4986
        %6199 = vmatmul.mubr.f32.gmra.mrb[0].mxu0 %v4985
        %v6200 = vpop.f32.mrb[0].mxu0
        %v6201 = vadd.f32 %v5944, %v6200
        %v6202 = vpop.f32.mrb[0].mxu0
        %6203 = vmatprep.mubr.f32.mxu0 %v4995
        %6204 = vmatmul.mubr.f32.gmra.mrb[0].mxu0 %v4994
        %v6205 = vpop.f32.mrb[0].mxu0
        %v6206 = vadd.f32 %v5949, %v6205
        %v6207 = vpop.f32.mrb[0].mxu0
        %6208 = vmatprep.mubr.f32.mxu0 %v5004
        %6209 = vmatmul.mubr.f32.gmra.mrb[0].mxu0 %v5003
        %v6210 = vpop.f32.mrb[0].mxu0
        %v6211 = vadd.f32 %v5954, %v6210
        %v6212 = vpop.f32.mrb[0].mxu0
        %6213 = vmatprep.mubr.f32.mxu0 %v5013
        %6214 = vmatmul.mubr.f32.gmra.mrb[0].mxu0 %v5012
        %v6215 = vpop.f32.mrb[0].mxu0
        %v6216 = vadd.f32 %v5959, %v6215
        %v6217 = vpop.f32.mrb[0].mxu0
        %6218 = vmatprep.mubr.f32.mxu0 %v5022
        %6219 = vmatmul.mubr.f32.gmra.mrb[0].mxu0 %v5021
        %v6220 = vpop.f32.mrb[0].mxu0
        %v6221 = vadd.f32 %v5964, %v6220
        %v6222 = vpop.f32.mrb[0].mxu0
        %6223 = vmatprep.mubr.f32.mxu0 %v5031
        %6224 = vmatmul.mubr.f32.gmra.mrb[0].mxu0 %v5030
        %v6225 = vpop.f32.mrb[0].mxu0
        %v6226 = vadd.f32 %v5969, %v6225
        %v6227 = vpop.f32.mrb[0].mxu0
        %6228 = vmatprep.mubr.f32.mxu0 %v5040
        %6229 = vmatmul.mubr.f32.gmra.mrb[0].mxu0 %v5039
        %v6230 = vpop.f32.mrb[0].mxu0
        %v6231 = vadd.f32 %v5974, %v6230
        %v6232 = vpop.f32.mrb[0].mxu0
        %6233 = vmatprep.mubr.f32.mxu0 %v5049
        %6234 = vmatmul.mubr.f32.gmra.mrb[0].mxu0 %v5048
        %v6235 = vpop.f32.mrb[0].mxu0
        %v6236 = vpop.f32.mrb[0].mxu0
        %6237 = vmatprep.mubr.f32.mxu0 %v5058
        %6238 = vmatmul.mubr.f32.gmra.mrb[0].mxu0 %v5057
        %v6239 = vpop.f32.mrb[0].mxu0
        %v6240 = vpop.f32.mrb[0].mxu0
        %6241 = vmatprep.mubr.f32.mxu0 %v5067
        %6242 = vmatmul.mubr.f32.gmra.mrb[0].mxu0 %v5066
        %v6243 = vpop.f32.mrb[0].mxu0
        %v6244 = vpop.f32.mrb[0].mxu0
        %6245 = vmatprep.mubr.f32.mxu0 %v5076
        %6246 = vmatmul.mubr.f32.gmra.mrb[0].mxu0 %v5075
        %v6247 = vpop.f32.mrb[0].mxu0
        %v6248 = vpop.f32.mrb[0].mxu0
        %6249 = vdwg.mxu0
        %6250 = vmatprep.subr.mxu0 0.0
        %6251 = vmatpush1.msra.mxu0 %v5206
        %6252 = vmatprep.subr.mxu0 0.0
        %6253 = vmatpush1.msra.mxu0 %v5207
        %6254 = vmatprep.subr.mxu0 0.0
        %6255 = vmatpush1.msra.mxu0 %v5208
        %6256 = vmatprep.subr.mxu0 0.0
        %6257 = vmatpush1.msra.mxu0 %v5209
        %6258 = vmatprep.subr.mxu0 0.0
        %6259 = vmatpush1.msra.mxu0 %v5210
        %6260 = vmatprep.subr.mxu0 0.0
        %6261 = vmatpush1.msra.mxu0 %v5211
        %6262 = vmatprep.subr.mxu0 0.0
        %6263 = vmatpush1.msra.mxu0 %v5212
        %6264 = vmatprep.subr.mxu0 0.0
        %6265 = vmatpush1.msra.mxu0 %v5213
        %6266 = vmatprep.subr.mxu0 0.0
        %6267 = vmatpush1.msra.mxu0 %v5214
        %6268 = vmatprep.subr.mxu0 0.0
        %6269 = vmatpush1.msra.mxu0 %v5215
        %6270 = vmatprep.subr.mxu0 0.0
        %6271 = vmatpush1.msra.mxu0 %v5216
        %6272 = vmatprep.subr.mxu0 0.0
        %6273 = vmatpush1.msra.mxu0 %v5217
        %6274 = vmatprep.subr.mxu0 0.0
        %6275 = vmatpush1.msra.mxu0 %v5218
        %6276 = vmatprep.subr.mxu0 0.0
        %6277 = vmatpush1.msra.mxu0 %v5219
        %6278 = vmatprep.subr.mxu0 0.0
        %6279 = vmatpush1.msra.mxu0 %v5220
        %6280 = vmatprep.subr.mxu0 0.0
        %6281 = vmatpush1.msra.mxu0 %v5221
        %6282 = vmatprep.subr.mxu0 0.0
        %6283 = vmatpush1.msra.mxu0 0.0
        %6284 = vmatprep.subr.mxu0 0.0
        %6285 = vmatpush1.msra.mxu0 0.0
        %6286 = vmatprep.subr.mxu0 0.0
        %6287 = vmatpush1.msra.mxu0 0.0
        %6288 = vmatprep.subr.mxu0 0.0
        %6289 = vmatpush1.msra.mxu0 0.0
        %6290 = vmatprep.subr.mxu0 0.0
        %6291 = vmatpush1.msra.mxu0 0.0
        %6292 = vmatprep.subr.mxu0 0.0
        %6293 = vmatpush1.msra.mxu0 0.0
        %6294 = vmatprep.subr.mxu0 0.0
        %6295 = vmatpush1.msra.mxu0 0.0
        %6296 = vmatprep.subr.mxu0 0.0
        %6297 = vmatpush1.msra.mxu0 0.0
        %6298 = vmatprep.subr.mxu0 0.0
        %6299 = vmatpush1.msra.mxu0 0.0
        %6300 = vmatprep.subr.mxu0 0.0
        %6301 = vmatpush1.msra.mxu0 0.0
        %6302 = vmatprep.subr.mxu0 0.0
        %6303 = vmatpush1.msra.mxu0 0.0
        %6304 = vmatprep.subr.mxu0 0.0
        %6305 = vmatpush1.msra.mxu0 0.0
        %6306 = vmatprep.subr.mxu0 0.0
        %6307 = vmatpush1.msra.mxu0 0.0
        %6308 = vmatprep.subr.mxu0 0.0
        %6309 = vmatpush1.msra.mxu0 0.0
        %6310 = vmatprep.subr.mxu0 0.0
        %6311 = vmatpush1.msra.mxu0 0.0
        %6312 = vmatprep.subr.mxu0 0.0
        %6313 = vmatpush1.msra.mxu0 0.0
        %6314 = vmatprep.mubr.f32.mxu0 0.0
        %6315 = vmatmul.mubr.f32.gmra.mrb[0].mxu0 %v4726
        %v6316 = vpop.f32.mrb[0].mxu0
        %v6317 = vpop.f32.mrb[0].mxu0
        %6318 = vmatprep.mubr.f32.mxu0 0.0
        %6319 = vmatmul.mubr.f32.gmra.mrb[0].mxu0 %v4735
        %v6320 = vpop.f32.mrb[0].mxu0
        %v6321 = vpop.f32.mrb[0].mxu0
        %6322 = vmatprep.mubr.f32.mxu0 0.0
        %6323 = vmatmul.mubr.f32.gmra.mrb[0].mxu0 %v4744
        %v6324 = vpop.f32.mrb[0].mxu0
        %v6325 = vpop.f32.mrb[0].mxu0
        %6326 = vmatprep.mubr.f32.mxu0 0.0
        %6327 = vmatmul.mubr.f32.gmra.mrb[0].mxu0 %v4753
        %v6328 = vpop.f32.mrb[0].mxu0
        %v6329 = vpop.f32.mrb[0].mxu0
        %6330 = vmatprep.mubr.f32.mxu0 0.0
        %6331 = vmatmul.mubr.f32.gmra.mrb[0].mxu0 %v4762
        %v6332 = vpop.f32.mrb[0].mxu0
        %v6333 = vadd.f32 %v6076, %v6332
        %v6334 = vpop.f32.mrb[0].mxu0
        %6335 = vmatprep.mubr.f32.mxu0 0.0
        %6336 = vmatmul.mubr.f32.gmra.mrb[0].mxu0 %v4771
        %v6337 = vpop.f32.mrb[0].mxu0
        %v6338 = vadd.f32 %v6081, %v6337
        %v6339 = vpop.f32.mrb[0].mxu0
        %6340 = vmatprep.mubr.f32.mxu0 0.0
        %6341 = vmatmul.mubr.f32.gmra.mrb[0].mxu0 %v4780
        %v6342 = vpop.f32.mrb[0].mxu0
        %v6343 = vadd.f32 %v6086, %v6342
        %v6344 = vpop.f32.mrb[0].mxu0
        %6345 = vmatprep.mubr.f32.mxu0 0.0
        %6346 = vmatmul.mubr.f32.gmra.mrb[0].mxu0 %v4789
        %v6347 = vpop.f32.mrb[0].mxu0
        %v6348 = vadd.f32 %v6091, %v6347
        %v6349 = vpop.f32.mrb[0].mxu0
        %6350 = vmatprep.mubr.f32.mxu0 0.0
        %6351 = vmatmul.mubr.f32.gmra.mrb[0].mxu0 %v4798
        %v6352 = vpop.f32.mrb[0].mxu0
        %v6353 = vadd.f32 %v6096, %v6352
        %v6354 = vpop.f32.mrb[0].mxu0
        %6355 = vmatprep.mubr.f32.mxu0 0.0
        %6356 = vmatmul.mubr.f32.gmra.mrb[0].mxu0 %v4807
        %v6357 = vpop.f32.mrb[0].mxu0
        %v6358 = vadd.f32 %v6101, %v6357
        %v6359 = vpop.f32.mrb[0].mxu0
        %6360 = vmatprep.mubr.f32.mxu0 0.0
        %6361 = vmatmul.mubr.f32.gmra.mrb[0].mxu0 %v4816
        %v6362 = vpop.f32.mrb[0].mxu0
        %v6363 = vadd.f32 %v6106, %v6362
        %v6364 = vpop.f32.mrb[0].mxu0
        %6365 = vmatprep.mubr.f32.mxu0 0.0
        %6366 = vmatmul.mubr.f32.gmra.mrb[0].mxu0 %v4825
        %v6367 = vpop.f32.mrb[0].mxu0
        %v6368 = vadd.f32 %v6111, %v6367
        %v6369 = vpop.f32.mrb[0].mxu0
        %6370 = vmatprep.mubr.f32.mxu0 0.0
        %6371 = vmatmul.mubr.f32.gmra.mrb[0].mxu0 %v4834
        %v6372 = vpop.f32.mrb[0].mxu0
        %v6373 = vadd.f32 %v6116, %v6372
        %v6374 = vpop.f32.mrb[0].mxu0
        %6375 = vmatprep.mubr.f32.mxu0 0.0
        %6376 = vmatmul.mubr.f32.gmra.mrb[0].mxu0 %v4843
        %v6377 = vpop.f32.mrb[0].mxu0
        %v6378 = vadd.f32 %v6121, %v6377
        %v6379 = vpop.f32.mrb[0].mxu0
        %6380 = vmatprep.mubr.f32.mxu0 0.0
        %6381 = vmatmul.mubr.f32.gmra.mrb[0].mxu0 %v4852
        %v6382 = vpop.f32.mrb[0].mxu0
        %v6383 = vadd.f32 %v6126, %v6382
        %v6384 = vpop.f32.mrb[0].mxu0
        %6385 = vmatprep.mubr.f32.mxu0 0.0
        %6386 = vmatmul.mubr.f32.gmra.mrb[0].mxu0 %v4861
        %v6387 = vpop.f32.mrb[0].mxu0
        %v6388 = vadd.f32 %v6131, %v6387
        %v6389 = vpop.f32.mrb[0].mxu0
        %6390 = vmatprep.mubr.f32.mxu0 0.0
        %6391 = vmatmul.mubr.f32.gmra.mrb[0].mxu0 %v4870
        %v6392 = vpop.f32.mrb[0].mxu0
        %v6393 = vadd.f32 %v6136, %v6392
        %v6394 = vpop.f32.mrb[0].mxu0
        %6395 = vmatprep.mubr.f32.mxu0 0.0
        %6396 = vmatmul.mubr.f32.gmra.mrb[0].mxu0 %v4879
        %v6397 = vpop.f32.mrb[0].mxu0
        %v6398 = vadd.f32 %v6141, %v6397
        %v6399 = vpop.f32.mrb[0].mxu0
        %6400 = vmatprep.mubr.f32.mxu0 0.0
        %6401 = vmatmul.mubr.f32.gmra.mrb[0].mxu0 %v4888
        %v6402 = vpop.f32.mrb[0].mxu0
        %v6403 = vadd.f32 %v6146, %v6402
        %v6404 = vpop.f32.mrb[0].mxu0
        %6405 = vmatprep.mubr.f32.mxu0 0.0
        %6406 = vmatmul.mubr.f32.gmra.mrb[0].mxu0 %v4897
        %v6407 = vpop.f32.mrb[0].mxu0
        %v6408 = vadd.f32 %v6151, %v6407
        %v6409 = vpop.f32.mrb[0].mxu0
        %6410 = vmatprep.mubr.f32.mxu0 0.0
        %6411 = vmatmul.mubr.f32.gmra.mrb[0].mxu0 %v4906
        %v6412 = vpop.f32.mrb[0].mxu0
        %v6413 = vadd.f32 %v6156, %v6412
        %v6414 = vpop.f32.mrb[0].mxu0
        %6415 = vmatprep.mubr.f32.mxu0 0.0
        %6416 = vmatmul.mubr.f32.gmra.mrb[0].mxu0 %v4915
        %v6417 = vpop.f32.mrb[0].mxu0
        %v6418 = vadd.f32 %v6161, %v6417
        %v6419 = vpop.f32.mrb[0].mxu0
        %6420 = vmatprep.mubr.f32.mxu0 0.0
        %6421 = vmatmul.mubr.f32.gmra.mrb[0].mxu0 %v4924
        %v6422 = vpop.f32.mrb[0].mxu0
        %v6423 = vadd.f32 %v6166, %v6422
        %v6424 = vpop.f32.mrb[0].mxu0
        %6425 = vmatprep.mubr.f32.mxu0 0.0
        %6426 = vmatmul.mubr.f32.gmra.mrb[0].mxu0 %v4933
        %v6427 = vpop.f32.mrb[0].mxu0
        %v6428 = vadd.f32 %v6171, %v6427
        %v6429 = vpop.f32.mrb[0].mxu0
        %6430 = vmatprep.mubr.f32.mxu0 0.0
        %6431 = vmatmul.mubr.f32.gmra.mrb[0].mxu0 %v4942
        %v6432 = vpop.f32.mrb[0].mxu0
        %v6433 = vadd.f32 %v6176, %v6432
        %v6434 = vpop.f32.mrb[0].mxu0
        %6435 = vmatprep.mubr.f32.mxu0 0.0
        %6436 = vmatmul.mubr.f32.gmra.mrb[0].mxu0 %v4951
        %v6437 = vpop.f32.mrb[0].mxu0
        %v6438 = vadd.f32 %v6181, %v6437
        %v6439 = vpop.f32.mrb[0].mxu0
        %6440 = vmatprep.mubr.f32.mxu0 0.0
        %6441 = vmatmul.mubr.f32.gmra.mrb[0].mxu0 %v4960
        %v6442 = vpop.f32.mrb[0].mxu0
        %v6443 = vadd.f32 %v6186, %v6442
        %v6444 = vpop.f32.mrb[0].mxu0
        %6445 = vmatprep.mubr.f32.mxu0 0.0
        %6446 = vmatmul.mubr.f32.gmra.mrb[0].mxu0 %v4969
        %v6447 = vpop.f32.mrb[0].mxu0
        %v6448 = vadd.f32 %v6191, %v6447
        %v6449 = vpop.f32.mrb[0].mxu0
        %6450 = vmatprep.mubr.f32.mxu0 0.0
        %6451 = vmatmul.mubr.f32.gmra.mrb[0].mxu0 %v4978
        %v6452 = vpop.f32.mrb[0].mxu0
        %v6453 = vadd.f32 %v6196, %v6452
        %v6454 = vpop.f32.mrb[0].mxu0
        %6455 = vmatprep.mubr.f32.mxu0 0.0
        %6456 = vmatmul.mubr.f32.gmra.mrb[0].mxu0 %v4987
        %v6457 = vpop.f32.mrb[0].mxu0
        %v6458 = vadd.f32 %v6201, %v6457
        %v6459 = vpop.f32.mrb[0].mxu0
        %6460 = vmatprep.mubr.f32.mxu0 0.0
        %6461 = vmatmul.mubr.f32.gmra.mrb[0].mxu0 %v4996
        %v6462 = vpop.f32.mrb[0].mxu0
        %v6463 = vadd.f32 %v6206, %v6462
        %v6464 = vpop.f32.mrb[0].mxu0
        %6465 = vmatprep.mubr.f32.mxu0 0.0
        %6466 = vmatmul.mubr.f32.gmra.mrb[0].mxu0 %v5005
        %v6467 = vpop.f32.mrb[0].mxu0
        %v6468 = vadd.f32 %v6211, %v6467
        %v6469 = vpop.f32.mrb[0].mxu0
        %6470 = vmatprep.mubr.f32.mxu0 0.0
        %6471 = vmatmul.mubr.f32.gmra.mrb[0].mxu0 %v5014
        %v6472 = vpop.f32.mrb[0].mxu0
        %v6473 = vadd.f32 %v6216, %v6472
        %v6474 = vpop.f32.mrb[0].mxu0
        %6475 = vmatprep.mubr.f32.mxu0 0.0
        %6476 = vmatmul.mubr.f32.gmra.mrb[0].mxu0 %v5023
        %v6477 = vpop.f32.mrb[0].mxu0
        %v6478 = vadd.f32 %v6221, %v6477
        %v6479 = vpop.f32.mrb[0].mxu0
        %6480 = vmatprep.mubr.f32.mxu0 0.0
        %6481 = vmatmul.mubr.f32.gmra.mrb[0].mxu0 %v5032
        %v6482 = vpop.f32.mrb[0].mxu0
        %v6483 = vadd.f32 %v6226, %v6482
        %v6484 = vpop.f32.mrb[0].mxu0
        %6485 = vmatprep.mubr.f32.mxu0 0.0
        %6486 = vmatmul.mubr.f32.gmra.mrb[0].mxu0 %v5041
        %v6487 = vpop.f32.mrb[0].mxu0
        %v6488 = vadd.f32 %v6231, %v6487
        %v6489 = vpop.f32.mrb[0].mxu0
        %6490 = vmatprep.mubr.f32.mxu0 0.0
        %6491 = vmatmul.mubr.f32.gmra.mrb[0].mxu0 %v5050
        %v6492 = vpop.f32.mrb[0].mxu0
        %v6493 = vpop.f32.mrb[0].mxu0
        %6494 = vmatprep.mubr.f32.mxu0 0.0
        %6495 = vmatmul.mubr.f32.gmra.mrb[0].mxu0 %v5059
        %v6496 = vpop.f32.mrb[0].mxu0
        %v6497 = vpop.f32.mrb[0].mxu0
        %6498 = vmatprep.mubr.f32.mxu0 0.0
        %6499 = vmatmul.mubr.f32.gmra.mrb[0].mxu0 %v5068
        %v6500 = vpop.f32.mrb[0].mxu0
        %v6501 = vpop.f32.mrb[0].mxu0
        %6502 = vmatprep.mubr.f32.mxu0 0.0
        %6503 = vmatmul.mubr.f32.gmra.mrb[0].mxu0 %v5077
        %v6504 = vpop.f32.mrb[0].mxu0
        %v6505 = vpop.f32.mrb[0].mxu0
        %6506 = vdwg.mxu0
        %v6507 = vld [vmem:[#allocation16] sm:$0x1]
        %v6509 = vlaneseq
        %v6510 = vshrl.u32 %v6509, 7
        %v6511 = vsub.s32 0, %v6510
        %v6512 = vrot.slane %v6507, %v6511
        %v6514 = vmul.f32 %v6333, %v6512
        %v6515 = vmul.f32 %v6338, %v6512
        %v6516 = vmul.f32 %v6343, %v6512
        %v6517 = vmul.f32 %v6348, %v6512
        %v6518 = vmul.f32 %v6353, %v6512
        %v6519 = vmul.f32 %v6358, %v6512
        %v6520 = vmul.f32 %v6363, %v6512
        %v6521 = vmul.f32 %v6368, %v6512
        %v6522 = vmul.f32 %v6373, %v6512
        %v6523 = vmul.f32 %v6378, %v6512
        %v6524 = vmul.f32 %v6383, %v6512
        %v6525 = vmul.f32 %v6388, %v6512
        %v6526 = vmul.f32 %v6393, %v6512
        %v6527 = vmul.f32 %v6398, %v6512
        %v6528 = vmul.f32 %v6403, %v6512
        %v6529 = vmul.f32 %v6408, %v6512
        %v6530 = vmul.f32 %v6413, %v6512
        %v6531 = vmul.f32 %v6418, %v6512
        %v6532 = vmul.f32 %v6423, %v6512
        %v6533 = vmul.f32 %v6428, %v6512
        %v6534 = vmul.f32 %v6433, %v6512
        %v6535 = vmul.f32 %v6438, %v6512
        %v6536 = vmul.f32 %v6443, %v6512
        %v6537 = vmul.f32 %v6448, %v6512
        %v6538 = vmul.f32 %v6453, %v6512
        %v6539 = vmul.f32 %v6458, %v6512
        %v6540 = vmul.f32 %v6463, %v6512
        %v6541 = vmul.f32 %v6468, %v6512
        %v6542 = vmul.f32 %v6473, %v6512
        %v6543 = vmul.f32 %v6478, %v6512
        %v6544 = vmul.f32 %v6483, %v6512
        %v6545 = vmul.f32 %v6488, %v6512
        %v6546 = vld [vmem:[#allocation17] sm:$0x1]
        %v6548 = vlaneseq
        %v6549 = vshrl.u32 %v6548, 7
        %v6550 = vsub.s32 0, %v6549
        %v6551 = vrot.slane %v6546, %v6550
        %v6553 = vadd.f32 %v6514, %v6551
        %v6554 = vadd.f32 %v6515, %v6551
        %v6555 = vadd.f32 %v6516, %v6551
        %v6556 = vadd.f32 %v6517, %v6551
        %v6557 = vadd.f32 %v6518, %v6551
        %v6558 = vadd.f32 %v6519, %v6551
        %v6559 = vadd.f32 %v6520, %v6551
        %v6560 = vadd.f32 %v6521, %v6551
        %v6561 = vadd.f32 %v6522, %v6551
        %v6562 = vadd.f32 %v6523, %v6551
        %v6563 = vadd.f32 %v6524, %v6551
        %v6564 = vadd.f32 %v6525, %v6551
        %v6565 = vadd.f32 %v6526, %v6551
        %v6566 = vadd.f32 %v6527, %v6551
        %v6567 = vadd.f32 %v6528, %v6551
        %v6568 = vadd.f32 %v6529, %v6551
        %v6569 = vadd.f32 %v6530, %v6551
        %v6570 = vadd.f32 %v6531, %v6551
        %v6571 = vadd.f32 %v6532, %v6551
        %v6572 = vadd.f32 %v6533, %v6551
        %v6573 = vadd.f32 %v6534, %v6551
        %v6574 = vadd.f32 %v6535, %v6551
        %v6575 = vadd.f32 %v6536, %v6551
        %v6576 = vadd.f32 %v6537, %v6551
        %v6577 = vadd.f32 %v6538, %v6551
        %v6578 = vadd.f32 %v6539, %v6551
        %v6579 = vadd.f32 %v6540, %v6551
        %v6580 = vadd.f32 %v6541, %v6551
        %v6581 = vadd.f32 %v6542, %v6551
        %v6582 = vadd.f32 %v6543, %v6551
        %v6583 = vadd.f32 %v6544, %v6551
        %v6584 = vadd.f32 %v6545, %v6551
        %s6585 = scalar_lea.vmem [#allocation2], 32
        %v6586 = vld [vmem:[%s6585] sm:$0xff]
        %v6587 = vld [vmem:[%s6585 + $0x8] sm:$0xff]
        %v6588 = vld [vmem:[%s6585 + $0x10] sm:$0xff]
        %v6589 = vld [vmem:[%s6585 + $0x18] sm:$0xff]
        %v6590 = vld [vmem:[%s6585 + $0x20] sm:$0xff]
        %v6591 = vld [vmem:[%s6585 + $0x28] sm:$0xff]
        %v6592 = vld [vmem:[%s6585 + $0x30] sm:$0xff]
        %v6593 = vld [vmem:[%s6585 + $0x38] sm:$0xff]
        %v6594 = vld [vmem:[%s6585 + $0x40] sm:$0xff]
        %v6595 = vld [vmem:[%s6585 + $0x48] sm:$0xff]
        %v6596 = vld [vmem:[%s6585 + $0x50] sm:$0xff]
        %v6597 = vld [vmem:[%s6585 + $0x58] sm:$0xff]
        %v6598 = vld [vmem:[%s6585 + $0x60] sm:$0xff]
        %v6599 = vld [vmem:[%s6585 + $0x68] sm:$0xff]
        %v6600 = vld [vmem:[%s6585 + $0x70] sm:$0xff]
        %v6601 = vld [vmem:[%s6585 + $0x78] sm:$0xff]
        %v6602 = vld [vmem:[%s6585 + $0x80] sm:$0xff]
        %v6603 = vld [vmem:[%s6585 + $0x88] sm:$0xff]
        %v6604 = vld [vmem:[%s6585 + $0x90] sm:$0xff]
        %v6605 = vld [vmem:[%s6585 + $0x98] sm:$0xff]
        %v6606 = vld [vmem:[%s6585 + $0xa0] sm:$0xff]
        %v6607 = vld [vmem:[%s6585 + $0xa8] sm:$0xff]
        %v6608 = vld [vmem:[%s6585 + $0xb0] sm:$0xff]
        %v6609 = vld [vmem:[%s6585 + $0xb8] sm:$0xff]
        %v6610 = vld [vmem:[%s6585 + $0xc0] sm:$0xff]
        %v6611 = vld [vmem:[%s6585 + $0xc8] sm:$0xff]
        %v6612 = vld [vmem:[%s6585 + $0xd0] sm:$0xff]
        %v6613 = vld [vmem:[%s6585 + $0xd8] sm:$0xff]
        %v6614 = vld [vmem:[%s6585 + $0xe0] sm:$0xff]
        %v6615 = vld [vmem:[%s6585 + $0xe8] sm:$0xff]
        %v6616 = vld [vmem:[%s6585 + $0xf0] sm:$0xff]
        %v6617 = vld [vmem:[%s6585 + $0xf8] sm:$0xff]
        %v6618 = vadd.f32 %v6553, %v6586
        %v6619 = vadd.f32 %v6554, %v6587
        %v6620 = vadd.f32 %v6555, %v6588
        %v6621 = vadd.f32 %v6556, %v6589
        %v6622 = vadd.f32 %v6557, %v6590
        %v6623 = vadd.f32 %v6558, %v6591
        %v6624 = vadd.f32 %v6559, %v6592
        %v6625 = vadd.f32 %v6560, %v6593
        %v6626 = vadd.f32 %v6561, %v6594
        %v6627 = vadd.f32 %v6562, %v6595
        %v6628 = vadd.f32 %v6563, %v6596
        %v6629 = vadd.f32 %v6564, %v6597
        %v6630 = vadd.f32 %v6565, %v6598
        %v6631 = vadd.f32 %v6566, %v6599
        %v6632 = vadd.f32 %v6567, %v6600
        %v6633 = vadd.f32 %v6568, %v6601
        %v6634 = vadd.f32 %v6569, %v6602
        %v6635 = vadd.f32 %v6570, %v6603
        %v6636 = vadd.f32 %v6571, %v6604
        %v6637 = vadd.f32 %v6572, %v6605
        %v6638 = vadd.f32 %v6573, %v6606
        %v6639 = vadd.f32 %v6574, %v6607
        %v6640 = vadd.f32 %v6575, %v6608
        %v6641 = vadd.f32 %v6576, %v6609
        %v6642 = vadd.f32 %v6577, %v6610
        %v6643 = vadd.f32 %v6578, %v6611
        %v6644 = vadd.f32 %v6579, %v6612
        %v6645 = vadd.f32 %v6580, %v6613
        %v6646 = vadd.f32 %v6581, %v6614
        %v6647 = vadd.f32 %v6582, %v6615
        %v6648 = vadd.f32 %v6583, %v6616
        %v6649 = vadd.f32 %v6584, %v6617
        %v6650 = vmax.f32 %v6618, 0.0
        %v6651 = vmax.f32 %v6619, 0.0
        %v6652 = vmax.f32 %v6620, 0.0
        %v6653 = vmax.f32 %v6621, 0.0
        %v6654 = vmax.f32 %v6622, 0.0
        %v6655 = vmax.f32 %v6623, 0.0
        %v6656 = vmax.f32 %v6624, 0.0
        %v6657 = vmax.f32 %v6625, 0.0
        %v6658 = vmax.f32 %v6626, 0.0
        %v6659 = vmax.f32 %v6627, 0.0
        %v6660 = vmax.f32 %v6628, 0.0
        %v6661 = vmax.f32 %v6629, 0.0
        %v6662 = vmax.f32 %v6630, 0.0
        %v6663 = vmax.f32 %v6631, 0.0
        %v6664 = vmax.f32 %v6632, 0.0
        %v6665 = vmax.f32 %v6633, 0.0
        %v6666 = vmax.f32 %v6634, 0.0
        %v6667 = vmax.f32 %v6635, 0.0
        %v6668 = vmax.f32 %v6636, 0.0
        %v6669 = vmax.f32 %v6637, 0.0
        %v6670 = vmax.f32 %v6638, 0.0
        %v6671 = vmax.f32 %v6639, 0.0
        %v6672 = vmax.f32 %v6640, 0.0
        %v6673 = vmax.f32 %v6641, 0.0
        %v6674 = vmax.f32 %v6642, 0.0
        %v6675 = vmax.f32 %v6643, 0.0
        %v6676 = vmax.f32 %v6644, 0.0
        %v6677 = vmax.f32 %v6645, 0.0
        %v6678 = vmax.f32 %v6646, 0.0
        %v6679 = vmax.f32 %v6647, 0.0
        %v6680 = vmax.f32 %v6648, 0.0
        %v6681 = vmax.f32 %v6649, 0.0
        %6682 = vst [vmem:[%s407] sm:$0xff] %v6650
        %6683 = vst [vmem:[%s407 + $0x8] sm:$0xff] %v6651
        %6684 = vst [vmem:[%s407 + $0x10] sm:$0xff] %v6652
        %6685 = vst [vmem:[%s407 + $0x18] sm:$0xff] %v6653
        %6686 = vst [vmem:[%s407 + $0x20] sm:$0xff] %v6654
        %6687 = vst [vmem:[%s407 + $0x28] sm:$0xff] %v6655
        %6688 = vst [vmem:[%s407 + $0x30] sm:$0xff] %v6656
        %6689 = vst [vmem:[%s407 + $0x38] sm:$0xff] %v6657
        %6690 = vst [vmem:[%s407 + $0x40] sm:$0xff] %v6658
        %6691 = vst [vmem:[%s407 + $0x48] sm:$0xff] %v6659
        %6692 = vst [vmem:[%s407 + $0x50] sm:$0xff] %v6660
        %6693 = vst [vmem:[%s407 + $0x58] sm:$0xff] %v6661
        %6694 = vst [vmem:[%s407 + $0x60] sm:$0xff] %v6662
        %6695 = vst [vmem:[%s407 + $0x68] sm:$0xff] %v6663
        %6696 = vst [vmem:[%s407 + $0x70] sm:$0xff] %v6664
        %6697 = vst [vmem:[%s407 + $0x78] sm:$0xff] %v6665
        %6698 = vst [vmem:[%s407 + $0x80] sm:$0xff] %v6666
        %6699 = vst [vmem:[%s407 + $0x88] sm:$0xff] %v6667
        %6700 = vst [vmem:[%s407 + $0x90] sm:$0xff] %v6668
        %6701 = vst [vmem:[%s407 + $0x98] sm:$0xff] %v6669
        %6702 = vst [vmem:[%s407 + $0xa0] sm:$0xff] %v6670
        %6703 = vst [vmem:[%s407 + $0xa8] sm:$0xff] %v6671
        %6704 = vst [vmem:[%s407 + $0xb0] sm:$0xff] %v6672
        %6705 = vst [vmem:[%s407 + $0xb8] sm:$0xff] %v6673
        %6706 = vst [vmem:[%s407 + $0xc0] sm:$0xff] %v6674
        %6707 = vst [vmem:[%s407 + $0xc8] sm:$0xff] %v6675
        %6708 = vst [vmem:[%s407 + $0xd0] sm:$0xff] %v6676
        %6709 = vst [vmem:[%s407 + $0xd8] sm:$0xff] %v6677
        %6710 = vst [vmem:[%s407 + $0xe0] sm:$0xff] %v6678
        %6711 = vst [vmem:[%s407 + $0xe8] sm:$0xff] %v6679
        %6712 = vst [vmem:[%s407 + $0xf0] sm:$0xff] %v6680
        %6713 = vst [vmem:[%s407 + $0xf8] sm:$0xff] %v6681
        %s6714 = sand.u32 %s218, 1
        %s6715 = scalar_lea.sflag [#allocation7], %s6714
        %s6716 = sand.u32 %s218, 1
        %s6717 = smul.addr %s6716, 256
        %s6718 = scalar_lea.vmem [#allocation19], %s6717
        // Predicated region
        $region89: #{tpu_custom_call.1} parent=51 // pred_check
          %p6719 = pneg %p228
        $region90: #{tpu_custom_call.1} parent=51 // pred_check_branch
          %6721 = sbr.rel (%p6719) target = $region92
        $region91: #{tpu_custom_call.1} parent=51 // pred_region
          %s6722 = smul.u32 16, %s33
          %s6724 = ssub.s32 4096, 4096
          %6725 = vsyncadd %s6715, %s6724
          %s6726 = smul.addr %s6722, 2
          %s6727 = smul.addr %s32, 32
          %s6728 = sadd.s32 %s6726, %s6727
          %s6729 = smul.addr %s6728, 128
          %s6730 = scalar_lea.hbm %s9, %s6729
          %s6731 = sshll.u32 %s6718, 4
          %s6732 = int_to_ptr.vmem [resolvable:$true] %s6731
          %6737 = dma.vmem_to_hbm [thread:$0]  %s6732, 4096, %s6730, %s6715, 128, 128, 8
        $region92: #{tpu_custom_call.1} parent=51 // pred_fallthru
          _
      $region52: #{tpu_custom_call.1} parent=5 // pred_fallthru
        _
      %p6738 = scmp.le.s32.totalorder 2, %s23
      // Predicated region
      $region93: #{tpu_custom_call.1} parent=5 // pred_check
        %p6739 = pneg %p6738
      $region94: #{tpu_custom_call.1} parent=5 // pred_check_branch
        %6741 = sbr.rel (%p6739) target = $region96
      $region95: #{tpu_custom_call.1} parent=5 // pred_region
        %s6742 = ssub.s32 %s23, 2
        // Predicated region
        $region97: #{tpu_custom_call.1} parent=95 // pred_check
          %p6743 = pneg %p234
        $region98: #{tpu_custom_call.1} parent=95 // pred_check_branch
          %6745 = sbr.rel (%p6743) target = $region100
        $region99: #{tpu_custom_call.1} parent=95 // pred_region
          %s6746 = sand.u32 %s219, 1
          %s6747 = scalar_lea.sflag [#allocation7], %s6746
          %s6748 = sand.u32 %s219, 1
          %s6749 = smul.addr %s6748, 256
          %s6750 = scalar_lea.vmem [#allocation19], %s6749
          %6751 = dma.done %s6747, 4096
        $region100: #{tpu_custom_call.1} parent=95 // pred_fallthru
          _
      $region96: #{tpu_custom_call.1} parent=5 // pred_fallthru
        _
    $region6: #{tpu_custom_call.1} parent=1 // loop_footer
      %s27 = sadd.s32 1, %s23
    $region7: #{tpu_custom_call.1} parent=1 // loop_footer_branch
      %22 = sbr.rel target = $region3
    $region8: #{tpu_custom_call.1} parent=1 // loop_exit
      _
    %6752 = vsyncpa [#allocation6], 1
    %s6753 = scalar_lea.sflag [#allocation6], 1
    %6754 = vsyncpa %s6753, 1
    %6755 = vsyncpa [#allocation9], 1
    %6756 = vsyncpa [#allocation12], 1
    %6757 = vsyncpa [#allocation15], 1
    %6758 = vsyncpa [#allocation18], 1
    %6759 = vsyncpa [#allocation7], 1
    %s6760 = scalar_lea.sflag [#allocation7], 1
    %6761 = vsyncpa %s6760, 1
  %6762 = vsyncmov [#allocation4]
  %s6763 = vpop.sfrf %6762
  %p6764 = scmp.eq.s32.totalorder %s6763, 0
  %p6765 = pneg %p6764
  %6767 = shalt.err (%p6765)

</llo_original>
